<compile_context>
chip_gen: v5e
topology: v5e:2x2
jax: 0.10.0
libtpu: 0.0.40
codegen_flags: <defaults>
</compile_context>

<pallas_src>
import functools

import jax
import jax.numpy as jnp
import numpy as np
from jax.experimental import pallas as pl
from jax.experimental.pallas import tpu as pltpu


# ----------------------------------------------------------------------------- kernel
def stumble_kernel(x_ref, w_ih0_ref, w_ih_rest_ref, w_hh_ref, b_ref,
                   w_lin_ref, b_lin_ref, y_ref, hout_scr, *, n_layers, hidden_p):
    """Whole forward pass in one invocation.

    x_ref:        (S, B, F)        f32   raw (unpadded) features
    w_ih0_ref:    (F, 4*Hp)        f32   layer-0 input->hidden (gate blocks lane-aligned)
    w_ih_rest_ref:(max(L-1,1), Hp, 4*Hp) bf16
    w_hh_ref:     (L, Hp, 4*Hp)    bf16
    b_ref:        (L, 1, 4*Hp)     f32   (b_ih + b_hh), zero in padded lanes
    w_lin_ref:    (1, Hp)          f32   final linear row (zero-padded)
    b_lin_ref:    (1, 1)           f32   SMEM scalar
    y_ref:        (S, B)           f32   sigmoid(logits), lane-dense-ish output slab
    hout_scr:     (S, B, Hp)       f32   top-layer hidden state per timestep
    """
    S = x_ref.shape[0]
    B = x_ref.shape[1]
    Hp = hidden_p

    def step(t, carry):
        hs, cs = carry                      # tuples of (B, Hp) f32 per layer
        inp = x_ref[t]                      # (B, F) f32
        new_h = []
        new_c = []
        for l in range(n_layers):           # static unrolled layer loop
            if l == 0:
                g_ih = jnp.dot(inp, w_ih0_ref[...],
                               preferred_element_type=jnp.float32)
            else:
                g_ih = jnp.dot(inp, w_ih_rest_ref[l - 1],
                               preferred_element_type=jnp.float32)
            g_hh = jnp.dot(hs[l].astype(jnp.bfloat16), w_hh_ref[l],
                           preferred_element_type=jnp.float32)
            gates = g_ih + g_hh + b_ref[l]                    # (B, 4*Hp) f32
            # 128-lane-aligned gate slices (Hp is a multiple of 128): no cross-lane moves.
            i = jax.nn.sigmoid(gates[:, 0 * Hp:1 * Hp])
            f = jax.nn.sigmoid(gates[:, 1 * Hp:2 * Hp])
            g = jnp.tanh(gates[:, 2 * Hp:3 * Hp])
            o = jax.nn.sigmoid(gates[:, 3 * Hp:4 * Hp])
            c_new = f * cs[l] + i * g
            h_new = o * jnp.tanh(c_new)
            new_h.append(h_new)
            new_c.append(c_new)
            inp = h_new.astype(jnp.bfloat16)                  # bf16 feed to next layer's MXU op
        hout_scr[t] = new_h[-1]                               # top-layer output for this step
        return tuple(new_h), tuple(new_c)

    zeros = tuple(jnp.zeros((B, Hp), jnp.float32) for _ in range(n_layers))
    jax.lax.fori_loop(0, S, step, (zeros, zeros), unroll=(S <= 32))

    # Final Linear(H,1) + Sigmoid for ALL timesteps at once: VPU multiply + lane reduce
    # (padded lanes of h and w_lin are exactly zero, so they contribute nothing).
    h_all = hout_scr[...]                                     # (S, B, Hp) f32
    w_row = w_lin_ref[...][None, :, :]                        # (1, 1, Hp)
    logits = jnp.sum(h_all * w_row, axis=-1) + b_lin_ref[0, 0]  # (S, B)
    y_ref[...] = jax.nn.sigmoid(logits)


# ----------------------------------------------------------------------------- wrapper
def stumble_net_forward(x, kparams):
    """x: (S, B, F) f32, kparams: padded/casted params -> (S*B, 1) f32."""
    w_ih0, w_ih_rest, w_hh, b, w_lin, b_lin = kparams
    S, B, _ = x.shape
    L, Hp, _ = w_hh.shape

    kernel = functools.partial(stumble_kernel, n_layers=L, hidden_p=Hp)
    vmem = lambda: pl.BlockSpec(memory_space=pltpu.MemorySpace.VMEM)
    y = pl.pallas_call(
        kernel,
        out_shape=jax.ShapeDtypeStruct((S, B), jnp.float32),
        in_specs=[
            vmem(),   # x
            vmem(),   # w_ih0
            vmem(),   # w_ih_rest
            vmem(),   # w_hh
            vmem(),   # biases
            vmem(),   # linear weight row
            pl.BlockSpec(memory_space=pltpu.MemorySpace.SMEM),   # linear bias scalar
        ],
        out_specs=pl.BlockSpec(memory_space=pltpu.MemorySpace.VMEM),
        scratch_shapes=[pltpu.VMEM((S, B, Hp), jnp.float32)],    # per-step top-layer h
    )(x, w_ih0, w_ih_rest, w_hh, b, w_lin, b_lin)
    # matches PyTorch out.view(-1, hidden) -> linear -> sigmoid ordering
    return y.reshape(S * B, 1)


# ---------------------------------------------------------------- params + preparation
def init_params(key, n_features, hidden, n_layers):
    """PyTorch-style LSTM/Linear uniform(-1/sqrt(H), 1/sqrt(H)) init (logical layout)."""
    k = 1.0 / np.sqrt(hidden)
    keys = jax.random.split(key, 4 * n_layers + 2)
    w_ih, w_hh, b = [], [], []
    ki = 0
    for l in range(n_layers):
        in_dim = n_features if l == 0 else hidden
        w_ih.append(jax.random.uniform(keys[ki], (in_dim, 4 * hidden), jnp.float32, -k, k)); ki += 1
        w_hh.append(jax.random.uniform(keys[ki], (hidden, 4 * hidden), jnp.float32, -k, k)); ki += 1
        b_ih = jax.random.uniform(keys[ki], (4 * hidden,), jnp.float32, -k, k); ki += 1
        b_hh = jax.random.uniform(keys[ki], (4 * hidden,), jnp.float32, -k, k); ki += 1
        b.append(b_ih + b_hh)
    w_lin = jax.random.uniform(keys[ki], (hidden, 1), jnp.float32, -k, k); ki += 1
    b_lin = jax.random.uniform(keys[ki], (1,), jnp.float32, -k, k)
    return w_ih, w_hh, b, w_lin, b_lin


def _pad_gate_cols(w, hidden, hidden_p):
    """(K, 4*hidden) -> (K, 4*hidden_p); each gate block left-aligned in a Hp-wide slot."""
    K = w.shape[0]
    out = jnp.zeros((K, 4 * hidden_p), w.dtype)
    for g in range(4):
        out = out.at[:, g * hidden_p: g * hidden_p + hidden].set(
            w[:, g * hidden:(g + 1) * hidden])
    return out


def prepare_params(params, hidden, n_layers, hidden_p):
    """Pad gate/hidden dims to lane-aligned Hp and cast recurrent weights to bf16."""
    w_ih, w_hh, b, w_lin, b_lin = params
    G = 4 * hidden_p

    # Layer-0 input->hidden kept f32 (tiny); gate blocks lane-aligned.
    w_ih0_p = _pad_gate_cols(w_ih[0], hidden, hidden_p)                       # (F, G) f32

    rest = []
    for l in range(1, n_layers):
        wl = jnp.zeros((hidden_p, G), jnp.float32).at[:hidden].set(
            _pad_gate_cols(w_ih[l], hidden, hidden_p))
        rest.append(wl)
    if not rest:                                   # keep a dummy slab for n_layers == 1
        rest.append(jnp.zeros((hidden_p, G), jnp.float32))
    w_ih_rest_p = jnp.stack(rest).astype(jnp.bfloat16)                        # (max(L-1,1), Hp, G)

    whh_p, b_p = [], []
    for l in range(n_layers):
        wl = jnp.zeros((hidden_p, G), jnp.float32).at[:hidden].set(
            _pad_gate_cols(w_hh[l], hidden, hidden_p))
        whh_p.append(wl)
        b_p.append(_pad_gate_cols(b[l][None, :], hidden, hidden_p))
    w_hh_p = jnp.stack(whh_p).astype(jnp.bfloat16)                            # (L, Hp, G) bf16
    b_p = jnp.stack(b_p)                                                      # (L, 1, G) f32

    w_lin_p = jnp.zeros((1, hidden_p), jnp.float32).at[0, :hidden].set(w_lin[:, 0])
    b_lin_p = jnp.reshape(b_lin, (1, 1)).astype(jnp.float32)
    return w_ih0_p, w_ih_rest_p, w_hh_p, b_p, w_lin_p, b_lin_p


# ----------------------------------------------------------------------------- reference
def reference_forward(x, params, hidden, n_layers):
    """Pure-JAX reference of the same math (mirrors the kernel's bf16 weight quantization)."""
    w_ih, w_hh, b, w_lin, b_lin = params
    S, B, _ = x.shape
    h = [jnp.zeros((B, hidden), jnp.float32) for _ in range(n_layers)]
    c = [jnp.zeros((B, hidden), jnp.float32) for _ in range(n_layers)]

    def bdot(a, w):
        return jnp.dot(a.astype(jnp.bfloat16), w.astype(jnp.bfloat16),
                       preferred_element_type=jnp.float32)

    outs = []
    for t in range(S):
        inp = x[t]
        for l in range(n_layers):
            if l == 0:
                g_ih = jnp.dot(inp, w_ih[0], preferred_element_type=jnp.float32)
            else:
                g_ih = bdot(inp, w_ih[l])
            gates = g_ih + bdot(h[l], w_hh[l]) + b[l]
            i = jax.nn.sigmoid(gates[:, :hidden])
            f = jax.nn.sigmoid(gates[:, hidden:2 * hidden])
            g = jnp.tanh(gates[:, 2 * hidden:3 * hidden])
            o = jax.nn.sigmoid(gates[:, 3 * hidden:])
            c[l] = f * c[l] + i * g
            h[l] = o * jnp.tanh(c[l])
            inp = h[l]
        outs.append(jax.nn.sigmoid(inp @ w_lin + b_lin))      # (B, 1)
    return jnp.stack(outs).reshape(S * B, 1)


# ----------------------------------------------------------------------------- main
if __name__ == "__main__":
    n_features, hidden, n_layers = 4, 32, 2
    seq, batch = 8, 2
    hidden_p = ((hidden + 127) // 128) * 128          # lane-aligned hidden (128)

    key = jax.random.PRNGKey(0)
    kp, kx = jax.random.split(key)
    params = init_params(kp, n_features, hidden, n_layers)
    x = jax.random.normal(kx, (seq, batch, n_features), jnp.float32)

    kparams = prepare_params(params, hidden, n_layers, hidden_p)
    forward = jax.jit(stumble_net_forward)
    out = jax.block_until_ready(forward(x, kparams))

    ref = reference_forward(x, params, hidden, n_layers)
    assert out.shape == (seq * batch, 1)
    # Both sides use identical bf16 weight quantization, so the real diff is ~1e-6;
    # tolerance leaves margin for matmul accumulation-order / transcendental lowering.
    np.testing.assert_allclose(np.asarray(out), np.asarray(ref), rtol=5e-4, atol=5e-4)

    print("KERNEL_OK")
</pallas_src>

<mosaic_0001>
module attributes {stable_mosaic.version = 11 : i64} {
  func.func @stumble_kernel(%arg0: memref<8x2x4xf32, #tpu.memory_space<vmem>>, %arg1: memref<4x512xf32, #tpu.memory_space<vmem>>, %arg2: memref<1x128x512xbf16, #tpu.memory_space<vmem>>, %arg3: memref<2x128x512xbf16, #tpu.memory_space<vmem>>, %arg4: memref<2x1x512xf32, #tpu.memory_space<vmem>>, %arg5: memref<1x128xf32, #tpu.memory_space<vmem>>, %arg6: memref<1x1xf32, #tpu.memory_space<smem>>, %arg7: memref<8x2xf32, #tpu.memory_space<vmem>>, %arg8: memref<8x2x128xf32, #tpu.memory_space<vmem>>) attributes {dimension_semantics = [], scalar_prefetch = 0 : i64, scratch_operands = 1 : i64, tpu.core_type = #tpu.core_type<tc>} {
    %cst = arith.constant 0.000000e+00 : f32
    %0 = vector.broadcast %cst : f32 to vector<2x128xf32>
    %cst_0 = arith.constant 0.000000e+00 : f32
    %1 = vector.broadcast %cst_0 : f32 to vector<2x128xf32>
    %c0_i32 = arith.constant 0 : i32
    %2 = arith.index_cast %c0_i32 : i32 to index
    %c0 = arith.constant 0 : index
    %c0_1 = arith.constant 0 : index
    %3 = vector.load %arg0[%2, %c0, %c0_1] : memref<8x2x4xf32, #tpu.memory_space<vmem>>, vector<1x2x4xf32>
    %4 = vector.shape_cast %3 : vector<1x2x4xf32> to vector<2x4xf32>
    %c0_2 = arith.constant 0 : index
    %c0_3 = arith.constant 0 : index
    %5 = vector.load %arg1[%c0_2, %c0_3] : memref<4x512xf32, #tpu.memory_space<vmem>>, vector<4x512xf32>
    %cst_4 = arith.constant dense<0.000000e+00> : vector<2x512xf32>
    %6 = tpu.matmul %4, %5, %cst_4 {dimension_numbers = #tpu.dot_dimension_numbers<[1], [0], [0], [1], [0, 0, 1, 1], [], []>} : vector<2x4xf32>, vector<4x512xf32>, vector<2x512xf32> -> vector<2x512xf32>
    %7 = arith.truncf %0 : vector<2x128xf32> to vector<2x128xbf16>
    %c0_5 = arith.constant 0 : index
    %c0_6 = arith.constant 0 : index
    %c0_7 = arith.constant 0 : index
    %8 = vector.load %arg3[%c0_5, %c0_6, %c0_7] : memref<2x128x512xbf16, #tpu.memory_space<vmem>>, vector<1x128x512xbf16>
    %9 = vector.shape_cast %8 : vector<1x128x512xbf16> to vector<128x512xbf16>
    %cst_8 = arith.constant dense<0.000000e+00> : vector<2x512xf32>
    %10 = tpu.matmul %7, %9, %cst_8 {dimension_numbers = #tpu.dot_dimension_numbers<[1], [0], [0], [1], [0, 0, 1, 1], [], []>} : vector<2x128xbf16>, vector<128x512xbf16>, vector<2x512xf32> -> vector<2x512xf32>
    %11 = arith.addf %6, %10 : vector<2x512xf32>
    %c0_9 = arith.constant 0 : index
    %c0_10 = arith.constant 0 : index
    %c0_11 = arith.constant 0 : index
    %12 = vector.load %arg4[%c0_9, %c0_10, %c0_11] : memref<2x1x512xf32, #tpu.memory_space<vmem>>, vector<1x1x512xf32>
    %13 = vector.shape_cast %12 : vector<1x1x512xf32> to vector<1x512xf32>
    %14 = vector.broadcast %13 : vector<1x512xf32> to vector<2x512xf32>
    %15 = arith.addf %11, %14 : vector<2x512xf32>
    %16 = vector.extract_strided_slice %15 {offsets = [0, 0], sizes = [2, 128], strides = [1, 1]} : vector<2x512xf32> to vector<2x128xf32>
    %17 = arith.negf %16 : vector<2x128xf32>
    %18 = math.exp %17 : vector<2x128xf32>
    %cst_12 = arith.constant 1.000000e+00 : f32
    %19 = vector.broadcast %cst_12 : f32 to vector<2x128xf32>
    %20 = arith.addf %19, %18 : vector<2x128xf32>
    %21 = arith.divf %19, %20 : vector<2x128xf32>
    %22 = vector.extract_strided_slice %15 {offsets = [0, 128], sizes = [2, 128], strides = [1, 1]} : vector<2x512xf32> to vector<2x128xf32>
    %23 = arith.negf %22 : vector<2x128xf32>
    %24 = math.exp %23 : vector<2x128xf32>
    %cst_13 = arith.constant 1.000000e+00 : f32
    %25 = vector.broadcast %cst_13 : f32 to vector<2x128xf32>
    %26 = arith.addf %25, %24 : vector<2x128xf32>
    %27 = arith.divf %25, %26 : vector<2x128xf32>
    %28 = vector.extract_strided_slice %15 {offsets = [0, 256], sizes = [2, 128], strides = [1, 1]} : vector<2x512xf32> to vector<2x128xf32>
    %29 = math.tanh %28 : vector<2x128xf32>
    %30 = vector.extract_strided_slice %15 {offsets = [0, 384], sizes = [2, 128], strides = [1, 1]} : vector<2x512xf32> to vector<2x128xf32>
    %31 = arith.negf %30 : vector<2x128xf32>
    %32 = math.exp %31 : vector<2x128xf32>
    %cst_14 = arith.constant 1.000000e+00 : f32
    %33 = vector.broadcast %cst_14 : f32 to vector<2x128xf32>
    %34 = arith.addf %33, %32 : vector<2x128xf32>
    %35 = arith.divf %33, %34 : vector<2x128xf32>
    %36 = arith.mulf %27, %0 : vector<2x128xf32>
    %37 = arith.mulf %21, %29 : vector<2x128xf32>
    %38 = arith.addf %36, %37 : vector<2x128xf32>
    %39 = math.tanh %38 : vector<2x128xf32>
    %40 = arith.mulf %35, %39 : vector<2x128xf32>
    %41 = arith.truncf %40 : vector<2x128xf32> to vector<2x128xbf16>
    %c0_15 = arith.constant 0 : index
    %c0_16 = arith.constant 0 : index
    %c0_17 = arith.constant 0 : index
    %42 = vector.load %arg2[%c0_15, %c0_16, %c0_17] : memref<1x128x512xbf16, #tpu.memory_space<vmem>>, vector<1x128x512xbf16>
    %43 = vector.shape_cast %42 : vector<1x128x512xbf16> to vector<128x512xbf16>
    %cst_18 = arith.constant dense<0.000000e+00> : vector<2x512xf32>
    %44 = tpu.matmul %41, %43, %cst_18 {dimension_numbers = #tpu.dot_dimension_numbers<[1], [0], [0], [1], [0, 0, 1, 1], [], []>} : vector<2x128xbf16>, vector<128x512xbf16>, vector<2x512xf32> -> vector<2x512xf32>
    %45 = arith.truncf %1 : vector<2x128xf32> to vector<2x128xbf16>
    %c1 = arith.constant 1 : index
    %c0_19 = arith.constant 0 : index
    %c0_20 = arith.constant 0 : index
    %46 = vector.load %arg3[%c1, %c0_19, %c0_20] : memref<2x128x512xbf16, #tpu.memory_space<vmem>>, vector<1x128x512xbf16>
    %47 = vector.shape_cast %46 : vector<1x128x512xbf16> to vector<128x512xbf16>
    %cst_21 = arith.constant dense<0.000000e+00> : vector<2x512xf32>
    %48 = tpu.matmul %45, %47, %cst_21 {dimension_numbers = #tpu.dot_dimension_numbers<[1], [0], [0], [1], [0, 0, 1, 1], [], []>} : vector<2x128xbf16>, vector<128x512xbf16>, vector<2x512xf32> -> vector<2x512xf32>
    %49 = arith.addf %44, %48 : vector<2x512xf32>
    %c1_22 = arith.constant 1 : index
    %c0_23 = arith.constant 0 : index
    %c0_24 = arith.constant 0 : index
    %50 = vector.load %arg4[%c1_22, %c0_23, %c0_24] : memref<2x1x512xf32, #tpu.memory_space<vmem>>, vector<1x1x512xf32>
    %51 = vector.shape_cast %50 : vector<1x1x512xf32> to vector<1x512xf32>
    %52 = vector.broadcast %51 : vector<1x512xf32> to vector<2x512xf32>
    %53 = arith.addf %49, %52 : vector<2x512xf32>
    %54 = vector.extract_strided_slice %53 {offsets = [0, 0], sizes = [2, 128], strides = [1, 1]} : vector<2x512xf32> to vector<2x128xf32>
    %55 = arith.negf %54 : vector<2x128xf32>
    %56 = math.exp %55 : vector<2x128xf32>
    %cst_25 = arith.constant 1.000000e+00 : f32
    %57 = vector.broadcast %cst_25 : f32 to vector<2x128xf32>
    %58 = arith.addf %57, %56 : vector<2x128xf32>
    %59 = arith.divf %57, %58 : vector<2x128xf32>
    %60 = vector.extract_strided_slice %53 {offsets = [0, 128], sizes = [2, 128], strides = [1, 1]} : vector<2x512xf32> to vector<2x128xf32>
    %61 = arith.negf %60 : vector<2x128xf32>
    %62 = math.exp %61 : vector<2x128xf32>
    %cst_26 = arith.constant 1.000000e+00 : f32
    %63 = vector.broadcast %cst_26 : f32 to vector<2x128xf32>
    %64 = arith.addf %63, %62 : vector<2x128xf32>
    %65 = arith.divf %63, %64 : vector<2x128xf32>
    %66 = vector.extract_strided_slice %53 {offsets = [0, 256], sizes = [2, 128], strides = [1, 1]} : vector<2x512xf32> to vector<2x128xf32>
    %67 = math.tanh %66 : vector<2x128xf32>
    %68 = vector.extract_strided_slice %53 {offsets = [0, 384], sizes = [2, 128], strides = [1, 1]} : vector<2x512xf32> to vector<2x128xf32>
    %69 = arith.negf %68 : vector<2x128xf32>
    %70 = math.exp %69 : vector<2x128xf32>
    %cst_27 = arith.constant 1.000000e+00 : f32
    %71 = vector.broadcast %cst_27 : f32 to vector<2x128xf32>
    %72 = arith.addf %71, %70 : vector<2x128xf32>
    %73 = arith.divf %71, %72 : vector<2x128xf32>
    %74 = arith.mulf %65, %1 : vector<2x128xf32>
    %75 = arith.mulf %59, %67 : vector<2x128xf32>
    %76 = arith.addf %74, %75 : vector<2x128xf32>
    %77 = math.tanh %76 : vector<2x128xf32>
    %78 = arith.mulf %73, %77 : vector<2x128xf32>
    %79 = arith.index_cast %c0_i32 : i32 to index
    %c0_28 = arith.constant 0 : index
    %c0_29 = arith.constant 0 : index
    %80 = vector.load %arg8[%79, %c0_28, %c0_29] : memref<8x2x128xf32, #tpu.memory_space<vmem>>, vector<1x2x128xf32>
    %81 = vector.shape_cast %80 : vector<1x2x128xf32> to vector<2x128xf32>
    %82 = vector.shape_cast %78 : vector<2x128xf32> to vector<1x2x128xf32>
    tpu.vector_store %arg8[%79, %c0_28, %c0_29], %82 {strides = array<i32>} : memref<8x2x128xf32, #tpu.memory_space<vmem>>, vector<1x2x128xf32>,
    %c1_i32 = arith.constant 1 : i32
    %83 = arith.index_cast %c1_i32 : i32 to index
    %c0_30 = arith.constant 0 : index
    %c0_31 = arith.constant 0 : index
    %84 = vector.load %arg0[%83, %c0_30, %c0_31] : memref<8x2x4xf32, #tpu.memory_space<vmem>>, vector<1x2x4xf32>
    %85 = vector.shape_cast %84 : vector<1x2x4xf32> to vector<2x4xf32>
    %c0_32 = arith.constant 0 : index
    %c0_33 = arith.constant 0 : index
    %86 = vector.load %arg1[%c0_32, %c0_33] : memref<4x512xf32, #tpu.memory_space<vmem>>, vector<4x512xf32>
    %cst_34 = arith.constant dense<0.000000e+00> : vector<2x512xf32>
    %87 = tpu.matmul %85, %86, %cst_34 {dimension_numbers = #tpu.dot_dimension_numbers<[1], [0], [0], [1], [0, 0, 1, 1], [], []>} : vector<2x4xf32>, vector<4x512xf32>, vector<2x512xf32> -> vector<2x512xf32>
    %88 = arith.truncf %40 : vector<2x128xf32> to vector<2x128xbf16>
    %c0_35 = arith.constant 0 : index
    %c0_36 = arith.constant 0 : index
    %c0_37 = arith.constant 0 : index
    %89 = vector.load %arg3[%c0_35, %c0_36, %c0_37] : memref<2x128x512xbf16, #tpu.memory_space<vmem>>, vector<1x128x512xbf16>
    %90 = vector.shape_cast %89 : vector<1x128x512xbf16> to vector<128x512xbf16>
    %cst_38 = arith.constant dense<0.000000e+00> : vector<2x512xf32>
    %91 = tpu.matmul %88, %90, %cst_38 {dimension_numbers = #tpu.dot_dimension_numbers<[1], [0], [0], [1], [0, 0, 1, 1], [], []>} : vector<2x128xbf16>, vector<128x512xbf16>, vector<2x512xf32> -> vector<2x512xf32>
    %92 = arith.addf %87, %91 : vector<2x512xf32>
    %c0_39 = arith.constant 0 : index
    %c0_40 = arith.constant 0 : index
    %c0_41 = arith.constant 0 : index
    %93 = vector.load %arg4[%c0_39, %c0_40, %c0_41] : memref<2x1x512xf32, #tpu.memory_space<vmem>>, vector<1x1x512xf32>
    %94 = vector.shape_cast %93 : vector<1x1x512xf32> to vector<1x512xf32>
    %95 = vector.broadcast %94 : vector<1x512xf32> to vector<2x512xf32>
    %96 = arith.addf %92, %95 : vector<2x512xf32>
    %97 = vector.extract_strided_slice %96 {offsets = [0, 0], sizes = [2, 128], strides = [1, 1]} : vector<2x512xf32> to vector<2x128xf32>
    %98 = arith.negf %97 : vector<2x128xf32>
    %99 = math.exp %98 : vector<2x128xf32>
    %cst_42 = arith.constant 1.000000e+00 : f32
    %100 = vector.broadcast %cst_42 : f32 to vector<2x128xf32>
    %101 = arith.addf %100, %99 : vector<2x128xf32>
    %102 = arith.divf %100, %101 : vector<2x128xf32>
    %103 = vector.extract_strided_slice %96 {offsets = [0, 128], sizes = [2, 128], strides = [1, 1]} : vector<2x512xf32> to vector<2x128xf32>
    %104 = arith.negf %103 : vector<2x128xf32>
    %105 = math.exp %104 : vector<2x128xf32>
    %cst_43 = arith.constant 1.000000e+00 : f32
    %106 = vector.broadcast %cst_43 : f32 to vector<2x128xf32>
    %107 = arith.addf %106, %105 : vector<2x128xf32>
    %108 = arith.divf %106, %107 : vector<2x128xf32>
    %109 = vector.extract_strided_slice %96 {offsets = [0, 256], sizes = [2, 128], strides = [1, 1]} : vector<2x512xf32> to vector<2x128xf32>
    %110 = math.tanh %109 : vector<2x128xf32>
    %111 = vector.extract_strided_slice %96 {offsets = [0, 384], sizes = [2, 128], strides = [1, 1]} : vector<2x512xf32> to vector<2x128xf32>
    %112 = arith.negf %111 : vector<2x128xf32>
    %113 = math.exp %112 : vector<2x128xf32>
    %cst_44 = arith.constant 1.000000e+00 : f32
    %114 = vector.broadcast %cst_44 : f32 to vector<2x128xf32>
    %115 = arith.addf %114, %113 : vector<2x128xf32>
    %116 = arith.divf %114, %115 : vector<2x128xf32>
    %117 = arith.mulf %108, %38 : vector<2x128xf32>
    %118 = arith.mulf %102, %110 : vector<2x128xf32>
    %119 = arith.addf %117, %118 : vector<2x128xf32>
    %120 = math.tanh %119 : vector<2x128xf32>
    %121 = arith.mulf %116, %120 : vector<2x128xf32>
    %122 = arith.truncf %121 : vector<2x128xf32> to vector<2x128xbf16>
    %c0_45 = arith.constant 0 : index
    %c0_46 = arith.constant 0 : index
    %c0_47 = arith.constant 0 : index
    %123 = vector.load %arg2[%c0_45, %c0_46, %c0_47] : memref<1x128x512xbf16, #tpu.memory_space<vmem>>, vector<1x128x512xbf16>
    %124 = vector.shape_cast %123 : vector<1x128x512xbf16> to vector<128x512xbf16>
    %cst_48 = arith.constant dense<0.000000e+00> : vector<2x512xf32>
    %125 = tpu.matmul %122, %124, %cst_48 {dimension_numbers = #tpu.dot_dimension_numbers<[1], [0], [0], [1], [0, 0, 1, 1], [], []>} : vector<2x128xbf16>, vector<128x512xbf16>, vector<2x512xf32> -> vector<2x512xf32>
    %126 = arith.truncf %78 : vector<2x128xf32> to vector<2x128xbf16>
    %c1_49 = arith.constant 1 : index
    %c0_50 = arith.constant 0 : index
    %c0_51 = arith.constant 0 : index
    %127 = vector.load %arg3[%c1_49, %c0_50, %c0_51] : memref<2x128x512xbf16, #tpu.memory_space<vmem>>, vector<1x128x512xbf16>
    %128 = vector.shape_cast %127 : vector<1x128x512xbf16> to vector<128x512xbf16>
    %cst_52 = arith.constant dense<0.000000e+00> : vector<2x512xf32>
    %129 = tpu.matmul %126, %128, %cst_52 {dimension_numbers = #tpu.dot_dimension_numbers<[1], [0], [0], [1], [0, 0, 1, 1], [], []>} : vector<2x128xbf16>, vector<128x512xbf16>, vector<2x512xf32> -> vector<2x512xf32>
    %130 = arith.addf %125, %129 : vector<2x512xf32>
    %c1_53 = arith.constant 1 : index
    %c0_54 = arith.constant 0 : index
    %c0_55 = arith.constant 0 : index
    %131 = vector.load %arg4[%c1_53, %c0_54, %c0_55] : memref<2x1x512xf32, #tpu.memory_space<vmem>>, vector<1x1x512xf32>
    %132 = vector.shape_cast %131 : vector<1x1x512xf32> to vector<1x512xf32>
    %133 = vector.broadcast %132 : vector<1x512xf32> to vector<2x512xf32>
    %134 = arith.addf %130, %133 : vector<2x512xf32>
    %135 = vector.extract_strided_slice %134 {offsets = [0, 0], sizes = [2, 128], strides = [1, 1]} : vector<2x512xf32> to vector<2x128xf32>
    %136 = arith.negf %135 : vector<2x128xf32>
    %137 = math.exp %136 : vector<2x128xf32>
    %cst_56 = arith.constant 1.000000e+00 : f32
    %138 = vector.broadcast %cst_56 : f32 to vector<2x128xf32>
    %139 = arith.addf %138, %137 : vector<2x128xf32>
    %140 = arith.divf %138, %139 : vector<2x128xf32>
    %141 = vector.extract_strided_slice %134 {offsets = [0, 128], sizes = [2, 128], strides = [1, 1]} : vector<2x512xf32> to vector<2x128xf32>
    %142 = arith.negf %141 : vector<2x128xf32>
    %143 = math.exp %142 : vector<2x128xf32>
    %cst_57 = arith.constant 1.000000e+00 : f32
    %144 = vector.broadcast %cst_57 : f32 to vector<2x128xf32>
    %145 = arith.addf %144, %143 : vector<2x128xf32>
    %146 = arith.divf %144, %145 : vector<2x128xf32>
    %147 = vector.extract_strided_slice %134 {offsets = [0, 256], sizes = [2, 128], strides = [1, 1]} : vector<2x512xf32> to vector<2x128xf32>
    %148 = math.tanh %147 : vector<2x128xf32>
    %149 = vector.extract_strided_slice %134 {offsets = [0, 384], sizes = [2, 128], strides = [1, 1]} : vector<2x512xf32> to vector<2x128xf32>
    %150 = arith.negf %149 : vector<2x128xf32>
    %151 = math.exp %150 : vector<2x128xf32>
    %cst_58 = arith.constant 1.000000e+00 : f32
    %152 = vector.broadcast %cst_58 : f32 to vector<2x128xf32>
    %153 = arith.addf %152, %151 : vector<2x128xf32>
    %154 = arith.divf %152, %153 : vector<2x128xf32>
    %155 = arith.mulf %146, %76 : vector<2x128xf32>
    %156 = arith.mulf %140, %148 : vector<2x128xf32>
    %157 = arith.addf %155, %156 : vector<2x128xf32>
    %158 = math.tanh %157 : vector<2x128xf32>
    %159 = arith.mulf %154, %158 : vector<2x128xf32>
    %160 = arith.index_cast %c1_i32 : i32 to index
    %c0_59 = arith.constant 0 : index
    %c0_60 = arith.constant 0 : index
    %161 = vector.load %arg8[%160, %c0_59, %c0_60] : memref<8x2x128xf32, #tpu.memory_space<vmem>>, vector<1x2x128xf32>
    %162 = vector.shape_cast %161 : vector<1x2x128xf32> to vector<2x128xf32>
    %163 = vector.shape_cast %159 : vector<2x128xf32> to vector<1x2x128xf32>
    tpu.vector_store %arg8[%160, %c0_59, %c0_60], %163 {strides = array<i32>} : memref<8x2x128xf32, #tpu.memory_space<vmem>>, vector<1x2x128xf32>,
    %c2_i32 = arith.constant 2 : i32
    %164 = arith.index_cast %c2_i32 : i32 to index
    %c0_61 = arith.constant 0 : index
    %c0_62 = arith.constant 0 : index
    %165 = vector.load %arg0[%164, %c0_61, %c0_62] : memref<8x2x4xf32, #tpu.memory_space<vmem>>, vector<1x2x4xf32>
    %166 = vector.shape_cast %165 : vector<1x2x4xf32> to vector<2x4xf32>
    %c0_63 = arith.constant 0 : index
    %c0_64 = arith.constant 0 : index
    %167 = vector.load %arg1[%c0_63, %c0_64] : memref<4x512xf32, #tpu.memory_space<vmem>>, vector<4x512xf32>
    %cst_65 = arith.constant dense<0.000000e+00> : vector<2x512xf32>
    %168 = tpu.matmul %166, %167, %cst_65 {dimension_numbers = #tpu.dot_dimension_numbers<[1], [0], [0], [1], [0, 0, 1, 1], [], []>} : vector<2x4xf32>, vector<4x512xf32>, vector<2x512xf32> -> vector<2x512xf32>
    %169 = arith.truncf %121 : vector<2x128xf32> to vector<2x128xbf16>
    %c0_66 = arith.constant 0 : index
    %c0_67 = arith.constant 0 : index
    %c0_68 = arith.constant 0 : index
    %170 = vector.load %arg3[%c0_66, %c0_67, %c0_68] : memref<2x128x512xbf16, #tpu.memory_space<vmem>>, vector<1x128x512xbf16>
    %171 = vector.shape_cast %170 : vector<1x128x512xbf16> to vector<128x512xbf16>
    %cst_69 = arith.constant dense<0.000000e+00> : vector<2x512xf32>
    %172 = tpu.matmul %169, %171, %cst_69 {dimension_numbers = #tpu.dot_dimension_numbers<[1], [0], [0], [1], [0, 0, 1, 1], [], []>} : vector<2x128xbf16>, vector<128x512xbf16>, vector<2x512xf32> -> vector<2x512xf32>
    %173 = arith.addf %168, %172 : vector<2x512xf32>
    %c0_70 = arith.constant 0 : index
    %c0_71 = arith.constant 0 : index
    %c0_72 = arith.constant 0 : index
    %174 = vector.load %arg4[%c0_70, %c0_71, %c0_72] : memref<2x1x512xf32, #tpu.memory_space<vmem>>, vector<1x1x512xf32>
    %175 = vector.shape_cast %174 : vector<1x1x512xf32> to vector<1x512xf32>
    %176 = vector.broadcast %175 : vector<1x512xf32> to vector<2x512xf32>
    %177 = arith.addf %173, %176 : vector<2x512xf32>
    %178 = vector.extract_strided_slice %177 {offsets = [0, 0], sizes = [2, 128], strides = [1, 1]} : vector<2x512xf32> to vector<2x128xf32>
    %179 = arith.negf %178 : vector<2x128xf32>
    %180 = math.exp %179 : vector<2x128xf32>
    %cst_73 = arith.constant 1.000000e+00 : f32
    %181 = vector.broadcast %cst_73 : f32 to vector<2x128xf32>
    %182 = arith.addf %181, %180 : vector<2x128xf32>
    %183 = arith.divf %181, %182 : vector<2x128xf32>
    %184 = vector.extract_strided_slice %177 {offsets = [0, 128], sizes = [2, 128], strides = [1, 1]} : vector<2x512xf32> to vector<2x128xf32>
    %185 = arith.negf %184 : vector<2x128xf32>
    %186 = math.exp %185 : vector<2x128xf32>
    %cst_74 = arith.constant 1.000000e+00 : f32
    %187 = vector.broadcast %cst_74 : f32 to vector<2x128xf32>
    %188 = arith.addf %187, %186 : vector<2x128xf32>
    %189 = arith.divf %187, %188 : vector<2x128xf32>
    %190 = vector.extract_strided_slice %177 {offsets = [0, 256], sizes = [2, 128], strides = [1, 1]} : vector<2x512xf32> to vector<2x128xf32>
    %191 = math.tanh %190 : vector<2x128xf32>
    %192 = vector.extract_strided_slice %177 {offsets = [0, 384], sizes = [2, 128], strides = [1, 1]} : vector<2x512xf32> to vector<2x128xf32>
    %193 = arith.negf %192 : vector<2x128xf32>
    %194 = math.exp %193 : vector<2x128xf32>
    %cst_75 = arith.constant 1.000000e+00 : f32
    %195 = vector.broadcast %cst_75 : f32 to vector<2x128xf32>
    %196 = arith.addf %195, %194 : vector<2x128xf32>
    %197 = arith.divf %195, %196 : vector<2x128xf32>
    %198 = arith.mulf %189, %119 : vector<2x128xf32>
    %199 = arith.mulf %183, %191 : vector<2x128xf32>
    %200 = arith.addf %198, %199 : vector<2x128xf32>
    %201 = math.tanh %200 : vector<2x128xf32>
    %202 = arith.mulf %197, %201 : vector<2x128xf32>
    %203 = arith.truncf %202 : vector<2x128xf32> to vector<2x128xbf16>
    %c0_76 = arith.constant 0 : index
    %c0_77 = arith.constant 0 : index
    %c0_78 = arith.constant 0 : index
    %204 = vector.load %arg2[%c0_76, %c0_77, %c0_78] : memref<1x128x512xbf16, #tpu.memory_space<vmem>>, vector<1x128x512xbf16>
    %205 = vector.shape_cast %204 : vector<1x128x512xbf16> to vector<128x512xbf16>
    %cst_79 = arith.constant dense<0.000000e+00> : vector<2x512xf32>
    %206 = tpu.matmul %203, %205, %cst_79 {dimension_numbers = #tpu.dot_dimension_numbers<[1], [0], [0], [1], [0, 0, 1, 1], [], []>} : vector<2x128xbf16>, vector<128x512xbf16>, vector<2x512xf32> -> vector<2x512xf32>
    %207 = arith.truncf %159 : vector<2x128xf32> to vector<2x128xbf16>
    %c1_80 = arith.constant 1 : index
    %c0_81 = arith.constant 0 : index
    %c0_82 = arith.constant 0 : index
    %208 = vector.load %arg3[%c1_80, %c0_81, %c0_82] : memref<2x128x512xbf16, #tpu.memory_space<vmem>>, vector<1x128x512xbf16>
    %209 = vector.shape_cast %208 : vector<1x128x512xbf16> to vector<128x512xbf16>
    %cst_83 = arith.constant dense<0.000000e+00> : vector<2x512xf32>
    %210 = tpu.matmul %207, %209, %cst_83 {dimension_numbers = #tpu.dot_dimension_numbers<[1], [0], [0], [1], [0, 0, 1, 1], [], []>} : vector<2x128xbf16>, vector<128x512xbf16>, vector<2x512xf32> -> vector<2x512xf32>
    %211 = arith.addf %206, %210 : vector<2x512xf32>
    %c1_84 = arith.constant 1 : index
    %c0_85 = arith.constant 0 : index
    %c0_86 = arith.constant 0 : index
    %212 = vector.load %arg4[%c1_84, %c0_85, %c0_86] : memref<2x1x512xf32, #tpu.memory_space<vmem>>, vector<1x1x512xf32>
    %213 = vector.shape_cast %212 : vector<1x1x512xf32> to vector<1x512xf32>
    %214 = vector.broadcast %213 : vector<1x512xf32> to vector<2x512xf32>
    %215 = arith.addf %211, %214 : vector<2x512xf32>
    %216 = vector.extract_strided_slice %215 {offsets = [0, 0], sizes = [2, 128], strides = [1, 1]} : vector<2x512xf32> to vector<2x128xf32>
    %217 = arith.negf %216 : vector<2x128xf32>
    %218 = math.exp %217 : vector<2x128xf32>
    %cst_87 = arith.constant 1.000000e+00 : f32
    %219 = vector.broadcast %cst_87 : f32 to vector<2x128xf32>
    %220 = arith.addf %219, %218 : vector<2x128xf32>
    %221 = arith.divf %219, %220 : vector<2x128xf32>
    %222 = vector.extract_strided_slice %215 {offsets = [0, 128], sizes = [2, 128], strides = [1, 1]} : vector<2x512xf32> to vector<2x128xf32>
    %223 = arith.negf %222 : vector<2x128xf32>
    %224 = math.exp %223 : vector<2x128xf32>
    %cst_88 = arith.constant 1.000000e+00 : f32
    %225 = vector.broadcast %cst_88 : f32 to vector<2x128xf32>
    %226 = arith.addf %225, %224 : vector<2x128xf32>
    %227 = arith.divf %225, %226 : vector<2x128xf32>
    %228 = vector.extract_strided_slice %215 {offsets = [0, 256], sizes = [2, 128], strides = [1, 1]} : vector<2x512xf32> to vector<2x128xf32>
    %229 = math.tanh %228 : vector<2x128xf32>
    %230 = vector.extract_strided_slice %215 {offsets = [0, 384], sizes = [2, 128], strides = [1, 1]} : vector<2x512xf32> to vector<2x128xf32>
    %231 = arith.negf %230 : vector<2x128xf32>
    %232 = math.exp %231 : vector<2x128xf32>
    %cst_89 = arith.constant 1.000000e+00 : f32
    %233 = vector.broadcast %cst_89 : f32 to vector<2x128xf32>
    %234 = arith.addf %233, %232 : vector<2x128xf32>
    %235 = arith.divf %233, %234 : vector<2x128xf32>
    %236 = arith.mulf %227, %157 : vector<2x128xf32>
    %237 = arith.mulf %221, %229 : vector<2x128xf32>
    %238 = arith.addf %236, %237 : vector<2x128xf32>
    %239 = math.tanh %238 : vector<2x128xf32>
    %240 = arith.mulf %235, %239 : vector<2x128xf32>
    %241 = arith.index_cast %c2_i32 : i32 to index
    %c0_90 = arith.constant 0 : index
    %c0_91 = arith.constant 0 : index
    %242 = vector.load %arg8[%241, %c0_90, %c0_91] : memref<8x2x128xf32, #tpu.memory_space<vmem>>, vector<1x2x128xf32>
    %243 = vector.shape_cast %242 : vector<1x2x128xf32> to vector<2x128xf32>
    %244 = vector.shape_cast %240 : vector<2x128xf32> to vector<1x2x128xf32>
    tpu.vector_store %arg8[%241, %c0_90, %c0_91], %244 {strides = array<i32>} : memref<8x2x128xf32, #tpu.memory_space<vmem>>, vector<1x2x128xf32>,
    %c3_i32 = arith.constant 3 : i32
    %245 = arith.index_cast %c3_i32 : i32 to index
    %c0_92 = arith.constant 0 : index
    %c0_93 = arith.constant 0 : index
    %246 = vector.load %arg0[%245, %c0_92, %c0_93] : memref<8x2x4xf32, #tpu.memory_space<vmem>>, vector<1x2x4xf32>
    %247 = vector.shape_cast %246 : vector<1x2x4xf32> to vector<2x4xf32>
    %c0_94 = arith.constant 0 : index
    %c0_95 = arith.constant 0 : index
    %248 = vector.load %arg1[%c0_94, %c0_95] : memref<4x512xf32, #tpu.memory_space<vmem>>, vector<4x512xf32>
    %cst_96 = arith.constant dense<0.000000e+00> : vector<2x512xf32>
    %249 = tpu.matmul %247, %248, %cst_96 {dimension_numbers = #tpu.dot_dimension_numbers<[1], [0], [0], [1], [0, 0, 1, 1], [], []>} : vector<2x4xf32>, vector<4x512xf32>, vector<2x512xf32> -> vector<2x512xf32>
    %250 = arith.truncf %202 : vector<2x128xf32> to vector<2x128xbf16>
    %c0_97 = arith.constant 0 : index
    %c0_98 = arith.constant 0 : index
    %c0_99 = arith.constant 0 : index
    %251 = vector.load %arg3[%c0_97, %c0_98, %c0_99] : memref<2x128x512xbf16, #tpu.memory_space<vmem>>, vector<1x128x512xbf16>
    %252 = vector.shape_cast %251 : vector<1x128x512xbf16> to vector<128x512xbf16>
    %cst_100 = arith.constant dense<0.000000e+00> : vector<2x512xf32>
    %253 = tpu.matmul %250, %252, %cst_100 {dimension_numbers = #tpu.dot_dimension_numbers<[1], [0], [0], [1], [0, 0, 1, 1], [], []>} : vector<2x128xbf16>, vector<128x512xbf16>, vector<2x512xf32> -> vector<2x512xf32>
    %254 = arith.addf %249, %253 : vector<2x512xf32>
    %c0_101 = arith.constant 0 : index
    %c0_102 = arith.constant 0 : index
    %c0_103 = arith.constant 0 : index
    %255 = vector.load %arg4[%c0_101, %c0_102, %c0_103] : memref<2x1x512xf32, #tpu.memory_space<vmem>>, vector<1x1x512xf32>
    %256 = vector.shape_cast %255 : vector<1x1x512xf32> to vector<1x512xf32>
    %257 = vector.broadcast %256 : vector<1x512xf32> to vector<2x512xf32>
    %258 = arith.addf %254, %257 : vector<2x512xf32>
    %259 = vector.extract_strided_slice %258 {offsets = [0, 0], sizes = [2, 128], strides = [1, 1]} : vector<2x512xf32> to vector<2x128xf32>
    %260 = arith.negf %259 : vector<2x128xf32>
    %261 = math.exp %260 : vector<2x128xf32>
    %cst_104 = arith.constant 1.000000e+00 : f32
    %262 = vector.broadcast %cst_104 : f32 to vector<2x128xf32>
    %263 = arith.addf %262, %261 : vector<2x128xf32>
    %264 = arith.divf %262, %263 : vector<2x128xf32>
    %265 = vector.extract_strided_slice %258 {offsets = [0, 128], sizes = [2, 128], strides = [1, 1]} : vector<2x512xf32> to vector<2x128xf32>
    %266 = arith.negf %265 : vector<2x128xf32>
    %267 = math.exp %266 : vector<2x128xf32>
    %cst_105 = arith.constant 1.000000e+00 : f32
    %268 = vector.broadcast %cst_105 : f32 to vector<2x128xf32>
    %269 = arith.addf %268, %267 : vector<2x128xf32>
    %270 = arith.divf %268, %269 : vector<2x128xf32>
    %271 = vector.extract_strided_slice %258 {offsets = [0, 256], sizes = [2, 128], strides = [1, 1]} : vector<2x512xf32> to vector<2x128xf32>
    %272 = math.tanh %271 : vector<2x128xf32>
    %273 = vector.extract_strided_slice %258 {offsets = [0, 384], sizes = [2, 128], strides = [1, 1]} : vector<2x512xf32> to vector<2x128xf32>
    %274 = arith.negf %273 : vector<2x128xf32>
    %275 = math.exp %274 : vector<2x128xf32>
    %cst_106 = arith.constant 1.000000e+00 : f32
    %276 = vector.broadcast %cst_106 : f32 to vector<2x128xf32>
    %277 = arith.addf %276, %275 : vector<2x128xf32>
    %278 = arith.divf %276, %277 : vector<2x128xf32>
    %279 = arith.mulf %270, %200 : vector<2x128xf32>
    %280 = arith.mulf %264, %272 : vector<2x128xf32>
    %281 = arith.addf %279, %280 : vector<2x128xf32>
    %282 = math.tanh %281 : vector<2x128xf32>
    %283 = arith.mulf %278, %282 : vector<2x128xf32>
    %284 = arith.truncf %283 : vector<2x128xf32> to vector<2x128xbf16>
    %c0_107 = arith.constant 0 : index
    %c0_108 = arith.constant 0 : index
    %c0_109 = arith.constant 0 : index
    %285 = vector.load %arg2[%c0_107, %c0_108, %c0_109] : memref<1x128x512xbf16, #tpu.memory_space<vmem>>, vector<1x128x512xbf16>
    %286 = vector.shape_cast %285 : vector<1x128x512xbf16> to vector<128x512xbf16>
    %cst_110 = arith.constant dense<0.000000e+00> : vector<2x512xf32>
    %287 = tpu.matmul %284, %286, %cst_110 {dimension_numbers = #tpu.dot_dimension_numbers<[1], [0], [0], [1], [0, 0, 1, 1], [], []>} : vector<2x128xbf16>, vector<128x512xbf16>, vector<2x512xf32> -> vector<2x512xf32>
    %288 = arith.truncf %240 : vector<2x128xf32> to vector<2x128xbf16>
    %c1_111 = arith.constant 1 : index
    %c0_112 = arith.constant 0 : index
    %c0_113 = arith.constant 0 : index
    %289 = vector.load %arg3[%c1_111, %c0_112, %c0_113] : memref<2x128x512xbf16, #tpu.memory_space<vmem>>, vector<1x128x512xbf16>
    %290 = vector.shape_cast %289 : vector<1x128x512xbf16> to vector<128x512xbf16>
    %cst_114 = arith.constant dense<0.000000e+00> : vector<2x512xf32>
    %291 = tpu.matmul %288, %290, %cst_114 {dimension_numbers = #tpu.dot_dimension_numbers<[1], [0], [0], [1], [0, 0, 1, 1], [], []>} : vector<2x128xbf16>, vector<128x512xbf16>, vector<2x512xf32> -> vector<2x512xf32>
    %292 = arith.addf %287, %291 : vector<2x512xf32>
    %c1_115 = arith.constant 1 : index
    %c0_116 = arith.constant 0 : index
    %c0_117 = arith.constant 0 : index
    %293 = vector.load %arg4[%c1_115, %c0_116, %c0_117] : memref<2x1x512xf32, #tpu.memory_space<vmem>>, vector<1x1x512xf32>
    %294 = vector.shape_cast %293 : vector<1x1x512xf32> to vector<1x512xf32>
    %295 = vector.broadcast %294 : vector<1x512xf32> to vector<2x512xf32>
    %296 = arith.addf %292, %295 : vector<2x512xf32>
    %297 = vector.extract_strided_slice %296 {offsets = [0, 0], sizes = [2, 128], strides = [1, 1]} : vector<2x512xf32> to vector<2x128xf32>
    %298 = arith.negf %297 : vector<2x128xf32>
    %299 = math.exp %298 : vector<2x128xf32>
    %cst_118 = arith.constant 1.000000e+00 : f32
    %300 = vector.broadcast %cst_118 : f32 to vector<2x128xf32>
    %301 = arith.addf %300, %299 : vector<2x128xf32>
    %302 = arith.divf %300, %301 : vector<2x128xf32>
    %303 = vector.extract_strided_slice %296 {offsets = [0, 128], sizes = [2, 128], strides = [1, 1]} : vector<2x512xf32> to vector<2x128xf32>
    %304 = arith.negf %303 : vector<2x128xf32>
    %305 = math.exp %304 : vector<2x128xf32>
    %cst_119 = arith.constant 1.000000e+00 : f32
    %306 = vector.broadcast %cst_119 : f32 to vector<2x128xf32>
    %307 = arith.addf %306, %305 : vector<2x128xf32>
    %308 = arith.divf %306, %307 : vector<2x128xf32>
    %309 = vector.extract_strided_slice %296 {offsets = [0, 256], sizes = [2, 128], strides = [1, 1]} : vector<2x512xf32> to vector<2x128xf32>
    %310 = math.tanh %309 : vector<2x128xf32>
    %311 = vector.extract_strided_slice %296 {offsets = [0, 384], sizes = [2, 128], strides = [1, 1]} : vector<2x512xf32> to vector<2x128xf32>
    %312 = arith.negf %311 : vector<2x128xf32>
    %313 = math.exp %312 : vector<2x128xf32>
    %cst_120 = arith.constant 1.000000e+00 : f32
    %314 = vector.broadcast %cst_120 : f32 to vector<2x128xf32>
    %315 = arith.addf %314, %313 : vector<2x128xf32>
    %316 = arith.divf %314, %315 : vector<2x128xf32>
    %317 = arith.mulf %308, %238 : vector<2x128xf32>
    %318 = arith.mulf %302, %310 : vector<2x128xf32>
    %319 = arith.addf %317, %318 : vector<2x128xf32>
    %320 = math.tanh %319 : vector<2x128xf32>
    %321 = arith.mulf %316, %320 : vector<2x128xf32>
    %322 = arith.index_cast %c3_i32 : i32 to index
    %c0_121 = arith.constant 0 : index
    %c0_122 = arith.constant 0 : index
    %323 = vector.load %arg8[%322, %c0_121, %c0_122] : memref<8x2x128xf32, #tpu.memory_space<vmem>>, vector<1x2x128xf32>
    %324 = vector.shape_cast %323 : vector<1x2x128xf32> to vector<2x128xf32>
    %325 = vector.shape_cast %321 : vector<2x128xf32> to vector<1x2x128xf32>
    tpu.vector_store %arg8[%322, %c0_121, %c0_122], %325 {strides = array<i32>} : memref<8x2x128xf32, #tpu.memory_space<vmem>>, vector<1x2x128xf32>,
    %c4_i32 = arith.constant 4 : i32
    %326 = arith.index_cast %c4_i32 : i32 to index
    %c0_123 = arith.constant 0 : index
    %c0_124 = arith.constant 0 : index
    %327 = vector.load %arg0[%326, %c0_123, %c0_124] : memref<8x2x4xf32, #tpu.memory_space<vmem>>, vector<1x2x4xf32>
    %328 = vector.shape_cast %327 : vector<1x2x4xf32> to vector<2x4xf32>
    %c0_125 = arith.constant 0 : index
    %c0_126 = arith.constant 0 : index
    %329 = vector.load %arg1[%c0_125, %c0_126] : memref<4x512xf32, #tpu.memory_space<vmem>>, vector<4x512xf32>
    %cst_127 = arith.constant dense<0.000000e+00> : vector<2x512xf32>
    %330 = tpu.matmul %328, %329, %cst_127 {dimension_numbers = #tpu.dot_dimension_numbers<[1], [0], [0], [1], [0, 0, 1, 1], [], []>} : vector<2x4xf32>, vector<4x512xf32>, vector<2x512xf32> -> vector<2x512xf32>
    %331 = arith.truncf %283 : vector<2x128xf32> to vector<2x128xbf16>
    %c0_128 = arith.constant 0 : index
    %c0_129 = arith.constant 0 : index
    %c0_130 = arith.constant 0 : index
    %332 = vector.load %arg3[%c0_128, %c0_129, %c0_130] : memref<2x128x512xbf16, #tpu.memory_space<vmem>>, vector<1x128x512xbf16>
    %333 = vector.shape_cast %332 : vector<1x128x512xbf16> to vector<128x512xbf16>
    %cst_131 = arith.constant dense<0.000000e+00> : vector<2x512xf32>
    %334 = tpu.matmul %331, %333, %cst_131 {dimension_numbers = #tpu.dot_dimension_numbers<[1], [0], [0], [1], [0, 0, 1, 1], [], []>} : vector<2x128xbf16>, vector<128x512xbf16>, vector<2x512xf32> -> vector<2x512xf32>
    %335 = arith.addf %330, %334 : vector<2x512xf32>
    %c0_132 = arith.constant 0 : index
    %c0_133 = arith.constant 0 : index
    %c0_134 = arith.constant 0 : index
    %336 = vector.load %arg4[%c0_132, %c0_133, %c0_134] : memref<2x1x512xf32, #tpu.memory_space<vmem>>, vector<1x1x512xf32>
    %337 = vector.shape_cast %336 : vector<1x1x512xf32> to vector<1x512xf32>
    %338 = vector.broadcast %337 : vector<1x512xf32> to vector<2x512xf32>
    %339 = arith.addf %335, %338 : vector<2x512xf32>
    %340 = vector.extract_strided_slice %339 {offsets = [0, 0], sizes = [2, 128], strides = [1, 1]} : vector<2x512xf32> to vector<2x128xf32>
    %341 = arith.negf %340 : vector<2x128xf32>
    %342 = math.exp %341 : vector<2x128xf32>
    %cst_135 = arith.constant 1.000000e+00 : f32
    %343 = vector.broadcast %cst_135 : f32 to vector<2x128xf32>
    %344 = arith.addf %343, %342 : vector<2x128xf32>
    %345 = arith.divf %343, %344 : vector<2x128xf32>
    %346 = vector.extract_strided_slice %339 {offsets = [0, 128], sizes = [2, 128], strides = [1, 1]} : vector<2x512xf32> to vector<2x128xf32>
    %347 = arith.negf %346 : vector<2x128xf32>
    %348 = math.exp %347 : vector<2x128xf32>
    %cst_136 = arith.constant 1.000000e+00 : f32
    %349 = vector.broadcast %cst_136 : f32 to vector<2x128xf32>
    %350 = arith.addf %349, %348 : vector<2x128xf32>
    %351 = arith.divf %349, %350 : vector<2x128xf32>
    %352 = vector.extract_strided_slice %339 {offsets = [0, 256], sizes = [2, 128], strides = [1, 1]} : vector<2x512xf32> to vector<2x128xf32>
    %353 = math.tanh %352 : vector<2x128xf32>
    %354 = vector.extract_strided_slice %339 {offsets = [0, 384], sizes = [2, 128], strides = [1, 1]} : vector<2x512xf32> to vector<2x128xf32>
    %355 = arith.negf %354 : vector<2x128xf32>
    %356 = math.exp %355 : vector<2x128xf32>
    %cst_137 = arith.constant 1.000000e+00 : f32
    %357 = vector.broadcast %cst_137 : f32 to vector<2x128xf32>
    %358 = arith.addf %357, %356 : vector<2x128xf32>
    %359 = arith.divf %357, %358 : vector<2x128xf32>
    %360 = arith.mulf %351, %281 : vector<2x128xf32>
    %361 = arith.mulf %345, %353 : vector<2x128xf32>
    %362 = arith.addf %360, %361 : vector<2x128xf32>
    %363 = math.tanh %362 : vector<2x128xf32>
    %364 = arith.mulf %359, %363 : vector<2x128xf32>
    %365 = arith.truncf %364 : vector<2x128xf32> to vector<2x128xbf16>
    %c0_138 = arith.constant 0 : index
    %c0_139 = arith.constant 0 : index
    %c0_140 = arith.constant 0 : index
    %366 = vector.load %arg2[%c0_138, %c0_139, %c0_140] : memref<1x128x512xbf16, #tpu.memory_space<vmem>>, vector<1x128x512xbf16>
    %367 = vector.shape_cast %366 : vector<1x128x512xbf16> to vector<128x512xbf16>
    %cst_141 = arith.constant dense<0.000000e+00> : vector<2x512xf32>
    %368 = tpu.matmul %365, %367, %cst_141 {dimension_numbers = #tpu.dot_dimension_numbers<[1], [0], [0], [1], [0, 0, 1, 1], [], []>} : vector<2x128xbf16>, vector<128x512xbf16>, vector<2x512xf32> -> vector<2x512xf32>
    %369 = arith.truncf %321 : vector<2x128xf32> to vector<2x128xbf16>
    %c1_142 = arith.constant 1 : index
    %c0_143 = arith.constant 0 : index
    %c0_144 = arith.constant 0 : index
    %370 = vector.load %arg3[%c1_142, %c0_143, %c0_144] : memref<2x128x512xbf16, #tpu.memory_space<vmem>>, vector<1x128x512xbf16>
    %371 = vector.shape_cast %370 : vector<1x128x512xbf16> to vector<128x512xbf16>
    %cst_145 = arith.constant dense<0.000000e+00> : vector<2x512xf32>
    %372 = tpu.matmul %369, %371, %cst_145 {dimension_numbers = #tpu.dot_dimension_numbers<[1], [0], [0], [1], [0, 0, 1, 1], [], []>} : vector<2x128xbf16>, vector<128x512xbf16>, vector<2x512xf32> -> vector<2x512xf32>
    %373 = arith.addf %368, %372 : vector<2x512xf32>
    %c1_146 = arith.constant 1 : index
    %c0_147 = arith.constant 0 : index
    %c0_148 = arith.constant 0 : index
    %374 = vector.load %arg4[%c1_146, %c0_147, %c0_148] : memref<2x1x512xf32, #tpu.memory_space<vmem>>, vector<1x1x512xf32>
    %375 = vector.shape_cast %374 : vector<1x1x512xf32> to vector<1x512xf32>
    %376 = vector.broadcast %375 : vector<1x512xf32> to vector<2x512xf32>
    %377 = arith.addf %373, %376 : vector<2x512xf32>
    %378 = vector.extract_strided_slice %377 {offsets = [0, 0], sizes = [2, 128], strides = [1, 1]} : vector<2x512xf32> to vector<2x128xf32>
    %379 = arith.negf %378 : vector<2x128xf32>
    %380 = math.exp %379 : vector<2x128xf32>
    %cst_149 = arith.constant 1.000000e+00 : f32
    %381 = vector.broadcast %cst_149 : f32 to vector<2x128xf32>
    %382 = arith.addf %381, %380 : vector<2x128xf32>
    %383 = arith.divf %381, %382 : vector<2x128xf32>
    %384 = vector.extract_strided_slice %377 {offsets = [0, 128], sizes = [2, 128], strides = [1, 1]} : vector<2x512xf32> to vector<2x128xf32>
    %385 = arith.negf %384 : vector<2x128xf32>
    %386 = math.exp %385 : vector<2x128xf32>
    %cst_150 = arith.constant 1.000000e+00 : f32
    %387 = vector.broadcast %cst_150 : f32 to vector<2x128xf32>
    %388 = arith.addf %387, %386 : vector<2x128xf32>
    %389 = arith.divf %387, %388 : vector<2x128xf32>
    %390 = vector.extract_strided_slice %377 {offsets = [0, 256], sizes = [2, 128], strides = [1, 1]} : vector<2x512xf32> to vector<2x128xf32>
    %391 = math.tanh %390 : vector<2x128xf32>
    %392 = vector.extract_strided_slice %377 {offsets = [0, 384], sizes = [2, 128], strides = [1, 1]} : vector<2x512xf32> to vector<2x128xf32>
    %393 = arith.negf %392 : vector<2x128xf32>
    %394 = math.exp %393 : vector<2x128xf32>
    %cst_151 = arith.constant 1.000000e+00 : f32
    %395 = vector.broadcast %cst_151 : f32 to vector<2x128xf32>
    %396 = arith.addf %395, %394 : vector<2x128xf32>
    %397 = arith.divf %395, %396 : vector<2x128xf32>
    %398 = arith.mulf %389, %319 : vector<2x128xf32>
    %399 = arith.mulf %383, %391 : vector<2x128xf32>
    %400 = arith.addf %398, %399 : vector<2x128xf32>
    %401 = math.tanh %400 : vector<2x128xf32>
    %402 = arith.mulf %397, %401 : vector<2x128xf32>
    %403 = arith.index_cast %c4_i32 : i32 to index
    %c0_152 = arith.constant 0 : index
    %c0_153 = arith.constant 0 : index
    %404 = vector.load %arg8[%403, %c0_152, %c0_153] : memref<8x2x128xf32, #tpu.memory_space<vmem>>, vector<1x2x128xf32>
    %405 = vector.shape_cast %404 : vector<1x2x128xf32> to vector<2x128xf32>
    %406 = vector.shape_cast %402 : vector<2x128xf32> to vector<1x2x128xf32>
    tpu.vector_store %arg8[%403, %c0_152, %c0_153], %406 {strides = array<i32>} : memref<8x2x128xf32, #tpu.memory_space<vmem>>, vector<1x2x128xf32>,
    %c5_i32 = arith.constant 5 : i32
    %407 = arith.index_cast %c5_i32 : i32 to index
    %c0_154 = arith.constant 0 : index
    %c0_155 = arith.constant 0 : index
    %408 = vector.load %arg0[%407, %c0_154, %c0_155] : memref<8x2x4xf32, #tpu.memory_space<vmem>>, vector<1x2x4xf32>
    %409 = vector.shape_cast %408 : vector<1x2x4xf32> to vector<2x4xf32>
    %c0_156 = arith.constant 0 : index
    %c0_157 = arith.constant 0 : index
    %410 = vector.load %arg1[%c0_156, %c0_157] : memref<4x512xf32, #tpu.memory_space<vmem>>, vector<4x512xf32>
    %cst_158 = arith.constant dense<0.000000e+00> : vector<2x512xf32>
    %411 = tpu.matmul %409, %410, %cst_158 {dimension_numbers = #tpu.dot_dimension_numbers<[1], [0], [0], [1], [0, 0, 1, 1], [], []>} : vector<2x4xf32>, vector<4x512xf32>, vector<2x512xf32> -> vector<2x512xf32>
    %412 = arith.truncf %364 : vector<2x128xf32> to vector<2x128xbf16>
    %c0_159 = arith.constant 0 : index
    %c0_160 = arith.constant 0 : index
    %c0_161 = arith.constant 0 : index
    %413 = vector.load %arg3[%c0_159, %c0_160, %c0_161] : memref<2x128x512xbf16, #tpu.memory_space<vmem>>, vector<1x128x512xbf16>
    %414 = vector.shape_cast %413 : vector<1x128x512xbf16> to vector<128x512xbf16>
    %cst_162 = arith.constant dense<0.000000e+00> : vector<2x512xf32>
    %415 = tpu.matmul %412, %414, %cst_162 {dimension_numbers = #tpu.dot_dimension_numbers<[1], [0], [0], [1], [0, 0, 1, 1], [], []>} : vector<2x128xbf16>, vector<128x512xbf16>, vector<2x512xf32> -> vector<2x512xf32>
    %416 = arith.addf %411, %415 : vector<2x512xf32>
    %c0_163 = arith.constant 0 : index
    %c0_164 = arith.constant 0 : index
    %c0_165 = arith.constant 0 : index
    %417 = vector.load %arg4[%c0_163, %c0_164, %c0_165] : memref<2x1x512xf32, #tpu.memory_space<vmem>>, vector<1x1x512xf32>
    %418 = vector.shape_cast %417 : vector<1x1x512xf32> to vector<1x512xf32>
    %419 = vector.broadcast %418 : vector<1x512xf32> to vector<2x512xf32>
    %420 = arith.addf %416, %419 : vector<2x512xf32>
    %421 = vector.extract_strided_slice %420 {offsets = [0, 0], sizes = [2, 128], strides = [1, 1]} : vector<2x512xf32> to vector<2x128xf32>
    %422 = arith.negf %421 : vector<2x128xf32>
    %423 = math.exp %422 : vector<2x128xf32>
    %cst_166 = arith.constant 1.000000e+00 : f32
    %424 = vector.broadcast %cst_166 : f32 to vector<2x128xf32>
    %425 = arith.addf %424, %423 : vector<2x128xf32>
    %426 = arith.divf %424, %425 : vector<2x128xf32>
    %427 = vector.extract_strided_slice %420 {offsets = [0, 128], sizes = [2, 128], strides = [1, 1]} : vector<2x512xf32> to vector<2x128xf32>
    %428 = arith.negf %427 : vector<2x128xf32>
    %429 = math.exp %428 : vector<2x128xf32>
    %cst_167 = arith.constant 1.000000e+00 : f32
    %430 = vector.broadcast %cst_167 : f32 to vector<2x128xf32>
    %431 = arith.addf %430, %429 : vector<2x128xf32>
    %432 = arith.divf %430, %431 : vector<2x128xf32>
    %433 = vector.extract_strided_slice %420 {offsets = [0, 256], sizes = [2, 128], strides = [1, 1]} : vector<2x512xf32> to vector<2x128xf32>
    %434 = math.tanh %433 : vector<2x128xf32>
    %435 = vector.extract_strided_slice %420 {offsets = [0, 384], sizes = [2, 128], strides = [1, 1]} : vector<2x512xf32> to vector<2x128xf32>
    %436 = arith.negf %435 : vector<2x128xf32>
    %437 = math.exp %436 : vector<2x128xf32>
    %cst_168 = arith.constant 1.000000e+00 : f32
    %438 = vector.broadcast %cst_168 : f32 to vector<2x128xf32>
    %439 = arith.addf %438, %437 : vector<2x128xf32>
    %440 = arith.divf %438, %439 : vector<2x128xf32>
    %441 = arith.mulf %432, %362 : vector<2x128xf32>
    %442 = arith.mulf %426, %434 : vector<2x128xf32>
    %443 = arith.addf %441, %442 : vector<2x128xf32>
    %444 = math.tanh %443 : vector<2x128xf32>
    %445 = arith.mulf %440, %444 : vector<2x128xf32>
    %446 = arith.truncf %445 : vector<2x128xf32> to vector<2x128xbf16>
    %c0_169 = arith.constant 0 : index
    %c0_170 = arith.constant 0 : index
    %c0_171 = arith.constant 0 : index
    %447 = vector.load %arg2[%c0_169, %c0_170, %c0_171] : memref<1x128x512xbf16, #tpu.memory_space<vmem>>, vector<1x128x512xbf16>
    %448 = vector.shape_cast %447 : vector<1x128x512xbf16> to vector<128x512xbf16>
    %cst_172 = arith.constant dense<0.000000e+00> : vector<2x512xf32>
    %449 = tpu.matmul %446, %448, %cst_172 {dimension_numbers = #tpu.dot_dimension_numbers<[1], [0], [0], [1], [0, 0, 1, 1], [], []>} : vector<2x128xbf16>, vector<128x512xbf16>, vector<2x512xf32> -> vector<2x512xf32>
    %450 = arith.truncf %402 : vector<2x128xf32> to vector<2x128xbf16>
    %c1_173 = arith.constant 1 : index
    %c0_174 = arith.constant 0 : index
    %c0_175 = arith.constant 0 : index
    %451 = vector.load %arg3[%c1_173, %c0_174, %c0_175] : memref<2x128x512xbf16, #tpu.memory_space<vmem>>, vector<1x128x512xbf16>
    %452 = vector.shape_cast %451 : vector<1x128x512xbf16> to vector<128x512xbf16>
    %cst_176 = arith.constant dense<0.000000e+00> : vector<2x512xf32>
    %453 = tpu.matmul %450, %452, %cst_176 {dimension_numbers = #tpu.dot_dimension_numbers<[1], [0], [0], [1], [0, 0, 1, 1], [], []>} : vector<2x128xbf16>, vector<128x512xbf16>, vector<2x512xf32> -> vector<2x512xf32>
    %454 = arith.addf %449, %453 : vector<2x512xf32>
    %c1_177 = arith.constant 1 : index
    %c0_178 = arith.constant 0 : index
    %c0_179 = arith.constant 0 : index
    %455 = vector.load %arg4[%c1_177, %c0_178, %c0_179] : memref<2x1x512xf32, #tpu.memory_space<vmem>>, vector<1x1x512xf32>
    %456 = vector.shape_cast %455 : vector<1x1x512xf32> to vector<1x512xf32>
    %457 = vector.broadcast %456 : vector<1x512xf32> to vector<2x512xf32>
    %458 = arith.addf %454, %457 : vector<2x512xf32>
    %459 = vector.extract_strided_slice %458 {offsets = [0, 0], sizes = [2, 128], strides = [1, 1]} : vector<2x512xf32> to vector<2x128xf32>
    %460 = arith.negf %459 : vector<2x128xf32>
    %461 = math.exp %460 : vector<2x128xf32>
    %cst_180 = arith.constant 1.000000e+00 : f32
    %462 = vector.broadcast %cst_180 : f32 to vector<2x128xf32>
    %463 = arith.addf %462, %461 : vector<2x128xf32>
    %464 = arith.divf %462, %463 : vector<2x128xf32>
    %465 = vector.extract_strided_slice %458 {offsets = [0, 128], sizes = [2, 128], strides = [1, 1]} : vector<2x512xf32> to vector<2x128xf32>
    %466 = arith.negf %465 : vector<2x128xf32>
    %467 = math.exp %466 : vector<2x128xf32>
    %cst_181 = arith.constant 1.000000e+00 : f32
    %468 = vector.broadcast %cst_181 : f32 to vector<2x128xf32>
    %469 = arith.addf %468, %467 : vector<2x128xf32>
    %470 = arith.divf %468, %469 : vector<2x128xf32>
    %471 = vector.extract_strided_slice %458 {offsets = [0, 256], sizes = [2, 128], strides = [1, 1]} : vector<2x512xf32> to vector<2x128xf32>
    %472 = math.tanh %471 : vector<2x128xf32>
    %473 = vector.extract_strided_slice %458 {offsets = [0, 384], sizes = [2, 128], strides = [1, 1]} : vector<2x512xf32> to vector<2x128xf32>
    %474 = arith.negf %473 : vector<2x128xf32>
    %475 = math.exp %474 : vector<2x128xf32>
    %cst_182 = arith.constant 1.000000e+00 : f32
    %476 = vector.broadcast %cst_182 : f32 to vector<2x128xf32>
    %477 = arith.addf %476, %475 : vector<2x128xf32>
    %478 = arith.divf %476, %477 : vector<2x128xf32>
    %479 = arith.mulf %470, %400 : vector<2x128xf32>
    %480 = arith.mulf %464, %472 : vector<2x128xf32>
    %481 = arith.addf %479, %480 : vector<2x128xf32>
    %482 = math.tanh %481 : vector<2x128xf32>
    %483 = arith.mulf %478, %482 : vector<2x128xf32>
    %484 = arith.index_cast %c5_i32 : i32 to index
    %c0_183 = arith.constant 0 : index
    %c0_184 = arith.constant 0 : index
    %485 = vector.load %arg8[%484, %c0_183, %c0_184] : memref<8x2x128xf32, #tpu.memory_space<vmem>>, vector<1x2x128xf32>
    %486 = vector.shape_cast %485 : vector<1x2x128xf32> to vector<2x128xf32>
    %487 = vector.shape_cast %483 : vector<2x128xf32> to vector<1x2x128xf32>
    tpu.vector_store %arg8[%484, %c0_183, %c0_184], %487 {strides = array<i32>} : memref<8x2x128xf32, #tpu.memory_space<vmem>>, vector<1x2x128xf32>,
    %c6_i32 = arith.constant 6 : i32
    %488 = arith.index_cast %c6_i32 : i32 to index
    %c0_185 = arith.constant 0 : index
    %c0_186 = arith.constant 0 : index
    %489 = vector.load %arg0[%488, %c0_185, %c0_186] : memref<8x2x4xf32, #tpu.memory_space<vmem>>, vector<1x2x4xf32>
    %490 = vector.shape_cast %489 : vector<1x2x4xf32> to vector<2x4xf32>
    %c0_187 = arith.constant 0 : index
    %c0_188 = arith.constant 0 : index
    %491 = vector.load %arg1[%c0_187, %c0_188] : memref<4x512xf32, #tpu.memory_space<vmem>>, vector<4x512xf32>
    %cst_189 = arith.constant dense<0.000000e+00> : vector<2x512xf32>
    %492 = tpu.matmul %490, %491, %cst_189 {dimension_numbers = #tpu.dot_dimension_numbers<[1], [0], [0], [1], [0, 0, 1, 1], [], []>} : vector<2x4xf32>, vector<4x512xf32>, vector<2x512xf32> -> vector<2x512xf32>
    %493 = arith.truncf %445 : vector<2x128xf32> to vector<2x128xbf16>
    %c0_190 = arith.constant 0 : index
    %c0_191 = arith.constant 0 : index
    %c0_192 = arith.constant 0 : index
    %494 = vector.load %arg3[%c0_190, %c0_191, %c0_192] : memref<2x128x512xbf16, #tpu.memory_space<vmem>>, vector<1x128x512xbf16>
    %495 = vector.shape_cast %494 : vector<1x128x512xbf16> to vector<128x512xbf16>
    %cst_193 = arith.constant dense<0.000000e+00> : vector<2x512xf32>
    %496 = tpu.matmul %493, %495, %cst_193 {dimension_numbers = #tpu.dot_dimension_numbers<[1], [0], [0], [1], [0, 0, 1, 1], [], []>} : vector<2x128xbf16>, vector<128x512xbf16>, vector<2x512xf32> -> vector<2x512xf32>
    %497 = arith.addf %492, %496 : vector<2x512xf32>
    %c0_194 = arith.constant 0 : index
    %c0_195 = arith.constant 0 : index
    %c0_196 = arith.constant 0 : index
    %498 = vector.load %arg4[%c0_194, %c0_195, %c0_196] : memref<2x1x512xf32, #tpu.memory_space<vmem>>, vector<1x1x512xf32>
    %499 = vector.shape_cast %498 : vector<1x1x512xf32> to vector<1x512xf32>
    %500 = vector.broadcast %499 : vector<1x512xf32> to vector<2x512xf32>
    %501 = arith.addf %497, %500 : vector<2x512xf32>
    %502 = vector.extract_strided_slice %501 {offsets = [0, 0], sizes = [2, 128], strides = [1, 1]} : vector<2x512xf32> to vector<2x128xf32>
    %503 = arith.negf %502 : vector<2x128xf32>
    %504 = math.exp %503 : vector<2x128xf32>
    %cst_197 = arith.constant 1.000000e+00 : f32
    %505 = vector.broadcast %cst_197 : f32 to vector<2x128xf32>
    %506 = arith.addf %505, %504 : vector<2x128xf32>
    %507 = arith.divf %505, %506 : vector<2x128xf32>
    %508 = vector.extract_strided_slice %501 {offsets = [0, 128], sizes = [2, 128], strides = [1, 1]} : vector<2x512xf32> to vector<2x128xf32>
    %509 = arith.negf %508 : vector<2x128xf32>
    %510 = math.exp %509 : vector<2x128xf32>
    %cst_198 = arith.constant 1.000000e+00 : f32
    %511 = vector.broadcast %cst_198 : f32 to vector<2x128xf32>
    %512 = arith.addf %511, %510 : vector<2x128xf32>
    %513 = arith.divf %511, %512 : vector<2x128xf32>
    %514 = vector.extract_strided_slice %501 {offsets = [0, 256], sizes = [2, 128], strides = [1, 1]} : vector<2x512xf32> to vector<2x128xf32>
    %515 = math.tanh %514 : vector<2x128xf32>
    %516 = vector.extract_strided_slice %501 {offsets = [0, 384], sizes = [2, 128], strides = [1, 1]} : vector<2x512xf32> to vector<2x128xf32>
    %517 = arith.negf %516 : vector<2x128xf32>
    %518 = math.exp %517 : vector<2x128xf32>
    %cst_199 = arith.constant 1.000000e+00 : f32
    %519 = vector.broadcast %cst_199 : f32 to vector<2x128xf32>
    %520 = arith.addf %519, %518 : vector<2x128xf32>
    %521 = arith.divf %519, %520 : vector<2x128xf32>
    %522 = arith.mulf %513, %443 : vector<2x128xf32>
    %523 = arith.mulf %507, %515 : vector<2x128xf32>
    %524 = arith.addf %522, %523 : vector<2x128xf32>
    %525 = math.tanh %524 : vector<2x128xf32>
    %526 = arith.mulf %521, %525 : vector<2x128xf32>
    %527 = arith.truncf %526 : vector<2x128xf32> to vector<2x128xbf16>
    %c0_200 = arith.constant 0 : index
    %c0_201 = arith.constant 0 : index
    %c0_202 = arith.constant 0 : index
    %528 = vector.load %arg2[%c0_200, %c0_201, %c0_202] : memref<1x128x512xbf16, #tpu.memory_space<vmem>>, vector<1x128x512xbf16>
    %529 = vector.shape_cast %528 : vector<1x128x512xbf16> to vector<128x512xbf16>
    %cst_203 = arith.constant dense<0.000000e+00> : vector<2x512xf32>
    %530 = tpu.matmul %527, %529, %cst_203 {dimension_numbers = #tpu.dot_dimension_numbers<[1], [0], [0], [1], [0, 0, 1, 1], [], []>} : vector<2x128xbf16>, vector<128x512xbf16>, vector<2x512xf32> -> vector<2x512xf32>
    %531 = arith.truncf %483 : vector<2x128xf32> to vector<2x128xbf16>
    %c1_204 = arith.constant 1 : index
    %c0_205 = arith.constant 0 : index
    %c0_206 = arith.constant 0 : index
    %532 = vector.load %arg3[%c1_204, %c0_205, %c0_206] : memref<2x128x512xbf16, #tpu.memory_space<vmem>>, vector<1x128x512xbf16>
    %533 = vector.shape_cast %532 : vector<1x128x512xbf16> to vector<128x512xbf16>
    %cst_207 = arith.constant dense<0.000000e+00> : vector<2x512xf32>
    %534 = tpu.matmul %531, %533, %cst_207 {dimension_numbers = #tpu.dot_dimension_numbers<[1], [0], [0], [1], [0, 0, 1, 1], [], []>} : vector<2x128xbf16>, vector<128x512xbf16>, vector<2x512xf32> -> vector<2x512xf32>
    %535 = arith.addf %530, %534 : vector<2x512xf32>
    %c1_208 = arith.constant 1 : index
    %c0_209 = arith.constant 0 : index
    %c0_210 = arith.constant 0 : index
    %536 = vector.load %arg4[%c1_208, %c0_209, %c0_210] : memref<2x1x512xf32, #tpu.memory_space<vmem>>, vector<1x1x512xf32>
    %537 = vector.shape_cast %536 : vector<1x1x512xf32> to vector<1x512xf32>
    %538 = vector.broadcast %537 : vector<1x512xf32> to vector<2x512xf32>
    %539 = arith.addf %535, %538 : vector<2x512xf32>
    %540 = vector.extract_strided_slice %539 {offsets = [0, 0], sizes = [2, 128], strides = [1, 1]} : vector<2x512xf32> to vector<2x128xf32>
    %541 = arith.negf %540 : vector<2x128xf32>
    %542 = math.exp %541 : vector<2x128xf32>
    %cst_211 = arith.constant 1.000000e+00 : f32
    %543 = vector.broadcast %cst_211 : f32 to vector<2x128xf32>
    %544 = arith.addf %543, %542 : vector<2x128xf32>
    %545 = arith.divf %543, %544 : vector<2x128xf32>
    %546 = vector.extract_strided_slice %539 {offsets = [0, 128], sizes = [2, 128], strides = [1, 1]} : vector<2x512xf32> to vector<2x128xf32>
    %547 = arith.negf %546 : vector<2x128xf32>
    %548 = math.exp %547 : vector<2x128xf32>
    %cst_212 = arith.constant 1.000000e+00 : f32
    %549 = vector.broadcast %cst_212 : f32 to vector<2x128xf32>
    %550 = arith.addf %549, %548 : vector<2x128xf32>
    %551 = arith.divf %549, %550 : vector<2x128xf32>
    %552 = vector.extract_strided_slice %539 {offsets = [0, 256], sizes = [2, 128], strides = [1, 1]} : vector<2x512xf32> to vector<2x128xf32>
    %553 = math.tanh %552 : vector<2x128xf32>
    %554 = vector.extract_strided_slice %539 {offsets = [0, 384], sizes = [2, 128], strides = [1, 1]} : vector<2x512xf32> to vector<2x128xf32>
    %555 = arith.negf %554 : vector<2x128xf32>
    %556 = math.exp %555 : vector<2x128xf32>
    %cst_213 = arith.constant 1.000000e+00 : f32
    %557 = vector.broadcast %cst_213 : f32 to vector<2x128xf32>
    %558 = arith.addf %557, %556 : vector<2x128xf32>
    %559 = arith.divf %557, %558 : vector<2x128xf32>
    %560 = arith.mulf %551, %481 : vector<2x128xf32>
    %561 = arith.mulf %545, %553 : vector<2x128xf32>
    %562 = arith.addf %560, %561 : vector<2x128xf32>
    %563 = math.tanh %562 : vector<2x128xf32>
    %564 = arith.mulf %559, %563 : vector<2x128xf32>
    %565 = arith.index_cast %c6_i32 : i32 to index
    %c0_214 = arith.constant 0 : index
    %c0_215 = arith.constant 0 : index
    %566 = vector.load %arg8[%565, %c0_214, %c0_215] : memref<8x2x128xf32, #tpu.memory_space<vmem>>, vector<1x2x128xf32>
    %567 = vector.shape_cast %566 : vector<1x2x128xf32> to vector<2x128xf32>
    %568 = vector.shape_cast %564 : vector<2x128xf32> to vector<1x2x128xf32>
    tpu.vector_store %arg8[%565, %c0_214, %c0_215], %568 {strides = array<i32>} : memref<8x2x128xf32, #tpu.memory_space<vmem>>, vector<1x2x128xf32>,
    %c7_i32 = arith.constant 7 : i32
    %569 = arith.index_cast %c7_i32 : i32 to index
    %c0_216 = arith.constant 0 : index
    %c0_217 = arith.constant 0 : index
    %570 = vector.load %arg0[%569, %c0_216, %c0_217] : memref<8x2x4xf32, #tpu.memory_space<vmem>>, vector<1x2x4xf32>
    %571 = vector.shape_cast %570 : vector<1x2x4xf32> to vector<2x4xf32>
    %c0_218 = arith.constant 0 : index
    %c0_219 = arith.constant 0 : index
    %572 = vector.load %arg1[%c0_218, %c0_219] : memref<4x512xf32, #tpu.memory_space<vmem>>, vector<4x512xf32>
    %cst_220 = arith.constant dense<0.000000e+00> : vector<2x512xf32>
    %573 = tpu.matmul %571, %572, %cst_220 {dimension_numbers = #tpu.dot_dimension_numbers<[1], [0], [0], [1], [0, 0, 1, 1], [], []>} : vector<2x4xf32>, vector<4x512xf32>, vector<2x512xf32> -> vector<2x512xf32>
    %574 = arith.truncf %526 : vector<2x128xf32> to vector<2x128xbf16>
    %c0_221 = arith.constant 0 : index
    %c0_222 = arith.constant 0 : index
    %c0_223 = arith.constant 0 : index
    %575 = vector.load %arg3[%c0_221, %c0_222, %c0_223] : memref<2x128x512xbf16, #tpu.memory_space<vmem>>, vector<1x128x512xbf16>
    %576 = vector.shape_cast %575 : vector<1x128x512xbf16> to vector<128x512xbf16>
    %cst_224 = arith.constant dense<0.000000e+00> : vector<2x512xf32>
    %577 = tpu.matmul %574, %576, %cst_224 {dimension_numbers = #tpu.dot_dimension_numbers<[1], [0], [0], [1], [0, 0, 1, 1], [], []>} : vector<2x128xbf16>, vector<128x512xbf16>, vector<2x512xf32> -> vector<2x512xf32>
    %578 = arith.addf %573, %577 : vector<2x512xf32>
    %c0_225 = arith.constant 0 : index
    %c0_226 = arith.constant 0 : index
    %c0_227 = arith.constant 0 : index
    %579 = vector.load %arg4[%c0_225, %c0_226, %c0_227] : memref<2x1x512xf32, #tpu.memory_space<vmem>>, vector<1x1x512xf32>
    %580 = vector.shape_cast %579 : vector<1x1x512xf32> to vector<1x512xf32>
    %581 = vector.broadcast %580 : vector<1x512xf32> to vector<2x512xf32>
    %582 = arith.addf %578, %581 : vector<2x512xf32>
    %583 = vector.extract_strided_slice %582 {offsets = [0, 0], sizes = [2, 128], strides = [1, 1]} : vector<2x512xf32> to vector<2x128xf32>
    %584 = arith.negf %583 : vector<2x128xf32>
    %585 = math.exp %584 : vector<2x128xf32>
    %cst_228 = arith.constant 1.000000e+00 : f32
    %586 = vector.broadcast %cst_228 : f32 to vector<2x128xf32>
    %587 = arith.addf %586, %585 : vector<2x128xf32>
    %588 = arith.divf %586, %587 : vector<2x128xf32>
    %589 = vector.extract_strided_slice %582 {offsets = [0, 128], sizes = [2, 128], strides = [1, 1]} : vector<2x512xf32> to vector<2x128xf32>
    %590 = arith.negf %589 : vector<2x128xf32>
    %591 = math.exp %590 : vector<2x128xf32>
    %cst_229 = arith.constant 1.000000e+00 : f32
    %592 = vector.broadcast %cst_229 : f32 to vector<2x128xf32>
    %593 = arith.addf %592, %591 : vector<2x128xf32>
    %594 = arith.divf %592, %593 : vector<2x128xf32>
    %595 = vector.extract_strided_slice %582 {offsets = [0, 256], sizes = [2, 128], strides = [1, 1]} : vector<2x512xf32> to vector<2x128xf32>
    %596 = math.tanh %595 : vector<2x128xf32>
    %597 = vector.extract_strided_slice %582 {offsets = [0, 384], sizes = [2, 128], strides = [1, 1]} : vector<2x512xf32> to vector<2x128xf32>
    %598 = arith.negf %597 : vector<2x128xf32>
    %599 = math.exp %598 : vector<2x128xf32>
    %cst_230 = arith.constant 1.000000e+00 : f32
    %600 = vector.broadcast %cst_230 : f32 to vector<2x128xf32>
    %601 = arith.addf %600, %599 : vector<2x128xf32>
    %602 = arith.divf %600, %601 : vector<2x128xf32>
    %603 = arith.mulf %594, %524 : vector<2x128xf32>
    %604 = arith.mulf %588, %596 : vector<2x128xf32>
    %605 = arith.addf %603, %604 : vector<2x128xf32>
    %606 = math.tanh %605 : vector<2x128xf32>
    %607 = arith.mulf %602, %606 : vector<2x128xf32>
    %608 = arith.truncf %607 : vector<2x128xf32> to vector<2x128xbf16>
    %c0_231 = arith.constant 0 : index
    %c0_232 = arith.constant 0 : index
    %c0_233 = arith.constant 0 : index
    %609 = vector.load %arg2[%c0_231, %c0_232, %c0_233] : memref<1x128x512xbf16, #tpu.memory_space<vmem>>, vector<1x128x512xbf16>
    %610 = vector.shape_cast %609 : vector<1x128x512xbf16> to vector<128x512xbf16>
    %cst_234 = arith.constant dense<0.000000e+00> : vector<2x512xf32>
    %611 = tpu.matmul %608, %610, %cst_234 {dimension_numbers = #tpu.dot_dimension_numbers<[1], [0], [0], [1], [0, 0, 1, 1], [], []>} : vector<2x128xbf16>, vector<128x512xbf16>, vector<2x512xf32> -> vector<2x512xf32>
    %612 = arith.truncf %564 : vector<2x128xf32> to vector<2x128xbf16>
    %c1_235 = arith.constant 1 : index
    %c0_236 = arith.constant 0 : index
    %c0_237 = arith.constant 0 : index
    %613 = vector.load %arg3[%c1_235, %c0_236, %c0_237] : memref<2x128x512xbf16, #tpu.memory_space<vmem>>, vector<1x128x512xbf16>
    %614 = vector.shape_cast %613 : vector<1x128x512xbf16> to vector<128x512xbf16>
    %cst_238 = arith.constant dense<0.000000e+00> : vector<2x512xf32>
    %615 = tpu.matmul %612, %614, %cst_238 {dimension_numbers = #tpu.dot_dimension_numbers<[1], [0], [0], [1], [0, 0, 1, 1], [], []>} : vector<2x128xbf16>, vector<128x512xbf16>, vector<2x512xf32> -> vector<2x512xf32>
    %616 = arith.addf %611, %615 : vector<2x512xf32>
    %c1_239 = arith.constant 1 : index
    %c0_240 = arith.constant 0 : index
    %c0_241 = arith.constant 0 : index
    %617 = vector.load %arg4[%c1_239, %c0_240, %c0_241] : memref<2x1x512xf32, #tpu.memory_space<vmem>>, vector<1x1x512xf32>
    %618 = vector.shape_cast %617 : vector<1x1x512xf32> to vector<1x512xf32>
    %619 = vector.broadcast %618 : vector<1x512xf32> to vector<2x512xf32>
    %620 = arith.addf %616, %619 : vector<2x512xf32>
    %621 = vector.extract_strided_slice %620 {offsets = [0, 0], sizes = [2, 128], strides = [1, 1]} : vector<2x512xf32> to vector<2x128xf32>
    %622 = arith.negf %621 : vector<2x128xf32>
    %623 = math.exp %622 : vector<2x128xf32>
    %cst_242 = arith.constant 1.000000e+00 : f32
    %624 = vector.broadcast %cst_242 : f32 to vector<2x128xf32>
    %625 = arith.addf %624, %623 : vector<2x128xf32>
    %626 = arith.divf %624, %625 : vector<2x128xf32>
    %627 = vector.extract_strided_slice %620 {offsets = [0, 128], sizes = [2, 128], strides = [1, 1]} : vector<2x512xf32> to vector<2x128xf32>
    %628 = arith.negf %627 : vector<2x128xf32>
    %629 = math.exp %628 : vector<2x128xf32>
    %cst_243 = arith.constant 1.000000e+00 : f32
    %630 = vector.broadcast %cst_243 : f32 to vector<2x128xf32>
    %631 = arith.addf %630, %629 : vector<2x128xf32>
    %632 = arith.divf %630, %631 : vector<2x128xf32>
    %633 = vector.extract_strided_slice %620 {offsets = [0, 256], sizes = [2, 128], strides = [1, 1]} : vector<2x512xf32> to vector<2x128xf32>
    %634 = math.tanh %633 : vector<2x128xf32>
    %635 = vector.extract_strided_slice %620 {offsets = [0, 384], sizes = [2, 128], strides = [1, 1]} : vector<2x512xf32> to vector<2x128xf32>
    %636 = arith.negf %635 : vector<2x128xf32>
    %637 = math.exp %636 : vector<2x128xf32>
    %cst_244 = arith.constant 1.000000e+00 : f32
    %638 = vector.broadcast %cst_244 : f32 to vector<2x128xf32>
    %639 = arith.addf %638, %637 : vector<2x128xf32>
    %640 = arith.divf %638, %639 : vector<2x128xf32>
    %641 = arith.mulf %632, %562 : vector<2x128xf32>
    %642 = arith.mulf %626, %634 : vector<2x128xf32>
    %643 = arith.addf %641, %642 : vector<2x128xf32>
    %644 = math.tanh %643 : vector<2x128xf32>
    %645 = arith.mulf %640, %644 : vector<2x128xf32>
    %646 = arith.index_cast %c7_i32 : i32 to index
    %c0_245 = arith.constant 0 : index
    %c0_246 = arith.constant 0 : index
    %647 = vector.load %arg8[%646, %c0_245, %c0_246] : memref<8x2x128xf32, #tpu.memory_space<vmem>>, vector<1x2x128xf32>
    %648 = vector.shape_cast %647 : vector<1x2x128xf32> to vector<2x128xf32>
    %649 = vector.shape_cast %645 : vector<2x128xf32> to vector<1x2x128xf32>
    tpu.vector_store %arg8[%646, %c0_245, %c0_246], %649 {strides = array<i32>} : memref<8x2x128xf32, #tpu.memory_space<vmem>>, vector<1x2x128xf32>,
    %c8_i32 = arith.constant 8 : i32
    %c0_247 = arith.constant 0 : index
    %c0_248 = arith.constant 0 : index
    %c0_249 = arith.constant 0 : index
    %650 = vector.load %arg8[%c0_247, %c0_248, %c0_249] : memref<8x2x128xf32, #tpu.memory_space<vmem>>, vector<8x2x128xf32>
    %c0_250 = arith.constant 0 : index
    %c0_251 = arith.constant 0 : index
    %651 = vector.load %arg5[%c0_250, %c0_251] : memref<1x128xf32, #tpu.memory_space<vmem>>, vector<1x128xf32>
    %652 = vector.shape_cast %651 : vector<1x128xf32> to vector<1x1x128xf32>
    %653 = vector.broadcast %652 : vector<1x1x128xf32> to vector<8x2x128xf32>
    %654 = arith.mulf %650, %653 : vector<8x2x128xf32>
    %cst_252 = arith.constant dense<0.000000e+00> : vector<8x2xf32>
    %655 = vector.multi_reduction <add>, %654, %cst_252 [2] : vector<8x2x128xf32> to vector<8x2xf32>
    %c0_253 = arith.constant 0 : index
    %c0_254 = arith.constant 0 : index
    %656 = memref.load %arg6[%c0_253, %c0_254] : memref<1x1xf32, #tpu.memory_space<smem>>
    %657 = vector.broadcast %656 : f32 to vector<8x2xf32>
    %658 = arith.addf %655, %657 : vector<8x2xf32>
    %659 = arith.negf %658 : vector<8x2xf32>
    %660 = math.exp %659 : vector<8x2xf32>
    %cst_255 = arith.constant 1.000000e+00 : f32
    %661 = vector.broadcast %cst_255 : f32 to vector<8x2xf32>
    %662 = arith.addf %661, %660 : vector<8x2xf32>
    %663 = arith.divf %661, %662 : vector<8x2xf32>
    %c0_256 = arith.constant 0 : index
    %c0_257 = arith.constant 0 : index
    %664 = vector.load %arg7[%c0_256, %c0_257] : memref<8x2xf32, #tpu.memory_space<vmem>>, vector<8x2xf32>
    tpu.vector_store %arg7[%c0_256, %c0_257], %663 {strides = array<i32>} : memref<8x2xf32, #tpu.memory_space<vmem>>, vector<8x2xf32>,
    return
  }
}

</mosaic_0001>

<llo_original>
// kernel: stumble_net_forward.1
$region0: #{stumble_net_forward.1}
  #allocation0 [shape = 'u32[]', space=smem, size = 0x4, offset = 0x4, fixed_abs, tag = 'smem constant byte address 0x4 - core index']
  #allocation1 [shape = 'u32[72,128]{1,0:T(1,128)}', space=vmem, size = 0x9000, scoped, tag = 'internal scratch']
  #allocation2 [shape = 'f32[8,2,128]{2,1,0:T(2,128)}', space=vmem, size = 0x2000, scoped, tag = 'scratch operand']
  #allocation3 [shape = 'f32[1,1]{1,0:T(1,128)S(6)}', space=smem, size = 0x200, scoped, tag = 'scoped memory for stumble_net_forward.1']
  %s0 = inlined_call_operand.vmem [shape: f32[8,2,4], index: 0, kind: input, shape index: {}]
  %s1 = inlined_call_operand.vmem [shape: f32[4,512], index: 1, kind: input, shape index: {}]
  %s2 = inlined_call_operand.hbm [shape: bf16[1,128,512], index: 2, kind: input, shape index: {}]
  %s3 = inlined_call_operand.hbm [shape: bf16[2,128,512], index: 3, kind: input, shape index: {}]
  %s4 = inlined_call_operand.vmem [shape: f32[2,1,512], index: 4, kind: input, shape index: {}]
  %s5 = inlined_call_operand.vmem [shape: f32[1,128], index: 5, kind: input, shape index: {}]
  %s6 = inlined_call_operand.<no memory space> [shape: f32[1,1], index: 6, kind: input, shape index: {}]
  %s7 = inlined_call_operand.vmem [shape: f32[8,2], index: 7, kind: output, shape index: {}]
  %s8 = sld [smem:[#allocation0]]
  $region46: #{stumble_net_forward.1} parent=0
    _
  %s10 = ssub.s32 1, %s8
  %s11 = scalar_select 0, %s10, %s8
  %12 = sst [smem:[#allocation3]] %s6
  $region1: #{stumble_net_forward.1} parent=0
    #allocation4 [shape = 'u8[131072]{0}', space=vmem, size = 0x20000, scoped, tag = 'input window, operand 2, single buffered']
    #allocation5 [shape = 's32[1]{0}', space=sflag, size = 0x4, scoped, tag = 'scoped memory for stumble_net_forward.1']
    #allocation6 [shape = 'u8[262144]{0}', space=vmem, size = 0x40000, scoped, tag = 'input window, operand 3, single buffered']
    #allocation7 [shape = 's32[1]{0}', space=sflag, size = 0x4, scoped, tag = 'scoped memory for stumble_net_forward.1']
    %13 = vsyncpa [#allocation5], 0
    %14 = vsyncpa [#allocation7], 0
    // Predicated region
    $region2: #{stumble_net_forward.1} parent=1 // pred_check
      _
    $region3: #{stumble_net_forward.1} parent=1 // pred_check_branch
      %16 = sbr.rel (0) target = $region5
    $region4: #{stumble_net_forward.1} parent=1 // pred_region
      _
    $region5: #{stumble_net_forward.1} parent=1 // pred_fallthru
      _
    // Predicated region
    $region6: #{stumble_net_forward.1} parent=1 // pred_check
      _
    $region7: #{stumble_net_forward.1} parent=1 // pred_check_branch
      %18 = sbr.rel (0) target = $region9
    $region8: #{stumble_net_forward.1} parent=1 // pred_region
      _
    $region9: #{stumble_net_forward.1} parent=1 // pred_fallthru
      _
    // Predicated region
    $region10: #{stumble_net_forward.1} parent=1 // pred_check
      _
    $region11: #{stumble_net_forward.1} parent=1 // pred_check_branch
      %20 = sbr.rel (0) target = $region13
    $region12: #{stumble_net_forward.1} parent=1 // pred_region
      %22 = vsyncadd [#allocation5], 0
      %s23 = sshll.u32 %s2, 4
      %s24 = int_to_ptr.hbm [resolvable:$true] %s23
      %s25 = sshll.u32 [#allocation4], 4
      %s26 = int_to_ptr.vmem [resolvable:$true] %s25
      %31 = dma.hbm_to_vmem [thread:$0]  %s24, 4096, %s26, [#allocation5], 256, 256, 16
    $region13: #{stumble_net_forward.1} parent=1 // pred_fallthru
      _
    // Predicated region
    $region14: #{stumble_net_forward.1} parent=1 // pred_check
      _
    $region15: #{stumble_net_forward.1} parent=1 // pred_check_branch
      %33 = sbr.rel (0) target = $region17
    $region16: #{stumble_net_forward.1} parent=1 // pred_region
      %35 = vsyncadd [#allocation7], 0
      %s36 = sshll.u32 %s3, 4
      %s37 = int_to_ptr.hbm [resolvable:$true] %s36
      %s38 = sshll.u32 [#allocation6], 4
      %s39 = int_to_ptr.vmem [resolvable:$true] %s38
      %44 = dma.hbm_to_vmem [thread:$0]  %s37, 8192, %s39, [#allocation7], 256, 256, 16
    $region17: #{stumble_net_forward.1} parent=1 // pred_fallthru
      _
    // Predicated region
    $region18: #{stumble_net_forward.1} parent=1 // pred_check
      _
    $region19: #{stumble_net_forward.1} parent=1 // pred_check_branch
      %46 = sbr.rel (0) target = $region21
    $region20: #{stumble_net_forward.1} parent=1 // pred_region
      _
    $region21: #{stumble_net_forward.1} parent=1 // pred_fallthru
      _
    // Predicated region
    $region22: #{stumble_net_forward.1} parent=1 // pred_check
      _
    $region23: #{stumble_net_forward.1} parent=1 // pred_check_branch
      %48 = sbr.rel (0) target = $region25
    $region24: #{stumble_net_forward.1} parent=1 // pred_region
      _
    $region25: #{stumble_net_forward.1} parent=1 // pred_fallthru
      _
    // Predicated region
    $region26: #{stumble_net_forward.1} parent=1 // pred_check
      _
    $region27: #{stumble_net_forward.1} parent=1 // pred_check_branch
      %50 = sbr.rel (0) target = $region29
    $region28: #{stumble_net_forward.1} parent=1 // pred_region
      _
    $region29: #{stumble_net_forward.1} parent=1 // pred_fallthru
      _
    // Predicated region
    $region30: #{stumble_net_forward.1} parent=1 // pred_check
      _
    $region31: #{stumble_net_forward.1} parent=1 // pred_check_branch
      %52 = sbr.rel (0) target = $region33
    $region32: #{stumble_net_forward.1} parent=1 // pred_region
      %54 = dma.done [#allocation5], 4096
    $region33: #{stumble_net_forward.1} parent=1 // pred_fallthru
      _
    // Predicated region
    $region34: #{stumble_net_forward.1} parent=1 // pred_check
      _
    $region35: #{stumble_net_forward.1} parent=1 // pred_check_branch
      %56 = sbr.rel (0) target = $region37
    $region36: #{stumble_net_forward.1} parent=1 // pred_region
      %58 = dma.done [#allocation7], 8192
    $region37: #{stumble_net_forward.1} parent=1 // pred_fallthru
      _
    %v60 = vld [vmem:[%s0] sm:$0x3]
    %v61 = vld [vmem:[%s1] sm:$0xff]
    %v62 = vld [vmem:[%s1 + $0x8] sm:$0xff]
    %v63 = vld [vmem:[#allocation6] sm:$0xff]
    %v64 = vld [vmem:[#allocation6 + $0x8] sm:$0xff]
    %v65 = vld [vmem:[#allocation6 + $0x10] sm:$0xff]
    %v66 = vld [vmem:[#allocation6 + $0x18] sm:$0xff]
    %v67 = vld [vmem:[#allocation6 + $0x20] sm:$0xff]
    %v68 = vld [vmem:[#allocation6 + $0x28] sm:$0xff]
    %v69 = vld [vmem:[#allocation6 + $0x30] sm:$0xff]
    %v70 = vld [vmem:[#allocation6 + $0x38] sm:$0xff]
    %v71 = vld [vmem:[#allocation6 + $0x40] sm:$0xff]
    %v72 = vld [vmem:[#allocation6 + $0x48] sm:$0xff]
    %v73 = vld [vmem:[#allocation6 + $0x50] sm:$0xff]
    %v74 = vld [vmem:[#allocation6 + $0x58] sm:$0xff]
    %v75 = vld [vmem:[#allocation6 + $0x60] sm:$0xff]
    %v76 = vld [vmem:[#allocation6 + $0x68] sm:$0xff]
    %v77 = vld [vmem:[#allocation6 + $0x70] sm:$0xff]
    %v78 = vld [vmem:[#allocation6 + $0x78] sm:$0xff]
    %v79 = vld [vmem:[#allocation6 + $0x80] sm:$0xff]
    %v80 = vld [vmem:[#allocation6 + $0x88] sm:$0xff]
    %v81 = vld [vmem:[#allocation6 + $0x90] sm:$0xff]
    %v82 = vld [vmem:[#allocation6 + $0x98] sm:$0xff]
    %v83 = vld [vmem:[#allocation6 + $0xa0] sm:$0xff]
    %v84 = vld [vmem:[#allocation6 + $0xa8] sm:$0xff]
    %v85 = vld [vmem:[#allocation6 + $0xb0] sm:$0xff]
    %v86 = vld [vmem:[#allocation6 + $0xb8] sm:$0xff]
    %v87 = vld [vmem:[#allocation6 + $0xc0] sm:$0xff]
    %v88 = vld [vmem:[#allocation6 + $0xc8] sm:$0xff]
    %v89 = vld [vmem:[#allocation6 + $0xd0] sm:$0xff]
    %v90 = vld [vmem:[#allocation6 + $0xd8] sm:$0xff]
    %v91 = vld [vmem:[#allocation6 + $0xe0] sm:$0xff]
    %v92 = vld [vmem:[#allocation6 + $0xe8] sm:$0xff]
    %v93 = vld [vmem:[#allocation6 + $0xf0] sm:$0xff]
    %v94 = vld [vmem:[#allocation6 + $0xf8] sm:$0xff]
    %v127 = vunpack.c.l.b16 %v63
    %v128 = vunpack.c.h.b16 %v63
    %v129 = vunpack.c.l.b16 %v64
    %v130 = vunpack.c.h.b16 %v64
    %v131 = vunpack.c.l.b16 %v65
    %v132 = vunpack.c.h.b16 %v65
    %v133 = vunpack.c.l.b16 %v66
    %v134 = vunpack.c.h.b16 %v66
    %v135 = vunpack.c.l.b16 %v67
    %v136 = vunpack.c.h.b16 %v67
    %v137 = vunpack.c.l.b16 %v68
    %v138 = vunpack.c.h.b16 %v68
    %v139 = vunpack.c.l.b16 %v69
    %v140 = vunpack.c.h.b16 %v69
    %v141 = vunpack.c.l.b16 %v70
    %v142 = vunpack.c.h.b16 %v70
    %v143 = vunpack.c.l.b16 %v71
    %v144 = vunpack.c.h.b16 %v71
    %v145 = vunpack.c.l.b16 %v72
    %v146 = vunpack.c.h.b16 %v72
    %v147 = vunpack.c.l.b16 %v73
    %v148 = vunpack.c.h.b16 %v73
    %v149 = vunpack.c.l.b16 %v74
    %v150 = vunpack.c.h.b16 %v74
    %v151 = vunpack.c.l.b16 %v75
    %v152 = vunpack.c.h.b16 %v75
    %v153 = vunpack.c.l.b16 %v76
    %v154 = vunpack.c.h.b16 %v76
    %v155 = vunpack.c.l.b16 %v77
    %v156 = vunpack.c.h.b16 %v77
    %v157 = vunpack.c.l.b16 %v78
    %v158 = vunpack.c.h.b16 %v78
    %v159 = vunpack.c.l.b16 %v79
    %v160 = vunpack.c.h.b16 %v79
    %v161 = vunpack.c.l.b16 %v80
    %v162 = vunpack.c.h.b16 %v80
    %v163 = vunpack.c.l.b16 %v81
    %v164 = vunpack.c.h.b16 %v81
    %v165 = vunpack.c.l.b16 %v82
    %v166 = vunpack.c.h.b16 %v82
    %v167 = vunpack.c.l.b16 %v83
    %v168 = vunpack.c.h.b16 %v83
    %v169 = vunpack.c.l.b16 %v84
    %v170 = vunpack.c.h.b16 %v84
    %v171 = vunpack.c.l.b16 %v85
    %v172 = vunpack.c.h.b16 %v85
    %v173 = vunpack.c.l.b16 %v86
    %v174 = vunpack.c.h.b16 %v86
    %v175 = vunpack.c.l.b16 %v87
    %v176 = vunpack.c.h.b16 %v87
    %v177 = vunpack.c.l.b16 %v88
    %v178 = vunpack.c.h.b16 %v88
    %v179 = vunpack.c.l.b16 %v89
    %v180 = vunpack.c.h.b16 %v89
    %v181 = vunpack.c.l.b16 %v90
    %v182 = vunpack.c.h.b16 %v90
    %v183 = vunpack.c.l.b16 %v91
    %v184 = vunpack.c.h.b16 %v91
    %v185 = vunpack.c.l.b16 %v92
    %v186 = vunpack.c.h.b16 %v92
    %v187 = vunpack.c.l.b16 %v93
    %v188 = vunpack.c.h.b16 %v93
    %v189 = vunpack.c.l.b16 %v94
    %v190 = vunpack.c.h.b16 %v94
    %v191 = vpack.c.b16 %v131, %v127
    %v192 = vpack.c.b16 %v132, %v128
    %v193 = vpack.c.b16 %v133, %v129
    %v194 = vpack.c.b16 %v134, %v130
    %v195 = vpack.c.b16 %v139, %v135
    %v196 = vpack.c.b16 %v140, %v136
    %v197 = vpack.c.b16 %v141, %v137
    %v198 = vpack.c.b16 %v142, %v138
    %v199 = vpack.c.b16 %v147, %v143
    %v200 = vpack.c.b16 %v148, %v144
    %v201 = vpack.c.b16 %v149, %v145
    %v202 = vpack.c.b16 %v150, %v146
    %v203 = vpack.c.b16 %v155, %v151
    %v204 = vpack.c.b16 %v156, %v152
    %v205 = vpack.c.b16 %v157, %v153
    %v206 = vpack.c.b16 %v158, %v154
    %v207 = vpack.c.b16 %v163, %v159
    %v208 = vpack.c.b16 %v164, %v160
    %v209 = vpack.c.b16 %v165, %v161
    %v210 = vpack.c.b16 %v166, %v162
    %v211 = vpack.c.b16 %v171, %v167
    %v212 = vpack.c.b16 %v172, %v168
    %v213 = vpack.c.b16 %v173, %v169
    %v214 = vpack.c.b16 %v174, %v170
    %v215 = vpack.c.b16 %v179, %v175
    %v216 = vpack.c.b16 %v180, %v176
    %v217 = vpack.c.b16 %v181, %v177
    %v218 = vpack.c.b16 %v182, %v178
    %v219 = vpack.c.b16 %v187, %v183
    %v220 = vpack.c.b16 %v188, %v184
    %v221 = vpack.c.b16 %v189, %v185
    %v222 = vpack.c.b16 %v190, %v186
    %255 = vmatpush.bf16.msra.mxu0 %v219
    %256 = vmatpush.bf16.msra.mxu0 %v215
    %257 = vmatpush.bf16.msra.mxu0 %v211
    %258 = vmatpush.bf16.msra.mxu0 %v207
    %259 = vmatpush.bf16.msra.mxu0 %v203
    %260 = vmatpush.bf16.msra.mxu0 %v199
    %261 = vmatpush.bf16.msra.mxu0 %v195
    %262 = vmatpush.bf16.msra.mxu0 %v191
    %263 = vmatmul.bf16.gmra.mxu0 0
    %v264 = vpop.f32.mrf.mxu0
    %v265 = vadd.f32 0.0, %v264
    %v266 = vpop.f32.mrf.mxu0
    %267 = vdwg.mxu0
    %268 = vmatpush.bf16.msra.mxu0 %v220
    %269 = vmatpush.bf16.msra.mxu0 %v216
    %270 = vmatpush.bf16.msra.mxu0 %v212
    %271 = vmatpush.bf16.msra.mxu0 %v208
    %272 = vmatpush.bf16.msra.mxu0 %v204
    %273 = vmatpush.bf16.msra.mxu0 %v200
    %274 = vmatpush.bf16.msra.mxu0 %v196
    %275 = vmatpush.bf16.msra.mxu0 %v192
    %276 = vmatmul.bf16.gmra.mxu0 0
    %v277 = vpop.f32.mrf.mxu0
    %v278 = vadd.f32 0.0, %v277
    %v279 = vpop.f32.mrf.mxu0
    %280 = vdwg.mxu0
    %281 = vmatpush.bf16.msra.mxu0 %v221
    %282 = vmatpush.bf16.msra.mxu0 %v217
    %283 = vmatpush.bf16.msra.mxu0 %v213
    %284 = vmatpush.bf16.msra.mxu0 %v209
    %285 = vmatpush.bf16.msra.mxu0 %v205
    %286 = vmatpush.bf16.msra.mxu0 %v201
    %287 = vmatpush.bf16.msra.mxu0 %v197
    %288 = vmatpush.bf16.msra.mxu0 %v193
    %289 = vmatmul.bf16.gmra.mxu0 0
    %v290 = vpop.f32.mrf.mxu0
    %v291 = vadd.f32 0.0, %v290
    %v292 = vpop.f32.mrf.mxu0
    %293 = vdwg.mxu0
    %294 = vmatpush.bf16.msra.mxu0 %v222
    %295 = vmatpush.bf16.msra.mxu0 %v218
    %296 = vmatpush.bf16.msra.mxu0 %v214
    %297 = vmatpush.bf16.msra.mxu0 %v210
    %298 = vmatpush.bf16.msra.mxu0 %v206
    %299 = vmatpush.bf16.msra.mxu0 %v202
    %300 = vmatpush.bf16.msra.mxu0 %v198
    %301 = vmatpush.bf16.msra.mxu0 %v194
    %302 = vmatmul.bf16.gmra.mxu0 0
    %v303 = vpop.f32.mrf.mxu0
    %v304 = vadd.f32 0.0, %v303
    %v305 = vpop.f32.mrf.mxu0
    %306 = vdwg.mxu0
    %309 = vst [vmem:[#allocation1] ss:$2 sm:$0xff] %v61
    %s310 = scalar_lea.vmem [#allocation1], 16
    %311 = vst [vmem:[%s310] ss:$2 sm:$0xff] %v62
    %v312 = vld.sshfl [vmem:[#allocation1] sm:$0xff pattern:$0x75316420]
    %v313 = vld.sshfl [vmem:[#allocation1 + $0x8] sm:$0xff pattern:$0x75316420]
    %v314 = vld.sshfl [vmem:[#allocation1 + $0x10] sm:$0xff pattern:$0x75316420]
    %v315 = vld.sshfl [vmem:[#allocation1 + $0x18] sm:$0xff pattern:$0x75316420]
    %vm316 = vcmask 31744
    %v318 = vsel %vm316, %v60, 0
    %vm320 = vcmask 1043456
    %v321 = vsel %vm320, %v312, 0
    %v323 = vsel %vm320, %v313, 0
    %v325 = vsel %vm320, %v314, 0
    %v327 = vsel %vm320, %v315, 0
    %329 = vmatpush.msra.mxu0 0.0
    %330 = vmatpush.msra.mxu0 0.0
    %331 = vmatpush.msra.mxu0 0.0
    %332 = vmatpush.msra.mxu0 0.0
    %333 = vmatpush.msra.mxu0 0.0
    %334 = vmatpush.msra.mxu0 0.0
    %335 = vmatpush.msra.mxu0 0.0
    %336 = vmatpush.msra.mxu0 0.0
    %337 = vmatpush.msra.mxu0 0.0
    %338 = vmatpush.msra.mxu0 0.0
    %339 = vmatpush.msra.mxu0 0.0
    %340 = vmatpush.msra.mxu0 0.0
    %341 = vmatpush.msra.mxu0 0.0
    %342 = vmatpush.msra.mxu0 0.0
    %343 = vmatpush.msra.mxu0 0.0
    %344 = vmatpush.msra.mxu0 %v321
    %345 = vmatmul.f32.gmra.mxu0 %v318
    %v346 = vpop.f32.mrf.mxu0
    %v347 = vadd.f32 %v265, %v346
    %348 = vdwg.mxu0
    %349 = vmatpush.msra.mxu0 0.0
    %350 = vmatpush.msra.mxu0 0.0
    %351 = vmatpush.msra.mxu0 0.0
    %352 = vmatpush.msra.mxu0 0.0
    %353 = vmatpush.msra.mxu0 0.0
    %354 = vmatpush.msra.mxu0 0.0
    %355 = vmatpush.msra.mxu0 0.0
    %356 = vmatpush.msra.mxu0 0.0
    %357 = vmatpush.msra.mxu0 0.0
    %358 = vmatpush.msra.mxu0 0.0
    %359 = vmatpush.msra.mxu0 0.0
    %360 = vmatpush.msra.mxu0 0.0
    %361 = vmatpush.msra.mxu0 0.0
    %362 = vmatpush.msra.mxu0 0.0
    %363 = vmatpush.msra.mxu0 0.0
    %364 = vmatpush.msra.mxu0 %v323
    %365 = vmatmul.f32.gmra.mxu0 %v318
    %v366 = vpop.f32.mrf.mxu0
    %v367 = vadd.f32 %v278, %v366
    %368 = vdwg.mxu0
    %369 = vmatpush.msra.mxu0 0.0
    %370 = vmatpush.msra.mxu0 0.0
    %371 = vmatpush.msra.mxu0 0.0
    %372 = vmatpush.msra.mxu0 0.0
    %373 = vmatpush.msra.mxu0 0.0
    %374 = vmatpush.msra.mxu0 0.0
    %375 = vmatpush.msra.mxu0 0.0
    %376 = vmatpush.msra.mxu0 0.0
    %377 = vmatpush.msra.mxu0 0.0
    %378 = vmatpush.msra.mxu0 0.0
    %379 = vmatpush.msra.mxu0 0.0
    %380 = vmatpush.msra.mxu0 0.0
    %381 = vmatpush.msra.mxu0 0.0
    %382 = vmatpush.msra.mxu0 0.0
    %383 = vmatpush.msra.mxu0 0.0
    %384 = vmatpush.msra.mxu0 %v325
    %385 = vmatmul.f32.gmra.mxu0 %v318
    %v386 = vpop.f32.mrf.mxu0
    %v387 = vadd.f32 %v291, %v386
    %388 = vdwg.mxu0
    %389 = vmatpush.msra.mxu0 0.0
    %390 = vmatpush.msra.mxu0 0.0
    %391 = vmatpush.msra.mxu0 0.0
    %392 = vmatpush.msra.mxu0 0.0
    %393 = vmatpush.msra.mxu0 0.0
    %394 = vmatpush.msra.mxu0 0.0
    %395 = vmatpush.msra.mxu0 0.0
    %396 = vmatpush.msra.mxu0 0.0
    %397 = vmatpush.msra.mxu0 0.0
    %398 = vmatpush.msra.mxu0 0.0
    %399 = vmatpush.msra.mxu0 0.0
    %400 = vmatpush.msra.mxu0 0.0
    %401 = vmatpush.msra.mxu0 0.0
    %402 = vmatpush.msra.mxu0 0.0
    %403 = vmatpush.msra.mxu0 0.0
    %404 = vmatpush.msra.mxu0 %v327
    %405 = vmatmul.f32.gmra.mxu0 %v318
    %v406 = vpop.f32.mrf.mxu0
    %v407 = vadd.f32 %v304, %v406
    %408 = vdwg.mxu0
    %v409 = vld [vmem:[%s4] sm:$0xf]
    %v411 = vperm.slane %v409, 0
    %v412 = vperm.slane %v409, 1
    %v413 = vperm.slane %v409, 2
    %v414 = vperm.slane %v409, 3
    %v419 = vadd.f32 %v347, %v411
    %v420 = vadd.f32 %v367, %v412
    %v421 = vadd.f32 %v387, %v413
    %v422 = vadd.f32 %v407, %v414
    %v423 = vxor.u32 %v419, 2147483648
    %v424 = vmul.f32 %v423, 1.442695
    %v425 = vpow.pop %v424
    %v426 = vadd.f32 %v425, 1.0
    %v427 = vrcp.pop %v426
    %v428 = vmul.f32 %v426, %v427
    %v429 = vsub.f32 1.0, %v428
    %v430 = vmul.f32 %v427, %v429
    %v431 = vadd.f32 %v427, %v430
    %vm432 = vweird.f32 %v426
    %vm433 = vweird.f32 %v427
    %vm434 = vmor %vm432, %vm433
    %v435 = vsel %vm434, %v427, %v431
    %v436 = vand.u32 2147483647, %v426
    %vm437 = vcmp.eq.f32.partialorder %v436, 8.507059e+37
    %v438 = vand.u32 %v426, 2147483648
    %v439 = vor.u32 1.1754944e-38, %v438
    %v440 = vsel %vm437, %v439, %v435
    %v441 = vmul.f32 1.0, %v440
    %v442 = vxor.u32 %v420, 2147483648
    %v443 = vmul.f32 %v442, 1.442695
    %v444 = vpow.pop %v443
    %v445 = vadd.f32 %v444, 1.0
    %v446 = vrcp.pop %v445
    %v447 = vmul.f32 %v445, %v446
    %v448 = vsub.f32 1.0, %v447
    %v449 = vmul.f32 %v446, %v448
    %v450 = vadd.f32 %v446, %v449
    %vm451 = vweird.f32 %v445
    %vm452 = vweird.f32 %v446
    %vm453 = vmor %vm451, %vm452
    %v454 = vsel %vm453, %v446, %v450
    %v455 = vand.u32 2147483647, %v445
    %vm456 = vcmp.eq.f32.partialorder %v455, 8.507059e+37
    %v457 = vand.u32 %v445, 2147483648
    %v458 = vor.u32 1.1754944e-38, %v457
    %v459 = vsel %vm456, %v458, %v454
    %v460 = vmul.f32 1.0, %v459
    %v461 = vtanh.pop %v421
    %v462 = vxor.u32 %v422, 2147483648
    %v463 = vmul.f32 %v462, 1.442695
    %v464 = vpow.pop %v463
    %v465 = vadd.f32 %v464, 1.0
    %v466 = vrcp.pop %v465
    %v467 = vmul.f32 %v465, %v466
    %v468 = vsub.f32 1.0, %v467
    %v469 = vmul.f32 %v466, %v468
    %v470 = vadd.f32 %v466, %v469
    %vm471 = vweird.f32 %v465
    %vm472 = vweird.f32 %v466
    %vm473 = vmor %vm471, %vm472
    %v474 = vsel %vm473, %v466, %v470
    %v475 = vand.u32 2147483647, %v465
    %vm476 = vcmp.eq.f32.partialorder %v475, 8.507059e+37
    %v477 = vand.u32 %v465, 2147483648
    %v478 = vor.u32 1.1754944e-38, %v477
    %v479 = vsel %vm476, %v478, %v474
    %v480 = vmul.f32 1.0, %v479
    %v481 = vmul.f32 %v460, 0.0
    %v482 = vmul.f32 %v441, %v461
    %v483 = vadd.f32 %v481, %v482
    %v484 = vtanh.pop %v483
    %v485 = vmul.f32 %v480, %v484
    %v486 = vpack.c.bf16 %v485, %v485
    %v487 = vld [vmem:[#allocation4] sm:$0xff]
    %v488 = vld [vmem:[#allocation4 + $0x8] sm:$0xff]
    %v489 = vld [vmem:[#allocation4 + $0x10] sm:$0xff]
    %v490 = vld [vmem:[#allocation4 + $0x18] sm:$0xff]
    %v491 = vld [vmem:[#allocation4 + $0x20] sm:$0xff]
    %v492 = vld [vmem:[#allocation4 + $0x28] sm:$0xff]
    %v493 = vld [vmem:[#allocation4 + $0x30] sm:$0xff]
    %v494 = vld [vmem:[#allocation4 + $0x38] sm:$0xff]
    %v495 = vld [vmem:[#allocation4 + $0x40] sm:$0xff]
    %v496 = vld [vmem:[#allocation4 + $0x48] sm:$0xff]
    %v497 = vld [vmem:[#allocation4 + $0x50] sm:$0xff]
    %v498 = vld [vmem:[#allocation4 + $0x58] sm:$0xff]
    %v499 = vld [vmem:[#allocation4 + $0x60] sm:$0xff]
    %v500 = vld [vmem:[#allocation4 + $0x68] sm:$0xff]
    %v501 = vld [vmem:[#allocation4 + $0x70] sm:$0xff]
    %v502 = vld [vmem:[#allocation4 + $0x78] sm:$0xff]
    %v503 = vld [vmem:[#allocation4 + $0x80] sm:$0xff]
    %v504 = vld [vmem:[#allocation4 + $0x88] sm:$0xff]
    %v505 = vld [vmem:[#allocation4 + $0x90] sm:$0xff]
    %v506 = vld [vmem:[#allocation4 + $0x98] sm:$0xff]
    %v507 = vld [vmem:[#allocation4 + $0xa0] sm:$0xff]
    %v508 = vld [vmem:[#allocation4 + $0xa8] sm:$0xff]
    %v509 = vld [vmem:[#allocation4 + $0xb0] sm:$0xff]
    %v510 = vld [vmem:[#allocation4 + $0xb8] sm:$0xff]
    %v511 = vld [vmem:[#allocation4 + $0xc0] sm:$0xff]
    %v512 = vld [vmem:[#allocation4 + $0xc8] sm:$0xff]
    %v513 = vld [vmem:[#allocation4 + $0xd0] sm:$0xff]
    %v514 = vld [vmem:[#allocation4 + $0xd8] sm:$0xff]
    %v515 = vld [vmem:[#allocation4 + $0xe0] sm:$0xff]
    %v516 = vld [vmem:[#allocation4 + $0xe8] sm:$0xff]
    %v517 = vld [vmem:[#allocation4 + $0xf0] sm:$0xff]
    %v518 = vld [vmem:[#allocation4 + $0xf8] sm:$0xff]
    %s519 = scalar_lea.vmem [#allocation6], 256
    %v520 = vld [vmem:[%s519] sm:$0xff]
    %v521 = vld [vmem:[%s519 + $0x8] sm:$0xff]
    %v522 = vld [vmem:[%s519 + $0x10] sm:$0xff]
    %v523 = vld [vmem:[%s519 + $0x18] sm:$0xff]
    %v524 = vld [vmem:[%s519 + $0x20] sm:$0xff]
    %v525 = vld [vmem:[%s519 + $0x28] sm:$0xff]
    %v526 = vld [vmem:[%s519 + $0x30] sm:$0xff]
    %v527 = vld [vmem:[%s519 + $0x38] sm:$0xff]
    %v528 = vld [vmem:[%s519 + $0x40] sm:$0xff]
    %v529 = vld [vmem:[%s519 + $0x48] sm:$0xff]
    %v530 = vld [vmem:[%s519 + $0x50] sm:$0xff]
    %v531 = vld [vmem:[%s519 + $0x58] sm:$0xff]
    %v532 = vld [vmem:[%s519 + $0x60] sm:$0xff]
    %v533 = vld [vmem:[%s519 + $0x68] sm:$0xff]
    %v534 = vld [vmem:[%s519 + $0x70] sm:$0xff]
    %v535 = vld [vmem:[%s519 + $0x78] sm:$0xff]
    %v536 = vld [vmem:[%s519 + $0x80] sm:$0xff]
    %v537 = vld [vmem:[%s519 + $0x88] sm:$0xff]
    %v538 = vld [vmem:[%s519 + $0x90] sm:$0xff]
    %v539 = vld [vmem:[%s519 + $0x98] sm:$0xff]
    %v540 = vld [vmem:[%s519 + $0xa0] sm:$0xff]
    %v541 = vld [vmem:[%s519 + $0xa8] sm:$0xff]
    %v542 = vld [vmem:[%s519 + $0xb0] sm:$0xff]
    %v543 = vld [vmem:[%s519 + $0xb8] sm:$0xff]
    %v544 = vld [vmem:[%s519 + $0xc0] sm:$0xff]
    %v545 = vld [vmem:[%s519 + $0xc8] sm:$0xff]
    %v546 = vld [vmem:[%s519 + $0xd0] sm:$0xff]
    %v547 = vld [vmem:[%s519 + $0xd8] sm:$0xff]
    %v548 = vld [vmem:[%s519 + $0xe0] sm:$0xff]
    %v549 = vld [vmem:[%s519 + $0xe8] sm:$0xff]
    %v550 = vld [vmem:[%s519 + $0xf0] sm:$0xff]
    %v551 = vld [vmem:[%s519 + $0xf8] sm:$0xff]
    %v584 = vunpack.c.l.b16 %v520
    %v585 = vunpack.c.h.b16 %v520
    %v586 = vunpack.c.l.b16 %v521
    %v587 = vunpack.c.h.b16 %v521
    %v588 = vunpack.c.l.b16 %v522
    %v589 = vunpack.c.h.b16 %v522
    %v590 = vunpack.c.l.b16 %v523
    %v591 = vunpack.c.h.b16 %v523
    %v592 = vunpack.c.l.b16 %v524
    %v593 = vunpack.c.h.b16 %v524
    %v594 = vunpack.c.l.b16 %v525
    %v595 = vunpack.c.h.b16 %v525
    %v596 = vunpack.c.l.b16 %v526
    %v597 = vunpack.c.h.b16 %v526
    %v598 = vunpack.c.l.b16 %v527
    %v599 = vunpack.c.h.b16 %v527
    %v600 = vunpack.c.l.b16 %v528
    %v601 = vunpack.c.h.b16 %v528
    %v602 = vunpack.c.l.b16 %v529
    %v603 = vunpack.c.h.b16 %v529
    %v604 = vunpack.c.l.b16 %v530
    %v605 = vunpack.c.h.b16 %v530
    %v606 = vunpack.c.l.b16 %v531
    %v607 = vunpack.c.h.b16 %v531
    %v608 = vunpack.c.l.b16 %v532
    %v609 = vunpack.c.h.b16 %v532
    %v610 = vunpack.c.l.b16 %v533
    %v611 = vunpack.c.h.b16 %v533
    %v612 = vunpack.c.l.b16 %v534
    %v613 = vunpack.c.h.b16 %v534
    %v614 = vunpack.c.l.b16 %v535
    %v615 = vunpack.c.h.b16 %v535
    %v616 = vunpack.c.l.b16 %v536
    %v617 = vunpack.c.h.b16 %v536
    %v618 = vunpack.c.l.b16 %v537
    %v619 = vunpack.c.h.b16 %v537
    %v620 = vunpack.c.l.b16 %v538
    %v621 = vunpack.c.h.b16 %v538
    %v622 = vunpack.c.l.b16 %v539
    %v623 = vunpack.c.h.b16 %v539
    %v624 = vunpack.c.l.b16 %v540
    %v625 = vunpack.c.h.b16 %v540
    %v626 = vunpack.c.l.b16 %v541
    %v627 = vunpack.c.h.b16 %v541
    %v628 = vunpack.c.l.b16 %v542
    %v629 = vunpack.c.h.b16 %v542
    %v630 = vunpack.c.l.b16 %v543
    %v631 = vunpack.c.h.b16 %v543
    %v632 = vunpack.c.l.b16 %v544
    %v633 = vunpack.c.h.b16 %v544
    %v634 = vunpack.c.l.b16 %v545
    %v635 = vunpack.c.h.b16 %v545
    %v636 = vunpack.c.l.b16 %v546
    %v637 = vunpack.c.h.b16 %v546
    %v638 = vunpack.c.l.b16 %v547
    %v639 = vunpack.c.h.b16 %v547
    %v640 = vunpack.c.l.b16 %v548
    %v641 = vunpack.c.h.b16 %v548
    %v642 = vunpack.c.l.b16 %v549
    %v643 = vunpack.c.h.b16 %v549
    %v644 = vunpack.c.l.b16 %v550
    %v645 = vunpack.c.h.b16 %v550
    %v646 = vunpack.c.l.b16 %v551
    %v647 = vunpack.c.h.b16 %v551
    %v648 = vpack.c.b16 %v588, %v584
    %v649 = vpack.c.b16 %v589, %v585
    %v650 = vpack.c.b16 %v590, %v586
    %v651 = vpack.c.b16 %v591, %v587
    %v652 = vpack.c.b16 %v596, %v592
    %v653 = vpack.c.b16 %v597, %v593
    %v654 = vpack.c.b16 %v598, %v594
    %v655 = vpack.c.b16 %v599, %v595
    %v656 = vpack.c.b16 %v604, %v600
    %v657 = vpack.c.b16 %v605, %v601
    %v658 = vpack.c.b16 %v606, %v602
    %v659 = vpack.c.b16 %v607, %v603
    %v660 = vpack.c.b16 %v612, %v608
    %v661 = vpack.c.b16 %v613, %v609
    %v662 = vpack.c.b16 %v614, %v610
    %v663 = vpack.c.b16 %v615, %v611
    %v664 = vpack.c.b16 %v620, %v616
    %v665 = vpack.c.b16 %v621, %v617
    %v666 = vpack.c.b16 %v622, %v618
    %v667 = vpack.c.b16 %v623, %v619
    %v668 = vpack.c.b16 %v628, %v624
    %v669 = vpack.c.b16 %v629, %v625
    %v670 = vpack.c.b16 %v630, %v626
    %v671 = vpack.c.b16 %v631, %v627
    %v672 = vpack.c.b16 %v636, %v632
    %v673 = vpack.c.b16 %v637, %v633
    %v674 = vpack.c.b16 %v638, %v634
    %v675 = vpack.c.b16 %v639, %v635
    %v676 = vpack.c.b16 %v644, %v640
    %v677 = vpack.c.b16 %v645, %v641
    %v678 = vpack.c.b16 %v646, %v642
    %v679 = vpack.c.b16 %v647, %v643
    %712 = vmatpush.bf16.msra.mxu0 %v676
    %713 = vmatpush.bf16.msra.mxu0 %v672
    %714 = vmatpush.bf16.msra.mxu0 %v668
    %715 = vmatpush.bf16.msra.mxu0 %v664
    %716 = vmatpush.bf16.msra.mxu0 %v660
    %717 = vmatpush.bf16.msra.mxu0 %v656
    %718 = vmatpush.bf16.msra.mxu0 %v652
    %719 = vmatpush.bf16.msra.mxu0 %v648
    %720 = vmatmul.bf16.gmra.mxu0 0
    %v721 = vpop.f32.mrf.mxu0
    %v722 = vadd.f32 0.0, %v721
    %v723 = vpop.f32.mrf.mxu0
    %724 = vdwg.mxu0
    %725 = vmatpush.bf16.msra.mxu0 %v677
    %726 = vmatpush.bf16.msra.mxu0 %v673
    %727 = vmatpush.bf16.msra.mxu0 %v669
    %728 = vmatpush.bf16.msra.mxu0 %v665
    %729 = vmatpush.bf16.msra.mxu0 %v661
    %730 = vmatpush.bf16.msra.mxu0 %v657
    %731 = vmatpush.bf16.msra.mxu0 %v653
    %732 = vmatpush.bf16.msra.mxu0 %v649
    %733 = vmatmul.bf16.gmra.mxu0 0
    %v734 = vpop.f32.mrf.mxu0
    %v735 = vadd.f32 0.0, %v734
    %v736 = vpop.f32.mrf.mxu0
    %737 = vdwg.mxu0
    %738 = vmatpush.bf16.msra.mxu0 %v678
    %739 = vmatpush.bf16.msra.mxu0 %v674
    %740 = vmatpush.bf16.msra.mxu0 %v670
    %741 = vmatpush.bf16.msra.mxu0 %v666
    %742 = vmatpush.bf16.msra.mxu0 %v662
    %743 = vmatpush.bf16.msra.mxu0 %v658
    %744 = vmatpush.bf16.msra.mxu0 %v654
    %745 = vmatpush.bf16.msra.mxu0 %v650
    %746 = vmatmul.bf16.gmra.mxu0 0
    %v747 = vpop.f32.mrf.mxu0
    %v748 = vadd.f32 0.0, %v747
    %v749 = vpop.f32.mrf.mxu0
    %750 = vdwg.mxu0
    %751 = vmatpush.bf16.msra.mxu0 %v679
    %752 = vmatpush.bf16.msra.mxu0 %v675
    %753 = vmatpush.bf16.msra.mxu0 %v671
    %754 = vmatpush.bf16.msra.mxu0 %v667
    %755 = vmatpush.bf16.msra.mxu0 %v663
    %756 = vmatpush.bf16.msra.mxu0 %v659
    %757 = vmatpush.bf16.msra.mxu0 %v655
    %758 = vmatpush.bf16.msra.mxu0 %v651
    %759 = vmatmul.bf16.gmra.mxu0 0
    %v760 = vpop.f32.mrf.mxu0
    %v761 = vadd.f32 0.0, %v760
    %v762 = vpop.f32.mrf.mxu0
    %763 = vdwg.mxu0
    %v796 = vunpack.c.l.b16 %v487
    %v797 = vunpack.c.h.b16 %v487
    %v798 = vunpack.c.l.b16 %v488
    %v799 = vunpack.c.h.b16 %v488
    %v800 = vunpack.c.l.b16 %v489
    %v801 = vunpack.c.h.b16 %v489
    %v802 = vunpack.c.l.b16 %v490
    %v803 = vunpack.c.h.b16 %v490
    %v804 = vunpack.c.l.b16 %v491
    %v805 = vunpack.c.h.b16 %v491
    %v806 = vunpack.c.l.b16 %v492
    %v807 = vunpack.c.h.b16 %v492
    %v808 = vunpack.c.l.b16 %v493
    %v809 = vunpack.c.h.b16 %v493
    %v810 = vunpack.c.l.b16 %v494
    %v811 = vunpack.c.h.b16 %v494
    %v812 = vunpack.c.l.b16 %v495
    %v813 = vunpack.c.h.b16 %v495
    %v814 = vunpack.c.l.b16 %v496
    %v815 = vunpack.c.h.b16 %v496
    %v816 = vunpack.c.l.b16 %v497
    %v817 = vunpack.c.h.b16 %v497
    %v818 = vunpack.c.l.b16 %v498
    %v819 = vunpack.c.h.b16 %v498
    %v820 = vunpack.c.l.b16 %v499
    %v821 = vunpack.c.h.b16 %v499
    %v822 = vunpack.c.l.b16 %v500
    %v823 = vunpack.c.h.b16 %v500
    %v824 = vunpack.c.l.b16 %v501
    %v825 = vunpack.c.h.b16 %v501
    %v826 = vunpack.c.l.b16 %v502
    %v827 = vunpack.c.h.b16 %v502
    %v828 = vunpack.c.l.b16 %v503
    %v829 = vunpack.c.h.b16 %v503
    %v830 = vunpack.c.l.b16 %v504
    %v831 = vunpack.c.h.b16 %v504
    %v832 = vunpack.c.l.b16 %v505
    %v833 = vunpack.c.h.b16 %v505
    %v834 = vunpack.c.l.b16 %v506
    %v835 = vunpack.c.h.b16 %v506
    %v836 = vunpack.c.l.b16 %v507
    %v837 = vunpack.c.h.b16 %v507
    %v838 = vunpack.c.l.b16 %v508
    %v839 = vunpack.c.h.b16 %v508
    %v840 = vunpack.c.l.b16 %v509
    %v841 = vunpack.c.h.b16 %v509
    %v842 = vunpack.c.l.b16 %v510
    %v843 = vunpack.c.h.b16 %v510
    %v844 = vunpack.c.l.b16 %v511
    %v845 = vunpack.c.h.b16 %v511
    %v846 = vunpack.c.l.b16 %v512
    %v847 = vunpack.c.h.b16 %v512
    %v848 = vunpack.c.l.b16 %v513
    %v849 = vunpack.c.h.b16 %v513
    %v850 = vunpack.c.l.b16 %v514
    %v851 = vunpack.c.h.b16 %v514
    %v852 = vunpack.c.l.b16 %v515
    %v853 = vunpack.c.h.b16 %v515
    %v854 = vunpack.c.l.b16 %v516
    %v855 = vunpack.c.h.b16 %v516
    %v856 = vunpack.c.l.b16 %v517
    %v857 = vunpack.c.h.b16 %v517
    %v858 = vunpack.c.l.b16 %v518
    %v859 = vunpack.c.h.b16 %v518
    %v860 = vpack.c.b16 %v800, %v796
    %v861 = vpack.c.b16 %v801, %v797
    %v862 = vpack.c.b16 %v802, %v798
    %v863 = vpack.c.b16 %v803, %v799
    %v864 = vpack.c.b16 %v808, %v804
    %v865 = vpack.c.b16 %v809, %v805
    %v866 = vpack.c.b16 %v810, %v806
    %v867 = vpack.c.b16 %v811, %v807
    %v868 = vpack.c.b16 %v816, %v812
    %v869 = vpack.c.b16 %v817, %v813
    %v870 = vpack.c.b16 %v818, %v814
    %v871 = vpack.c.b16 %v819, %v815
    %v872 = vpack.c.b16 %v824, %v820
    %v873 = vpack.c.b16 %v825, %v821
    %v874 = vpack.c.b16 %v826, %v822
    %v875 = vpack.c.b16 %v827, %v823
    %v876 = vpack.c.b16 %v832, %v828
    %v877 = vpack.c.b16 %v833, %v829
    %v878 = vpack.c.b16 %v834, %v830
    %v879 = vpack.c.b16 %v835, %v831
    %v880 = vpack.c.b16 %v840, %v836
    %v881 = vpack.c.b16 %v841, %v837
    %v882 = vpack.c.b16 %v842, %v838
    %v883 = vpack.c.b16 %v843, %v839
    %v884 = vpack.c.b16 %v848, %v844
    %v885 = vpack.c.b16 %v849, %v845
    %v886 = vpack.c.b16 %v850, %v846
    %v887 = vpack.c.b16 %v851, %v847
    %v888 = vpack.c.b16 %v856, %v852
    %v889 = vpack.c.b16 %v857, %v853
    %v890 = vpack.c.b16 %v858, %v854
    %v891 = vpack.c.b16 %v859, %v855
    %924 = vmatpush.bf16.msra.mxu0 %v888
    %925 = vmatpush.bf16.msra.mxu0 %v884
    %926 = vmatpush.bf16.msra.mxu0 %v880
    %927 = vmatpush.bf16.msra.mxu0 %v876
    %928 = vmatpush.bf16.msra.mxu0 %v872
    %929 = vmatpush.bf16.msra.mxu0 %v868
    %930 = vmatpush.bf16.msra.mxu0 %v864
    %931 = vmatpush.bf16.msra.mxu0 %v860
    %932 = vmatmul.bf16.gmra.mxu0 %v486
    %v933 = vpop.f32.mrf.mxu0
    %v934 = vadd.f32 %v722, %v933
    %v935 = vpop.f32.mrf.mxu0
    %936 = vdwg.mxu0
    %937 = vmatpush.bf16.msra.mxu0 %v889
    %938 = vmatpush.bf16.msra.mxu0 %v885
    %939 = vmatpush.bf16.msra.mxu0 %v881
    %940 = vmatpush.bf16.msra.mxu0 %v877
    %941 = vmatpush.bf16.msra.mxu0 %v873
    %942 = vmatpush.bf16.msra.mxu0 %v869
    %943 = vmatpush.bf16.msra.mxu0 %v865
    %944 = vmatpush.bf16.msra.mxu0 %v861
    %945 = vmatmul.bf16.gmra.mxu0 %v486
    %v946 = vpop.f32.mrf.mxu0
    %v947 = vadd.f32 %v735, %v946
    %v948 = vpop.f32.mrf.mxu0
    %949 = vdwg.mxu0
    %950 = vmatpush.bf16.msra.mxu0 %v890
    %951 = vmatpush.bf16.msra.mxu0 %v886
    %952 = vmatpush.bf16.msra.mxu0 %v882
    %953 = vmatpush.bf16.msra.mxu0 %v878
    %954 = vmatpush.bf16.msra.mxu0 %v874
    %955 = vmatpush.bf16.msra.mxu0 %v870
    %956 = vmatpush.bf16.msra.mxu0 %v866
    %957 = vmatpush.bf16.msra.mxu0 %v862
    %958 = vmatmul.bf16.gmra.mxu0 %v486
    %v959 = vpop.f32.mrf.mxu0
    %v960 = vadd.f32 %v748, %v959
    %v961 = vpop.f32.mrf.mxu0
    %962 = vdwg.mxu0
    %963 = vmatpush.bf16.msra.mxu0 %v891
    %964 = vmatpush.bf16.msra.mxu0 %v887
    %965 = vmatpush.bf16.msra.mxu0 %v883
    %966 = vmatpush.bf16.msra.mxu0 %v879
    %967 = vmatpush.bf16.msra.mxu0 %v875
    %968 = vmatpush.bf16.msra.mxu0 %v871
    %969 = vmatpush.bf16.msra.mxu0 %v867
    %970 = vmatpush.bf16.msra.mxu0 %v863
    %971 = vmatmul.bf16.gmra.mxu0 %v486
    %v972 = vpop.f32.mrf.mxu0
    %v973 = vadd.f32 %v761, %v972
    %v974 = vpop.f32.mrf.mxu0
    %975 = vdwg.mxu0
    %s976 = scalar_lea.vmem %s4, 4
    %v977 = vld [vmem:[%s976] sm:$0xf]
    %v979 = vperm.slane %v977, 0
    %v980 = vperm.slane %v977, 1
    %v981 = vperm.slane %v977, 2
    %v982 = vperm.slane %v977, 3
    %v987 = vadd.f32 %v934, %v979
    %v988 = vadd.f32 %v947, %v980
    %v989 = vadd.f32 %v960, %v981
    %v990 = vadd.f32 %v973, %v982
    %v991 = vxor.u32 %v987, 2147483648
    %v992 = vmul.f32 %v991, 1.442695
    %v993 = vpow.pop %v992
    %v994 = vadd.f32 %v993, 1.0
    %v995 = vrcp.pop %v994
    %v996 = vmul.f32 %v994, %v995
    %v997 = vsub.f32 1.0, %v996
    %v998 = vmul.f32 %v995, %v997
    %v999 = vadd.f32 %v995, %v998
    %vm1000 = vweird.f32 %v994
    %vm1001 = vweird.f32 %v995
    %vm1002 = vmor %vm1000, %vm1001
    %v1003 = vsel %vm1002, %v995, %v999
    %v1004 = vand.u32 2147483647, %v994
    %vm1005 = vcmp.eq.f32.partialorder %v1004, 8.507059e+37
    %v1006 = vand.u32 %v994, 2147483648
    %v1007 = vor.u32 1.1754944e-38, %v1006
    %v1008 = vsel %vm1005, %v1007, %v1003
    %v1009 = vmul.f32 1.0, %v1008
    %v1010 = vxor.u32 %v988, 2147483648
    %v1011 = vmul.f32 %v1010, 1.442695
    %v1012 = vpow.pop %v1011
    %v1013 = vadd.f32 %v1012, 1.0
    %v1014 = vrcp.pop %v1013
    %v1015 = vmul.f32 %v1013, %v1014
    %v1016 = vsub.f32 1.0, %v1015
    %v1017 = vmul.f32 %v1014, %v1016
    %v1018 = vadd.f32 %v1014, %v1017
    %vm1019 = vweird.f32 %v1013
    %vm1020 = vweird.f32 %v1014
    %vm1021 = vmor %vm1019, %vm1020
    %v1022 = vsel %vm1021, %v1014, %v1018
    %v1023 = vand.u32 2147483647, %v1013
    %vm1024 = vcmp.eq.f32.partialorder %v1023, 8.507059e+37
    %v1025 = vand.u32 %v1013, 2147483648
    %v1026 = vor.u32 1.1754944e-38, %v1025
    %v1027 = vsel %vm1024, %v1026, %v1022
    %v1028 = vmul.f32 1.0, %v1027
    %v1029 = vtanh.pop %v989
    %v1030 = vxor.u32 %v990, 2147483648
    %v1031 = vmul.f32 %v1030, 1.442695
    %v1032 = vpow.pop %v1031
    %v1033 = vadd.f32 %v1032, 1.0
    %v1034 = vrcp.pop %v1033
    %v1035 = vmul.f32 %v1033, %v1034
    %v1036 = vsub.f32 1.0, %v1035
    %v1037 = vmul.f32 %v1034, %v1036
    %v1038 = vadd.f32 %v1034, %v1037
    %vm1039 = vweird.f32 %v1033
    %vm1040 = vweird.f32 %v1034
    %vm1041 = vmor %vm1039, %vm1040
    %v1042 = vsel %vm1041, %v1034, %v1038
    %v1043 = vand.u32 2147483647, %v1033
    %vm1044 = vcmp.eq.f32.partialorder %v1043, 8.507059e+37
    %v1045 = vand.u32 %v1033, 2147483648
    %v1046 = vor.u32 1.1754944e-38, %v1045
    %v1047 = vsel %vm1044, %v1046, %v1042
    %v1048 = vmul.f32 1.0, %v1047
    %v1049 = vmul.f32 %v1028, 0.0
    %v1050 = vmul.f32 %v1009, %v1029
    %v1051 = vadd.f32 %v1049, %v1050
    %v1052 = vtanh.pop %v1051
    %v1053 = vmul.f32 %v1048, %v1052
    %1054 = vst [vmem:[#allocation2] sm:$0x3] %v1053
    %s1055 = scalar_lea.vmem %s0, 2
    %v1056 = vld [vmem:[%s1055] sm:$0x3]
    %v1057 = vld [vmem:[%s1] sm:$0xff]
    %v1058 = vld [vmem:[%s1 + $0x8] sm:$0xff]
    %v1059 = vld [vmem:[#allocation6] sm:$0xff]
    %v1060 = vld [vmem:[#allocation6 + $0x8] sm:$0xff]
    %v1061 = vld [vmem:[#allocation6 + $0x10] sm:$0xff]
    %v1062 = vld [vmem:[#allocation6 + $0x18] sm:$0xff]
    %v1063 = vld [vmem:[#allocation6 + $0x20] sm:$0xff]
    %v1064 = vld [vmem:[#allocation6 + $0x28] sm:$0xff]
    %v1065 = vld [vmem:[#allocation6 + $0x30] sm:$0xff]
    %v1066 = vld [vmem:[#allocation6 + $0x38] sm:$0xff]
    %v1067 = vld [vmem:[#allocation6 + $0x40] sm:$0xff]
    %v1068 = vld [vmem:[#allocation6 + $0x48] sm:$0xff]
    %v1069 = vld [vmem:[#allocation6 + $0x50] sm:$0xff]
    %v1070 = vld [vmem:[#allocation6 + $0x58] sm:$0xff]
    %v1071 = vld [vmem:[#allocation6 + $0x60] sm:$0xff]
    %v1072 = vld [vmem:[#allocation6 + $0x68] sm:$0xff]
    %v1073 = vld [vmem:[#allocation6 + $0x70] sm:$0xff]
    %v1074 = vld [vmem:[#allocation6 + $0x78] sm:$0xff]
    %v1075 = vld [vmem:[#allocation6 + $0x80] sm:$0xff]
    %v1076 = vld [vmem:[#allocation6 + $0x88] sm:$0xff]
    %v1077 = vld [vmem:[#allocation6 + $0x90] sm:$0xff]
    %v1078 = vld [vmem:[#allocation6 + $0x98] sm:$0xff]
    %v1079 = vld [vmem:[#allocation6 + $0xa0] sm:$0xff]
    %v1080 = vld [vmem:[#allocation6 + $0xa8] sm:$0xff]
    %v1081 = vld [vmem:[#allocation6 + $0xb0] sm:$0xff]
    %v1082 = vld [vmem:[#allocation6 + $0xb8] sm:$0xff]
    %v1083 = vld [vmem:[#allocation6 + $0xc0] sm:$0xff]
    %v1084 = vld [vmem:[#allocation6 + $0xc8] sm:$0xff]
    %v1085 = vld [vmem:[#allocation6 + $0xd0] sm:$0xff]
    %v1086 = vld [vmem:[#allocation6 + $0xd8] sm:$0xff]
    %v1087 = vld [vmem:[#allocation6 + $0xe0] sm:$0xff]
    %v1088 = vld [vmem:[#allocation6 + $0xe8] sm:$0xff]
    %v1089 = vld [vmem:[#allocation6 + $0xf0] sm:$0xff]
    %v1090 = vld [vmem:[#allocation6 + $0xf8] sm:$0xff]
    %v1123 = vunpack.c.l.b16 %v1059
    %v1124 = vunpack.c.h.b16 %v1059
    %v1125 = vunpack.c.l.b16 %v1060
    %v1126 = vunpack.c.h.b16 %v1060
    %v1127 = vunpack.c.l.b16 %v1061
    %v1128 = vunpack.c.h.b16 %v1061
    %v1129 = vunpack.c.l.b16 %v1062
    %v1130 = vunpack.c.h.b16 %v1062
    %v1131 = vunpack.c.l.b16 %v1063
    %v1132 = vunpack.c.h.b16 %v1063
    %v1133 = vunpack.c.l.b16 %v1064
    %v1134 = vunpack.c.h.b16 %v1064
    %v1135 = vunpack.c.l.b16 %v1065
    %v1136 = vunpack.c.h.b16 %v1065
    %v1137 = vunpack.c.l.b16 %v1066
    %v1138 = vunpack.c.h.b16 %v1066
    %v1139 = vunpack.c.l.b16 %v1067
    %v1140 = vunpack.c.h.b16 %v1067
    %v1141 = vunpack.c.l.b16 %v1068
    %v1142 = vunpack.c.h.b16 %v1068
    %v1143 = vunpack.c.l.b16 %v1069
    %v1144 = vunpack.c.h.b16 %v1069
    %v1145 = vunpack.c.l.b16 %v1070
    %v1146 = vunpack.c.h.b16 %v1070
    %v1147 = vunpack.c.l.b16 %v1071
    %v1148 = vunpack.c.h.b16 %v1071
    %v1149 = vunpack.c.l.b16 %v1072
    %v1150 = vunpack.c.h.b16 %v1072
    %v1151 = vunpack.c.l.b16 %v1073
    %v1152 = vunpack.c.h.b16 %v1073
    %v1153 = vunpack.c.l.b16 %v1074
    %v1154 = vunpack.c.h.b16 %v1074
    %v1155 = vunpack.c.l.b16 %v1075
    %v1156 = vunpack.c.h.b16 %v1075
    %v1157 = vunpack.c.l.b16 %v1076
    %v1158 = vunpack.c.h.b16 %v1076
    %v1159 = vunpack.c.l.b16 %v1077
    %v1160 = vunpack.c.h.b16 %v1077
    %v1161 = vunpack.c.l.b16 %v1078
    %v1162 = vunpack.c.h.b16 %v1078
    %v1163 = vunpack.c.l.b16 %v1079
    %v1164 = vunpack.c.h.b16 %v1079
    %v1165 = vunpack.c.l.b16 %v1080
    %v1166 = vunpack.c.h.b16 %v1080
    %v1167 = vunpack.c.l.b16 %v1081
    %v1168 = vunpack.c.h.b16 %v1081
    %v1169 = vunpack.c.l.b16 %v1082
    %v1170 = vunpack.c.h.b16 %v1082
    %v1171 = vunpack.c.l.b16 %v1083
    %v1172 = vunpack.c.h.b16 %v1083
    %v1173 = vunpack.c.l.b16 %v1084
    %v1174 = vunpack.c.h.b16 %v1084
    %v1175 = vunpack.c.l.b16 %v1085
    %v1176 = vunpack.c.h.b16 %v1085
    %v1177 = vunpack.c.l.b16 %v1086
    %v1178 = vunpack.c.h.b16 %v1086
    %v1179 = vunpack.c.l.b16 %v1087
    %v1180 = vunpack.c.h.b16 %v1087
    %v1181 = vunpack.c.l.b16 %v1088
    %v1182 = vunpack.c.h.b16 %v1088
    %v1183 = vunpack.c.l.b16 %v1089
    %v1184 = vunpack.c.h.b16 %v1089
    %v1185 = vunpack.c.l.b16 %v1090
    %v1186 = vunpack.c.h.b16 %v1090
    %v1187 = vpack.c.b16 %v1127, %v1123
    %v1188 = vpack.c.b16 %v1128, %v1124
    %v1189 = vpack.c.b16 %v1129, %v1125
    %v1190 = vpack.c.b16 %v1130, %v1126
    %v1191 = vpack.c.b16 %v1135, %v1131
    %v1192 = vpack.c.b16 %v1136, %v1132
    %v1193 = vpack.c.b16 %v1137, %v1133
    %v1194 = vpack.c.b16 %v1138, %v1134
    %v1195 = vpack.c.b16 %v1143, %v1139
    %v1196 = vpack.c.b16 %v1144, %v1140
    %v1197 = vpack.c.b16 %v1145, %v1141
    %v1198 = vpack.c.b16 %v1146, %v1142
    %v1199 = vpack.c.b16 %v1151, %v1147
    %v1200 = vpack.c.b16 %v1152, %v1148
    %v1201 = vpack.c.b16 %v1153, %v1149
    %v1202 = vpack.c.b16 %v1154, %v1150
    %v1203 = vpack.c.b16 %v1159, %v1155
    %v1204 = vpack.c.b16 %v1160, %v1156
    %v1205 = vpack.c.b16 %v1161, %v1157
    %v1206 = vpack.c.b16 %v1162, %v1158
    %v1207 = vpack.c.b16 %v1167, %v1163
    %v1208 = vpack.c.b16 %v1168, %v1164
    %v1209 = vpack.c.b16 %v1169, %v1165
    %v1210 = vpack.c.b16 %v1170, %v1166
    %v1211 = vpack.c.b16 %v1175, %v1171
    %v1212 = vpack.c.b16 %v1176, %v1172
    %v1213 = vpack.c.b16 %v1177, %v1173
    %v1214 = vpack.c.b16 %v1178, %v1174
    %v1215 = vpack.c.b16 %v1183, %v1179
    %v1216 = vpack.c.b16 %v1184, %v1180
    %v1217 = vpack.c.b16 %v1185, %v1181
    %v1218 = vpack.c.b16 %v1186, %v1182
    %1251 = vmatpush.bf16.msra.mxu0 %v1215
    %1252 = vmatpush.bf16.msra.mxu0 %v1211
    %1253 = vmatpush.bf16.msra.mxu0 %v1207
    %1254 = vmatpush.bf16.msra.mxu0 %v1203
    %1255 = vmatpush.bf16.msra.mxu0 %v1199
    %1256 = vmatpush.bf16.msra.mxu0 %v1195
    %1257 = vmatpush.bf16.msra.mxu0 %v1191
    %1258 = vmatpush.bf16.msra.mxu0 %v1187
    %1259 = vmatmul.bf16.gmra.mxu0 %v486
    %v1260 = vpop.f32.mrf.mxu0
    %v1261 = vadd.f32 0.0, %v1260
    %v1262 = vpop.f32.mrf.mxu0
    %1263 = vdwg.mxu0
    %1264 = vmatpush.bf16.msra.mxu0 %v1216
    %1265 = vmatpush.bf16.msra.mxu0 %v1212
    %1266 = vmatpush.bf16.msra.mxu0 %v1208
    %1267 = vmatpush.bf16.msra.mxu0 %v1204
    %1268 = vmatpush.bf16.msra.mxu0 %v1200
    %1269 = vmatpush.bf16.msra.mxu0 %v1196
    %1270 = vmatpush.bf16.msra.mxu0 %v1192
    %1271 = vmatpush.bf16.msra.mxu0 %v1188
    %1272 = vmatmul.bf16.gmra.mxu0 %v486
    %v1273 = vpop.f32.mrf.mxu0
    %v1274 = vadd.f32 0.0, %v1273
    %v1275 = vpop.f32.mrf.mxu0
    %1276 = vdwg.mxu0
    %1277 = vmatpush.bf16.msra.mxu0 %v1217
    %1278 = vmatpush.bf16.msra.mxu0 %v1213
    %1279 = vmatpush.bf16.msra.mxu0 %v1209
    %1280 = vmatpush.bf16.msra.mxu0 %v1205
    %1281 = vmatpush.bf16.msra.mxu0 %v1201
    %1282 = vmatpush.bf16.msra.mxu0 %v1197
    %1283 = vmatpush.bf16.msra.mxu0 %v1193
    %1284 = vmatpush.bf16.msra.mxu0 %v1189
    %1285 = vmatmul.bf16.gmra.mxu0 %v486
    %v1286 = vpop.f32.mrf.mxu0
    %v1287 = vadd.f32 0.0, %v1286
    %v1288 = vpop.f32.mrf.mxu0
    %1289 = vdwg.mxu0
    %1290 = vmatpush.bf16.msra.mxu0 %v1218
    %1291 = vmatpush.bf16.msra.mxu0 %v1214
    %1292 = vmatpush.bf16.msra.mxu0 %v1210
    %1293 = vmatpush.bf16.msra.mxu0 %v1206
    %1294 = vmatpush.bf16.msra.mxu0 %v1202
    %1295 = vmatpush.bf16.msra.mxu0 %v1198
    %1296 = vmatpush.bf16.msra.mxu0 %v1194
    %1297 = vmatpush.bf16.msra.mxu0 %v1190
    %1298 = vmatmul.bf16.gmra.mxu0 %v486
    %v1299 = vpop.f32.mrf.mxu0
    %v1300 = vadd.f32 0.0, %v1299
    %v1301 = vpop.f32.mrf.mxu0
    %1302 = vdwg.mxu0
    %1305 = vst [vmem:[#allocation1] ss:$2 sm:$0xff] %v1057
    %s1306 = scalar_lea.vmem [#allocation1], 16
    %1307 = vst [vmem:[%s1306] ss:$2 sm:$0xff] %v1058
    %v1308 = vld.sshfl [vmem:[#allocation1] sm:$0xff pattern:$0x75316420]
    %v1309 = vld.sshfl [vmem:[#allocation1 + $0x8] sm:$0xff pattern:$0x75316420]
    %v1310 = vld.sshfl [vmem:[#allocation1 + $0x10] sm:$0xff pattern:$0x75316420]
    %v1311 = vld.sshfl [vmem:[#allocation1 + $0x18] sm:$0xff pattern:$0x75316420]
    %v1313 = vsel %vm316, %v1056, 0
    %v1315 = vsel %vm320, %v1308, 0
    %v1317 = vsel %vm320, %v1309, 0
    %v1319 = vsel %vm320, %v1310, 0
    %v1321 = vsel %vm320, %v1311, 0
    %1323 = vmatpush.msra.mxu0 0.0
    %1324 = vmatpush.msra.mxu0 0.0
    %1325 = vmatpush.msra.mxu0 0.0
    %1326 = vmatpush.msra.mxu0 0.0
    %1327 = vmatpush.msra.mxu0 0.0
    %1328 = vmatpush.msra.mxu0 0.0
    %1329 = vmatpush.msra.mxu0 0.0
    %1330 = vmatpush.msra.mxu0 0.0
    %1331 = vmatpush.msra.mxu0 0.0
    %1332 = vmatpush.msra.mxu0 0.0
    %1333 = vmatpush.msra.mxu0 0.0
    %1334 = vmatpush.msra.mxu0 0.0
    %1335 = vmatpush.msra.mxu0 0.0
    %1336 = vmatpush.msra.mxu0 0.0
    %1337 = vmatpush.msra.mxu0 0.0
    %1338 = vmatpush.msra.mxu0 %v1315
    %1339 = vmatmul.f32.gmra.mxu0 %v1313
    %v1340 = vpop.f32.mrf.mxu0
    %v1341 = vadd.f32 %v1261, %v1340
    %1342 = vdwg.mxu0
    %1343 = vmatpush.msra.mxu0 0.0
    %1344 = vmatpush.msra.mxu0 0.0
    %1345 = vmatpush.msra.mxu0 0.0
    %1346 = vmatpush.msra.mxu0 0.0
    %1347 = vmatpush.msra.mxu0 0.0
    %1348 = vmatpush.msra.mxu0 0.0
    %1349 = vmatpush.msra.mxu0 0.0
    %1350 = vmatpush.msra.mxu0 0.0
    %1351 = vmatpush.msra.mxu0 0.0
    %1352 = vmatpush.msra.mxu0 0.0
    %1353 = vmatpush.msra.mxu0 0.0
    %1354 = vmatpush.msra.mxu0 0.0
    %1355 = vmatpush.msra.mxu0 0.0
    %1356 = vmatpush.msra.mxu0 0.0
    %1357 = vmatpush.msra.mxu0 0.0
    %1358 = vmatpush.msra.mxu0 %v1317
    %1359 = vmatmul.f32.gmra.mxu0 %v1313
    %v1360 = vpop.f32.mrf.mxu0
    %v1361 = vadd.f32 %v1274, %v1360
    %1362 = vdwg.mxu0
    %1363 = vmatpush.msra.mxu0 0.0
    %1364 = vmatpush.msra.mxu0 0.0
    %1365 = vmatpush.msra.mxu0 0.0
    %1366 = vmatpush.msra.mxu0 0.0
    %1367 = vmatpush.msra.mxu0 0.0
    %1368 = vmatpush.msra.mxu0 0.0
    %1369 = vmatpush.msra.mxu0 0.0
    %1370 = vmatpush.msra.mxu0 0.0
    %1371 = vmatpush.msra.mxu0 0.0
    %1372 = vmatpush.msra.mxu0 0.0
    %1373 = vmatpush.msra.mxu0 0.0
    %1374 = vmatpush.msra.mxu0 0.0
    %1375 = vmatpush.msra.mxu0 0.0
    %1376 = vmatpush.msra.mxu0 0.0
    %1377 = vmatpush.msra.mxu0 0.0
    %1378 = vmatpush.msra.mxu0 %v1319
    %1379 = vmatmul.f32.gmra.mxu0 %v1313
    %v1380 = vpop.f32.mrf.mxu0
    %v1381 = vadd.f32 %v1287, %v1380
    %1382 = vdwg.mxu0
    %1383 = vmatpush.msra.mxu0 0.0
    %1384 = vmatpush.msra.mxu0 0.0
    %1385 = vmatpush.msra.mxu0 0.0
    %1386 = vmatpush.msra.mxu0 0.0
    %1387 = vmatpush.msra.mxu0 0.0
    %1388 = vmatpush.msra.mxu0 0.0
    %1389 = vmatpush.msra.mxu0 0.0
    %1390 = vmatpush.msra.mxu0 0.0
    %1391 = vmatpush.msra.mxu0 0.0
    %1392 = vmatpush.msra.mxu0 0.0
    %1393 = vmatpush.msra.mxu0 0.0
    %1394 = vmatpush.msra.mxu0 0.0
    %1395 = vmatpush.msra.mxu0 0.0
    %1396 = vmatpush.msra.mxu0 0.0
    %1397 = vmatpush.msra.mxu0 0.0
    %1398 = vmatpush.msra.mxu0 %v1321
    %1399 = vmatmul.f32.gmra.mxu0 %v1313
    %v1400 = vpop.f32.mrf.mxu0
    %v1401 = vadd.f32 %v1300, %v1400
    %1402 = vdwg.mxu0
    %v1403 = vld [vmem:[%s4] sm:$0xf]
    %v1405 = vperm.slane %v1403, 0
    %v1406 = vperm.slane %v1403, 1
    %v1407 = vperm.slane %v1403, 2
    %v1408 = vperm.slane %v1403, 3
    %v1413 = vadd.f32 %v1341, %v1405
    %v1414 = vadd.f32 %v1361, %v1406
    %v1415 = vadd.f32 %v1381, %v1407
    %v1416 = vadd.f32 %v1401, %v1408
    %v1417 = vxor.u32 %v1413, 2147483648
    %v1418 = vmul.f32 %v1417, 1.442695
    %v1419 = vpow.pop %v1418
    %v1420 = vadd.f32 %v1419, 1.0
    %v1421 = vrcp.pop %v1420
    %v1422 = vmul.f32 %v1420, %v1421
    %v1423 = vsub.f32 1.0, %v1422
    %v1424 = vmul.f32 %v1421, %v1423
    %v1425 = vadd.f32 %v1421, %v1424
    %vm1426 = vweird.f32 %v1420
    %vm1427 = vweird.f32 %v1421
    %vm1428 = vmor %vm1426, %vm1427
    %v1429 = vsel %vm1428, %v1421, %v1425
    %v1430 = vand.u32 2147483647, %v1420
    %vm1431 = vcmp.eq.f32.partialorder %v1430, 8.507059e+37
    %v1432 = vand.u32 %v1420, 2147483648
    %v1433 = vor.u32 1.1754944e-38, %v1432
    %v1434 = vsel %vm1431, %v1433, %v1429
    %v1435 = vmul.f32 1.0, %v1434
    %v1436 = vxor.u32 %v1414, 2147483648
    %v1437 = vmul.f32 %v1436, 1.442695
    %v1438 = vpow.pop %v1437
    %v1439 = vadd.f32 %v1438, 1.0
    %v1440 = vrcp.pop %v1439
    %v1441 = vmul.f32 %v1439, %v1440
    %v1442 = vsub.f32 1.0, %v1441
    %v1443 = vmul.f32 %v1440, %v1442
    %v1444 = vadd.f32 %v1440, %v1443
    %vm1445 = vweird.f32 %v1439
    %vm1446 = vweird.f32 %v1440
    %vm1447 = vmor %vm1445, %vm1446
    %v1448 = vsel %vm1447, %v1440, %v1444
    %v1449 = vand.u32 2147483647, %v1439
    %vm1450 = vcmp.eq.f32.partialorder %v1449, 8.507059e+37
    %v1451 = vand.u32 %v1439, 2147483648
    %v1452 = vor.u32 1.1754944e-38, %v1451
    %v1453 = vsel %vm1450, %v1452, %v1448
    %v1454 = vmul.f32 1.0, %v1453
    %v1455 = vtanh.pop %v1415
    %v1456 = vxor.u32 %v1416, 2147483648
    %v1457 = vmul.f32 %v1456, 1.442695
    %v1458 = vpow.pop %v1457
    %v1459 = vadd.f32 %v1458, 1.0
    %v1460 = vrcp.pop %v1459
    %v1461 = vmul.f32 %v1459, %v1460
    %v1462 = vsub.f32 1.0, %v1461
    %v1463 = vmul.f32 %v1460, %v1462
    %v1464 = vadd.f32 %v1460, %v1463
    %vm1465 = vweird.f32 %v1459
    %vm1466 = vweird.f32 %v1460
    %vm1467 = vmor %vm1465, %vm1466
    %v1468 = vsel %vm1467, %v1460, %v1464
    %v1469 = vand.u32 2147483647, %v1459
    %vm1470 = vcmp.eq.f32.partialorder %v1469, 8.507059e+37
    %v1471 = vand.u32 %v1459, 2147483648
    %v1472 = vor.u32 1.1754944e-38, %v1471
    %v1473 = vsel %vm1470, %v1472, %v1468
    %v1474 = vmul.f32 1.0, %v1473
    %v1475 = vmul.f32 %v1454, %v483
    %v1476 = vmul.f32 %v1435, %v1455
    %v1477 = vadd.f32 %v1475, %v1476
    %v1478 = vtanh.pop %v1477
    %v1479 = vmul.f32 %v1474, %v1478
    %v1480 = vpack.c.bf16 %v1479, %v1479
    %v1481 = vld [vmem:[#allocation4] sm:$0xff]
    %v1482 = vld [vmem:[#allocation4 + $0x8] sm:$0xff]
    %v1483 = vld [vmem:[#allocation4 + $0x10] sm:$0xff]
    %v1484 = vld [vmem:[#allocation4 + $0x18] sm:$0xff]
    %v1485 = vld [vmem:[#allocation4 + $0x20] sm:$0xff]
    %v1486 = vld [vmem:[#allocation4 + $0x28] sm:$0xff]
    %v1487 = vld [vmem:[#allocation4 + $0x30] sm:$0xff]
    %v1488 = vld [vmem:[#allocation4 + $0x38] sm:$0xff]
    %v1489 = vld [vmem:[#allocation4 + $0x40] sm:$0xff]
    %v1490 = vld [vmem:[#allocation4 + $0x48] sm:$0xff]
    %v1491 = vld [vmem:[#allocation4 + $0x50] sm:$0xff]
    %v1492 = vld [vmem:[#allocation4 + $0x58] sm:$0xff]
    %v1493 = vld [vmem:[#allocation4 + $0x60] sm:$0xff]
    %v1494 = vld [vmem:[#allocation4 + $0x68] sm:$0xff]
    %v1495 = vld [vmem:[#allocation4 + $0x70] sm:$0xff]
    %v1496 = vld [vmem:[#allocation4 + $0x78] sm:$0xff]
    %v1497 = vld [vmem:[#allocation4 + $0x80] sm:$0xff]
    %v1498 = vld [vmem:[#allocation4 + $0x88] sm:$0xff]
    %v1499 = vld [vmem:[#allocation4 + $0x90] sm:$0xff]
    %v1500 = vld [vmem:[#allocation4 + $0x98] sm:$0xff]
    %v1501 = vld [vmem:[#allocation4 + $0xa0] sm:$0xff]
    %v1502 = vld [vmem:[#allocation4 + $0xa8] sm:$0xff]
    %v1503 = vld [vmem:[#allocation4 + $0xb0] sm:$0xff]
    %v1504 = vld [vmem:[#allocation4 + $0xb8] sm:$0xff]
    %v1505 = vld [vmem:[#allocation4 + $0xc0] sm:$0xff]
    %v1506 = vld [vmem:[#allocation4 + $0xc8] sm:$0xff]
    %v1507 = vld [vmem:[#allocation4 + $0xd0] sm:$0xff]
    %v1508 = vld [vmem:[#allocation4 + $0xd8] sm:$0xff]
    %v1509 = vld [vmem:[#allocation4 + $0xe0] sm:$0xff]
    %v1510 = vld [vmem:[#allocation4 + $0xe8] sm:$0xff]
    %v1511 = vld [vmem:[#allocation4 + $0xf0] sm:$0xff]
    %v1512 = vld [vmem:[#allocation4 + $0xf8] sm:$0xff]
    %v1513 = vpack.c.bf16 %v1053, %v1053
    %v1514 = vld [vmem:[%s519] sm:$0xff]
    %v1515 = vld [vmem:[%s519 + $0x8] sm:$0xff]
    %v1516 = vld [vmem:[%s519 + $0x10] sm:$0xff]
    %v1517 = vld [vmem:[%s519 + $0x18] sm:$0xff]
    %v1518 = vld [vmem:[%s519 + $0x20] sm:$0xff]
    %v1519 = vld [vmem:[%s519 + $0x28] sm:$0xff]
    %v1520 = vld [vmem:[%s519 + $0x30] sm:$0xff]
    %v1521 = vld [vmem:[%s519 + $0x38] sm:$0xff]
    %v1522 = vld [vmem:[%s519 + $0x40] sm:$0xff]
    %v1523 = vld [vmem:[%s519 + $0x48] sm:$0xff]
    %v1524 = vld [vmem:[%s519 + $0x50] sm:$0xff]
    %v1525 = vld [vmem:[%s519 + $0x58] sm:$0xff]
    %v1526 = vld [vmem:[%s519 + $0x60] sm:$0xff]
    %v1527 = vld [vmem:[%s519 + $0x68] sm:$0xff]
    %v1528 = vld [vmem:[%s519 + $0x70] sm:$0xff]
    %v1529 = vld [vmem:[%s519 + $0x78] sm:$0xff]
    %v1530 = vld [vmem:[%s519 + $0x80] sm:$0xff]
    %v1531 = vld [vmem:[%s519 + $0x88] sm:$0xff]
    %v1532 = vld [vmem:[%s519 + $0x90] sm:$0xff]
    %v1533 = vld [vmem:[%s519 + $0x98] sm:$0xff]
    %v1534 = vld [vmem:[%s519 + $0xa0] sm:$0xff]
    %v1535 = vld [vmem:[%s519 + $0xa8] sm:$0xff]
    %v1536 = vld [vmem:[%s519 + $0xb0] sm:$0xff]
    %v1537 = vld [vmem:[%s519 + $0xb8] sm:$0xff]
    %v1538 = vld [vmem:[%s519 + $0xc0] sm:$0xff]
    %v1539 = vld [vmem:[%s519 + $0xc8] sm:$0xff]
    %v1540 = vld [vmem:[%s519 + $0xd0] sm:$0xff]
    %v1541 = vld [vmem:[%s519 + $0xd8] sm:$0xff]
    %v1542 = vld [vmem:[%s519 + $0xe0] sm:$0xff]
    %v1543 = vld [vmem:[%s519 + $0xe8] sm:$0xff]
    %v1544 = vld [vmem:[%s519 + $0xf0] sm:$0xff]
    %v1545 = vld [vmem:[%s519 + $0xf8] sm:$0xff]
    %v1578 = vunpack.c.l.b16 %v1514
    %v1579 = vunpack.c.h.b16 %v1514
    %v1580 = vunpack.c.l.b16 %v1515
    %v1581 = vunpack.c.h.b16 %v1515
    %v1582 = vunpack.c.l.b16 %v1516
    %v1583 = vunpack.c.h.b16 %v1516
    %v1584 = vunpack.c.l.b16 %v1517
    %v1585 = vunpack.c.h.b16 %v1517
    %v1586 = vunpack.c.l.b16 %v1518
    %v1587 = vunpack.c.h.b16 %v1518
    %v1588 = vunpack.c.l.b16 %v1519
    %v1589 = vunpack.c.h.b16 %v1519
    %v1590 = vunpack.c.l.b16 %v1520
    %v1591 = vunpack.c.h.b16 %v1520
    %v1592 = vunpack.c.l.b16 %v1521
    %v1593 = vunpack.c.h.b16 %v1521
    %v1594 = vunpack.c.l.b16 %v1522
    %v1595 = vunpack.c.h.b16 %v1522
    %v1596 = vunpack.c.l.b16 %v1523
    %v1597 = vunpack.c.h.b16 %v1523
    %v1598 = vunpack.c.l.b16 %v1524
    %v1599 = vunpack.c.h.b16 %v1524
    %v1600 = vunpack.c.l.b16 %v1525
    %v1601 = vunpack.c.h.b16 %v1525
    %v1602 = vunpack.c.l.b16 %v1526
    %v1603 = vunpack.c.h.b16 %v1526
    %v1604 = vunpack.c.l.b16 %v1527
    %v1605 = vunpack.c.h.b16 %v1527
    %v1606 = vunpack.c.l.b16 %v1528
    %v1607 = vunpack.c.h.b16 %v1528
    %v1608 = vunpack.c.l.b16 %v1529
    %v1609 = vunpack.c.h.b16 %v1529
    %v1610 = vunpack.c.l.b16 %v1530
    %v1611 = vunpack.c.h.b16 %v1530
    %v1612 = vunpack.c.l.b16 %v1531
    %v1613 = vunpack.c.h.b16 %v1531
    %v1614 = vunpack.c.l.b16 %v1532
    %v1615 = vunpack.c.h.b16 %v1532
    %v1616 = vunpack.c.l.b16 %v1533
    %v1617 = vunpack.c.h.b16 %v1533
    %v1618 = vunpack.c.l.b16 %v1534
    %v1619 = vunpack.c.h.b16 %v1534
    %v1620 = vunpack.c.l.b16 %v1535
    %v1621 = vunpack.c.h.b16 %v1535
    %v1622 = vunpack.c.l.b16 %v1536
    %v1623 = vunpack.c.h.b16 %v1536
    %v1624 = vunpack.c.l.b16 %v1537
    %v1625 = vunpack.c.h.b16 %v1537
    %v1626 = vunpack.c.l.b16 %v1538
    %v1627 = vunpack.c.h.b16 %v1538
    %v1628 = vunpack.c.l.b16 %v1539
    %v1629 = vunpack.c.h.b16 %v1539
    %v1630 = vunpack.c.l.b16 %v1540
    %v1631 = vunpack.c.h.b16 %v1540
    %v1632 = vunpack.c.l.b16 %v1541
    %v1633 = vunpack.c.h.b16 %v1541
    %v1634 = vunpack.c.l.b16 %v1542
    %v1635 = vunpack.c.h.b16 %v1542
    %v1636 = vunpack.c.l.b16 %v1543
    %v1637 = vunpack.c.h.b16 %v1543
    %v1638 = vunpack.c.l.b16 %v1544
    %v1639 = vunpack.c.h.b16 %v1544
    %v1640 = vunpack.c.l.b16 %v1545
    %v1641 = vunpack.c.h.b16 %v1545
    %v1642 = vpack.c.b16 %v1582, %v1578
    %v1643 = vpack.c.b16 %v1583, %v1579
    %v1644 = vpack.c.b16 %v1584, %v1580
    %v1645 = vpack.c.b16 %v1585, %v1581
    %v1646 = vpack.c.b16 %v1590, %v1586
    %v1647 = vpack.c.b16 %v1591, %v1587
    %v1648 = vpack.c.b16 %v1592, %v1588
    %v1649 = vpack.c.b16 %v1593, %v1589
    %v1650 = vpack.c.b16 %v1598, %v1594
    %v1651 = vpack.c.b16 %v1599, %v1595
    %v1652 = vpack.c.b16 %v1600, %v1596
    %v1653 = vpack.c.b16 %v1601, %v1597
    %v1654 = vpack.c.b16 %v1606, %v1602
    %v1655 = vpack.c.b16 %v1607, %v1603
    %v1656 = vpack.c.b16 %v1608, %v1604
    %v1657 = vpack.c.b16 %v1609, %v1605
    %v1658 = vpack.c.b16 %v1614, %v1610
    %v1659 = vpack.c.b16 %v1615, %v1611
    %v1660 = vpack.c.b16 %v1616, %v1612
    %v1661 = vpack.c.b16 %v1617, %v1613
    %v1662 = vpack.c.b16 %v1622, %v1618
    %v1663 = vpack.c.b16 %v1623, %v1619
    %v1664 = vpack.c.b16 %v1624, %v1620
    %v1665 = vpack.c.b16 %v1625, %v1621
    %v1666 = vpack.c.b16 %v1630, %v1626
    %v1667 = vpack.c.b16 %v1631, %v1627
    %v1668 = vpack.c.b16 %v1632, %v1628
    %v1669 = vpack.c.b16 %v1633, %v1629
    %v1670 = vpack.c.b16 %v1638, %v1634
    %v1671 = vpack.c.b16 %v1639, %v1635
    %v1672 = vpack.c.b16 %v1640, %v1636
    %v1673 = vpack.c.b16 %v1641, %v1637
    %1706 = vmatpush.bf16.msra.mxu0 %v1670
    %1707 = vmatpush.bf16.msra.mxu0 %v1666
    %1708 = vmatpush.bf16.msra.mxu0 %v1662
    %1709 = vmatpush.bf16.msra.mxu0 %v1658
    %1710 = vmatpush.bf16.msra.mxu0 %v1654
    %1711 = vmatpush.bf16.msra.mxu0 %v1650
    %1712 = vmatpush.bf16.msra.mxu0 %v1646
    %1713 = vmatpush.bf16.msra.mxu0 %v1642
    %1714 = vmatmul.bf16.gmra.mxu0 %v1513
    %v1715 = vpop.f32.mrf.mxu0
    %v1716 = vadd.f32 0.0, %v1715
    %v1717 = vpop.f32.mrf.mxu0
    %1718 = vdwg.mxu0
    %1719 = vmatpush.bf16.msra.mxu0 %v1671
    %1720 = vmatpush.bf16.msra.mxu0 %v1667
    %1721 = vmatpush.bf16.msra.mxu0 %v1663
    %1722 = vmatpush.bf16.msra.mxu0 %v1659
    %1723 = vmatpush.bf16.msra.mxu0 %v1655
    %1724 = vmatpush.bf16.msra.mxu0 %v1651
    %1725 = vmatpush.bf16.msra.mxu0 %v1647
    %1726 = vmatpush.bf16.msra.mxu0 %v1643
    %1727 = vmatmul.bf16.gmra.mxu0 %v1513
    %v1728 = vpop.f32.mrf.mxu0
    %v1729 = vadd.f32 0.0, %v1728
    %v1730 = vpop.f32.mrf.mxu0
    %1731 = vdwg.mxu0
    %1732 = vmatpush.bf16.msra.mxu0 %v1672
    %1733 = vmatpush.bf16.msra.mxu0 %v1668
    %1734 = vmatpush.bf16.msra.mxu0 %v1664
    %1735 = vmatpush.bf16.msra.mxu0 %v1660
    %1736 = vmatpush.bf16.msra.mxu0 %v1656
    %1737 = vmatpush.bf16.msra.mxu0 %v1652
    %1738 = vmatpush.bf16.msra.mxu0 %v1648
    %1739 = vmatpush.bf16.msra.mxu0 %v1644
    %1740 = vmatmul.bf16.gmra.mxu0 %v1513
    %v1741 = vpop.f32.mrf.mxu0
    %v1742 = vadd.f32 0.0, %v1741
    %v1743 = vpop.f32.mrf.mxu0
    %1744 = vdwg.mxu0
    %1745 = vmatpush.bf16.msra.mxu0 %v1673
    %1746 = vmatpush.bf16.msra.mxu0 %v1669
    %1747 = vmatpush.bf16.msra.mxu0 %v1665
    %1748 = vmatpush.bf16.msra.mxu0 %v1661
    %1749 = vmatpush.bf16.msra.mxu0 %v1657
    %1750 = vmatpush.bf16.msra.mxu0 %v1653
    %1751 = vmatpush.bf16.msra.mxu0 %v1649
    %1752 = vmatpush.bf16.msra.mxu0 %v1645
    %1753 = vmatmul.bf16.gmra.mxu0 %v1513
    %v1754 = vpop.f32.mrf.mxu0
    %v1755 = vadd.f32 0.0, %v1754
    %v1756 = vpop.f32.mrf.mxu0
    %1757 = vdwg.mxu0
    %v1790 = vunpack.c.l.b16 %v1481
    %v1791 = vunpack.c.h.b16 %v1481
    %v1792 = vunpack.c.l.b16 %v1482
    %v1793 = vunpack.c.h.b16 %v1482
    %v1794 = vunpack.c.l.b16 %v1483
    %v1795 = vunpack.c.h.b16 %v1483
    %v1796 = vunpack.c.l.b16 %v1484
    %v1797 = vunpack.c.h.b16 %v1484
    %v1798 = vunpack.c.l.b16 %v1485
    %v1799 = vunpack.c.h.b16 %v1485
    %v1800 = vunpack.c.l.b16 %v1486
    %v1801 = vunpack.c.h.b16 %v1486
    %v1802 = vunpack.c.l.b16 %v1487
    %v1803 = vunpack.c.h.b16 %v1487
    %v1804 = vunpack.c.l.b16 %v1488
    %v1805 = vunpack.c.h.b16 %v1488
    %v1806 = vunpack.c.l.b16 %v1489
    %v1807 = vunpack.c.h.b16 %v1489
    %v1808 = vunpack.c.l.b16 %v1490
    %v1809 = vunpack.c.h.b16 %v1490
    %v1810 = vunpack.c.l.b16 %v1491
    %v1811 = vunpack.c.h.b16 %v1491
    %v1812 = vunpack.c.l.b16 %v1492
    %v1813 = vunpack.c.h.b16 %v1492
    %v1814 = vunpack.c.l.b16 %v1493
    %v1815 = vunpack.c.h.b16 %v1493
    %v1816 = vunpack.c.l.b16 %v1494
    %v1817 = vunpack.c.h.b16 %v1494
    %v1818 = vunpack.c.l.b16 %v1495
    %v1819 = vunpack.c.h.b16 %v1495
    %v1820 = vunpack.c.l.b16 %v1496
    %v1821 = vunpack.c.h.b16 %v1496
    %v1822 = vunpack.c.l.b16 %v1497
    %v1823 = vunpack.c.h.b16 %v1497
    %v1824 = vunpack.c.l.b16 %v1498
    %v1825 = vunpack.c.h.b16 %v1498
    %v1826 = vunpack.c.l.b16 %v1499
    %v1827 = vunpack.c.h.b16 %v1499
    %v1828 = vunpack.c.l.b16 %v1500
    %v1829 = vunpack.c.h.b16 %v1500
    %v1830 = vunpack.c.l.b16 %v1501
    %v1831 = vunpack.c.h.b16 %v1501
    %v1832 = vunpack.c.l.b16 %v1502
    %v1833 = vunpack.c.h.b16 %v1502
    %v1834 = vunpack.c.l.b16 %v1503
    %v1835 = vunpack.c.h.b16 %v1503
    %v1836 = vunpack.c.l.b16 %v1504
    %v1837 = vunpack.c.h.b16 %v1504
    %v1838 = vunpack.c.l.b16 %v1505
    %v1839 = vunpack.c.h.b16 %v1505
    %v1840 = vunpack.c.l.b16 %v1506
    %v1841 = vunpack.c.h.b16 %v1506
    %v1842 = vunpack.c.l.b16 %v1507
    %v1843 = vunpack.c.h.b16 %v1507
    %v1844 = vunpack.c.l.b16 %v1508
    %v1845 = vunpack.c.h.b16 %v1508
    %v1846 = vunpack.c.l.b16 %v1509
    %v1847 = vunpack.c.h.b16 %v1509
    %v1848 = vunpack.c.l.b16 %v1510
    %v1849 = vunpack.c.h.b16 %v1510
    %v1850 = vunpack.c.l.b16 %v1511
    %v1851 = vunpack.c.h.b16 %v1511
    %v1852 = vunpack.c.l.b16 %v1512
    %v1853 = vunpack.c.h.b16 %v1512
    %v1854 = vpack.c.b16 %v1794, %v1790
    %v1855 = vpack.c.b16 %v1795, %v1791
    %v1856 = vpack.c.b16 %v1796, %v1792
    %v1857 = vpack.c.b16 %v1797, %v1793
    %v1858 = vpack.c.b16 %v1802, %v1798
    %v1859 = vpack.c.b16 %v1803, %v1799
    %v1860 = vpack.c.b16 %v1804, %v1800
    %v1861 = vpack.c.b16 %v1805, %v1801
    %v1862 = vpack.c.b16 %v1810, %v1806
    %v1863 = vpack.c.b16 %v1811, %v1807
    %v1864 = vpack.c.b16 %v1812, %v1808
    %v1865 = vpack.c.b16 %v1813, %v1809
    %v1866 = vpack.c.b16 %v1818, %v1814
    %v1867 = vpack.c.b16 %v1819, %v1815
    %v1868 = vpack.c.b16 %v1820, %v1816
    %v1869 = vpack.c.b16 %v1821, %v1817
    %v1870 = vpack.c.b16 %v1826, %v1822
    %v1871 = vpack.c.b16 %v1827, %v1823
    %v1872 = vpack.c.b16 %v1828, %v1824
    %v1873 = vpack.c.b16 %v1829, %v1825
    %v1874 = vpack.c.b16 %v1834, %v1830
    %v1875 = vpack.c.b16 %v1835, %v1831
    %v1876 = vpack.c.b16 %v1836, %v1832
    %v1877 = vpack.c.b16 %v1837, %v1833
    %v1878 = vpack.c.b16 %v1842, %v1838
    %v1879 = vpack.c.b16 %v1843, %v1839
    %v1880 = vpack.c.b16 %v1844, %v1840
    %v1881 = vpack.c.b16 %v1845, %v1841
    %v1882 = vpack.c.b16 %v1850, %v1846
    %v1883 = vpack.c.b16 %v1851, %v1847
    %v1884 = vpack.c.b16 %v1852, %v1848
    %v1885 = vpack.c.b16 %v1853, %v1849
    %1918 = vmatpush.bf16.msra.mxu0 %v1882
    %1919 = vmatpush.bf16.msra.mxu0 %v1878
    %1920 = vmatpush.bf16.msra.mxu0 %v1874
    %1921 = vmatpush.bf16.msra.mxu0 %v1870
    %1922 = vmatpush.bf16.msra.mxu0 %v1866
    %1923 = vmatpush.bf16.msra.mxu0 %v1862
    %1924 = vmatpush.bf16.msra.mxu0 %v1858
    %1925 = vmatpush.bf16.msra.mxu0 %v1854
    %1926 = vmatmul.bf16.gmra.mxu0 %v1480
    %v1927 = vpop.f32.mrf.mxu0
    %v1928 = vadd.f32 %v1716, %v1927
    %v1929 = vpop.f32.mrf.mxu0
    %1930 = vdwg.mxu0
    %1931 = vmatpush.bf16.msra.mxu0 %v1883
    %1932 = vmatpush.bf16.msra.mxu0 %v1879
    %1933 = vmatpush.bf16.msra.mxu0 %v1875
    %1934 = vmatpush.bf16.msra.mxu0 %v1871
    %1935 = vmatpush.bf16.msra.mxu0 %v1867
    %1936 = vmatpush.bf16.msra.mxu0 %v1863
    %1937 = vmatpush.bf16.msra.mxu0 %v1859
    %1938 = vmatpush.bf16.msra.mxu0 %v1855
    %1939 = vmatmul.bf16.gmra.mxu0 %v1480
    %v1940 = vpop.f32.mrf.mxu0
    %v1941 = vadd.f32 %v1729, %v1940
    %v1942 = vpop.f32.mrf.mxu0
    %1943 = vdwg.mxu0
    %1944 = vmatpush.bf16.msra.mxu0 %v1884
    %1945 = vmatpush.bf16.msra.mxu0 %v1880
    %1946 = vmatpush.bf16.msra.mxu0 %v1876
    %1947 = vmatpush.bf16.msra.mxu0 %v1872
    %1948 = vmatpush.bf16.msra.mxu0 %v1868
    %1949 = vmatpush.bf16.msra.mxu0 %v1864
    %1950 = vmatpush.bf16.msra.mxu0 %v1860
    %1951 = vmatpush.bf16.msra.mxu0 %v1856
    %1952 = vmatmul.bf16.gmra.mxu0 %v1480
    %v1953 = vpop.f32.mrf.mxu0
    %v1954 = vadd.f32 %v1742, %v1953
    %v1955 = vpop.f32.mrf.mxu0
    %1956 = vdwg.mxu0
    %1957 = vmatpush.bf16.msra.mxu0 %v1885
    %1958 = vmatpush.bf16.msra.mxu0 %v1881
    %1959 = vmatpush.bf16.msra.mxu0 %v1877
    %1960 = vmatpush.bf16.msra.mxu0 %v1873
    %1961 = vmatpush.bf16.msra.mxu0 %v1869
    %1962 = vmatpush.bf16.msra.mxu0 %v1865
    %1963 = vmatpush.bf16.msra.mxu0 %v1861
    %1964 = vmatpush.bf16.msra.mxu0 %v1857
    %1965 = vmatmul.bf16.gmra.mxu0 %v1480
    %v1966 = vpop.f32.mrf.mxu0
    %v1967 = vadd.f32 %v1755, %v1966
    %v1968 = vpop.f32.mrf.mxu0
    %1969 = vdwg.mxu0
    %v1970 = vld [vmem:[%s976] sm:$0xf]
    %v1972 = vperm.slane %v1970, 0
    %v1973 = vperm.slane %v1970, 1
    %v1974 = vperm.slane %v1970, 2
    %v1975 = vperm.slane %v1970, 3
    %v1980 = vadd.f32 %v1928, %v1972
    %v1981 = vadd.f32 %v1941, %v1973
    %v1982 = vadd.f32 %v1954, %v1974
    %v1983 = vadd.f32 %v1967, %v1975
    %v1984 = vxor.u32 %v1980, 2147483648
    %v1985 = vmul.f32 %v1984, 1.442695
    %v1986 = vpow.pop %v1985
    %v1987 = vadd.f32 %v1986, 1.0
    %v1988 = vrcp.pop %v1987
    %v1989 = vmul.f32 %v1987, %v1988
    %v1990 = vsub.f32 1.0, %v1989
    %v1991 = vmul.f32 %v1988, %v1990
    %v1992 = vadd.f32 %v1988, %v1991
    %vm1993 = vweird.f32 %v1987
    %vm1994 = vweird.f32 %v1988
    %vm1995 = vmor %vm1993, %vm1994
    %v1996 = vsel %vm1995, %v1988, %v1992
    %v1997 = vand.u32 2147483647, %v1987
    %vm1998 = vcmp.eq.f32.partialorder %v1997, 8.507059e+37
    %v1999 = vand.u32 %v1987, 2147483648
    %v2000 = vor.u32 1.1754944e-38, %v1999
    %v2001 = vsel %vm1998, %v2000, %v1996
    %v2002 = vmul.f32 1.0, %v2001
    %v2003 = vxor.u32 %v1981, 2147483648
    %v2004 = vmul.f32 %v2003, 1.442695
    %v2005 = vpow.pop %v2004
    %v2006 = vadd.f32 %v2005, 1.0
    %v2007 = vrcp.pop %v2006
    %v2008 = vmul.f32 %v2006, %v2007
    %v2009 = vsub.f32 1.0, %v2008
    %v2010 = vmul.f32 %v2007, %v2009
    %v2011 = vadd.f32 %v2007, %v2010
    %vm2012 = vweird.f32 %v2006
    %vm2013 = vweird.f32 %v2007
    %vm2014 = vmor %vm2012, %vm2013
    %v2015 = vsel %vm2014, %v2007, %v2011
    %v2016 = vand.u32 2147483647, %v2006
    %vm2017 = vcmp.eq.f32.partialorder %v2016, 8.507059e+37
    %v2018 = vand.u32 %v2006, 2147483648
    %v2019 = vor.u32 1.1754944e-38, %v2018
    %v2020 = vsel %vm2017, %v2019, %v2015
    %v2021 = vmul.f32 1.0, %v2020
    %v2022 = vtanh.pop %v1982
    %v2023 = vxor.u32 %v1983, 2147483648
    %v2024 = vmul.f32 %v2023, 1.442695
    %v2025 = vpow.pop %v2024
    %v2026 = vadd.f32 %v2025, 1.0
    %v2027 = vrcp.pop %v2026
    %v2028 = vmul.f32 %v2026, %v2027
    %v2029 = vsub.f32 1.0, %v2028
    %v2030 = vmul.f32 %v2027, %v2029
    %v2031 = vadd.f32 %v2027, %v2030
    %vm2032 = vweird.f32 %v2026
    %vm2033 = vweird.f32 %v2027
    %vm2034 = vmor %vm2032, %vm2033
    %v2035 = vsel %vm2034, %v2027, %v2031
    %v2036 = vand.u32 2147483647, %v2026
    %vm2037 = vcmp.eq.f32.partialorder %v2036, 8.507059e+37
    %v2038 = vand.u32 %v2026, 2147483648
    %v2039 = vor.u32 1.1754944e-38, %v2038
    %v2040 = vsel %vm2037, %v2039, %v2035
    %v2041 = vmul.f32 1.0, %v2040
    %v2042 = vmul.f32 %v2021, %v1051
    %v2043 = vmul.f32 %v2002, %v2022
    %v2044 = vadd.f32 %v2042, %v2043
    %v2045 = vtanh.pop %v2044
    %v2046 = vmul.f32 %v2041, %v2045
    %s2047 = scalar_lea.vmem [#allocation2], 2
    %2048 = vst [vmem:[%s2047] sm:$0x3] %v2046
    %s2049 = scalar_lea.vmem %s0, 4
    %v2050 = vld [vmem:[%s2049] sm:$0x3]
    %v2051 = vld [vmem:[%s1] sm:$0xff]
    %v2052 = vld [vmem:[%s1 + $0x8] sm:$0xff]
    %v2053 = vld [vmem:[#allocation6] sm:$0xff]
    %v2054 = vld [vmem:[#allocation6 + $0x8] sm:$0xff]
    %v2055 = vld [vmem:[#allocation6 + $0x10] sm:$0xff]
    %v2056 = vld [vmem:[#allocation6 + $0x18] sm:$0xff]
    %v2057 = vld [vmem:[#allocation6 + $0x20] sm:$0xff]
    %v2058 = vld [vmem:[#allocation6 + $0x28] sm:$0xff]
    %v2059 = vld [vmem:[#allocation6 + $0x30] sm:$0xff]
    %v2060 = vld [vmem:[#allocation6 + $0x38] sm:$0xff]
    %v2061 = vld [vmem:[#allocation6 + $0x40] sm:$0xff]
    %v2062 = vld [vmem:[#allocation6 + $0x48] sm:$0xff]
    %v2063 = vld [vmem:[#allocation6 + $0x50] sm:$0xff]
    %v2064 = vld [vmem:[#allocation6 + $0x58] sm:$0xff]
    %v2065 = vld [vmem:[#allocation6 + $0x60] sm:$0xff]
    %v2066 = vld [vmem:[#allocation6 + $0x68] sm:$0xff]
    %v2067 = vld [vmem:[#allocation6 + $0x70] sm:$0xff]
    %v2068 = vld [vmem:[#allocation6 + $0x78] sm:$0xff]
    %v2069 = vld [vmem:[#allocation6 + $0x80] sm:$0xff]
    %v2070 = vld [vmem:[#allocation6 + $0x88] sm:$0xff]
    %v2071 = vld [vmem:[#allocation6 + $0x90] sm:$0xff]
    %v2072 = vld [vmem:[#allocation6 + $0x98] sm:$0xff]
    %v2073 = vld [vmem:[#allocation6 + $0xa0] sm:$0xff]
    %v2074 = vld [vmem:[#allocation6 + $0xa8] sm:$0xff]
    %v2075 = vld [vmem:[#allocation6 + $0xb0] sm:$0xff]
    %v2076 = vld [vmem:[#allocation6 + $0xb8] sm:$0xff]
    %v2077 = vld [vmem:[#allocation6 + $0xc0] sm:$0xff]
    %v2078 = vld [vmem:[#allocation6 + $0xc8] sm:$0xff]
    %v2079 = vld [vmem:[#allocation6 + $0xd0] sm:$0xff]
    %v2080 = vld [vmem:[#allocation6 + $0xd8] sm:$0xff]
    %v2081 = vld [vmem:[#allocation6 + $0xe0] sm:$0xff]
    %v2082 = vld [vmem:[#allocation6 + $0xe8] sm:$0xff]
    %v2083 = vld [vmem:[#allocation6 + $0xf0] sm:$0xff]
    %v2084 = vld [vmem:[#allocation6 + $0xf8] sm:$0xff]
    %v2117 = vunpack.c.l.b16 %v2053
    %v2118 = vunpack.c.h.b16 %v2053
    %v2119 = vunpack.c.l.b16 %v2054
    %v2120 = vunpack.c.h.b16 %v2054
    %v2121 = vunpack.c.l.b16 %v2055
    %v2122 = vunpack.c.h.b16 %v2055
    %v2123 = vunpack.c.l.b16 %v2056
    %v2124 = vunpack.c.h.b16 %v2056
    %v2125 = vunpack.c.l.b16 %v2057
    %v2126 = vunpack.c.h.b16 %v2057
    %v2127 = vunpack.c.l.b16 %v2058
    %v2128 = vunpack.c.h.b16 %v2058
    %v2129 = vunpack.c.l.b16 %v2059
    %v2130 = vunpack.c.h.b16 %v2059
    %v2131 = vunpack.c.l.b16 %v2060
    %v2132 = vunpack.c.h.b16 %v2060
    %v2133 = vunpack.c.l.b16 %v2061
    %v2134 = vunpack.c.h.b16 %v2061
    %v2135 = vunpack.c.l.b16 %v2062
    %v2136 = vunpack.c.h.b16 %v2062
    %v2137 = vunpack.c.l.b16 %v2063
    %v2138 = vunpack.c.h.b16 %v2063
    %v2139 = vunpack.c.l.b16 %v2064
    %v2140 = vunpack.c.h.b16 %v2064
    %v2141 = vunpack.c.l.b16 %v2065
    %v2142 = vunpack.c.h.b16 %v2065
    %v2143 = vunpack.c.l.b16 %v2066
    %v2144 = vunpack.c.h.b16 %v2066
    %v2145 = vunpack.c.l.b16 %v2067
    %v2146 = vunpack.c.h.b16 %v2067
    %v2147 = vunpack.c.l.b16 %v2068
    %v2148 = vunpack.c.h.b16 %v2068
    %v2149 = vunpack.c.l.b16 %v2069
    %v2150 = vunpack.c.h.b16 %v2069
    %v2151 = vunpack.c.l.b16 %v2070
    %v2152 = vunpack.c.h.b16 %v2070
    %v2153 = vunpack.c.l.b16 %v2071
    %v2154 = vunpack.c.h.b16 %v2071
    %v2155 = vunpack.c.l.b16 %v2072
    %v2156 = vunpack.c.h.b16 %v2072
    %v2157 = vunpack.c.l.b16 %v2073
    %v2158 = vunpack.c.h.b16 %v2073
    %v2159 = vunpack.c.l.b16 %v2074
    %v2160 = vunpack.c.h.b16 %v2074
    %v2161 = vunpack.c.l.b16 %v2075
    %v2162 = vunpack.c.h.b16 %v2075
    %v2163 = vunpack.c.l.b16 %v2076
    %v2164 = vunpack.c.h.b16 %v2076
    %v2165 = vunpack.c.l.b16 %v2077
    %v2166 = vunpack.c.h.b16 %v2077
    %v2167 = vunpack.c.l.b16 %v2078
    %v2168 = vunpack.c.h.b16 %v2078
    %v2169 = vunpack.c.l.b16 %v2079
    %v2170 = vunpack.c.h.b16 %v2079
    %v2171 = vunpack.c.l.b16 %v2080
    %v2172 = vunpack.c.h.b16 %v2080
    %v2173 = vunpack.c.l.b16 %v2081
    %v2174 = vunpack.c.h.b16 %v2081
    %v2175 = vunpack.c.l.b16 %v2082
    %v2176 = vunpack.c.h.b16 %v2082
    %v2177 = vunpack.c.l.b16 %v2083
    %v2178 = vunpack.c.h.b16 %v2083
    %v2179 = vunpack.c.l.b16 %v2084
    %v2180 = vunpack.c.h.b16 %v2084
    %v2181 = vpack.c.b16 %v2121, %v2117
    %v2182 = vpack.c.b16 %v2122, %v2118
    %v2183 = vpack.c.b16 %v2123, %v2119
    %v2184 = vpack.c.b16 %v2124, %v2120
    %v2185 = vpack.c.b16 %v2129, %v2125
    %v2186 = vpack.c.b16 %v2130, %v2126
    %v2187 = vpack.c.b16 %v2131, %v2127
    %v2188 = vpack.c.b16 %v2132, %v2128
    %v2189 = vpack.c.b16 %v2137, %v2133
    %v2190 = vpack.c.b16 %v2138, %v2134
    %v2191 = vpack.c.b16 %v2139, %v2135
    %v2192 = vpack.c.b16 %v2140, %v2136
    %v2193 = vpack.c.b16 %v2145, %v2141
    %v2194 = vpack.c.b16 %v2146, %v2142
    %v2195 = vpack.c.b16 %v2147, %v2143
    %v2196 = vpack.c.b16 %v2148, %v2144
    %v2197 = vpack.c.b16 %v2153, %v2149
    %v2198 = vpack.c.b16 %v2154, %v2150
    %v2199 = vpack.c.b16 %v2155, %v2151
    %v2200 = vpack.c.b16 %v2156, %v2152
    %v2201 = vpack.c.b16 %v2161, %v2157
    %v2202 = vpack.c.b16 %v2162, %v2158
    %v2203 = vpack.c.b16 %v2163, %v2159
    %v2204 = vpack.c.b16 %v2164, %v2160
    %v2205 = vpack.c.b16 %v2169, %v2165
    %v2206 = vpack.c.b16 %v2170, %v2166
    %v2207 = vpack.c.b16 %v2171, %v2167
    %v2208 = vpack.c.b16 %v2172, %v2168
    %v2209 = vpack.c.b16 %v2177, %v2173
    %v2210 = vpack.c.b16 %v2178, %v2174
    %v2211 = vpack.c.b16 %v2179, %v2175
    %v2212 = vpack.c.b16 %v2180, %v2176
    %2245 = vmatpush.bf16.msra.mxu0 %v2209
    %2246 = vmatpush.bf16.msra.mxu0 %v2205
    %2247 = vmatpush.bf16.msra.mxu0 %v2201
    %2248 = vmatpush.bf16.msra.mxu0 %v2197
    %2249 = vmatpush.bf16.msra.mxu0 %v2193
    %2250 = vmatpush.bf16.msra.mxu0 %v2189
    %2251 = vmatpush.bf16.msra.mxu0 %v2185
    %2252 = vmatpush.bf16.msra.mxu0 %v2181
    %2253 = vmatmul.bf16.gmra.mxu0 %v1480
    %v2254 = vpop.f32.mrf.mxu0
    %v2255 = vadd.f32 0.0, %v2254
    %v2256 = vpop.f32.mrf.mxu0
    %2257 = vdwg.mxu0
    %2258 = vmatpush.bf16.msra.mxu0 %v2210
    %2259 = vmatpush.bf16.msra.mxu0 %v2206
    %2260 = vmatpush.bf16.msra.mxu0 %v2202
    %2261 = vmatpush.bf16.msra.mxu0 %v2198
    %2262 = vmatpush.bf16.msra.mxu0 %v2194
    %2263 = vmatpush.bf16.msra.mxu0 %v2190
    %2264 = vmatpush.bf16.msra.mxu0 %v2186
    %2265 = vmatpush.bf16.msra.mxu0 %v2182
    %2266 = vmatmul.bf16.gmra.mxu0 %v1480
    %v2267 = vpop.f32.mrf.mxu0
    %v2268 = vadd.f32 0.0, %v2267
    %v2269 = vpop.f32.mrf.mxu0
    %2270 = vdwg.mxu0
    %2271 = vmatpush.bf16.msra.mxu0 %v2211
    %2272 = vmatpush.bf16.msra.mxu0 %v2207
    %2273 = vmatpush.bf16.msra.mxu0 %v2203
    %2274 = vmatpush.bf16.msra.mxu0 %v2199
    %2275 = vmatpush.bf16.msra.mxu0 %v2195
    %2276 = vmatpush.bf16.msra.mxu0 %v2191
    %2277 = vmatpush.bf16.msra.mxu0 %v2187
    %2278 = vmatpush.bf16.msra.mxu0 %v2183
    %2279 = vmatmul.bf16.gmra.mxu0 %v1480
    %v2280 = vpop.f32.mrf.mxu0
    %v2281 = vadd.f32 0.0, %v2280
    %v2282 = vpop.f32.mrf.mxu0
    %2283 = vdwg.mxu0
    %2284 = vmatpush.bf16.msra.mxu0 %v2212
    %2285 = vmatpush.bf16.msra.mxu0 %v2208
    %2286 = vmatpush.bf16.msra.mxu0 %v2204
    %2287 = vmatpush.bf16.msra.mxu0 %v2200
    %2288 = vmatpush.bf16.msra.mxu0 %v2196
    %2289 = vmatpush.bf16.msra.mxu0 %v2192
    %2290 = vmatpush.bf16.msra.mxu0 %v2188
    %2291 = vmatpush.bf16.msra.mxu0 %v2184
    %2292 = vmatmul.bf16.gmra.mxu0 %v1480
    %v2293 = vpop.f32.mrf.mxu0
    %v2294 = vadd.f32 0.0, %v2293
    %v2295 = vpop.f32.mrf.mxu0
    %2296 = vdwg.mxu0
    %2299 = vst [vmem:[#allocation1] ss:$2 sm:$0xff] %v2051
    %s2300 = scalar_lea.vmem [#allocation1], 16
    %2301 = vst [vmem:[%s2300] ss:$2 sm:$0xff] %v2052
    %v2302 = vld.sshfl [vmem:[#allocation1] sm:$0xff pattern:$0x75316420]
    %v2303 = vld.sshfl [vmem:[#allocation1 + $0x8] sm:$0xff pattern:$0x75316420]
    %v2304 = vld.sshfl [vmem:[#allocation1 + $0x10] sm:$0xff pattern:$0x75316420]
    %v2305 = vld.sshfl [vmem:[#allocation1 + $0x18] sm:$0xff pattern:$0x75316420]
    %v2307 = vsel %vm316, %v2050, 0
    %v2309 = vsel %vm320, %v2302, 0
    %v2311 = vsel %vm320, %v2303, 0
    %v2313 = vsel %vm320, %v2304, 0
    %v2315 = vsel %vm320, %v2305, 0
    %2317 = vmatpush.msra.mxu0 0.0
    %2318 = vmatpush.msra.mxu0 0.0
    %2319 = vmatpush.msra.mxu0 0.0
    %2320 = vmatpush.msra.mxu0 0.0
    %2321 = vmatpush.msra.mxu0 0.0
    %2322 = vmatpush.msra.mxu0 0.0
    %2323 = vmatpush.msra.mxu0 0.0
    %2324 = vmatpush.msra.mxu0 0.0
    %2325 = vmatpush.msra.mxu0 0.0
    %2326 = vmatpush.msra.mxu0 0.0
    %2327 = vmatpush.msra.mxu0 0.0
    %2328 = vmatpush.msra.mxu0 0.0
    %2329 = vmatpush.msra.mxu0 0.0
    %2330 = vmatpush.msra.mxu0 0.0
    %2331 = vmatpush.msra.mxu0 0.0
    %2332 = vmatpush.msra.mxu0 %v2309
    %2333 = vmatmul.f32.gmra.mxu0 %v2307
    %v2334 = vpop.f32.mrf.mxu0
    %v2335 = vadd.f32 %v2255, %v2334
    %2336 = vdwg.mxu0
    %2337 = vmatpush.msra.mxu0 0.0
    %2338 = vmatpush.msra.mxu0 0.0
    %2339 = vmatpush.msra.mxu0 0.0
    %2340 = vmatpush.msra.mxu0 0.0
    %2341 = vmatpush.msra.mxu0 0.0
    %2342 = vmatpush.msra.mxu0 0.0
    %2343 = vmatpush.msra.mxu0 0.0
    %2344 = vmatpush.msra.mxu0 0.0
    %2345 = vmatpush.msra.mxu0 0.0
    %2346 = vmatpush.msra.mxu0 0.0
    %2347 = vmatpush.msra.mxu0 0.0
    %2348 = vmatpush.msra.mxu0 0.0
    %2349 = vmatpush.msra.mxu0 0.0
    %2350 = vmatpush.msra.mxu0 0.0
    %2351 = vmatpush.msra.mxu0 0.0
    %2352 = vmatpush.msra.mxu0 %v2311
    %2353 = vmatmul.f32.gmra.mxu0 %v2307
    %v2354 = vpop.f32.mrf.mxu0
    %v2355 = vadd.f32 %v2268, %v2354
    %2356 = vdwg.mxu0
    %2357 = vmatpush.msra.mxu0 0.0
    %2358 = vmatpush.msra.mxu0 0.0
    %2359 = vmatpush.msra.mxu0 0.0
    %2360 = vmatpush.msra.mxu0 0.0
    %2361 = vmatpush.msra.mxu0 0.0
    %2362 = vmatpush.msra.mxu0 0.0
    %2363 = vmatpush.msra.mxu0 0.0
    %2364 = vmatpush.msra.mxu0 0.0
    %2365 = vmatpush.msra.mxu0 0.0
    %2366 = vmatpush.msra.mxu0 0.0
    %2367 = vmatpush.msra.mxu0 0.0
    %2368 = vmatpush.msra.mxu0 0.0
    %2369 = vmatpush.msra.mxu0 0.0
    %2370 = vmatpush.msra.mxu0 0.0
    %2371 = vmatpush.msra.mxu0 0.0
    %2372 = vmatpush.msra.mxu0 %v2313
    %2373 = vmatmul.f32.gmra.mxu0 %v2307
    %v2374 = vpop.f32.mrf.mxu0
    %v2375 = vadd.f32 %v2281, %v2374
    %2376 = vdwg.mxu0
    %2377 = vmatpush.msra.mxu0 0.0
    %2378 = vmatpush.msra.mxu0 0.0
    %2379 = vmatpush.msra.mxu0 0.0
    %2380 = vmatpush.msra.mxu0 0.0
    %2381 = vmatpush.msra.mxu0 0.0
    %2382 = vmatpush.msra.mxu0 0.0
    %2383 = vmatpush.msra.mxu0 0.0
    %2384 = vmatpush.msra.mxu0 0.0
    %2385 = vmatpush.msra.mxu0 0.0
    %2386 = vmatpush.msra.mxu0 0.0
    %2387 = vmatpush.msra.mxu0 0.0
    %2388 = vmatpush.msra.mxu0 0.0
    %2389 = vmatpush.msra.mxu0 0.0
    %2390 = vmatpush.msra.mxu0 0.0
    %2391 = vmatpush.msra.mxu0 0.0
    %2392 = vmatpush.msra.mxu0 %v2315
    %2393 = vmatmul.f32.gmra.mxu0 %v2307
    %v2394 = vpop.f32.mrf.mxu0
    %v2395 = vadd.f32 %v2294, %v2394
    %2396 = vdwg.mxu0
    %v2397 = vld [vmem:[%s4] sm:$0xf]
    %v2399 = vperm.slane %v2397, 0
    %v2400 = vperm.slane %v2397, 1
    %v2401 = vperm.slane %v2397, 2
    %v2402 = vperm.slane %v2397, 3
    %v2407 = vadd.f32 %v2335, %v2399
    %v2408 = vadd.f32 %v2355, %v2400
    %v2409 = vadd.f32 %v2375, %v2401
    %v2410 = vadd.f32 %v2395, %v2402
    %v2411 = vxor.u32 %v2407, 2147483648
    %v2412 = vmul.f32 %v2411, 1.442695
    %v2413 = vpow.pop %v2412
    %v2414 = vadd.f32 %v2413, 1.0
    %v2415 = vrcp.pop %v2414
    %v2416 = vmul.f32 %v2414, %v2415
    %v2417 = vsub.f32 1.0, %v2416
    %v2418 = vmul.f32 %v2415, %v2417
    %v2419 = vadd.f32 %v2415, %v2418
    %vm2420 = vweird.f32 %v2414
    %vm2421 = vweird.f32 %v2415
    %vm2422 = vmor %vm2420, %vm2421
    %v2423 = vsel %vm2422, %v2415, %v2419
    %v2424 = vand.u32 2147483647, %v2414
    %vm2425 = vcmp.eq.f32.partialorder %v2424, 8.507059e+37
    %v2426 = vand.u32 %v2414, 2147483648
    %v2427 = vor.u32 1.1754944e-38, %v2426
    %v2428 = vsel %vm2425, %v2427, %v2423
    %v2429 = vmul.f32 1.0, %v2428
    %v2430 = vxor.u32 %v2408, 2147483648
    %v2431 = vmul.f32 %v2430, 1.442695
    %v2432 = vpow.pop %v2431
    %v2433 = vadd.f32 %v2432, 1.0
    %v2434 = vrcp.pop %v2433
    %v2435 = vmul.f32 %v2433, %v2434
    %v2436 = vsub.f32 1.0, %v2435
    %v2437 = vmul.f32 %v2434, %v2436
    %v2438 = vadd.f32 %v2434, %v2437
    %vm2439 = vweird.f32 %v2433
    %vm2440 = vweird.f32 %v2434
    %vm2441 = vmor %vm2439, %vm2440
    %v2442 = vsel %vm2441, %v2434, %v2438
    %v2443 = vand.u32 2147483647, %v2433
    %vm2444 = vcmp.eq.f32.partialorder %v2443, 8.507059e+37
    %v2445 = vand.u32 %v2433, 2147483648
    %v2446 = vor.u32 1.1754944e-38, %v2445
    %v2447 = vsel %vm2444, %v2446, %v2442
    %v2448 = vmul.f32 1.0, %v2447
    %v2449 = vtanh.pop %v2409
    %v2450 = vxor.u32 %v2410, 2147483648
    %v2451 = vmul.f32 %v2450, 1.442695
    %v2452 = vpow.pop %v2451
    %v2453 = vadd.f32 %v2452, 1.0
    %v2454 = vrcp.pop %v2453
    %v2455 = vmul.f32 %v2453, %v2454
    %v2456 = vsub.f32 1.0, %v2455
    %v2457 = vmul.f32 %v2454, %v2456
    %v2458 = vadd.f32 %v2454, %v2457
    %vm2459 = vweird.f32 %v2453
    %vm2460 = vweird.f32 %v2454
    %vm2461 = vmor %vm2459, %vm2460
    %v2462 = vsel %vm2461, %v2454, %v2458
    %v2463 = vand.u32 2147483647, %v2453
    %vm2464 = vcmp.eq.f32.partialorder %v2463, 8.507059e+37
    %v2465 = vand.u32 %v2453, 2147483648
    %v2466 = vor.u32 1.1754944e-38, %v2465
    %v2467 = vsel %vm2464, %v2466, %v2462
    %v2468 = vmul.f32 1.0, %v2467
    %v2469 = vmul.f32 %v2448, %v1477
    %v2470 = vmul.f32 %v2429, %v2449
    %v2471 = vadd.f32 %v2469, %v2470
    %v2472 = vtanh.pop %v2471
    %v2473 = vmul.f32 %v2468, %v2472
    %v2474 = vpack.c.bf16 %v2473, %v2473
    %v2475 = vld [vmem:[#allocation4] sm:$0xff]
    %v2476 = vld [vmem:[#allocation4 + $0x8] sm:$0xff]
    %v2477 = vld [vmem:[#allocation4 + $0x10] sm:$0xff]
    %v2478 = vld [vmem:[#allocation4 + $0x18] sm:$0xff]
    %v2479 = vld [vmem:[#allocation4 + $0x20] sm:$0xff]
    %v2480 = vld [vmem:[#allocation4 + $0x28] sm:$0xff]
    %v2481 = vld [vmem:[#allocation4 + $0x30] sm:$0xff]
    %v2482 = vld [vmem:[#allocation4 + $0x38] sm:$0xff]
    %v2483 = vld [vmem:[#allocation4 + $0x40] sm:$0xff]
    %v2484 = vld [vmem:[#allocation4 + $0x48] sm:$0xff]
    %v2485 = vld [vmem:[#allocation4 + $0x50] sm:$0xff]
    %v2486 = vld [vmem:[#allocation4 + $0x58] sm:$0xff]
    %v2487 = vld [vmem:[#allocation4 + $0x60] sm:$0xff]
    %v2488 = vld [vmem:[#allocation4 + $0x68] sm:$0xff]
    %v2489 = vld [vmem:[#allocation4 + $0x70] sm:$0xff]
    %v2490 = vld [vmem:[#allocation4 + $0x78] sm:$0xff]
    %v2491 = vld [vmem:[#allocation4 + $0x80] sm:$0xff]
    %v2492 = vld [vmem:[#allocation4 + $0x88] sm:$0xff]
    %v2493 = vld [vmem:[#allocation4 + $0x90] sm:$0xff]
    %v2494 = vld [vmem:[#allocation4 + $0x98] sm:$0xff]
    %v2495 = vld [vmem:[#allocation4 + $0xa0] sm:$0xff]
    %v2496 = vld [vmem:[#allocation4 + $0xa8] sm:$0xff]
    %v2497 = vld [vmem:[#allocation4 + $0xb0] sm:$0xff]
    %v2498 = vld [vmem:[#allocation4 + $0xb8] sm:$0xff]
    %v2499 = vld [vmem:[#allocation4 + $0xc0] sm:$0xff]
    %v2500 = vld [vmem:[#allocation4 + $0xc8] sm:$0xff]
    %v2501 = vld [vmem:[#allocation4 + $0xd0] sm:$0xff]
    %v2502 = vld [vmem:[#allocation4 + $0xd8] sm:$0xff]
    %v2503 = vld [vmem:[#allocation4 + $0xe0] sm:$0xff]
    %v2504 = vld [vmem:[#allocation4 + $0xe8] sm:$0xff]
    %v2505 = vld [vmem:[#allocation4 + $0xf0] sm:$0xff]
    %v2506 = vld [vmem:[#allocation4 + $0xf8] sm:$0xff]
    %v2507 = vpack.c.bf16 %v2046, %v2046
    %v2508 = vld [vmem:[%s519] sm:$0xff]
    %v2509 = vld [vmem:[%s519 + $0x8] sm:$0xff]
    %v2510 = vld [vmem:[%s519 + $0x10] sm:$0xff]
    %v2511 = vld [vmem:[%s519 + $0x18] sm:$0xff]
    %v2512 = vld [vmem:[%s519 + $0x20] sm:$0xff]
    %v2513 = vld [vmem:[%s519 + $0x28] sm:$0xff]
    %v2514 = vld [vmem:[%s519 + $0x30] sm:$0xff]
    %v2515 = vld [vmem:[%s519 + $0x38] sm:$0xff]
    %v2516 = vld [vmem:[%s519 + $0x40] sm:$0xff]
    %v2517 = vld [vmem:[%s519 + $0x48] sm:$0xff]
    %v2518 = vld [vmem:[%s519 + $0x50] sm:$0xff]
    %v2519 = vld [vmem:[%s519 + $0x58] sm:$0xff]
    %v2520 = vld [vmem:[%s519 + $0x60] sm:$0xff]
    %v2521 = vld [vmem:[%s519 + $0x68] sm:$0xff]
    %v2522 = vld [vmem:[%s519 + $0x70] sm:$0xff]
    %v2523 = vld [vmem:[%s519 + $0x78] sm:$0xff]
    %v2524 = vld [vmem:[%s519 + $0x80] sm:$0xff]
    %v2525 = vld [vmem:[%s519 + $0x88] sm:$0xff]
    %v2526 = vld [vmem:[%s519 + $0x90] sm:$0xff]
    %v2527 = vld [vmem:[%s519 + $0x98] sm:$0xff]
    %v2528 = vld [vmem:[%s519 + $0xa0] sm:$0xff]
    %v2529 = vld [vmem:[%s519 + $0xa8] sm:$0xff]
    %v2530 = vld [vmem:[%s519 + $0xb0] sm:$0xff]
    %v2531 = vld [vmem:[%s519 + $0xb8] sm:$0xff]
    %v2532 = vld [vmem:[%s519 + $0xc0] sm:$0xff]
    %v2533 = vld [vmem:[%s519 + $0xc8] sm:$0xff]
    %v2534 = vld [vmem:[%s519 + $0xd0] sm:$0xff]
    %v2535 = vld [vmem:[%s519 + $0xd8] sm:$0xff]
    %v2536 = vld [vmem:[%s519 + $0xe0] sm:$0xff]
    %v2537 = vld [vmem:[%s519 + $0xe8] sm:$0xff]
    %v2538 = vld [vmem:[%s519 + $0xf0] sm:$0xff]
    %v2539 = vld [vmem:[%s519 + $0xf8] sm:$0xff]
    %v2572 = vunpack.c.l.b16 %v2508
    %v2573 = vunpack.c.h.b16 %v2508
    %v2574 = vunpack.c.l.b16 %v2509
    %v2575 = vunpack.c.h.b16 %v2509
    %v2576 = vunpack.c.l.b16 %v2510
    %v2577 = vunpack.c.h.b16 %v2510
    %v2578 = vunpack.c.l.b16 %v2511
    %v2579 = vunpack.c.h.b16 %v2511
    %v2580 = vunpack.c.l.b16 %v2512
    %v2581 = vunpack.c.h.b16 %v2512
    %v2582 = vunpack.c.l.b16 %v2513
    %v2583 = vunpack.c.h.b16 %v2513
    %v2584 = vunpack.c.l.b16 %v2514
    %v2585 = vunpack.c.h.b16 %v2514
    %v2586 = vunpack.c.l.b16 %v2515
    %v2587 = vunpack.c.h.b16 %v2515
    %v2588 = vunpack.c.l.b16 %v2516
    %v2589 = vunpack.c.h.b16 %v2516
    %v2590 = vunpack.c.l.b16 %v2517
    %v2591 = vunpack.c.h.b16 %v2517
    %v2592 = vunpack.c.l.b16 %v2518
    %v2593 = vunpack.c.h.b16 %v2518
    %v2594 = vunpack.c.l.b16 %v2519
    %v2595 = vunpack.c.h.b16 %v2519
    %v2596 = vunpack.c.l.b16 %v2520
    %v2597 = vunpack.c.h.b16 %v2520
    %v2598 = vunpack.c.l.b16 %v2521
    %v2599 = vunpack.c.h.b16 %v2521
    %v2600 = vunpack.c.l.b16 %v2522
    %v2601 = vunpack.c.h.b16 %v2522
    %v2602 = vunpack.c.l.b16 %v2523
    %v2603 = vunpack.c.h.b16 %v2523
    %v2604 = vunpack.c.l.b16 %v2524
    %v2605 = vunpack.c.h.b16 %v2524
    %v2606 = vunpack.c.l.b16 %v2525
    %v2607 = vunpack.c.h.b16 %v2525
    %v2608 = vunpack.c.l.b16 %v2526
    %v2609 = vunpack.c.h.b16 %v2526
    %v2610 = vunpack.c.l.b16 %v2527
    %v2611 = vunpack.c.h.b16 %v2527
    %v2612 = vunpack.c.l.b16 %v2528
    %v2613 = vunpack.c.h.b16 %v2528
    %v2614 = vunpack.c.l.b16 %v2529
    %v2615 = vunpack.c.h.b16 %v2529
    %v2616 = vunpack.c.l.b16 %v2530
    %v2617 = vunpack.c.h.b16 %v2530
    %v2618 = vunpack.c.l.b16 %v2531
    %v2619 = vunpack.c.h.b16 %v2531
    %v2620 = vunpack.c.l.b16 %v2532
    %v2621 = vunpack.c.h.b16 %v2532
    %v2622 = vunpack.c.l.b16 %v2533
    %v2623 = vunpack.c.h.b16 %v2533
    %v2624 = vunpack.c.l.b16 %v2534
    %v2625 = vunpack.c.h.b16 %v2534
    %v2626 = vunpack.c.l.b16 %v2535
    %v2627 = vunpack.c.h.b16 %v2535
    %v2628 = vunpack.c.l.b16 %v2536
    %v2629 = vunpack.c.h.b16 %v2536
    %v2630 = vunpack.c.l.b16 %v2537
    %v2631 = vunpack.c.h.b16 %v2537
    %v2632 = vunpack.c.l.b16 %v2538
    %v2633 = vunpack.c.h.b16 %v2538
    %v2634 = vunpack.c.l.b16 %v2539
    %v2635 = vunpack.c.h.b16 %v2539
    %v2636 = vpack.c.b16 %v2576, %v2572
    %v2637 = vpack.c.b16 %v2577, %v2573
    %v2638 = vpack.c.b16 %v2578, %v2574
    %v2639 = vpack.c.b16 %v2579, %v2575
    %v2640 = vpack.c.b16 %v2584, %v2580
    %v2641 = vpack.c.b16 %v2585, %v2581
    %v2642 = vpack.c.b16 %v2586, %v2582
    %v2643 = vpack.c.b16 %v2587, %v2583
    %v2644 = vpack.c.b16 %v2592, %v2588
    %v2645 = vpack.c.b16 %v2593, %v2589
    %v2646 = vpack.c.b16 %v2594, %v2590
    %v2647 = vpack.c.b16 %v2595, %v2591
    %v2648 = vpack.c.b16 %v2600, %v2596
    %v2649 = vpack.c.b16 %v2601, %v2597
    %v2650 = vpack.c.b16 %v2602, %v2598
    %v2651 = vpack.c.b16 %v2603, %v2599
    %v2652 = vpack.c.b16 %v2608, %v2604
    %v2653 = vpack.c.b16 %v2609, %v2605
    %v2654 = vpack.c.b16 %v2610, %v2606
    %v2655 = vpack.c.b16 %v2611, %v2607
    %v2656 = vpack.c.b16 %v2616, %v2612
    %v2657 = vpack.c.b16 %v2617, %v2613
    %v2658 = vpack.c.b16 %v2618, %v2614
    %v2659 = vpack.c.b16 %v2619, %v2615
    %v2660 = vpack.c.b16 %v2624, %v2620
    %v2661 = vpack.c.b16 %v2625, %v2621
    %v2662 = vpack.c.b16 %v2626, %v2622
    %v2663 = vpack.c.b16 %v2627, %v2623
    %v2664 = vpack.c.b16 %v2632, %v2628
    %v2665 = vpack.c.b16 %v2633, %v2629
    %v2666 = vpack.c.b16 %v2634, %v2630
    %v2667 = vpack.c.b16 %v2635, %v2631
    %2700 = vmatpush.bf16.msra.mxu0 %v2664
    %2701 = vmatpush.bf16.msra.mxu0 %v2660
    %2702 = vmatpush.bf16.msra.mxu0 %v2656
    %2703 = vmatpush.bf16.msra.mxu0 %v2652
    %2704 = vmatpush.bf16.msra.mxu0 %v2648
    %2705 = vmatpush.bf16.msra.mxu0 %v2644
    %2706 = vmatpush.bf16.msra.mxu0 %v2640
    %2707 = vmatpush.bf16.msra.mxu0 %v2636
    %2708 = vmatmul.bf16.gmra.mxu0 %v2507
    %v2709 = vpop.f32.mrf.mxu0
    %v2710 = vadd.f32 0.0, %v2709
    %v2711 = vpop.f32.mrf.mxu0
    %2712 = vdwg.mxu0
    %2713 = vmatpush.bf16.msra.mxu0 %v2665
    %2714 = vmatpush.bf16.msra.mxu0 %v2661
    %2715 = vmatpush.bf16.msra.mxu0 %v2657
    %2716 = vmatpush.bf16.msra.mxu0 %v2653
    %2717 = vmatpush.bf16.msra.mxu0 %v2649
    %2718 = vmatpush.bf16.msra.mxu0 %v2645
    %2719 = vmatpush.bf16.msra.mxu0 %v2641
    %2720 = vmatpush.bf16.msra.mxu0 %v2637
    %2721 = vmatmul.bf16.gmra.mxu0 %v2507
    %v2722 = vpop.f32.mrf.mxu0
    %v2723 = vadd.f32 0.0, %v2722
    %v2724 = vpop.f32.mrf.mxu0
    %2725 = vdwg.mxu0
    %2726 = vmatpush.bf16.msra.mxu0 %v2666
    %2727 = vmatpush.bf16.msra.mxu0 %v2662
    %2728 = vmatpush.bf16.msra.mxu0 %v2658
    %2729 = vmatpush.bf16.msra.mxu0 %v2654
    %2730 = vmatpush.bf16.msra.mxu0 %v2650
    %2731 = vmatpush.bf16.msra.mxu0 %v2646
    %2732 = vmatpush.bf16.msra.mxu0 %v2642
    %2733 = vmatpush.bf16.msra.mxu0 %v2638
    %2734 = vmatmul.bf16.gmra.mxu0 %v2507
    %v2735 = vpop.f32.mrf.mxu0
    %v2736 = vadd.f32 0.0, %v2735
    %v2737 = vpop.f32.mrf.mxu0
    %2738 = vdwg.mxu0
    %2739 = vmatpush.bf16.msra.mxu0 %v2667
    %2740 = vmatpush.bf16.msra.mxu0 %v2663
    %2741 = vmatpush.bf16.msra.mxu0 %v2659
    %2742 = vmatpush.bf16.msra.mxu0 %v2655
    %2743 = vmatpush.bf16.msra.mxu0 %v2651
    %2744 = vmatpush.bf16.msra.mxu0 %v2647
    %2745 = vmatpush.bf16.msra.mxu0 %v2643
    %2746 = vmatpush.bf16.msra.mxu0 %v2639
    %2747 = vmatmul.bf16.gmra.mxu0 %v2507
    %v2748 = vpop.f32.mrf.mxu0
    %v2749 = vadd.f32 0.0, %v2748
    %v2750 = vpop.f32.mrf.mxu0
    %2751 = vdwg.mxu0
    %v2784 = vunpack.c.l.b16 %v2475
    %v2785 = vunpack.c.h.b16 %v2475
    %v2786 = vunpack.c.l.b16 %v2476
    %v2787 = vunpack.c.h.b16 %v2476
    %v2788 = vunpack.c.l.b16 %v2477
    %v2789 = vunpack.c.h.b16 %v2477
    %v2790 = vunpack.c.l.b16 %v2478
    %v2791 = vunpack.c.h.b16 %v2478
    %v2792 = vunpack.c.l.b16 %v2479
    %v2793 = vunpack.c.h.b16 %v2479
    %v2794 = vunpack.c.l.b16 %v2480
    %v2795 = vunpack.c.h.b16 %v2480
    %v2796 = vunpack.c.l.b16 %v2481
    %v2797 = vunpack.c.h.b16 %v2481
    %v2798 = vunpack.c.l.b16 %v2482
    %v2799 = vunpack.c.h.b16 %v2482
    %v2800 = vunpack.c.l.b16 %v2483
    %v2801 = vunpack.c.h.b16 %v2483
    %v2802 = vunpack.c.l.b16 %v2484
    %v2803 = vunpack.c.h.b16 %v2484
    %v2804 = vunpack.c.l.b16 %v2485
    %v2805 = vunpack.c.h.b16 %v2485
    %v2806 = vunpack.c.l.b16 %v2486
    %v2807 = vunpack.c.h.b16 %v2486
    %v2808 = vunpack.c.l.b16 %v2487
    %v2809 = vunpack.c.h.b16 %v2487
    %v2810 = vunpack.c.l.b16 %v2488
    %v2811 = vunpack.c.h.b16 %v2488
    %v2812 = vunpack.c.l.b16 %v2489
    %v2813 = vunpack.c.h.b16 %v2489
    %v2814 = vunpack.c.l.b16 %v2490
    %v2815 = vunpack.c.h.b16 %v2490
    %v2816 = vunpack.c.l.b16 %v2491
    %v2817 = vunpack.c.h.b16 %v2491
    %v2818 = vunpack.c.l.b16 %v2492
    %v2819 = vunpack.c.h.b16 %v2492
    %v2820 = vunpack.c.l.b16 %v2493
    %v2821 = vunpack.c.h.b16 %v2493
    %v2822 = vunpack.c.l.b16 %v2494
    %v2823 = vunpack.c.h.b16 %v2494
    %v2824 = vunpack.c.l.b16 %v2495
    %v2825 = vunpack.c.h.b16 %v2495
    %v2826 = vunpack.c.l.b16 %v2496
    %v2827 = vunpack.c.h.b16 %v2496
    %v2828 = vunpack.c.l.b16 %v2497
    %v2829 = vunpack.c.h.b16 %v2497
    %v2830 = vunpack.c.l.b16 %v2498
    %v2831 = vunpack.c.h.b16 %v2498
    %v2832 = vunpack.c.l.b16 %v2499
    %v2833 = vunpack.c.h.b16 %v2499
    %v2834 = vunpack.c.l.b16 %v2500
    %v2835 = vunpack.c.h.b16 %v2500
    %v2836 = vunpack.c.l.b16 %v2501
    %v2837 = vunpack.c.h.b16 %v2501
    %v2838 = vunpack.c.l.b16 %v2502
    %v2839 = vunpack.c.h.b16 %v2502
    %v2840 = vunpack.c.l.b16 %v2503
    %v2841 = vunpack.c.h.b16 %v2503
    %v2842 = vunpack.c.l.b16 %v2504
    %v2843 = vunpack.c.h.b16 %v2504
    %v2844 = vunpack.c.l.b16 %v2505
    %v2845 = vunpack.c.h.b16 %v2505
    %v2846 = vunpack.c.l.b16 %v2506
    %v2847 = vunpack.c.h.b16 %v2506
    %v2848 = vpack.c.b16 %v2788, %v2784
    %v2849 = vpack.c.b16 %v2789, %v2785
    %v2850 = vpack.c.b16 %v2790, %v2786
    %v2851 = vpack.c.b16 %v2791, %v2787
    %v2852 = vpack.c.b16 %v2796, %v2792
    %v2853 = vpack.c.b16 %v2797, %v2793
    %v2854 = vpack.c.b16 %v2798, %v2794
    %v2855 = vpack.c.b16 %v2799, %v2795
    %v2856 = vpack.c.b16 %v2804, %v2800
    %v2857 = vpack.c.b16 %v2805, %v2801
    %v2858 = vpack.c.b16 %v2806, %v2802
    %v2859 = vpack.c.b16 %v2807, %v2803
    %v2860 = vpack.c.b16 %v2812, %v2808
    %v2861 = vpack.c.b16 %v2813, %v2809
    %v2862 = vpack.c.b16 %v2814, %v2810
    %v2863 = vpack.c.b16 %v2815, %v2811
    %v2864 = vpack.c.b16 %v2820, %v2816
    %v2865 = vpack.c.b16 %v2821, %v2817
    %v2866 = vpack.c.b16 %v2822, %v2818
    %v2867 = vpack.c.b16 %v2823, %v2819
    %v2868 = vpack.c.b16 %v2828, %v2824
    %v2869 = vpack.c.b16 %v2829, %v2825
    %v2870 = vpack.c.b16 %v2830, %v2826
    %v2871 = vpack.c.b16 %v2831, %v2827
    %v2872 = vpack.c.b16 %v2836, %v2832
    %v2873 = vpack.c.b16 %v2837, %v2833
    %v2874 = vpack.c.b16 %v2838, %v2834
    %v2875 = vpack.c.b16 %v2839, %v2835
    %v2876 = vpack.c.b16 %v2844, %v2840
    %v2877 = vpack.c.b16 %v2845, %v2841
    %v2878 = vpack.c.b16 %v2846, %v2842
    %v2879 = vpack.c.b16 %v2847, %v2843
    %2912 = vmatpush.bf16.msra.mxu0 %v2876
    %2913 = vmatpush.bf16.msra.mxu0 %v2872
    %2914 = vmatpush.bf16.msra.mxu0 %v2868
    %2915 = vmatpush.bf16.msra.mxu0 %v2864
    %2916 = vmatpush.bf16.msra.mxu0 %v2860
    %2917 = vmatpush.bf16.msra.mxu0 %v2856
    %2918 = vmatpush.bf16.msra.mxu0 %v2852
    %2919 = vmatpush.bf16.msra.mxu0 %v2848
    %2920 = vmatmul.bf16.gmra.mxu0 %v2474
    %v2921 = vpop.f32.mrf.mxu0
    %v2922 = vadd.f32 %v2710, %v2921
    %v2923 = vpop.f32.mrf.mxu0
    %2924 = vdwg.mxu0
    %2925 = vmatpush.bf16.msra.mxu0 %v2877
    %2926 = vmatpush.bf16.msra.mxu0 %v2873
    %2927 = vmatpush.bf16.msra.mxu0 %v2869
    %2928 = vmatpush.bf16.msra.mxu0 %v2865
    %2929 = vmatpush.bf16.msra.mxu0 %v2861
    %2930 = vmatpush.bf16.msra.mxu0 %v2857
    %2931 = vmatpush.bf16.msra.mxu0 %v2853
    %2932 = vmatpush.bf16.msra.mxu0 %v2849
    %2933 = vmatmul.bf16.gmra.mxu0 %v2474
    %v2934 = vpop.f32.mrf.mxu0
    %v2935 = vadd.f32 %v2723, %v2934
    %v2936 = vpop.f32.mrf.mxu0
    %2937 = vdwg.mxu0
    %2938 = vmatpush.bf16.msra.mxu0 %v2878
    %2939 = vmatpush.bf16.msra.mxu0 %v2874
    %2940 = vmatpush.bf16.msra.mxu0 %v2870
    %2941 = vmatpush.bf16.msra.mxu0 %v2866
    %2942 = vmatpush.bf16.msra.mxu0 %v2862
    %2943 = vmatpush.bf16.msra.mxu0 %v2858
    %2944 = vmatpush.bf16.msra.mxu0 %v2854
    %2945 = vmatpush.bf16.msra.mxu0 %v2850
    %2946 = vmatmul.bf16.gmra.mxu0 %v2474
    %v2947 = vpop.f32.mrf.mxu0
    %v2948 = vadd.f32 %v2736, %v2947
    %v2949 = vpop.f32.mrf.mxu0
    %2950 = vdwg.mxu0
    %2951 = vmatpush.bf16.msra.mxu0 %v2879
    %2952 = vmatpush.bf16.msra.mxu0 %v2875
    %2953 = vmatpush.bf16.msra.mxu0 %v2871
    %2954 = vmatpush.bf16.msra.mxu0 %v2867
    %2955 = vmatpush.bf16.msra.mxu0 %v2863
    %2956 = vmatpush.bf16.msra.mxu0 %v2859
    %2957 = vmatpush.bf16.msra.mxu0 %v2855
    %2958 = vmatpush.bf16.msra.mxu0 %v2851
    %2959 = vmatmul.bf16.gmra.mxu0 %v2474
    %v2960 = vpop.f32.mrf.mxu0
    %v2961 = vadd.f32 %v2749, %v2960
    %v2962 = vpop.f32.mrf.mxu0
    %2963 = vdwg.mxu0
    %v2964 = vld [vmem:[%s976] sm:$0xf]
    %v2966 = vperm.slane %v2964, 0
    %v2967 = vperm.slane %v2964, 1
    %v2968 = vperm.slane %v2964, 2
    %v2969 = vperm.slane %v2964, 3
    %v2974 = vadd.f32 %v2922, %v2966
    %v2975 = vadd.f32 %v2935, %v2967
    %v2976 = vadd.f32 %v2948, %v2968
    %v2977 = vadd.f32 %v2961, %v2969
    %v2978 = vxor.u32 %v2974, 2147483648
    %v2979 = vmul.f32 %v2978, 1.442695
    %v2980 = vpow.pop %v2979
    %v2981 = vadd.f32 %v2980, 1.0
    %v2982 = vrcp.pop %v2981
    %v2983 = vmul.f32 %v2981, %v2982
    %v2984 = vsub.f32 1.0, %v2983
    %v2985 = vmul.f32 %v2982, %v2984
    %v2986 = vadd.f32 %v2982, %v2985
    %vm2987 = vweird.f32 %v2981
    %vm2988 = vweird.f32 %v2982
    %vm2989 = vmor %vm2987, %vm2988
    %v2990 = vsel %vm2989, %v2982, %v2986
    %v2991 = vand.u32 2147483647, %v2981
    %vm2992 = vcmp.eq.f32.partialorder %v2991, 8.507059e+37
    %v2993 = vand.u32 %v2981, 2147483648
    %v2994 = vor.u32 1.1754944e-38, %v2993
    %v2995 = vsel %vm2992, %v2994, %v2990
    %v2996 = vmul.f32 1.0, %v2995
    %v2997 = vxor.u32 %v2975, 2147483648
    %v2998 = vmul.f32 %v2997, 1.442695
    %v2999 = vpow.pop %v2998
    %v3000 = vadd.f32 %v2999, 1.0
    %v3001 = vrcp.pop %v3000
    %v3002 = vmul.f32 %v3000, %v3001
    %v3003 = vsub.f32 1.0, %v3002
    %v3004 = vmul.f32 %v3001, %v3003
    %v3005 = vadd.f32 %v3001, %v3004
    %vm3006 = vweird.f32 %v3000
    %vm3007 = vweird.f32 %v3001
    %vm3008 = vmor %vm3006, %vm3007
    %v3009 = vsel %vm3008, %v3001, %v3005
    %v3010 = vand.u32 2147483647, %v3000
    %vm3011 = vcmp.eq.f32.partialorder %v3010, 8.507059e+37
    %v3012 = vand.u32 %v3000, 2147483648
    %v3013 = vor.u32 1.1754944e-38, %v3012
    %v3014 = vsel %vm3011, %v3013, %v3009
    %v3015 = vmul.f32 1.0, %v3014
    %v3016 = vtanh.pop %v2976
    %v3017 = vxor.u32 %v2977, 2147483648
    %v3018 = vmul.f32 %v3017, 1.442695
    %v3019 = vpow.pop %v3018
    %v3020 = vadd.f32 %v3019, 1.0
    %v3021 = vrcp.pop %v3020
    %v3022 = vmul.f32 %v3020, %v3021
    %v3023 = vsub.f32 1.0, %v3022
    %v3024 = vmul.f32 %v3021, %v3023
    %v3025 = vadd.f32 %v3021, %v3024
    %vm3026 = vweird.f32 %v3020
    %vm3027 = vweird.f32 %v3021
    %vm3028 = vmor %vm3026, %vm3027
    %v3029 = vsel %vm3028, %v3021, %v3025
    %v3030 = vand.u32 2147483647, %v3020
    %vm3031 = vcmp.eq.f32.partialorder %v3030, 8.507059e+37
    %v3032 = vand.u32 %v3020, 2147483648
    %v3033 = vor.u32 1.1754944e-38, %v3032
    %v3034 = vsel %vm3031, %v3033, %v3029
    %v3035 = vmul.f32 1.0, %v3034
    %v3036 = vmul.f32 %v3015, %v2044
    %v3037 = vmul.f32 %v2996, %v3016
    %v3038 = vadd.f32 %v3036, %v3037
    %v3039 = vtanh.pop %v3038
    %v3040 = vmul.f32 %v3035, %v3039
    %s3041 = scalar_lea.vmem [#allocation2], 4
    %3042 = vst [vmem:[%s3041] sm:$0x3] %v3040
    %s3043 = scalar_lea.vmem %s0, 6
    %v3044 = vld [vmem:[%s3043] sm:$0x3]
    %v3045 = vld [vmem:[%s1] sm:$0xff]
    %v3046 = vld [vmem:[%s1 + $0x8] sm:$0xff]
    %v3047 = vld [vmem:[#allocation6] sm:$0xff]
    %v3048 = vld [vmem:[#allocation6 + $0x8] sm:$0xff]
    %v3049 = vld [vmem:[#allocation6 + $0x10] sm:$0xff]
    %v3050 = vld [vmem:[#allocation6 + $0x18] sm:$0xff]
    %v3051 = vld [vmem:[#allocation6 + $0x20] sm:$0xff]
    %v3052 = vld [vmem:[#allocation6 + $0x28] sm:$0xff]
    %v3053 = vld [vmem:[#allocation6 + $0x30] sm:$0xff]
    %v3054 = vld [vmem:[#allocation6 + $0x38] sm:$0xff]
    %v3055 = vld [vmem:[#allocation6 + $0x40] sm:$0xff]
    %v3056 = vld [vmem:[#allocation6 + $0x48] sm:$0xff]
    %v3057 = vld [vmem:[#allocation6 + $0x50] sm:$0xff]
    %v3058 = vld [vmem:[#allocation6 + $0x58] sm:$0xff]
    %v3059 = vld [vmem:[#allocation6 + $0x60] sm:$0xff]
    %v3060 = vld [vmem:[#allocation6 + $0x68] sm:$0xff]
    %v3061 = vld [vmem:[#allocation6 + $0x70] sm:$0xff]
    %v3062 = vld [vmem:[#allocation6 + $0x78] sm:$0xff]
    %v3063 = vld [vmem:[#allocation6 + $0x80] sm:$0xff]
    %v3064 = vld [vmem:[#allocation6 + $0x88] sm:$0xff]
    %v3065 = vld [vmem:[#allocation6 + $0x90] sm:$0xff]
    %v3066 = vld [vmem:[#allocation6 + $0x98] sm:$0xff]
    %v3067 = vld [vmem:[#allocation6 + $0xa0] sm:$0xff]
    %v3068 = vld [vmem:[#allocation6 + $0xa8] sm:$0xff]
    %v3069 = vld [vmem:[#allocation6 + $0xb0] sm:$0xff]
    %v3070 = vld [vmem:[#allocation6 + $0xb8] sm:$0xff]
    %v3071 = vld [vmem:[#allocation6 + $0xc0] sm:$0xff]
    %v3072 = vld [vmem:[#allocation6 + $0xc8] sm:$0xff]
    %v3073 = vld [vmem:[#allocation6 + $0xd0] sm:$0xff]
    %v3074 = vld [vmem:[#allocation6 + $0xd8] sm:$0xff]
    %v3075 = vld [vmem:[#allocation6 + $0xe0] sm:$0xff]
    %v3076 = vld [vmem:[#allocation6 + $0xe8] sm:$0xff]
    %v3077 = vld [vmem:[#allocation6 + $0xf0] sm:$0xff]
    %v3078 = vld [vmem:[#allocation6 + $0xf8] sm:$0xff]
    %v3111 = vunpack.c.l.b16 %v3047
    %v3112 = vunpack.c.h.b16 %v3047
    %v3113 = vunpack.c.l.b16 %v3048
    %v3114 = vunpack.c.h.b16 %v3048
    %v3115 = vunpack.c.l.b16 %v3049
    %v3116 = vunpack.c.h.b16 %v3049
    %v3117 = vunpack.c.l.b16 %v3050
    %v3118 = vunpack.c.h.b16 %v3050
    %v3119 = vunpack.c.l.b16 %v3051
    %v3120 = vunpack.c.h.b16 %v3051
    %v3121 = vunpack.c.l.b16 %v3052
    %v3122 = vunpack.c.h.b16 %v3052
    %v3123 = vunpack.c.l.b16 %v3053
    %v3124 = vunpack.c.h.b16 %v3053
    %v3125 = vunpack.c.l.b16 %v3054
    %v3126 = vunpack.c.h.b16 %v3054
    %v3127 = vunpack.c.l.b16 %v3055
    %v3128 = vunpack.c.h.b16 %v3055
    %v3129 = vunpack.c.l.b16 %v3056
    %v3130 = vunpack.c.h.b16 %v3056
    %v3131 = vunpack.c.l.b16 %v3057
    %v3132 = vunpack.c.h.b16 %v3057
    %v3133 = vunpack.c.l.b16 %v3058
    %v3134 = vunpack.c.h.b16 %v3058
    %v3135 = vunpack.c.l.b16 %v3059
    %v3136 = vunpack.c.h.b16 %v3059
    %v3137 = vunpack.c.l.b16 %v3060
    %v3138 = vunpack.c.h.b16 %v3060
    %v3139 = vunpack.c.l.b16 %v3061
    %v3140 = vunpack.c.h.b16 %v3061
    %v3141 = vunpack.c.l.b16 %v3062
    %v3142 = vunpack.c.h.b16 %v3062
    %v3143 = vunpack.c.l.b16 %v3063
    %v3144 = vunpack.c.h.b16 %v3063
    %v3145 = vunpack.c.l.b16 %v3064
    %v3146 = vunpack.c.h.b16 %v3064
    %v3147 = vunpack.c.l.b16 %v3065
    %v3148 = vunpack.c.h.b16 %v3065
    %v3149 = vunpack.c.l.b16 %v3066
    %v3150 = vunpack.c.h.b16 %v3066
    %v3151 = vunpack.c.l.b16 %v3067
    %v3152 = vunpack.c.h.b16 %v3067
    %v3153 = vunpack.c.l.b16 %v3068
    %v3154 = vunpack.c.h.b16 %v3068
    %v3155 = vunpack.c.l.b16 %v3069
    %v3156 = vunpack.c.h.b16 %v3069
    %v3157 = vunpack.c.l.b16 %v3070
    %v3158 = vunpack.c.h.b16 %v3070
    %v3159 = vunpack.c.l.b16 %v3071
    %v3160 = vunpack.c.h.b16 %v3071
    %v3161 = vunpack.c.l.b16 %v3072
    %v3162 = vunpack.c.h.b16 %v3072
    %v3163 = vunpack.c.l.b16 %v3073
    %v3164 = vunpack.c.h.b16 %v3073
    %v3165 = vunpack.c.l.b16 %v3074
    %v3166 = vunpack.c.h.b16 %v3074
    %v3167 = vunpack.c.l.b16 %v3075
    %v3168 = vunpack.c.h.b16 %v3075
    %v3169 = vunpack.c.l.b16 %v3076
    %v3170 = vunpack.c.h.b16 %v3076
    %v3171 = vunpack.c.l.b16 %v3077
    %v3172 = vunpack.c.h.b16 %v3077
    %v3173 = vunpack.c.l.b16 %v3078
    %v3174 = vunpack.c.h.b16 %v3078
    %v3175 = vpack.c.b16 %v3115, %v3111
    %v3176 = vpack.c.b16 %v3116, %v3112
    %v3177 = vpack.c.b16 %v3117, %v3113
    %v3178 = vpack.c.b16 %v3118, %v3114
    %v3179 = vpack.c.b16 %v3123, %v3119
    %v3180 = vpack.c.b16 %v3124, %v3120
    %v3181 = vpack.c.b16 %v3125, %v3121
    %v3182 = vpack.c.b16 %v3126, %v3122
    %v3183 = vpack.c.b16 %v3131, %v3127
    %v3184 = vpack.c.b16 %v3132, %v3128
    %v3185 = vpack.c.b16 %v3133, %v3129
    %v3186 = vpack.c.b16 %v3134, %v3130
    %v3187 = vpack.c.b16 %v3139, %v3135
    %v3188 = vpack.c.b16 %v3140, %v3136
    %v3189 = vpack.c.b16 %v3141, %v3137
    %v3190 = vpack.c.b16 %v3142, %v3138
    %v3191 = vpack.c.b16 %v3147, %v3143
    %v3192 = vpack.c.b16 %v3148, %v3144
    %v3193 = vpack.c.b16 %v3149, %v3145
    %v3194 = vpack.c.b16 %v3150, %v3146
    %v3195 = vpack.c.b16 %v3155, %v3151
    %v3196 = vpack.c.b16 %v3156, %v3152
    %v3197 = vpack.c.b16 %v3157, %v3153
    %v3198 = vpack.c.b16 %v3158, %v3154
    %v3199 = vpack.c.b16 %v3163, %v3159
    %v3200 = vpack.c.b16 %v3164, %v3160
    %v3201 = vpack.c.b16 %v3165, %v3161
    %v3202 = vpack.c.b16 %v3166, %v3162
    %v3203 = vpack.c.b16 %v3171, %v3167
    %v3204 = vpack.c.b16 %v3172, %v3168
    %v3205 = vpack.c.b16 %v3173, %v3169
    %v3206 = vpack.c.b16 %v3174, %v3170
    %3239 = vmatpush.bf16.msra.mxu0 %v3203
    %3240 = vmatpush.bf16.msra.mxu0 %v3199
    %3241 = vmatpush.bf16.msra.mxu0 %v3195
    %3242 = vmatpush.bf16.msra.mxu0 %v3191
    %3243 = vmatpush.bf16.msra.mxu0 %v3187
    %3244 = vmatpush.bf16.msra.mxu0 %v3183
    %3245 = vmatpush.bf16.msra.mxu0 %v3179
    %3246 = vmatpush.bf16.msra.mxu0 %v3175
    %3247 = vmatmul.bf16.gmra.mxu0 %v2474
    %v3248 = vpop.f32.mrf.mxu0
    %v3249 = vadd.f32 0.0, %v3248
    %v3250 = vpop.f32.mrf.mxu0
    %3251 = vdwg.mxu0
    %3252 = vmatpush.bf16.msra.mxu0 %v3204
    %3253 = vmatpush.bf16.msra.mxu0 %v3200
    %3254 = vmatpush.bf16.msra.mxu0 %v3196
    %3255 = vmatpush.bf16.msra.mxu0 %v3192
    %3256 = vmatpush.bf16.msra.mxu0 %v3188
    %3257 = vmatpush.bf16.msra.mxu0 %v3184
    %3258 = vmatpush.bf16.msra.mxu0 %v3180
    %3259 = vmatpush.bf16.msra.mxu0 %v3176
    %3260 = vmatmul.bf16.gmra.mxu0 %v2474
    %v3261 = vpop.f32.mrf.mxu0
    %v3262 = vadd.f32 0.0, %v3261
    %v3263 = vpop.f32.mrf.mxu0
    %3264 = vdwg.mxu0
    %3265 = vmatpush.bf16.msra.mxu0 %v3205
    %3266 = vmatpush.bf16.msra.mxu0 %v3201
    %3267 = vmatpush.bf16.msra.mxu0 %v3197
    %3268 = vmatpush.bf16.msra.mxu0 %v3193
    %3269 = vmatpush.bf16.msra.mxu0 %v3189
    %3270 = vmatpush.bf16.msra.mxu0 %v3185
    %3271 = vmatpush.bf16.msra.mxu0 %v3181
    %3272 = vmatpush.bf16.msra.mxu0 %v3177
    %3273 = vmatmul.bf16.gmra.mxu0 %v2474
    %v3274 = vpop.f32.mrf.mxu0
    %v3275 = vadd.f32 0.0, %v3274
    %v3276 = vpop.f32.mrf.mxu0
    %3277 = vdwg.mxu0
    %3278 = vmatpush.bf16.msra.mxu0 %v3206
    %3279 = vmatpush.bf16.msra.mxu0 %v3202
    %3280 = vmatpush.bf16.msra.mxu0 %v3198
    %3281 = vmatpush.bf16.msra.mxu0 %v3194
    %3282 = vmatpush.bf16.msra.mxu0 %v3190
    %3283 = vmatpush.bf16.msra.mxu0 %v3186
    %3284 = vmatpush.bf16.msra.mxu0 %v3182
    %3285 = vmatpush.bf16.msra.mxu0 %v3178
    %3286 = vmatmul.bf16.gmra.mxu0 %v2474
    %v3287 = vpop.f32.mrf.mxu0
    %v3288 = vadd.f32 0.0, %v3287
    %v3289 = vpop.f32.mrf.mxu0
    %3290 = vdwg.mxu0
    %3293 = vst [vmem:[#allocation1] ss:$2 sm:$0xff] %v3045
    %s3294 = scalar_lea.vmem [#allocation1], 16
    %3295 = vst [vmem:[%s3294] ss:$2 sm:$0xff] %v3046
    %v3296 = vld.sshfl [vmem:[#allocation1] sm:$0xff pattern:$0x75316420]
    %v3297 = vld.sshfl [vmem:[#allocation1 + $0x8] sm:$0xff pattern:$0x75316420]
    %v3298 = vld.sshfl [vmem:[#allocation1 + $0x10] sm:$0xff pattern:$0x75316420]
    %v3299 = vld.sshfl [vmem:[#allocation1 + $0x18] sm:$0xff pattern:$0x75316420]
    %v3301 = vsel %vm316, %v3044, 0
    %v3303 = vsel %vm320, %v3296, 0
    %v3305 = vsel %vm320, %v3297, 0
    %v3307 = vsel %vm320, %v3298, 0
    %v3309 = vsel %vm320, %v3299, 0
    %3311 = vmatpush.msra.mxu0 0.0
    %3312 = vmatpush.msra.mxu0 0.0
    %3313 = vmatpush.msra.mxu0 0.0
    %3314 = vmatpush.msra.mxu0 0.0
    %3315 = vmatpush.msra.mxu0 0.0
    %3316 = vmatpush.msra.mxu0 0.0
    %3317 = vmatpush.msra.mxu0 0.0
    %3318 = vmatpush.msra.mxu0 0.0
    %3319 = vmatpush.msra.mxu0 0.0
    %3320 = vmatpush.msra.mxu0 0.0
    %3321 = vmatpush.msra.mxu0 0.0
    %3322 = vmatpush.msra.mxu0 0.0
    %3323 = vmatpush.msra.mxu0 0.0
    %3324 = vmatpush.msra.mxu0 0.0
    %3325 = vmatpush.msra.mxu0 0.0
    %3326 = vmatpush.msra.mxu0 %v3303
    %3327 = vmatmul.f32.gmra.mxu0 %v3301
    %v3328 = vpop.f32.mrf.mxu0
    %v3329 = vadd.f32 %v3249, %v3328
    %3330 = vdwg.mxu0
    %3331 = vmatpush.msra.mxu0 0.0
    %3332 = vmatpush.msra.mxu0 0.0
    %3333 = vmatpush.msra.mxu0 0.0
    %3334 = vmatpush.msra.mxu0 0.0
    %3335 = vmatpush.msra.mxu0 0.0
    %3336 = vmatpush.msra.mxu0 0.0
    %3337 = vmatpush.msra.mxu0 0.0
    %3338 = vmatpush.msra.mxu0 0.0
    %3339 = vmatpush.msra.mxu0 0.0
    %3340 = vmatpush.msra.mxu0 0.0
    %3341 = vmatpush.msra.mxu0 0.0
    %3342 = vmatpush.msra.mxu0 0.0
    %3343 = vmatpush.msra.mxu0 0.0
    %3344 = vmatpush.msra.mxu0 0.0
    %3345 = vmatpush.msra.mxu0 0.0
    %3346 = vmatpush.msra.mxu0 %v3305
    %3347 = vmatmul.f32.gmra.mxu0 %v3301
    %v3348 = vpop.f32.mrf.mxu0
    %v3349 = vadd.f32 %v3262, %v3348
    %3350 = vdwg.mxu0
    %3351 = vmatpush.msra.mxu0 0.0
    %3352 = vmatpush.msra.mxu0 0.0
    %3353 = vmatpush.msra.mxu0 0.0
    %3354 = vmatpush.msra.mxu0 0.0
    %3355 = vmatpush.msra.mxu0 0.0
    %3356 = vmatpush.msra.mxu0 0.0
    %3357 = vmatpush.msra.mxu0 0.0
    %3358 = vmatpush.msra.mxu0 0.0
    %3359 = vmatpush.msra.mxu0 0.0
    %3360 = vmatpush.msra.mxu0 0.0
    %3361 = vmatpush.msra.mxu0 0.0
    %3362 = vmatpush.msra.mxu0 0.0
    %3363 = vmatpush.msra.mxu0 0.0
    %3364 = vmatpush.msra.mxu0 0.0
    %3365 = vmatpush.msra.mxu0 0.0
    %3366 = vmatpush.msra.mxu0 %v3307
    %3367 = vmatmul.f32.gmra.mxu0 %v3301
    %v3368 = vpop.f32.mrf.mxu0
    %v3369 = vadd.f32 %v3275, %v3368
    %3370 = vdwg.mxu0
    %3371 = vmatpush.msra.mxu0 0.0
    %3372 = vmatpush.msra.mxu0 0.0
    %3373 = vmatpush.msra.mxu0 0.0
    %3374 = vmatpush.msra.mxu0 0.0
    %3375 = vmatpush.msra.mxu0 0.0
    %3376 = vmatpush.msra.mxu0 0.0
    %3377 = vmatpush.msra.mxu0 0.0
    %3378 = vmatpush.msra.mxu0 0.0
    %3379 = vmatpush.msra.mxu0 0.0
    %3380 = vmatpush.msra.mxu0 0.0
    %3381 = vmatpush.msra.mxu0 0.0
    %3382 = vmatpush.msra.mxu0 0.0
    %3383 = vmatpush.msra.mxu0 0.0
    %3384 = vmatpush.msra.mxu0 0.0
    %3385 = vmatpush.msra.mxu0 0.0
    %3386 = vmatpush.msra.mxu0 %v3309
    %3387 = vmatmul.f32.gmra.mxu0 %v3301
    %v3388 = vpop.f32.mrf.mxu0
    %v3389 = vadd.f32 %v3288, %v3388
    %3390 = vdwg.mxu0
    %v3391 = vld [vmem:[%s4] sm:$0xf]
    %v3393 = vperm.slane %v3391, 0
    %v3394 = vperm.slane %v3391, 1
    %v3395 = vperm.slane %v3391, 2
    %v3396 = vperm.slane %v3391, 3
    %v3401 = vadd.f32 %v3329, %v3393
    %v3402 = vadd.f32 %v3349, %v3394
    %v3403 = vadd.f32 %v3369, %v3395
    %v3404 = vadd.f32 %v3389, %v3396
    %v3405 = vxor.u32 %v3401, 2147483648
    %v3406 = vmul.f32 %v3405, 1.442695
    %v3407 = vpow.pop %v3406
    %v3408 = vadd.f32 %v3407, 1.0
    %v3409 = vrcp.pop %v3408
    %v3410 = vmul.f32 %v3408, %v3409
    %v3411 = vsub.f32 1.0, %v3410
    %v3412 = vmul.f32 %v3409, %v3411
    %v3413 = vadd.f32 %v3409, %v3412
    %vm3414 = vweird.f32 %v3408
    %vm3415 = vweird.f32 %v3409
    %vm3416 = vmor %vm3414, %vm3415
    %v3417 = vsel %vm3416, %v3409, %v3413
    %v3418 = vand.u32 2147483647, %v3408
    %vm3419 = vcmp.eq.f32.partialorder %v3418, 8.507059e+37
    %v3420 = vand.u32 %v3408, 2147483648
    %v3421 = vor.u32 1.1754944e-38, %v3420
    %v3422 = vsel %vm3419, %v3421, %v3417
    %v3423 = vmul.f32 1.0, %v3422
    %v3424 = vxor.u32 %v3402, 2147483648
    %v3425 = vmul.f32 %v3424, 1.442695
    %v3426 = vpow.pop %v3425
    %v3427 = vadd.f32 %v3426, 1.0
    %v3428 = vrcp.pop %v3427
    %v3429 = vmul.f32 %v3427, %v3428
    %v3430 = vsub.f32 1.0, %v3429
    %v3431 = vmul.f32 %v3428, %v3430
    %v3432 = vadd.f32 %v3428, %v3431
    %vm3433 = vweird.f32 %v3427
    %vm3434 = vweird.f32 %v3428
    %vm3435 = vmor %vm3433, %vm3434
    %v3436 = vsel %vm3435, %v3428, %v3432
    %v3437 = vand.u32 2147483647, %v3427
    %vm3438 = vcmp.eq.f32.partialorder %v3437, 8.507059e+37
    %v3439 = vand.u32 %v3427, 2147483648
    %v3440 = vor.u32 1.1754944e-38, %v3439
    %v3441 = vsel %vm3438, %v3440, %v3436
    %v3442 = vmul.f32 1.0, %v3441
    %v3443 = vtanh.pop %v3403
    %v3444 = vxor.u32 %v3404, 2147483648
    %v3445 = vmul.f32 %v3444, 1.442695
    %v3446 = vpow.pop %v3445
    %v3447 = vadd.f32 %v3446, 1.0
    %v3448 = vrcp.pop %v3447
    %v3449 = vmul.f32 %v3447, %v3448
    %v3450 = vsub.f32 1.0, %v3449
    %v3451 = vmul.f32 %v3448, %v3450
    %v3452 = vadd.f32 %v3448, %v3451
    %vm3453 = vweird.f32 %v3447
    %vm3454 = vweird.f32 %v3448
    %vm3455 = vmor %vm3453, %vm3454
    %v3456 = vsel %vm3455, %v3448, %v3452
    %v3457 = vand.u32 2147483647, %v3447
    %vm3458 = vcmp.eq.f32.partialorder %v3457, 8.507059e+37
    %v3459 = vand.u32 %v3447, 2147483648
    %v3460 = vor.u32 1.1754944e-38, %v3459
    %v3461 = vsel %vm3458, %v3460, %v3456
    %v3462 = vmul.f32 1.0, %v3461
    %v3463 = vmul.f32 %v3442, %v2471
    %v3464 = vmul.f32 %v3423, %v3443
    %v3465 = vadd.f32 %v3463, %v3464
    %v3466 = vtanh.pop %v3465
    %v3467 = vmul.f32 %v3462, %v3466
    %v3468 = vpack.c.bf16 %v3467, %v3467
    %v3469 = vld [vmem:[#allocation4] sm:$0xff]
    %v3470 = vld [vmem:[#allocation4 + $0x8] sm:$0xff]
    %v3471 = vld [vmem:[#allocation4 + $0x10] sm:$0xff]
    %v3472 = vld [vmem:[#allocation4 + $0x18] sm:$0xff]
    %v3473 = vld [vmem:[#allocation4 + $0x20] sm:$0xff]
    %v3474 = vld [vmem:[#allocation4 + $0x28] sm:$0xff]
    %v3475 = vld [vmem:[#allocation4 + $0x30] sm:$0xff]
    %v3476 = vld [vmem:[#allocation4 + $0x38] sm:$0xff]
    %v3477 = vld [vmem:[#allocation4 + $0x40] sm:$0xff]
    %v3478 = vld [vmem:[#allocation4 + $0x48] sm:$0xff]
    %v3479 = vld [vmem:[#allocation4 + $0x50] sm:$0xff]
    %v3480 = vld [vmem:[#allocation4 + $0x58] sm:$0xff]
    %v3481 = vld [vmem:[#allocation4 + $0x60] sm:$0xff]
    %v3482 = vld [vmem:[#allocation4 + $0x68] sm:$0xff]
    %v3483 = vld [vmem:[#allocation4 + $0x70] sm:$0xff]
    %v3484 = vld [vmem:[#allocation4 + $0x78] sm:$0xff]
    %v3485 = vld [vmem:[#allocation4 + $0x80] sm:$0xff]
    %v3486 = vld [vmem:[#allocation4 + $0x88] sm:$0xff]
    %v3487 = vld [vmem:[#allocation4 + $0x90] sm:$0xff]
    %v3488 = vld [vmem:[#allocation4 + $0x98] sm:$0xff]
    %v3489 = vld [vmem:[#allocation4 + $0xa0] sm:$0xff]
    %v3490 = vld [vmem:[#allocation4 + $0xa8] sm:$0xff]
    %v3491 = vld [vmem:[#allocation4 + $0xb0] sm:$0xff]
    %v3492 = vld [vmem:[#allocation4 + $0xb8] sm:$0xff]
    %v3493 = vld [vmem:[#allocation4 + $0xc0] sm:$0xff]
    %v3494 = vld [vmem:[#allocation4 + $0xc8] sm:$0xff]
    %v3495 = vld [vmem:[#allocation4 + $0xd0] sm:$0xff]
    %v3496 = vld [vmem:[#allocation4 + $0xd8] sm:$0xff]
    %v3497 = vld [vmem:[#allocation4 + $0xe0] sm:$0xff]
    %v3498 = vld [vmem:[#allocation4 + $0xe8] sm:$0xff]
    %v3499 = vld [vmem:[#allocation4 + $0xf0] sm:$0xff]
    %v3500 = vld [vmem:[#allocation4 + $0xf8] sm:$0xff]
    %v3501 = vpack.c.bf16 %v3040, %v3040
    %v3502 = vld [vmem:[%s519] sm:$0xff]
    %v3503 = vld [vmem:[%s519 + $0x8] sm:$0xff]
    %v3504 = vld [vmem:[%s519 + $0x10] sm:$0xff]
    %v3505 = vld [vmem:[%s519 + $0x18] sm:$0xff]
    %v3506 = vld [vmem:[%s519 + $0x20] sm:$0xff]
    %v3507 = vld [vmem:[%s519 + $0x28] sm:$0xff]
    %v3508 = vld [vmem:[%s519 + $0x30] sm:$0xff]
    %v3509 = vld [vmem:[%s519 + $0x38] sm:$0xff]
    %v3510 = vld [vmem:[%s519 + $0x40] sm:$0xff]
    %v3511 = vld [vmem:[%s519 + $0x48] sm:$0xff]
    %v3512 = vld [vmem:[%s519 + $0x50] sm:$0xff]
    %v3513 = vld [vmem:[%s519 + $0x58] sm:$0xff]
    %v3514 = vld [vmem:[%s519 + $0x60] sm:$0xff]
    %v3515 = vld [vmem:[%s519 + $0x68] sm:$0xff]
    %v3516 = vld [vmem:[%s519 + $0x70] sm:$0xff]
    %v3517 = vld [vmem:[%s519 + $0x78] sm:$0xff]
    %v3518 = vld [vmem:[%s519 + $0x80] sm:$0xff]
    %v3519 = vld [vmem:[%s519 + $0x88] sm:$0xff]
    %v3520 = vld [vmem:[%s519 + $0x90] sm:$0xff]
    %v3521 = vld [vmem:[%s519 + $0x98] sm:$0xff]
    %v3522 = vld [vmem:[%s519 + $0xa0] sm:$0xff]
    %v3523 = vld [vmem:[%s519 + $0xa8] sm:$0xff]
    %v3524 = vld [vmem:[%s519 + $0xb0] sm:$0xff]
    %v3525 = vld [vmem:[%s519 + $0xb8] sm:$0xff]
    %v3526 = vld [vmem:[%s519 + $0xc0] sm:$0xff]
    %v3527 = vld [vmem:[%s519 + $0xc8] sm:$0xff]
    %v3528 = vld [vmem:[%s519 + $0xd0] sm:$0xff]
    %v3529 = vld [vmem:[%s519 + $0xd8] sm:$0xff]
    %v3530 = vld [vmem:[%s519 + $0xe0] sm:$0xff]
    %v3531 = vld [vmem:[%s519 + $0xe8] sm:$0xff]
    %v3532 = vld [vmem:[%s519 + $0xf0] sm:$0xff]
    %v3533 = vld [vmem:[%s519 + $0xf8] sm:$0xff]
    %v3566 = vunpack.c.l.b16 %v3502
    %v3567 = vunpack.c.h.b16 %v3502
    %v3568 = vunpack.c.l.b16 %v3503
    %v3569 = vunpack.c.h.b16 %v3503
    %v3570 = vunpack.c.l.b16 %v3504
    %v3571 = vunpack.c.h.b16 %v3504
    %v3572 = vunpack.c.l.b16 %v3505
    %v3573 = vunpack.c.h.b16 %v3505
    %v3574 = vunpack.c.l.b16 %v3506
    %v3575 = vunpack.c.h.b16 %v3506
    %v3576 = vunpack.c.l.b16 %v3507
    %v3577 = vunpack.c.h.b16 %v3507
    %v3578 = vunpack.c.l.b16 %v3508
    %v3579 = vunpack.c.h.b16 %v3508
    %v3580 = vunpack.c.l.b16 %v3509
    %v3581 = vunpack.c.h.b16 %v3509
    %v3582 = vunpack.c.l.b16 %v3510
    %v3583 = vunpack.c.h.b16 %v3510
    %v3584 = vunpack.c.l.b16 %v3511
    %v3585 = vunpack.c.h.b16 %v3511
    %v3586 = vunpack.c.l.b16 %v3512
    %v3587 = vunpack.c.h.b16 %v3512
    %v3588 = vunpack.c.l.b16 %v3513
    %v3589 = vunpack.c.h.b16 %v3513
    %v3590 = vunpack.c.l.b16 %v3514
    %v3591 = vunpack.c.h.b16 %v3514
    %v3592 = vunpack.c.l.b16 %v3515
    %v3593 = vunpack.c.h.b16 %v3515
    %v3594 = vunpack.c.l.b16 %v3516
    %v3595 = vunpack.c.h.b16 %v3516
    %v3596 = vunpack.c.l.b16 %v3517
    %v3597 = vunpack.c.h.b16 %v3517
    %v3598 = vunpack.c.l.b16 %v3518
    %v3599 = vunpack.c.h.b16 %v3518
    %v3600 = vunpack.c.l.b16 %v3519
    %v3601 = vunpack.c.h.b16 %v3519
    %v3602 = vunpack.c.l.b16 %v3520
    %v3603 = vunpack.c.h.b16 %v3520
    %v3604 = vunpack.c.l.b16 %v3521
    %v3605 = vunpack.c.h.b16 %v3521
    %v3606 = vunpack.c.l.b16 %v3522
    %v3607 = vunpack.c.h.b16 %v3522
    %v3608 = vunpack.c.l.b16 %v3523
    %v3609 = vunpack.c.h.b16 %v3523
    %v3610 = vunpack.c.l.b16 %v3524
    %v3611 = vunpack.c.h.b16 %v3524
    %v3612 = vunpack.c.l.b16 %v3525
    %v3613 = vunpack.c.h.b16 %v3525
    %v3614 = vunpack.c.l.b16 %v3526
    %v3615 = vunpack.c.h.b16 %v3526
    %v3616 = vunpack.c.l.b16 %v3527
    %v3617 = vunpack.c.h.b16 %v3527
    %v3618 = vunpack.c.l.b16 %v3528
    %v3619 = vunpack.c.h.b16 %v3528
    %v3620 = vunpack.c.l.b16 %v3529
    %v3621 = vunpack.c.h.b16 %v3529
    %v3622 = vunpack.c.l.b16 %v3530
    %v3623 = vunpack.c.h.b16 %v3530
    %v3624 = vunpack.c.l.b16 %v3531
    %v3625 = vunpack.c.h.b16 %v3531
    %v3626 = vunpack.c.l.b16 %v3532
    %v3627 = vunpack.c.h.b16 %v3532
    %v3628 = vunpack.c.l.b16 %v3533
    %v3629 = vunpack.c.h.b16 %v3533
    %v3630 = vpack.c.b16 %v3570, %v3566
    %v3631 = vpack.c.b16 %v3571, %v3567
    %v3632 = vpack.c.b16 %v3572, %v3568
    %v3633 = vpack.c.b16 %v3573, %v3569
    %v3634 = vpack.c.b16 %v3578, %v3574
    %v3635 = vpack.c.b16 %v3579, %v3575
    %v3636 = vpack.c.b16 %v3580, %v3576
    %v3637 = vpack.c.b16 %v3581, %v3577
    %v3638 = vpack.c.b16 %v3586, %v3582
    %v3639 = vpack.c.b16 %v3587, %v3583
    %v3640 = vpack.c.b16 %v3588, %v3584
    %v3641 = vpack.c.b16 %v3589, %v3585
    %v3642 = vpack.c.b16 %v3594, %v3590
    %v3643 = vpack.c.b16 %v3595, %v3591
    %v3644 = vpack.c.b16 %v3596, %v3592
    %v3645 = vpack.c.b16 %v3597, %v3593
    %v3646 = vpack.c.b16 %v3602, %v3598
    %v3647 = vpack.c.b16 %v3603, %v3599
    %v3648 = vpack.c.b16 %v3604, %v3600
    %v3649 = vpack.c.b16 %v3605, %v3601
    %v3650 = vpack.c.b16 %v3610, %v3606
    %v3651 = vpack.c.b16 %v3611, %v3607
    %v3652 = vpack.c.b16 %v3612, %v3608
    %v3653 = vpack.c.b16 %v3613, %v3609
    %v3654 = vpack.c.b16 %v3618, %v3614
    %v3655 = vpack.c.b16 %v3619, %v3615
    %v3656 = vpack.c.b16 %v3620, %v3616
    %v3657 = vpack.c.b16 %v3621, %v3617
    %v3658 = vpack.c.b16 %v3626, %v3622
    %v3659 = vpack.c.b16 %v3627, %v3623
    %v3660 = vpack.c.b16 %v3628, %v3624
    %v3661 = vpack.c.b16 %v3629, %v3625
    %3694 = vmatpush.bf16.msra.mxu0 %v3658
    %3695 = vmatpush.bf16.msra.mxu0 %v3654
    %3696 = vmatpush.bf16.msra.mxu0 %v3650
    %3697 = vmatpush.bf16.msra.mxu0 %v3646
    %3698 = vmatpush.bf16.msra.mxu0 %v3642
    %3699 = vmatpush.bf16.msra.mxu0 %v3638
    %3700 = vmatpush.bf16.msra.mxu0 %v3634
    %3701 = vmatpush.bf16.msra.mxu0 %v3630
    %3702 = vmatmul.bf16.gmra.mxu0 %v3501
    %v3703 = vpop.f32.mrf.mxu0
    %v3704 = vadd.f32 0.0, %v3703
    %v3705 = vpop.f32.mrf.mxu0
    %3706 = vdwg.mxu0
    %3707 = vmatpush.bf16.msra.mxu0 %v3659
    %3708 = vmatpush.bf16.msra.mxu0 %v3655
    %3709 = vmatpush.bf16.msra.mxu0 %v3651
    %3710 = vmatpush.bf16.msra.mxu0 %v3647
    %3711 = vmatpush.bf16.msra.mxu0 %v3643
    %3712 = vmatpush.bf16.msra.mxu0 %v3639
    %3713 = vmatpush.bf16.msra.mxu0 %v3635
    %3714 = vmatpush.bf16.msra.mxu0 %v3631
    %3715 = vmatmul.bf16.gmra.mxu0 %v3501
    %v3716 = vpop.f32.mrf.mxu0
    %v3717 = vadd.f32 0.0, %v3716
    %v3718 = vpop.f32.mrf.mxu0
    %3719 = vdwg.mxu0
    %3720 = vmatpush.bf16.msra.mxu0 %v3660
    %3721 = vmatpush.bf16.msra.mxu0 %v3656
    %3722 = vmatpush.bf16.msra.mxu0 %v3652
    %3723 = vmatpush.bf16.msra.mxu0 %v3648
    %3724 = vmatpush.bf16.msra.mxu0 %v3644
    %3725 = vmatpush.bf16.msra.mxu0 %v3640
    %3726 = vmatpush.bf16.msra.mxu0 %v3636
    %3727 = vmatpush.bf16.msra.mxu0 %v3632
    %3728 = vmatmul.bf16.gmra.mxu0 %v3501
    %v3729 = vpop.f32.mrf.mxu0
    %v3730 = vadd.f32 0.0, %v3729
    %v3731 = vpop.f32.mrf.mxu0
    %3732 = vdwg.mxu0
    %3733 = vmatpush.bf16.msra.mxu0 %v3661
    %3734 = vmatpush.bf16.msra.mxu0 %v3657
    %3735 = vmatpush.bf16.msra.mxu0 %v3653
    %3736 = vmatpush.bf16.msra.mxu0 %v3649
    %3737 = vmatpush.bf16.msra.mxu0 %v3645
    %3738 = vmatpush.bf16.msra.mxu0 %v3641
    %3739 = vmatpush.bf16.msra.mxu0 %v3637
    %3740 = vmatpush.bf16.msra.mxu0 %v3633
    %3741 = vmatmul.bf16.gmra.mxu0 %v3501
    %v3742 = vpop.f32.mrf.mxu0
    %v3743 = vadd.f32 0.0, %v3742
    %v3744 = vpop.f32.mrf.mxu0
    %3745 = vdwg.mxu0
    %v3778 = vunpack.c.l.b16 %v3469
    %v3779 = vunpack.c.h.b16 %v3469
    %v3780 = vunpack.c.l.b16 %v3470
    %v3781 = vunpack.c.h.b16 %v3470
    %v3782 = vunpack.c.l.b16 %v3471
    %v3783 = vunpack.c.h.b16 %v3471
    %v3784 = vunpack.c.l.b16 %v3472
    %v3785 = vunpack.c.h.b16 %v3472
    %v3786 = vunpack.c.l.b16 %v3473
    %v3787 = vunpack.c.h.b16 %v3473
    %v3788 = vunpack.c.l.b16 %v3474
    %v3789 = vunpack.c.h.b16 %v3474
    %v3790 = vunpack.c.l.b16 %v3475
    %v3791 = vunpack.c.h.b16 %v3475
    %v3792 = vunpack.c.l.b16 %v3476
    %v3793 = vunpack.c.h.b16 %v3476
    %v3794 = vunpack.c.l.b16 %v3477
    %v3795 = vunpack.c.h.b16 %v3477
    %v3796 = vunpack.c.l.b16 %v3478
    %v3797 = vunpack.c.h.b16 %v3478
    %v3798 = vunpack.c.l.b16 %v3479
    %v3799 = vunpack.c.h.b16 %v3479
    %v3800 = vunpack.c.l.b16 %v3480
    %v3801 = vunpack.c.h.b16 %v3480
    %v3802 = vunpack.c.l.b16 %v3481
    %v3803 = vunpack.c.h.b16 %v3481
    %v3804 = vunpack.c.l.b16 %v3482
    %v3805 = vunpack.c.h.b16 %v3482
    %v3806 = vunpack.c.l.b16 %v3483
    %v3807 = vunpack.c.h.b16 %v3483
    %v3808 = vunpack.c.l.b16 %v3484
    %v3809 = vunpack.c.h.b16 %v3484
    %v3810 = vunpack.c.l.b16 %v3485
    %v3811 = vunpack.c.h.b16 %v3485
    %v3812 = vunpack.c.l.b16 %v3486
    %v3813 = vunpack.c.h.b16 %v3486
    %v3814 = vunpack.c.l.b16 %v3487
    %v3815 = vunpack.c.h.b16 %v3487
    %v3816 = vunpack.c.l.b16 %v3488
    %v3817 = vunpack.c.h.b16 %v3488
    %v3818 = vunpack.c.l.b16 %v3489
    %v3819 = vunpack.c.h.b16 %v3489
    %v3820 = vunpack.c.l.b16 %v3490
    %v3821 = vunpack.c.h.b16 %v3490
    %v3822 = vunpack.c.l.b16 %v3491
    %v3823 = vunpack.c.h.b16 %v3491
    %v3824 = vunpack.c.l.b16 %v3492
    %v3825 = vunpack.c.h.b16 %v3492
    %v3826 = vunpack.c.l.b16 %v3493
    %v3827 = vunpack.c.h.b16 %v3493
    %v3828 = vunpack.c.l.b16 %v3494
    %v3829 = vunpack.c.h.b16 %v3494
    %v3830 = vunpack.c.l.b16 %v3495
    %v3831 = vunpack.c.h.b16 %v3495
    %v3832 = vunpack.c.l.b16 %v3496
    %v3833 = vunpack.c.h.b16 %v3496
    %v3834 = vunpack.c.l.b16 %v3497
    %v3835 = vunpack.c.h.b16 %v3497
    %v3836 = vunpack.c.l.b16 %v3498
    %v3837 = vunpack.c.h.b16 %v3498
    %v3838 = vunpack.c.l.b16 %v3499
    %v3839 = vunpack.c.h.b16 %v3499
    %v3840 = vunpack.c.l.b16 %v3500
    %v3841 = vunpack.c.h.b16 %v3500
    %v3842 = vpack.c.b16 %v3782, %v3778
    %v3843 = vpack.c.b16 %v3783, %v3779
    %v3844 = vpack.c.b16 %v3784, %v3780
    %v3845 = vpack.c.b16 %v3785, %v3781
    %v3846 = vpack.c.b16 %v3790, %v3786
    %v3847 = vpack.c.b16 %v3791, %v3787
    %v3848 = vpack.c.b16 %v3792, %v3788
    %v3849 = vpack.c.b16 %v3793, %v3789
    %v3850 = vpack.c.b16 %v3798, %v3794
    %v3851 = vpack.c.b16 %v3799, %v3795
    %v3852 = vpack.c.b16 %v3800, %v3796
    %v3853 = vpack.c.b16 %v3801, %v3797
    %v3854 = vpack.c.b16 %v3806, %v3802
    %v3855 = vpack.c.b16 %v3807, %v3803
    %v3856 = vpack.c.b16 %v3808, %v3804
    %v3857 = vpack.c.b16 %v3809, %v3805
    %v3858 = vpack.c.b16 %v3814, %v3810
    %v3859 = vpack.c.b16 %v3815, %v3811
    %v3860 = vpack.c.b16 %v3816, %v3812
    %v3861 = vpack.c.b16 %v3817, %v3813
    %v3862 = vpack.c.b16 %v3822, %v3818
    %v3863 = vpack.c.b16 %v3823, %v3819
    %v3864 = vpack.c.b16 %v3824, %v3820
    %v3865 = vpack.c.b16 %v3825, %v3821
    %v3866 = vpack.c.b16 %v3830, %v3826
    %v3867 = vpack.c.b16 %v3831, %v3827
    %v3868 = vpack.c.b16 %v3832, %v3828
    %v3869 = vpack.c.b16 %v3833, %v3829
    %v3870 = vpack.c.b16 %v3838, %v3834
    %v3871 = vpack.c.b16 %v3839, %v3835
    %v3872 = vpack.c.b16 %v3840, %v3836
    %v3873 = vpack.c.b16 %v3841, %v3837
    %3906 = vmatpush.bf16.msra.mxu0 %v3870
    %3907 = vmatpush.bf16.msra.mxu0 %v3866
    %3908 = vmatpush.bf16.msra.mxu0 %v3862
    %3909 = vmatpush.bf16.msra.mxu0 %v3858
    %3910 = vmatpush.bf16.msra.mxu0 %v3854
    %3911 = vmatpush.bf16.msra.mxu0 %v3850
    %3912 = vmatpush.bf16.msra.mxu0 %v3846
    %3913 = vmatpush.bf16.msra.mxu0 %v3842
    %3914 = vmatmul.bf16.gmra.mxu0 %v3468
    %v3915 = vpop.f32.mrf.mxu0
    %v3916 = vadd.f32 %v3704, %v3915
    %v3917 = vpop.f32.mrf.mxu0
    %3918 = vdwg.mxu0
    %3919 = vmatpush.bf16.msra.mxu0 %v3871
    %3920 = vmatpush.bf16.msra.mxu0 %v3867
    %3921 = vmatpush.bf16.msra.mxu0 %v3863
    %3922 = vmatpush.bf16.msra.mxu0 %v3859
    %3923 = vmatpush.bf16.msra.mxu0 %v3855
    %3924 = vmatpush.bf16.msra.mxu0 %v3851
    %3925 = vmatpush.bf16.msra.mxu0 %v3847
    %3926 = vmatpush.bf16.msra.mxu0 %v3843
    %3927 = vmatmul.bf16.gmra.mxu0 %v3468
    %v3928 = vpop.f32.mrf.mxu0
    %v3929 = vadd.f32 %v3717, %v3928
    %v3930 = vpop.f32.mrf.mxu0
    %3931 = vdwg.mxu0
    %3932 = vmatpush.bf16.msra.mxu0 %v3872
    %3933 = vmatpush.bf16.msra.mxu0 %v3868
    %3934 = vmatpush.bf16.msra.mxu0 %v3864
    %3935 = vmatpush.bf16.msra.mxu0 %v3860
    %3936 = vmatpush.bf16.msra.mxu0 %v3856
    %3937 = vmatpush.bf16.msra.mxu0 %v3852
    %3938 = vmatpush.bf16.msra.mxu0 %v3848
    %3939 = vmatpush.bf16.msra.mxu0 %v3844
    %3940 = vmatmul.bf16.gmra.mxu0 %v3468
    %v3941 = vpop.f32.mrf.mxu0
    %v3942 = vadd.f32 %v3730, %v3941
    %v3943 = vpop.f32.mrf.mxu0
    %3944 = vdwg.mxu0
    %3945 = vmatpush.bf16.msra.mxu0 %v3873
    %3946 = vmatpush.bf16.msra.mxu0 %v3869
    %3947 = vmatpush.bf16.msra.mxu0 %v3865
    %3948 = vmatpush.bf16.msra.mxu0 %v3861
    %3949 = vmatpush.bf16.msra.mxu0 %v3857
    %3950 = vmatpush.bf16.msra.mxu0 %v3853
    %3951 = vmatpush.bf16.msra.mxu0 %v3849
    %3952 = vmatpush.bf16.msra.mxu0 %v3845
    %3953 = vmatmul.bf16.gmra.mxu0 %v3468
    %v3954 = vpop.f32.mrf.mxu0
    %v3955 = vadd.f32 %v3743, %v3954
    %v3956 = vpop.f32.mrf.mxu0
    %3957 = vdwg.mxu0
    %v3958 = vld [vmem:[%s976] sm:$0xf]
    %v3960 = vperm.slane %v3958, 0
    %v3961 = vperm.slane %v3958, 1
    %v3962 = vperm.slane %v3958, 2
    %v3963 = vperm.slane %v3958, 3
    %v3968 = vadd.f32 %v3916, %v3960
    %v3969 = vadd.f32 %v3929, %v3961
    %v3970 = vadd.f32 %v3942, %v3962
    %v3971 = vadd.f32 %v3955, %v3963
    %v3972 = vxor.u32 %v3968, 2147483648
    %v3973 = vmul.f32 %v3972, 1.442695
    %v3974 = vpow.pop %v3973
    %v3975 = vadd.f32 %v3974, 1.0
    %v3976 = vrcp.pop %v3975
    %v3977 = vmul.f32 %v3975, %v3976
    %v3978 = vsub.f32 1.0, %v3977
    %v3979 = vmul.f32 %v3976, %v3978
    %v3980 = vadd.f32 %v3976, %v3979
    %vm3981 = vweird.f32 %v3975
    %vm3982 = vweird.f32 %v3976
    %vm3983 = vmor %vm3981, %vm3982
    %v3984 = vsel %vm3983, %v3976, %v3980
    %v3985 = vand.u32 2147483647, %v3975
    %vm3986 = vcmp.eq.f32.partialorder %v3985, 8.507059e+37
    %v3987 = vand.u32 %v3975, 2147483648
    %v3988 = vor.u32 1.1754944e-38, %v3987
    %v3989 = vsel %vm3986, %v3988, %v3984
    %v3990 = vmul.f32 1.0, %v3989
    %v3991 = vxor.u32 %v3969, 2147483648
    %v3992 = vmul.f32 %v3991, 1.442695
    %v3993 = vpow.pop %v3992
    %v3994 = vadd.f32 %v3993, 1.0
    %v3995 = vrcp.pop %v3994
    %v3996 = vmul.f32 %v3994, %v3995
    %v3997 = vsub.f32 1.0, %v3996
    %v3998 = vmul.f32 %v3995, %v3997
    %v3999 = vadd.f32 %v3995, %v3998
    %vm4000 = vweird.f32 %v3994
    %vm4001 = vweird.f32 %v3995
    %vm4002 = vmor %vm4000, %vm4001
    %v4003 = vsel %vm4002, %v3995, %v3999
    %v4004 = vand.u32 2147483647, %v3994
    %vm4005 = vcmp.eq.f32.partialorder %v4004, 8.507059e+37
    %v4006 = vand.u32 %v3994, 2147483648
    %v4007 = vor.u32 1.1754944e-38, %v4006
    %v4008 = vsel %vm4005, %v4007, %v4003
    %v4009 = vmul.f32 1.0, %v4008
    %v4010 = vtanh.pop %v3970
    %v4011 = vxor.u32 %v3971, 2147483648
    %v4012 = vmul.f32 %v4011, 1.442695
    %v4013 = vpow.pop %v4012
    %v4014 = vadd.f32 %v4013, 1.0
    %v4015 = vrcp.pop %v4014
    %v4016 = vmul.f32 %v4014, %v4015
    %v4017 = vsub.f32 1.0, %v4016
    %v4018 = vmul.f32 %v4015, %v4017
    %v4019 = vadd.f32 %v4015, %v4018
    %vm4020 = vweird.f32 %v4014
    %vm4021 = vweird.f32 %v4015
    %vm4022 = vmor %vm4020, %vm4021
    %v4023 = vsel %vm4022, %v4015, %v4019
    %v4024 = vand.u32 2147483647, %v4014
    %vm4025 = vcmp.eq.f32.partialorder %v4024, 8.507059e+37
    %v4026 = vand.u32 %v4014, 2147483648
    %v4027 = vor.u32 1.1754944e-38, %v4026
    %v4028 = vsel %vm4025, %v4027, %v4023
    %v4029 = vmul.f32 1.0, %v4028
    %v4030 = vmul.f32 %v4009, %v3038
    %v4031 = vmul.f32 %v3990, %v4010
    %v4032 = vadd.f32 %v4030, %v4031
    %v4033 = vtanh.pop %v4032
    %v4034 = vmul.f32 %v4029, %v4033
    %s4035 = scalar_lea.vmem [#allocation2], 6
    %4036 = vst [vmem:[%s4035] sm:$0x3] %v4034
    %s4037 = scalar_lea.vmem %s0, 8
    %v4038 = vld [vmem:[%s4037] sm:$0x3]
    %v4039 = vld [vmem:[%s1] sm:$0xff]
    %v4040 = vld [vmem:[%s1 + $0x8] sm:$0xff]
    %v4041 = vld [vmem:[#allocation6] sm:$0xff]
    %v4042 = vld [vmem:[#allocation6 + $0x8] sm:$0xff]
    %v4043 = vld [vmem:[#allocation6 + $0x10] sm:$0xff]
    %v4044 = vld [vmem:[#allocation6 + $0x18] sm:$0xff]
    %v4045 = vld [vmem:[#allocation6 + $0x20] sm:$0xff]
    %v4046 = vld [vmem:[#allocation6 + $0x28] sm:$0xff]
    %v4047 = vld [vmem:[#allocation6 + $0x30] sm:$0xff]
    %v4048 = vld [vmem:[#allocation6 + $0x38] sm:$0xff]
    %v4049 = vld [vmem:[#allocation6 + $0x40] sm:$0xff]
    %v4050 = vld [vmem:[#allocation6 + $0x48] sm:$0xff]
    %v4051 = vld [vmem:[#allocation6 + $0x50] sm:$0xff]
    %v4052 = vld [vmem:[#allocation6 + $0x58] sm:$0xff]
    %v4053 = vld [vmem:[#allocation6 + $0x60] sm:$0xff]
    %v4054 = vld [vmem:[#allocation6 + $0x68] sm:$0xff]
    %v4055 = vld [vmem:[#allocation6 + $0x70] sm:$0xff]
    %v4056 = vld [vmem:[#allocation6 + $0x78] sm:$0xff]
    %v4057 = vld [vmem:[#allocation6 + $0x80] sm:$0xff]
    %v4058 = vld [vmem:[#allocation6 + $0x88] sm:$0xff]
    %v4059 = vld [vmem:[#allocation6 + $0x90] sm:$0xff]
    %v4060 = vld [vmem:[#allocation6 + $0x98] sm:$0xff]
    %v4061 = vld [vmem:[#allocation6 + $0xa0] sm:$0xff]
    %v4062 = vld [vmem:[#allocation6 + $0xa8] sm:$0xff]
    %v4063 = vld [vmem:[#allocation6 + $0xb0] sm:$0xff]
    %v4064 = vld [vmem:[#allocation6 + $0xb8] sm:$0xff]
    %v4065 = vld [vmem:[#allocation6 + $0xc0] sm:$0xff]
    %v4066 = vld [vmem:[#allocation6 + $0xc8] sm:$0xff]
    %v4067 = vld [vmem:[#allocation6 + $0xd0] sm:$0xff]
    %v4068 = vld [vmem:[#allocation6 + $0xd8] sm:$0xff]
    %v4069 = vld [vmem:[#allocation6 + $0xe0] sm:$0xff]
    %v4070 = vld [vmem:[#allocation6 + $0xe8] sm:$0xff]
    %v4071 = vld [vmem:[#allocation6 + $0xf0] sm:$0xff]
    %v4072 = vld [vmem:[#allocation6 + $0xf8] sm:$0xff]
    %v4105 = vunpack.c.l.b16 %v4041
    %v4106 = vunpack.c.h.b16 %v4041
    %v4107 = vunpack.c.l.b16 %v4042
    %v4108 = vunpack.c.h.b16 %v4042
    %v4109 = vunpack.c.l.b16 %v4043
    %v4110 = vunpack.c.h.b16 %v4043
    %v4111 = vunpack.c.l.b16 %v4044
    %v4112 = vunpack.c.h.b16 %v4044
    %v4113 = vunpack.c.l.b16 %v4045
    %v4114 = vunpack.c.h.b16 %v4045
    %v4115 = vunpack.c.l.b16 %v4046
    %v4116 = vunpack.c.h.b16 %v4046
    %v4117 = vunpack.c.l.b16 %v4047
    %v4118 = vunpack.c.h.b16 %v4047
    %v4119 = vunpack.c.l.b16 %v4048
    %v4120 = vunpack.c.h.b16 %v4048
    %v4121 = vunpack.c.l.b16 %v4049
    %v4122 = vunpack.c.h.b16 %v4049
    %v4123 = vunpack.c.l.b16 %v4050
    %v4124 = vunpack.c.h.b16 %v4050
    %v4125 = vunpack.c.l.b16 %v4051
    %v4126 = vunpack.c.h.b16 %v4051
    %v4127 = vunpack.c.l.b16 %v4052
    %v4128 = vunpack.c.h.b16 %v4052
    %v4129 = vunpack.c.l.b16 %v4053
    %v4130 = vunpack.c.h.b16 %v4053
    %v4131 = vunpack.c.l.b16 %v4054
    %v4132 = vunpack.c.h.b16 %v4054
    %v4133 = vunpack.c.l.b16 %v4055
    %v4134 = vunpack.c.h.b16 %v4055
    %v4135 = vunpack.c.l.b16 %v4056
    %v4136 = vunpack.c.h.b16 %v4056
    %v4137 = vunpack.c.l.b16 %v4057
    %v4138 = vunpack.c.h.b16 %v4057
    %v4139 = vunpack.c.l.b16 %v4058
    %v4140 = vunpack.c.h.b16 %v4058
    %v4141 = vunpack.c.l.b16 %v4059
    %v4142 = vunpack.c.h.b16 %v4059
    %v4143 = vunpack.c.l.b16 %v4060
    %v4144 = vunpack.c.h.b16 %v4060
    %v4145 = vunpack.c.l.b16 %v4061
    %v4146 = vunpack.c.h.b16 %v4061
    %v4147 = vunpack.c.l.b16 %v4062
    %v4148 = vunpack.c.h.b16 %v4062
    %v4149 = vunpack.c.l.b16 %v4063
    %v4150 = vunpack.c.h.b16 %v4063
    %v4151 = vunpack.c.l.b16 %v4064
    %v4152 = vunpack.c.h.b16 %v4064
    %v4153 = vunpack.c.l.b16 %v4065
    %v4154 = vunpack.c.h.b16 %v4065
    %v4155 = vunpack.c.l.b16 %v4066
    %v4156 = vunpack.c.h.b16 %v4066
    %v4157 = vunpack.c.l.b16 %v4067
    %v4158 = vunpack.c.h.b16 %v4067
    %v4159 = vunpack.c.l.b16 %v4068
    %v4160 = vunpack.c.h.b16 %v4068
    %v4161 = vunpack.c.l.b16 %v4069
    %v4162 = vunpack.c.h.b16 %v4069
    %v4163 = vunpack.c.l.b16 %v4070
    %v4164 = vunpack.c.h.b16 %v4070
    %v4165 = vunpack.c.l.b16 %v4071
    %v4166 = vunpack.c.h.b16 %v4071
    %v4167 = vunpack.c.l.b16 %v4072
    %v4168 = vunpack.c.h.b16 %v4072
    %v4169 = vpack.c.b16 %v4109, %v4105
    %v4170 = vpack.c.b16 %v4110, %v4106
    %v4171 = vpack.c.b16 %v4111, %v4107
    %v4172 = vpack.c.b16 %v4112, %v4108
    %v4173 = vpack.c.b16 %v4117, %v4113
    %v4174 = vpack.c.b16 %v4118, %v4114
    %v4175 = vpack.c.b16 %v4119, %v4115
    %v4176 = vpack.c.b16 %v4120, %v4116
    %v4177 = vpack.c.b16 %v4125, %v4121
    %v4178 = vpack.c.b16 %v4126, %v4122
    %v4179 = vpack.c.b16 %v4127, %v4123
    %v4180 = vpack.c.b16 %v4128, %v4124
    %v4181 = vpack.c.b16 %v4133, %v4129
    %v4182 = vpack.c.b16 %v4134, %v4130
    %v4183 = vpack.c.b16 %v4135, %v4131
    %v4184 = vpack.c.b16 %v4136, %v4132
    %v4185 = vpack.c.b16 %v4141, %v4137
    %v4186 = vpack.c.b16 %v4142, %v4138
    %v4187 = vpack.c.b16 %v4143, %v4139
    %v4188 = vpack.c.b16 %v4144, %v4140
    %v4189 = vpack.c.b16 %v4149, %v4145
    %v4190 = vpack.c.b16 %v4150, %v4146
    %v4191 = vpack.c.b16 %v4151, %v4147
    %v4192 = vpack.c.b16 %v4152, %v4148
    %v4193 = vpack.c.b16 %v4157, %v4153
    %v4194 = vpack.c.b16 %v4158, %v4154
    %v4195 = vpack.c.b16 %v4159, %v4155
    %v4196 = vpack.c.b16 %v4160, %v4156
    %v4197 = vpack.c.b16 %v4165, %v4161
    %v4198 = vpack.c.b16 %v4166, %v4162
    %v4199 = vpack.c.b16 %v4167, %v4163
    %v4200 = vpack.c.b16 %v4168, %v4164
    %4233 = vmatpush.bf16.msra.mxu0 %v4197
    %4234 = vmatpush.bf16.msra.mxu0 %v4193
    %4235 = vmatpush.bf16.msra.mxu0 %v4189
    %4236 = vmatpush.bf16.msra.mxu0 %v4185
    %4237 = vmatpush.bf16.msra.mxu0 %v4181
    %4238 = vmatpush.bf16.msra.mxu0 %v4177
    %4239 = vmatpush.bf16.msra.mxu0 %v4173
    %4240 = vmatpush.bf16.msra.mxu0 %v4169
    %4241 = vmatmul.bf16.gmra.mxu0 %v3468
    %v4242 = vpop.f32.mrf.mxu0
    %v4243 = vadd.f32 0.0, %v4242
    %v4244 = vpop.f32.mrf.mxu0
    %4245 = vdwg.mxu0
    %4246 = vmatpush.bf16.msra.mxu0 %v4198
    %4247 = vmatpush.bf16.msra.mxu0 %v4194
    %4248 = vmatpush.bf16.msra.mxu0 %v4190
    %4249 = vmatpush.bf16.msra.mxu0 %v4186
    %4250 = vmatpush.bf16.msra.mxu0 %v4182
    %4251 = vmatpush.bf16.msra.mxu0 %v4178
    %4252 = vmatpush.bf16.msra.mxu0 %v4174
    %4253 = vmatpush.bf16.msra.mxu0 %v4170
    %4254 = vmatmul.bf16.gmra.mxu0 %v3468
    %v4255 = vpop.f32.mrf.mxu0
    %v4256 = vadd.f32 0.0, %v4255
    %v4257 = vpop.f32.mrf.mxu0
    %4258 = vdwg.mxu0
    %4259 = vmatpush.bf16.msra.mxu0 %v4199
    %4260 = vmatpush.bf16.msra.mxu0 %v4195
    %4261 = vmatpush.bf16.msra.mxu0 %v4191
    %4262 = vmatpush.bf16.msra.mxu0 %v4187
    %4263 = vmatpush.bf16.msra.mxu0 %v4183
    %4264 = vmatpush.bf16.msra.mxu0 %v4179
    %4265 = vmatpush.bf16.msra.mxu0 %v4175
    %4266 = vmatpush.bf16.msra.mxu0 %v4171
    %4267 = vmatmul.bf16.gmra.mxu0 %v3468
    %v4268 = vpop.f32.mrf.mxu0
    %v4269 = vadd.f32 0.0, %v4268
    %v4270 = vpop.f32.mrf.mxu0
    %4271 = vdwg.mxu0
    %4272 = vmatpush.bf16.msra.mxu0 %v4200
    %4273 = vmatpush.bf16.msra.mxu0 %v4196
    %4274 = vmatpush.bf16.msra.mxu0 %v4192
    %4275 = vmatpush.bf16.msra.mxu0 %v4188
    %4276 = vmatpush.bf16.msra.mxu0 %v4184
    %4277 = vmatpush.bf16.msra.mxu0 %v4180
    %4278 = vmatpush.bf16.msra.mxu0 %v4176
    %4279 = vmatpush.bf16.msra.mxu0 %v4172
    %4280 = vmatmul.bf16.gmra.mxu0 %v3468
    %v4281 = vpop.f32.mrf.mxu0
    %v4282 = vadd.f32 0.0, %v4281
    %v4283 = vpop.f32.mrf.mxu0
    %4284 = vdwg.mxu0
    %4287 = vst [vmem:[#allocation1] ss:$2 sm:$0xff] %v4039
    %s4288 = scalar_lea.vmem [#allocation1], 16
    %4289 = vst [vmem:[%s4288] ss:$2 sm:$0xff] %v4040
    %v4290 = vld.sshfl [vmem:[#allocation1] sm:$0xff pattern:$0x75316420]
    %v4291 = vld.sshfl [vmem:[#allocation1 + $0x8] sm:$0xff pattern:$0x75316420]
    %v4292 = vld.sshfl [vmem:[#allocation1 + $0x10] sm:$0xff pattern:$0x75316420]
    %v4293 = vld.sshfl [vmem:[#allocation1 + $0x18] sm:$0xff pattern:$0x75316420]
    %v4295 = vsel %vm316, %v4038, 0
    %v4297 = vsel %vm320, %v4290, 0
    %v4299 = vsel %vm320, %v4291, 0
    %v4301 = vsel %vm320, %v4292, 0
    %v4303 = vsel %vm320, %v4293, 0
    %4305 = vmatpush.msra.mxu0 0.0
    %4306 = vmatpush.msra.mxu0 0.0
    %4307 = vmatpush.msra.mxu0 0.0
    %4308 = vmatpush.msra.mxu0 0.0
    %4309 = vmatpush.msra.mxu0 0.0
    %4310 = vmatpush.msra.mxu0 0.0
    %4311 = vmatpush.msra.mxu0 0.0
    %4312 = vmatpush.msra.mxu0 0.0
    %4313 = vmatpush.msra.mxu0 0.0
    %4314 = vmatpush.msra.mxu0 0.0
    %4315 = vmatpush.msra.mxu0 0.0
    %4316 = vmatpush.msra.mxu0 0.0
    %4317 = vmatpush.msra.mxu0 0.0
    %4318 = vmatpush.msra.mxu0 0.0
    %4319 = vmatpush.msra.mxu0 0.0
    %4320 = vmatpush.msra.mxu0 %v4297
    %4321 = vmatmul.f32.gmra.mxu0 %v4295
    %v4322 = vpop.f32.mrf.mxu0
    %v4323 = vadd.f32 %v4243, %v4322
    %4324 = vdwg.mxu0
    %4325 = vmatpush.msra.mxu0 0.0
    %4326 = vmatpush.msra.mxu0 0.0
    %4327 = vmatpush.msra.mxu0 0.0
    %4328 = vmatpush.msra.mxu0 0.0
    %4329 = vmatpush.msra.mxu0 0.0
    %4330 = vmatpush.msra.mxu0 0.0
    %4331 = vmatpush.msra.mxu0 0.0
    %4332 = vmatpush.msra.mxu0 0.0
    %4333 = vmatpush.msra.mxu0 0.0
    %4334 = vmatpush.msra.mxu0 0.0
    %4335 = vmatpush.msra.mxu0 0.0
    %4336 = vmatpush.msra.mxu0 0.0
    %4337 = vmatpush.msra.mxu0 0.0
    %4338 = vmatpush.msra.mxu0 0.0
    %4339 = vmatpush.msra.mxu0 0.0
    %4340 = vmatpush.msra.mxu0 %v4299
    %4341 = vmatmul.f32.gmra.mxu0 %v4295
    %v4342 = vpop.f32.mrf.mxu0
    %v4343 = vadd.f32 %v4256, %v4342
    %4344 = vdwg.mxu0
    %4345 = vmatpush.msra.mxu0 0.0
    %4346 = vmatpush.msra.mxu0 0.0
    %4347 = vmatpush.msra.mxu0 0.0
    %4348 = vmatpush.msra.mxu0 0.0
    %4349 = vmatpush.msra.mxu0 0.0
    %4350 = vmatpush.msra.mxu0 0.0
    %4351 = vmatpush.msra.mxu0 0.0
    %4352 = vmatpush.msra.mxu0 0.0
    %4353 = vmatpush.msra.mxu0 0.0
    %4354 = vmatpush.msra.mxu0 0.0
    %4355 = vmatpush.msra.mxu0 0.0
    %4356 = vmatpush.msra.mxu0 0.0
    %4357 = vmatpush.msra.mxu0 0.0
    %4358 = vmatpush.msra.mxu0 0.0
    %4359 = vmatpush.msra.mxu0 0.0
    %4360 = vmatpush.msra.mxu0 %v4301
    %4361 = vmatmul.f32.gmra.mxu0 %v4295
    %v4362 = vpop.f32.mrf.mxu0
    %v4363 = vadd.f32 %v4269, %v4362
    %4364 = vdwg.mxu0
    %4365 = vmatpush.msra.mxu0 0.0
    %4366 = vmatpush.msra.mxu0 0.0
    %4367 = vmatpush.msra.mxu0 0.0
    %4368 = vmatpush.msra.mxu0 0.0
    %4369 = vmatpush.msra.mxu0 0.0
    %4370 = vmatpush.msra.mxu0 0.0
    %4371 = vmatpush.msra.mxu0 0.0
    %4372 = vmatpush.msra.mxu0 0.0
    %4373 = vmatpush.msra.mxu0 0.0
    %4374 = vmatpush.msra.mxu0 0.0
    %4375 = vmatpush.msra.mxu0 0.0
    %4376 = vmatpush.msra.mxu0 0.0
    %4377 = vmatpush.msra.mxu0 0.0
    %4378 = vmatpush.msra.mxu0 0.0
    %4379 = vmatpush.msra.mxu0 0.0
    %4380 = vmatpush.msra.mxu0 %v4303
    %4381 = vmatmul.f32.gmra.mxu0 %v4295
    %v4382 = vpop.f32.mrf.mxu0
    %v4383 = vadd.f32 %v4282, %v4382
    %4384 = vdwg.mxu0
    %v4385 = vld [vmem:[%s4] sm:$0xf]
    %v4387 = vperm.slane %v4385, 0
    %v4388 = vperm.slane %v4385, 1
    %v4389 = vperm.slane %v4385, 2
    %v4390 = vperm.slane %v4385, 3
    %v4395 = vadd.f32 %v4323, %v4387
    %v4396 = vadd.f32 %v4343, %v4388
    %v4397 = vadd.f32 %v4363, %v4389
    %v4398 = vadd.f32 %v4383, %v4390
    %v4399 = vxor.u32 %v4395, 2147483648
    %v4400 = vmul.f32 %v4399, 1.442695
    %v4401 = vpow.pop %v4400
    %v4402 = vadd.f32 %v4401, 1.0
    %v4403 = vrcp.pop %v4402
    %v4404 = vmul.f32 %v4402, %v4403
    %v4405 = vsub.f32 1.0, %v4404
    %v4406 = vmul.f32 %v4403, %v4405
    %v4407 = vadd.f32 %v4403, %v4406
    %vm4408 = vweird.f32 %v4402
    %vm4409 = vweird.f32 %v4403
    %vm4410 = vmor %vm4408, %vm4409
    %v4411 = vsel %vm4410, %v4403, %v4407
    %v4412 = vand.u32 2147483647, %v4402
    %vm4413 = vcmp.eq.f32.partialorder %v4412, 8.507059e+37
    %v4414 = vand.u32 %v4402, 2147483648
    %v4415 = vor.u32 1.1754944e-38, %v4414
    %v4416 = vsel %vm4413, %v4415, %v4411
    %v4417 = vmul.f32 1.0, %v4416
    %v4418 = vxor.u32 %v4396, 2147483648
    %v4419 = vmul.f32 %v4418, 1.442695
    %v4420 = vpow.pop %v4419
    %v4421 = vadd.f32 %v4420, 1.0
    %v4422 = vrcp.pop %v4421
    %v4423 = vmul.f32 %v4421, %v4422
    %v4424 = vsub.f32 1.0, %v4423
    %v4425 = vmul.f32 %v4422, %v4424
    %v4426 = vadd.f32 %v4422, %v4425
    %vm4427 = vweird.f32 %v4421
    %vm4428 = vweird.f32 %v4422
    %vm4429 = vmor %vm4427, %vm4428
    %v4430 = vsel %vm4429, %v4422, %v4426
    %v4431 = vand.u32 2147483647, %v4421
    %vm4432 = vcmp.eq.f32.partialorder %v4431, 8.507059e+37
    %v4433 = vand.u32 %v4421, 2147483648
    %v4434 = vor.u32 1.1754944e-38, %v4433
    %v4435 = vsel %vm4432, %v4434, %v4430
    %v4436 = vmul.f32 1.0, %v4435
    %v4437 = vtanh.pop %v4397
    %v4438 = vxor.u32 %v4398, 2147483648
    %v4439 = vmul.f32 %v4438, 1.442695
    %v4440 = vpow.pop %v4439
    %v4441 = vadd.f32 %v4440, 1.0
    %v4442 = vrcp.pop %v4441
    %v4443 = vmul.f32 %v4441, %v4442
    %v4444 = vsub.f32 1.0, %v4443
    %v4445 = vmul.f32 %v4442, %v4444
    %v4446 = vadd.f32 %v4442, %v4445
    %vm4447 = vweird.f32 %v4441
    %vm4448 = vweird.f32 %v4442
    %vm4449 = vmor %vm4447, %vm4448
    %v4450 = vsel %vm4449, %v4442, %v4446
    %v4451 = vand.u32 2147483647, %v4441
    %vm4452 = vcmp.eq.f32.partialorder %v4451, 8.507059e+37
    %v4453 = vand.u32 %v4441, 2147483648
    %v4454 = vor.u32 1.1754944e-38, %v4453
    %v4455 = vsel %vm4452, %v4454, %v4450
    %v4456 = vmul.f32 1.0, %v4455
    %v4457 = vmul.f32 %v4436, %v3465
    %v4458 = vmul.f32 %v4417, %v4437
    %v4459 = vadd.f32 %v4457, %v4458
    %v4460 = vtanh.pop %v4459
    %v4461 = vmul.f32 %v4456, %v4460
    %v4462 = vpack.c.bf16 %v4461, %v4461
    %v4463 = vld [vmem:[#allocation4] sm:$0xff]
    %v4464 = vld [vmem:[#allocation4 + $0x8] sm:$0xff]
    %v4465 = vld [vmem:[#allocation4 + $0x10] sm:$0xff]
    %v4466 = vld [vmem:[#allocation4 + $0x18] sm:$0xff]
    %v4467 = vld [vmem:[#allocation4 + $0x20] sm:$0xff]
    %v4468 = vld [vmem:[#allocation4 + $0x28] sm:$0xff]
    %v4469 = vld [vmem:[#allocation4 + $0x30] sm:$0xff]
    %v4470 = vld [vmem:[#allocation4 + $0x38] sm:$0xff]
    %v4471 = vld [vmem:[#allocation4 + $0x40] sm:$0xff]
    %v4472 = vld [vmem:[#allocation4 + $0x48] sm:$0xff]
    %v4473 = vld [vmem:[#allocation4 + $0x50] sm:$0xff]
    %v4474 = vld [vmem:[#allocation4 + $0x58] sm:$0xff]
    %v4475 = vld [vmem:[#allocation4 + $0x60] sm:$0xff]
    %v4476 = vld [vmem:[#allocation4 + $0x68] sm:$0xff]
    %v4477 = vld [vmem:[#allocation4 + $0x70] sm:$0xff]
    %v4478 = vld [vmem:[#allocation4 + $0x78] sm:$0xff]
    %v4479 = vld [vmem:[#allocation4 + $0x80] sm:$0xff]
    %v4480 = vld [vmem:[#allocation4 + $0x88] sm:$0xff]
    %v4481 = vld [vmem:[#allocation4 + $0x90] sm:$0xff]
    %v4482 = vld [vmem:[#allocation4 + $0x98] sm:$0xff]
    %v4483 = vld [vmem:[#allocation4 + $0xa0] sm:$0xff]
    %v4484 = vld [vmem:[#allocation4 + $0xa8] sm:$0xff]
    %v4485 = vld [vmem:[#allocation4 + $0xb0] sm:$0xff]
    %v4486 = vld [vmem:[#allocation4 + $0xb8] sm:$0xff]
    %v4487 = vld [vmem:[#allocation4 + $0xc0] sm:$0xff]
    %v4488 = vld [vmem:[#allocation4 + $0xc8] sm:$0xff]
    %v4489 = vld [vmem:[#allocation4 + $0xd0] sm:$0xff]
    %v4490 = vld [vmem:[#allocation4 + $0xd8] sm:$0xff]
    %v4491 = vld [vmem:[#allocation4 + $0xe0] sm:$0xff]
    %v4492 = vld [vmem:[#allocation4 + $0xe8] sm:$0xff]
    %v4493 = vld [vmem:[#allocation4 + $0xf0] sm:$0xff]
    %v4494 = vld [vmem:[#allocation4 + $0xf8] sm:$0xff]
    %v4495 = vpack.c.bf16 %v4034, %v4034
    %v4496 = vld [vmem:[%s519] sm:$0xff]
    %v4497 = vld [vmem:[%s519 + $0x8] sm:$0xff]
    %v4498 = vld [vmem:[%s519 + $0x10] sm:$0xff]
    %v4499 = vld [vmem:[%s519 + $0x18] sm:$0xff]
    %v4500 = vld [vmem:[%s519 + $0x20] sm:$0xff]
    %v4501 = vld [vmem:[%s519 + $0x28] sm:$0xff]
    %v4502 = vld [vmem:[%s519 + $0x30] sm:$0xff]
    %v4503 = vld [vmem:[%s519 + $0x38] sm:$0xff]
    %v4504 = vld [vmem:[%s519 + $0x40] sm:$0xff]
    %v4505 = vld [vmem:[%s519 + $0x48] sm:$0xff]
    %v4506 = vld [vmem:[%s519 + $0x50] sm:$0xff]
    %v4507 = vld [vmem:[%s519 + $0x58] sm:$0xff]
    %v4508 = vld [vmem:[%s519 + $0x60] sm:$0xff]
    %v4509 = vld [vmem:[%s519 + $0x68] sm:$0xff]
    %v4510 = vld [vmem:[%s519 + $0x70] sm:$0xff]
    %v4511 = vld [vmem:[%s519 + $0x78] sm:$0xff]
    %v4512 = vld [vmem:[%s519 + $0x80] sm:$0xff]
    %v4513 = vld [vmem:[%s519 + $0x88] sm:$0xff]
    %v4514 = vld [vmem:[%s519 + $0x90] sm:$0xff]
    %v4515 = vld [vmem:[%s519 + $0x98] sm:$0xff]
    %v4516 = vld [vmem:[%s519 + $0xa0] sm:$0xff]
    %v4517 = vld [vmem:[%s519 + $0xa8] sm:$0xff]
    %v4518 = vld [vmem:[%s519 + $0xb0] sm:$0xff]
    %v4519 = vld [vmem:[%s519 + $0xb8] sm:$0xff]
    %v4520 = vld [vmem:[%s519 + $0xc0] sm:$0xff]
    %v4521 = vld [vmem:[%s519 + $0xc8] sm:$0xff]
    %v4522 = vld [vmem:[%s519 + $0xd0] sm:$0xff]
    %v4523 = vld [vmem:[%s519 + $0xd8] sm:$0xff]
    %v4524 = vld [vmem:[%s519 + $0xe0] sm:$0xff]
    %v4525 = vld [vmem:[%s519 + $0xe8] sm:$0xff]
    %v4526 = vld [vmem:[%s519 + $0xf0] sm:$0xff]
    %v4527 = vld [vmem:[%s519 + $0xf8] sm:$0xff]
    %v4560 = vunpack.c.l.b16 %v4496
    %v4561 = vunpack.c.h.b16 %v4496
    %v4562 = vunpack.c.l.b16 %v4497
    %v4563 = vunpack.c.h.b16 %v4497
    %v4564 = vunpack.c.l.b16 %v4498
    %v4565 = vunpack.c.h.b16 %v4498
    %v4566 = vunpack.c.l.b16 %v4499
    %v4567 = vunpack.c.h.b16 %v4499
    %v4568 = vunpack.c.l.b16 %v4500
    %v4569 = vunpack.c.h.b16 %v4500
    %v4570 = vunpack.c.l.b16 %v4501
    %v4571 = vunpack.c.h.b16 %v4501
    %v4572 = vunpack.c.l.b16 %v4502
    %v4573 = vunpack.c.h.b16 %v4502
    %v4574 = vunpack.c.l.b16 %v4503
    %v4575 = vunpack.c.h.b16 %v4503
    %v4576 = vunpack.c.l.b16 %v4504
    %v4577 = vunpack.c.h.b16 %v4504
    %v4578 = vunpack.c.l.b16 %v4505
    %v4579 = vunpack.c.h.b16 %v4505
    %v4580 = vunpack.c.l.b16 %v4506
    %v4581 = vunpack.c.h.b16 %v4506
    %v4582 = vunpack.c.l.b16 %v4507
    %v4583 = vunpack.c.h.b16 %v4507
    %v4584 = vunpack.c.l.b16 %v4508
    %v4585 = vunpack.c.h.b16 %v4508
    %v4586 = vunpack.c.l.b16 %v4509
    %v4587 = vunpack.c.h.b16 %v4509
    %v4588 = vunpack.c.l.b16 %v4510
    %v4589 = vunpack.c.h.b16 %v4510
    %v4590 = vunpack.c.l.b16 %v4511
    %v4591 = vunpack.c.h.b16 %v4511
    %v4592 = vunpack.c.l.b16 %v4512
    %v4593 = vunpack.c.h.b16 %v4512
    %v4594 = vunpack.c.l.b16 %v4513
    %v4595 = vunpack.c.h.b16 %v4513
    %v4596 = vunpack.c.l.b16 %v4514
    %v4597 = vunpack.c.h.b16 %v4514
    %v4598 = vunpack.c.l.b16 %v4515
    %v4599 = vunpack.c.h.b16 %v4515
    %v4600 = vunpack.c.l.b16 %v4516
    %v4601 = vunpack.c.h.b16 %v4516
    %v4602 = vunpack.c.l.b16 %v4517
    %v4603 = vunpack.c.h.b16 %v4517
    %v4604 = vunpack.c.l.b16 %v4518
    %v4605 = vunpack.c.h.b16 %v4518
    %v4606 = vunpack.c.l.b16 %v4519
    %v4607 = vunpack.c.h.b16 %v4519
    %v4608 = vunpack.c.l.b16 %v4520
    %v4609 = vunpack.c.h.b16 %v4520
    %v4610 = vunpack.c.l.b16 %v4521
    %v4611 = vunpack.c.h.b16 %v4521
    %v4612 = vunpack.c.l.b16 %v4522
    %v4613 = vunpack.c.h.b16 %v4522
    %v4614 = vunpack.c.l.b16 %v4523
    %v4615 = vunpack.c.h.b16 %v4523
    %v4616 = vunpack.c.l.b16 %v4524
    %v4617 = vunpack.c.h.b16 %v4524
    %v4618 = vunpack.c.l.b16 %v4525
    %v4619 = vunpack.c.h.b16 %v4525
    %v4620 = vunpack.c.l.b16 %v4526
    %v4621 = vunpack.c.h.b16 %v4526
    %v4622 = vunpack.c.l.b16 %v4527
    %v4623 = vunpack.c.h.b16 %v4527
    %v4624 = vpack.c.b16 %v4564, %v4560
    %v4625 = vpack.c.b16 %v4565, %v4561
    %v4626 = vpack.c.b16 %v4566, %v4562
    %v4627 = vpack.c.b16 %v4567, %v4563
    %v4628 = vpack.c.b16 %v4572, %v4568
    %v4629 = vpack.c.b16 %v4573, %v4569
    %v4630 = vpack.c.b16 %v4574, %v4570
    %v4631 = vpack.c.b16 %v4575, %v4571
    %v4632 = vpack.c.b16 %v4580, %v4576
    %v4633 = vpack.c.b16 %v4581, %v4577
    %v4634 = vpack.c.b16 %v4582, %v4578
    %v4635 = vpack.c.b16 %v4583, %v4579
    %v4636 = vpack.c.b16 %v4588, %v4584
    %v4637 = vpack.c.b16 %v4589, %v4585
    %v4638 = vpack.c.b16 %v4590, %v4586
    %v4639 = vpack.c.b16 %v4591, %v4587
    %v4640 = vpack.c.b16 %v4596, %v4592
    %v4641 = vpack.c.b16 %v4597, %v4593
    %v4642 = vpack.c.b16 %v4598, %v4594
    %v4643 = vpack.c.b16 %v4599, %v4595
    %v4644 = vpack.c.b16 %v4604, %v4600
    %v4645 = vpack.c.b16 %v4605, %v4601
    %v4646 = vpack.c.b16 %v4606, %v4602
    %v4647 = vpack.c.b16 %v4607, %v4603
    %v4648 = vpack.c.b16 %v4612, %v4608
    %v4649 = vpack.c.b16 %v4613, %v4609
    %v4650 = vpack.c.b16 %v4614, %v4610
    %v4651 = vpack.c.b16 %v4615, %v4611
    %v4652 = vpack.c.b16 %v4620, %v4616
    %v4653 = vpack.c.b16 %v4621, %v4617
    %v4654 = vpack.c.b16 %v4622, %v4618
    %v4655 = vpack.c.b16 %v4623, %v4619
    %4688 = vmatpush.bf16.msra.mxu0 %v4652
    %4689 = vmatpush.bf16.msra.mxu0 %v4648
    %4690 = vmatpush.bf16.msra.mxu0 %v4644
    %4691 = vmatpush.bf16.msra.mxu0 %v4640
    %4692 = vmatpush.bf16.msra.mxu0 %v4636
    %4693 = vmatpush.bf16.msra.mxu0 %v4632
    %4694 = vmatpush.bf16.msra.mxu0 %v4628
    %4695 = vmatpush.bf16.msra.mxu0 %v4624
    %4696 = vmatmul.bf16.gmra.mxu0 %v4495
    %v4697 = vpop.f32.mrf.mxu0
    %v4698 = vadd.f32 0.0, %v4697
    %v4699 = vpop.f32.mrf.mxu0
    %4700 = vdwg.mxu0
    %4701 = vmatpush.bf16.msra.mxu0 %v4653
    %4702 = vmatpush.bf16.msra.mxu0 %v4649
    %4703 = vmatpush.bf16.msra.mxu0 %v4645
    %4704 = vmatpush.bf16.msra.mxu0 %v4641
    %4705 = vmatpush.bf16.msra.mxu0 %v4637
    %4706 = vmatpush.bf16.msra.mxu0 %v4633
    %4707 = vmatpush.bf16.msra.mxu0 %v4629
    %4708 = vmatpush.bf16.msra.mxu0 %v4625
    %4709 = vmatmul.bf16.gmra.mxu0 %v4495
    %v4710 = vpop.f32.mrf.mxu0
    %v4711 = vadd.f32 0.0, %v4710
    %v4712 = vpop.f32.mrf.mxu0
    %4713 = vdwg.mxu0
    %4714 = vmatpush.bf16.msra.mxu0 %v4654
    %4715 = vmatpush.bf16.msra.mxu0 %v4650
    %4716 = vmatpush.bf16.msra.mxu0 %v4646
    %4717 = vmatpush.bf16.msra.mxu0 %v4642
    %4718 = vmatpush.bf16.msra.mxu0 %v4638
    %4719 = vmatpush.bf16.msra.mxu0 %v4634
    %4720 = vmatpush.bf16.msra.mxu0 %v4630
    %4721 = vmatpush.bf16.msra.mxu0 %v4626
    %4722 = vmatmul.bf16.gmra.mxu0 %v4495
    %v4723 = vpop.f32.mrf.mxu0
    %v4724 = vadd.f32 0.0, %v4723
    %v4725 = vpop.f32.mrf.mxu0
    %4726 = vdwg.mxu0
    %4727 = vmatpush.bf16.msra.mxu0 %v4655
    %4728 = vmatpush.bf16.msra.mxu0 %v4651
    %4729 = vmatpush.bf16.msra.mxu0 %v4647
    %4730 = vmatpush.bf16.msra.mxu0 %v4643
    %4731 = vmatpush.bf16.msra.mxu0 %v4639
    %4732 = vmatpush.bf16.msra.mxu0 %v4635
    %4733 = vmatpush.bf16.msra.mxu0 %v4631
    %4734 = vmatpush.bf16.msra.mxu0 %v4627
    %4735 = vmatmul.bf16.gmra.mxu0 %v4495
    %v4736 = vpop.f32.mrf.mxu0
    %v4737 = vadd.f32 0.0, %v4736
    %v4738 = vpop.f32.mrf.mxu0
    %4739 = vdwg.mxu0
    %v4772 = vunpack.c.l.b16 %v4463
    %v4773 = vunpack.c.h.b16 %v4463
    %v4774 = vunpack.c.l.b16 %v4464
    %v4775 = vunpack.c.h.b16 %v4464
    %v4776 = vunpack.c.l.b16 %v4465
    %v4777 = vunpack.c.h.b16 %v4465
    %v4778 = vunpack.c.l.b16 %v4466
    %v4779 = vunpack.c.h.b16 %v4466
    %v4780 = vunpack.c.l.b16 %v4467
    %v4781 = vunpack.c.h.b16 %v4467
    %v4782 = vunpack.c.l.b16 %v4468
    %v4783 = vunpack.c.h.b16 %v4468
    %v4784 = vunpack.c.l.b16 %v4469
    %v4785 = vunpack.c.h.b16 %v4469
    %v4786 = vunpack.c.l.b16 %v4470
    %v4787 = vunpack.c.h.b16 %v4470
    %v4788 = vunpack.c.l.b16 %v4471
    %v4789 = vunpack.c.h.b16 %v4471
    %v4790 = vunpack.c.l.b16 %v4472
    %v4791 = vunpack.c.h.b16 %v4472
    %v4792 = vunpack.c.l.b16 %v4473
    %v4793 = vunpack.c.h.b16 %v4473
    %v4794 = vunpack.c.l.b16 %v4474
    %v4795 = vunpack.c.h.b16 %v4474
    %v4796 = vunpack.c.l.b16 %v4475
    %v4797 = vunpack.c.h.b16 %v4475
    %v4798 = vunpack.c.l.b16 %v4476
    %v4799 = vunpack.c.h.b16 %v4476
    %v4800 = vunpack.c.l.b16 %v4477
    %v4801 = vunpack.c.h.b16 %v4477
    %v4802 = vunpack.c.l.b16 %v4478
    %v4803 = vunpack.c.h.b16 %v4478
    %v4804 = vunpack.c.l.b16 %v4479
    %v4805 = vunpack.c.h.b16 %v4479
    %v4806 = vunpack.c.l.b16 %v4480
    %v4807 = vunpack.c.h.b16 %v4480
    %v4808 = vunpack.c.l.b16 %v4481
    %v4809 = vunpack.c.h.b16 %v4481
    %v4810 = vunpack.c.l.b16 %v4482
    %v4811 = vunpack.c.h.b16 %v4482
    %v4812 = vunpack.c.l.b16 %v4483
    %v4813 = vunpack.c.h.b16 %v4483
    %v4814 = vunpack.c.l.b16 %v4484
    %v4815 = vunpack.c.h.b16 %v4484
    %v4816 = vunpack.c.l.b16 %v4485
    %v4817 = vunpack.c.h.b16 %v4485
    %v4818 = vunpack.c.l.b16 %v4486
    %v4819 = vunpack.c.h.b16 %v4486
    %v4820 = vunpack.c.l.b16 %v4487
    %v4821 = vunpack.c.h.b16 %v4487
    %v4822 = vunpack.c.l.b16 %v4488
    %v4823 = vunpack.c.h.b16 %v4488
    %v4824 = vunpack.c.l.b16 %v4489
    %v4825 = vunpack.c.h.b16 %v4489
    %v4826 = vunpack.c.l.b16 %v4490
    %v4827 = vunpack.c.h.b16 %v4490
    %v4828 = vunpack.c.l.b16 %v4491
    %v4829 = vunpack.c.h.b16 %v4491
    %v4830 = vunpack.c.l.b16 %v4492
    %v4831 = vunpack.c.h.b16 %v4492
    %v4832 = vunpack.c.l.b16 %v4493
    %v4833 = vunpack.c.h.b16 %v4493
    %v4834 = vunpack.c.l.b16 %v4494
    %v4835 = vunpack.c.h.b16 %v4494
    %v4836 = vpack.c.b16 %v4776, %v4772
    %v4837 = vpack.c.b16 %v4777, %v4773
    %v4838 = vpack.c.b16 %v4778, %v4774
    %v4839 = vpack.c.b16 %v4779, %v4775
    %v4840 = vpack.c.b16 %v4784, %v4780
    %v4841 = vpack.c.b16 %v4785, %v4781
    %v4842 = vpack.c.b16 %v4786, %v4782
    %v4843 = vpack.c.b16 %v4787, %v4783
    %v4844 = vpack.c.b16 %v4792, %v4788
    %v4845 = vpack.c.b16 %v4793, %v4789
    %v4846 = vpack.c.b16 %v4794, %v4790
    %v4847 = vpack.c.b16 %v4795, %v4791
    %v4848 = vpack.c.b16 %v4800, %v4796
    %v4849 = vpack.c.b16 %v4801, %v4797
    %v4850 = vpack.c.b16 %v4802, %v4798
    %v4851 = vpack.c.b16 %v4803, %v4799
    %v4852 = vpack.c.b16 %v4808, %v4804
    %v4853 = vpack.c.b16 %v4809, %v4805
    %v4854 = vpack.c.b16 %v4810, %v4806
    %v4855 = vpack.c.b16 %v4811, %v4807
    %v4856 = vpack.c.b16 %v4816, %v4812
    %v4857 = vpack.c.b16 %v4817, %v4813
    %v4858 = vpack.c.b16 %v4818, %v4814
    %v4859 = vpack.c.b16 %v4819, %v4815
    %v4860 = vpack.c.b16 %v4824, %v4820
    %v4861 = vpack.c.b16 %v4825, %v4821
    %v4862 = vpack.c.b16 %v4826, %v4822
    %v4863 = vpack.c.b16 %v4827, %v4823
    %v4864 = vpack.c.b16 %v4832, %v4828
    %v4865 = vpack.c.b16 %v4833, %v4829
    %v4866 = vpack.c.b16 %v4834, %v4830
    %v4867 = vpack.c.b16 %v4835, %v4831
    %4900 = vmatpush.bf16.msra.mxu0 %v4864
    %4901 = vmatpush.bf16.msra.mxu0 %v4860
    %4902 = vmatpush.bf16.msra.mxu0 %v4856
    %4903 = vmatpush.bf16.msra.mxu0 %v4852
    %4904 = vmatpush.bf16.msra.mxu0 %v4848
    %4905 = vmatpush.bf16.msra.mxu0 %v4844
    %4906 = vmatpush.bf16.msra.mxu0 %v4840
    %4907 = vmatpush.bf16.msra.mxu0 %v4836
    %4908 = vmatmul.bf16.gmra.mxu0 %v4462
    %v4909 = vpop.f32.mrf.mxu0
    %v4910 = vadd.f32 %v4698, %v4909
    %v4911 = vpop.f32.mrf.mxu0
    %4912 = vdwg.mxu0
    %4913 = vmatpush.bf16.msra.mxu0 %v4865
    %4914 = vmatpush.bf16.msra.mxu0 %v4861
    %4915 = vmatpush.bf16.msra.mxu0 %v4857
    %4916 = vmatpush.bf16.msra.mxu0 %v4853
    %4917 = vmatpush.bf16.msra.mxu0 %v4849
    %4918 = vmatpush.bf16.msra.mxu0 %v4845
    %4919 = vmatpush.bf16.msra.mxu0 %v4841
    %4920 = vmatpush.bf16.msra.mxu0 %v4837
    %4921 = vmatmul.bf16.gmra.mxu0 %v4462
    %v4922 = vpop.f32.mrf.mxu0
    %v4923 = vadd.f32 %v4711, %v4922
    %v4924 = vpop.f32.mrf.mxu0
    %4925 = vdwg.mxu0
    %4926 = vmatpush.bf16.msra.mxu0 %v4866
    %4927 = vmatpush.bf16.msra.mxu0 %v4862
    %4928 = vmatpush.bf16.msra.mxu0 %v4858
    %4929 = vmatpush.bf16.msra.mxu0 %v4854
    %4930 = vmatpush.bf16.msra.mxu0 %v4850
    %4931 = vmatpush.bf16.msra.mxu0 %v4846
    %4932 = vmatpush.bf16.msra.mxu0 %v4842
    %4933 = vmatpush.bf16.msra.mxu0 %v4838
    %4934 = vmatmul.bf16.gmra.mxu0 %v4462
    %v4935 = vpop.f32.mrf.mxu0
    %v4936 = vadd.f32 %v4724, %v4935
    %v4937 = vpop.f32.mrf.mxu0
    %4938 = vdwg.mxu0
    %4939 = vmatpush.bf16.msra.mxu0 %v4867
    %4940 = vmatpush.bf16.msra.mxu0 %v4863
    %4941 = vmatpush.bf16.msra.mxu0 %v4859
    %4942 = vmatpush.bf16.msra.mxu0 %v4855
    %4943 = vmatpush.bf16.msra.mxu0 %v4851
    %4944 = vmatpush.bf16.msra.mxu0 %v4847
    %4945 = vmatpush.bf16.msra.mxu0 %v4843
    %4946 = vmatpush.bf16.msra.mxu0 %v4839
    %4947 = vmatmul.bf16.gmra.mxu0 %v4462
    %v4948 = vpop.f32.mrf.mxu0
    %v4949 = vadd.f32 %v4737, %v4948
    %v4950 = vpop.f32.mrf.mxu0
    %4951 = vdwg.mxu0
    %v4952 = vld [vmem:[%s976] sm:$0xf]
    %v4954 = vperm.slane %v4952, 0
    %v4955 = vperm.slane %v4952, 1
    %v4956 = vperm.slane %v4952, 2
    %v4957 = vperm.slane %v4952, 3
    %v4962 = vadd.f32 %v4910, %v4954
    %v4963 = vadd.f32 %v4923, %v4955
    %v4964 = vadd.f32 %v4936, %v4956
    %v4965 = vadd.f32 %v4949, %v4957
    %v4966 = vxor.u32 %v4962, 2147483648
    %v4967 = vmul.f32 %v4966, 1.442695
    %v4968 = vpow.pop %v4967
    %v4969 = vadd.f32 %v4968, 1.0
    %v4970 = vrcp.pop %v4969
    %v4971 = vmul.f32 %v4969, %v4970
    %v4972 = vsub.f32 1.0, %v4971
    %v4973 = vmul.f32 %v4970, %v4972
    %v4974 = vadd.f32 %v4970, %v4973
    %vm4975 = vweird.f32 %v4969
    %vm4976 = vweird.f32 %v4970
    %vm4977 = vmor %vm4975, %vm4976
    %v4978 = vsel %vm4977, %v4970, %v4974
    %v4979 = vand.u32 2147483647, %v4969
    %vm4980 = vcmp.eq.f32.partialorder %v4979, 8.507059e+37
    %v4981 = vand.u32 %v4969, 2147483648
    %v4982 = vor.u32 1.1754944e-38, %v4981
    %v4983 = vsel %vm4980, %v4982, %v4978
    %v4984 = vmul.f32 1.0, %v4983
    %v4985 = vxor.u32 %v4963, 2147483648
    %v4986 = vmul.f32 %v4985, 1.442695
    %v4987 = vpow.pop %v4986
    %v4988 = vadd.f32 %v4987, 1.0
    %v4989 = vrcp.pop %v4988
    %v4990 = vmul.f32 %v4988, %v4989
    %v4991 = vsub.f32 1.0, %v4990
    %v4992 = vmul.f32 %v4989, %v4991
    %v4993 = vadd.f32 %v4989, %v4992
    %vm4994 = vweird.f32 %v4988
    %vm4995 = vweird.f32 %v4989
    %vm4996 = vmor %vm4994, %vm4995
    %v4997 = vsel %vm4996, %v4989, %v4993
    %v4998 = vand.u32 2147483647, %v4988
    %vm4999 = vcmp.eq.f32.partialorder %v4998, 8.507059e+37
    %v5000 = vand.u32 %v4988, 2147483648
    %v5001 = vor.u32 1.1754944e-38, %v5000
    %v5002 = vsel %vm4999, %v5001, %v4997
    %v5003 = vmul.f32 1.0, %v5002
    %v5004 = vtanh.pop %v4964
    %v5005 = vxor.u32 %v4965, 2147483648
    %v5006 = vmul.f32 %v5005, 1.442695
    %v5007 = vpow.pop %v5006
    %v5008 = vadd.f32 %v5007, 1.0
    %v5009 = vrcp.pop %v5008
    %v5010 = vmul.f32 %v5008, %v5009
    %v5011 = vsub.f32 1.0, %v5010
    %v5012 = vmul.f32 %v5009, %v5011
    %v5013 = vadd.f32 %v5009, %v5012
    %vm5014 = vweird.f32 %v5008
    %vm5015 = vweird.f32 %v5009
    %vm5016 = vmor %vm5014, %vm5015
    %v5017 = vsel %vm5016, %v5009, %v5013
    %v5018 = vand.u32 2147483647, %v5008
    %vm5019 = vcmp.eq.f32.partialorder %v5018, 8.507059e+37
    %v5020 = vand.u32 %v5008, 2147483648
    %v5021 = vor.u32 1.1754944e-38, %v5020
    %v5022 = vsel %vm5019, %v5021, %v5017
    %v5023 = vmul.f32 1.0, %v5022
    %v5024 = vmul.f32 %v5003, %v4032
    %v5025 = vmul.f32 %v4984, %v5004
    %v5026 = vadd.f32 %v5024, %v5025
    %v5027 = vtanh.pop %v5026
    %v5028 = vmul.f32 %v5023, %v5027
    %s5029 = scalar_lea.vmem [#allocation2], 8
    %5030 = vst [vmem:[%s5029] sm:$0x3] %v5028
    %s5031 = scalar_lea.vmem %s0, 10
    %v5032 = vld [vmem:[%s5031] sm:$0x3]
    %v5033 = vld [vmem:[%s1] sm:$0xff]
    %v5034 = vld [vmem:[%s1 + $0x8] sm:$0xff]
    %v5035 = vld [vmem:[#allocation6] sm:$0xff]
    %v5036 = vld [vmem:[#allocation6 + $0x8] sm:$0xff]
    %v5037 = vld [vmem:[#allocation6 + $0x10] sm:$0xff]
    %v5038 = vld [vmem:[#allocation6 + $0x18] sm:$0xff]
    %v5039 = vld [vmem:[#allocation6 + $0x20] sm:$0xff]
    %v5040 = vld [vmem:[#allocation6 + $0x28] sm:$0xff]
    %v5041 = vld [vmem:[#allocation6 + $0x30] sm:$0xff]
    %v5042 = vld [vmem:[#allocation6 + $0x38] sm:$0xff]
    %v5043 = vld [vmem:[#allocation6 + $0x40] sm:$0xff]
    %v5044 = vld [vmem:[#allocation6 + $0x48] sm:$0xff]
    %v5045 = vld [vmem:[#allocation6 + $0x50] sm:$0xff]
    %v5046 = vld [vmem:[#allocation6 + $0x58] sm:$0xff]
    %v5047 = vld [vmem:[#allocation6 + $0x60] sm:$0xff]
    %v5048 = vld [vmem:[#allocation6 + $0x68] sm:$0xff]
    %v5049 = vld [vmem:[#allocation6 + $0x70] sm:$0xff]
    %v5050 = vld [vmem:[#allocation6 + $0x78] sm:$0xff]
    %v5051 = vld [vmem:[#allocation6 + $0x80] sm:$0xff]
    %v5052 = vld [vmem:[#allocation6 + $0x88] sm:$0xff]
    %v5053 = vld [vmem:[#allocation6 + $0x90] sm:$0xff]
    %v5054 = vld [vmem:[#allocation6 + $0x98] sm:$0xff]
    %v5055 = vld [vmem:[#allocation6 + $0xa0] sm:$0xff]
    %v5056 = vld [vmem:[#allocation6 + $0xa8] sm:$0xff]
    %v5057 = vld [vmem:[#allocation6 + $0xb0] sm:$0xff]
    %v5058 = vld [vmem:[#allocation6 + $0xb8] sm:$0xff]
    %v5059 = vld [vmem:[#allocation6 + $0xc0] sm:$0xff]
    %v5060 = vld [vmem:[#allocation6 + $0xc8] sm:$0xff]
    %v5061 = vld [vmem:[#allocation6 + $0xd0] sm:$0xff]
    %v5062 = vld [vmem:[#allocation6 + $0xd8] sm:$0xff]
    %v5063 = vld [vmem:[#allocation6 + $0xe0] sm:$0xff]
    %v5064 = vld [vmem:[#allocation6 + $0xe8] sm:$0xff]
    %v5065 = vld [vmem:[#allocation6 + $0xf0] sm:$0xff]
    %v5066 = vld [vmem:[#allocation6 + $0xf8] sm:$0xff]
    %v5099 = vunpack.c.l.b16 %v5035
    %v5100 = vunpack.c.h.b16 %v5035
    %v5101 = vunpack.c.l.b16 %v5036
    %v5102 = vunpack.c.h.b16 %v5036
    %v5103 = vunpack.c.l.b16 %v5037
    %v5104 = vunpack.c.h.b16 %v5037
    %v5105 = vunpack.c.l.b16 %v5038
    %v5106 = vunpack.c.h.b16 %v5038
    %v5107 = vunpack.c.l.b16 %v5039
    %v5108 = vunpack.c.h.b16 %v5039
    %v5109 = vunpack.c.l.b16 %v5040
    %v5110 = vunpack.c.h.b16 %v5040
    %v5111 = vunpack.c.l.b16 %v5041
    %v5112 = vunpack.c.h.b16 %v5041
    %v5113 = vunpack.c.l.b16 %v5042
    %v5114 = vunpack.c.h.b16 %v5042
    %v5115 = vunpack.c.l.b16 %v5043
    %v5116 = vunpack.c.h.b16 %v5043
    %v5117 = vunpack.c.l.b16 %v5044
    %v5118 = vunpack.c.h.b16 %v5044
    %v5119 = vunpack.c.l.b16 %v5045
    %v5120 = vunpack.c.h.b16 %v5045
    %v5121 = vunpack.c.l.b16 %v5046
    %v5122 = vunpack.c.h.b16 %v5046
    %v5123 = vunpack.c.l.b16 %v5047
    %v5124 = vunpack.c.h.b16 %v5047
    %v5125 = vunpack.c.l.b16 %v5048
    %v5126 = vunpack.c.h.b16 %v5048
    %v5127 = vunpack.c.l.b16 %v5049
    %v5128 = vunpack.c.h.b16 %v5049
    %v5129 = vunpack.c.l.b16 %v5050
    %v5130 = vunpack.c.h.b16 %v5050
    %v5131 = vunpack.c.l.b16 %v5051
    %v5132 = vunpack.c.h.b16 %v5051
    %v5133 = vunpack.c.l.b16 %v5052
    %v5134 = vunpack.c.h.b16 %v5052
    %v5135 = vunpack.c.l.b16 %v5053
    %v5136 = vunpack.c.h.b16 %v5053
    %v5137 = vunpack.c.l.b16 %v5054
    %v5138 = vunpack.c.h.b16 %v5054
    %v5139 = vunpack.c.l.b16 %v5055
    %v5140 = vunpack.c.h.b16 %v5055
    %v5141 = vunpack.c.l.b16 %v5056
    %v5142 = vunpack.c.h.b16 %v5056
    %v5143 = vunpack.c.l.b16 %v5057
    %v5144 = vunpack.c.h.b16 %v5057
    %v5145 = vunpack.c.l.b16 %v5058
    %v5146 = vunpack.c.h.b16 %v5058
    %v5147 = vunpack.c.l.b16 %v5059
    %v5148 = vunpack.c.h.b16 %v5059
    %v5149 = vunpack.c.l.b16 %v5060
    %v5150 = vunpack.c.h.b16 %v5060
    %v5151 = vunpack.c.l.b16 %v5061
    %v5152 = vunpack.c.h.b16 %v5061
    %v5153 = vunpack.c.l.b16 %v5062
    %v5154 = vunpack.c.h.b16 %v5062
    %v5155 = vunpack.c.l.b16 %v5063
    %v5156 = vunpack.c.h.b16 %v5063
    %v5157 = vunpack.c.l.b16 %v5064
    %v5158 = vunpack.c.h.b16 %v5064
    %v5159 = vunpack.c.l.b16 %v5065
    %v5160 = vunpack.c.h.b16 %v5065
    %v5161 = vunpack.c.l.b16 %v5066
    %v5162 = vunpack.c.h.b16 %v5066
    %v5163 = vpack.c.b16 %v5103, %v5099
    %v5164 = vpack.c.b16 %v5104, %v5100
    %v5165 = vpack.c.b16 %v5105, %v5101
    %v5166 = vpack.c.b16 %v5106, %v5102
    %v5167 = vpack.c.b16 %v5111, %v5107
    %v5168 = vpack.c.b16 %v5112, %v5108
    %v5169 = vpack.c.b16 %v5113, %v5109
    %v5170 = vpack.c.b16 %v5114, %v5110
    %v5171 = vpack.c.b16 %v5119, %v5115
    %v5172 = vpack.c.b16 %v5120, %v5116
    %v5173 = vpack.c.b16 %v5121, %v5117
    %v5174 = vpack.c.b16 %v5122, %v5118
    %v5175 = vpack.c.b16 %v5127, %v5123
    %v5176 = vpack.c.b16 %v5128, %v5124
    %v5177 = vpack.c.b16 %v5129, %v5125
    %v5178 = vpack.c.b16 %v5130, %v5126
    %v5179 = vpack.c.b16 %v5135, %v5131
    %v5180 = vpack.c.b16 %v5136, %v5132
    %v5181 = vpack.c.b16 %v5137, %v5133
    %v5182 = vpack.c.b16 %v5138, %v5134
    %v5183 = vpack.c.b16 %v5143, %v5139
    %v5184 = vpack.c.b16 %v5144, %v5140
    %v5185 = vpack.c.b16 %v5145, %v5141
    %v5186 = vpack.c.b16 %v5146, %v5142
    %v5187 = vpack.c.b16 %v5151, %v5147
    %v5188 = vpack.c.b16 %v5152, %v5148
    %v5189 = vpack.c.b16 %v5153, %v5149
    %v5190 = vpack.c.b16 %v5154, %v5150
    %v5191 = vpack.c.b16 %v5159, %v5155
    %v5192 = vpack.c.b16 %v5160, %v5156
    %v5193 = vpack.c.b16 %v5161, %v5157
    %v5194 = vpack.c.b16 %v5162, %v5158
    %5227 = vmatpush.bf16.msra.mxu0 %v5191
    %5228 = vmatpush.bf16.msra.mxu0 %v5187
    %5229 = vmatpush.bf16.msra.mxu0 %v5183
    %5230 = vmatpush.bf16.msra.mxu0 %v5179
    %5231 = vmatpush.bf16.msra.mxu0 %v5175
    %5232 = vmatpush.bf16.msra.mxu0 %v5171
    %5233 = vmatpush.bf16.msra.mxu0 %v5167
    %5234 = vmatpush.bf16.msra.mxu0 %v5163
    %5235 = vmatmul.bf16.gmra.mxu0 %v4462
    %v5236 = vpop.f32.mrf.mxu0
    %v5237 = vadd.f32 0.0, %v5236
    %v5238 = vpop.f32.mrf.mxu0
    %5239 = vdwg.mxu0
    %5240 = vmatpush.bf16.msra.mxu0 %v5192
    %5241 = vmatpush.bf16.msra.mxu0 %v5188
    %5242 = vmatpush.bf16.msra.mxu0 %v5184
    %5243 = vmatpush.bf16.msra.mxu0 %v5180
    %5244 = vmatpush.bf16.msra.mxu0 %v5176
    %5245 = vmatpush.bf16.msra.mxu0 %v5172
    %5246 = vmatpush.bf16.msra.mxu0 %v5168
    %5247 = vmatpush.bf16.msra.mxu0 %v5164
    %5248 = vmatmul.bf16.gmra.mxu0 %v4462
    %v5249 = vpop.f32.mrf.mxu0
    %v5250 = vadd.f32 0.0, %v5249
    %v5251 = vpop.f32.mrf.mxu0
    %5252 = vdwg.mxu0
    %5253 = vmatpush.bf16.msra.mxu0 %v5193
    %5254 = vmatpush.bf16.msra.mxu0 %v5189
    %5255 = vmatpush.bf16.msra.mxu0 %v5185
    %5256 = vmatpush.bf16.msra.mxu0 %v5181
    %5257 = vmatpush.bf16.msra.mxu0 %v5177
    %5258 = vmatpush.bf16.msra.mxu0 %v5173
    %5259 = vmatpush.bf16.msra.mxu0 %v5169
    %5260 = vmatpush.bf16.msra.mxu0 %v5165
    %5261 = vmatmul.bf16.gmra.mxu0 %v4462
    %v5262 = vpop.f32.mrf.mxu0
    %v5263 = vadd.f32 0.0, %v5262
    %v5264 = vpop.f32.mrf.mxu0
    %5265 = vdwg.mxu0
    %5266 = vmatpush.bf16.msra.mxu0 %v5194
    %5267 = vmatpush.bf16.msra.mxu0 %v5190
    %5268 = vmatpush.bf16.msra.mxu0 %v5186
    %5269 = vmatpush.bf16.msra.mxu0 %v5182
    %5270 = vmatpush.bf16.msra.mxu0 %v5178
    %5271 = vmatpush.bf16.msra.mxu0 %v5174
    %5272 = vmatpush.bf16.msra.mxu0 %v5170
    %5273 = vmatpush.bf16.msra.mxu0 %v5166
    %5274 = vmatmul.bf16.gmra.mxu0 %v4462
    %v5275 = vpop.f32.mrf.mxu0
    %v5276 = vadd.f32 0.0, %v5275
    %v5277 = vpop.f32.mrf.mxu0
    %5278 = vdwg.mxu0
    %5281 = vst [vmem:[#allocation1] ss:$2 sm:$0xff] %v5033
    %s5282 = scalar_lea.vmem [#allocation1], 16
    %5283 = vst [vmem:[%s5282] ss:$2 sm:$0xff] %v5034
    %v5284 = vld.sshfl [vmem:[#allocation1] sm:$0xff pattern:$0x75316420]
    %v5285 = vld.sshfl [vmem:[#allocation1 + $0x8] sm:$0xff pattern:$0x75316420]
    %v5286 = vld.sshfl [vmem:[#allocation1 + $0x10] sm:$0xff pattern:$0x75316420]
    %v5287 = vld.sshfl [vmem:[#allocation1 + $0x18] sm:$0xff pattern:$0x75316420]
    %v5289 = vsel %vm316, %v5032, 0
    %v5291 = vsel %vm320, %v5284, 0
    %v5293 = vsel %vm320, %v5285, 0
    %v5295 = vsel %vm320, %v5286, 0
    %v5297 = vsel %vm320, %v5287, 0
    %5299 = vmatpush.msra.mxu0 0.0
    %5300 = vmatpush.msra.mxu0 0.0
    %5301 = vmatpush.msra.mxu0 0.0
    %5302 = vmatpush.msra.mxu0 0.0
    %5303 = vmatpush.msra.mxu0 0.0
    %5304 = vmatpush.msra.mxu0 0.0
    %5305 = vmatpush.msra.mxu0 0.0
    %5306 = vmatpush.msra.mxu0 0.0
    %5307 = vmatpush.msra.mxu0 0.0
    %5308 = vmatpush.msra.mxu0 0.0
    %5309 = vmatpush.msra.mxu0 0.0
    %5310 = vmatpush.msra.mxu0 0.0
    %5311 = vmatpush.msra.mxu0 0.0
    %5312 = vmatpush.msra.mxu0 0.0
    %5313 = vmatpush.msra.mxu0 0.0
    %5314 = vmatpush.msra.mxu0 %v5291
    %5315 = vmatmul.f32.gmra.mxu0 %v5289
    %v5316 = vpop.f32.mrf.mxu0
    %v5317 = vadd.f32 %v5237, %v5316
    %5318 = vdwg.mxu0
    %5319 = vmatpush.msra.mxu0 0.0
    %5320 = vmatpush.msra.mxu0 0.0
    %5321 = vmatpush.msra.mxu0 0.0
    %5322 = vmatpush.msra.mxu0 0.0
    %5323 = vmatpush.msra.mxu0 0.0
    %5324 = vmatpush.msra.mxu0 0.0
    %5325 = vmatpush.msra.mxu0 0.0
    %5326 = vmatpush.msra.mxu0 0.0
    %5327 = vmatpush.msra.mxu0 0.0
    %5328 = vmatpush.msra.mxu0 0.0
    %5329 = vmatpush.msra.mxu0 0.0
    %5330 = vmatpush.msra.mxu0 0.0
    %5331 = vmatpush.msra.mxu0 0.0
    %5332 = vmatpush.msra.mxu0 0.0
    %5333 = vmatpush.msra.mxu0 0.0
    %5334 = vmatpush.msra.mxu0 %v5293
    %5335 = vmatmul.f32.gmra.mxu0 %v5289
    %v5336 = vpop.f32.mrf.mxu0
    %v5337 = vadd.f32 %v5250, %v5336
    %5338 = vdwg.mxu0
    %5339 = vmatpush.msra.mxu0 0.0
    %5340 = vmatpush.msra.mxu0 0.0
    %5341 = vmatpush.msra.mxu0 0.0
    %5342 = vmatpush.msra.mxu0 0.0
    %5343 = vmatpush.msra.mxu0 0.0
    %5344 = vmatpush.msra.mxu0 0.0
    %5345 = vmatpush.msra.mxu0 0.0
    %5346 = vmatpush.msra.mxu0 0.0
    %5347 = vmatpush.msra.mxu0 0.0
    %5348 = vmatpush.msra.mxu0 0.0
    %5349 = vmatpush.msra.mxu0 0.0
    %5350 = vmatpush.msra.mxu0 0.0
    %5351 = vmatpush.msra.mxu0 0.0
    %5352 = vmatpush.msra.mxu0 0.0
    %5353 = vmatpush.msra.mxu0 0.0
    %5354 = vmatpush.msra.mxu0 %v5295
    %5355 = vmatmul.f32.gmra.mxu0 %v5289
    %v5356 = vpop.f32.mrf.mxu0
    %v5357 = vadd.f32 %v5263, %v5356
    %5358 = vdwg.mxu0
    %5359 = vmatpush.msra.mxu0 0.0
    %5360 = vmatpush.msra.mxu0 0.0
    %5361 = vmatpush.msra.mxu0 0.0
    %5362 = vmatpush.msra.mxu0 0.0
    %5363 = vmatpush.msra.mxu0 0.0
    %5364 = vmatpush.msra.mxu0 0.0
    %5365 = vmatpush.msra.mxu0 0.0
    %5366 = vmatpush.msra.mxu0 0.0
    %5367 = vmatpush.msra.mxu0 0.0
    %5368 = vmatpush.msra.mxu0 0.0
    %5369 = vmatpush.msra.mxu0 0.0
    %5370 = vmatpush.msra.mxu0 0.0
    %5371 = vmatpush.msra.mxu0 0.0
    %5372 = vmatpush.msra.mxu0 0.0
    %5373 = vmatpush.msra.mxu0 0.0
    %5374 = vmatpush.msra.mxu0 %v5297
    %5375 = vmatmul.f32.gmra.mxu0 %v5289
    %v5376 = vpop.f32.mrf.mxu0
    %v5377 = vadd.f32 %v5276, %v5376
    %5378 = vdwg.mxu0
    %v5379 = vld [vmem:[%s4] sm:$0xf]
    %v5381 = vperm.slane %v5379, 0
    %v5382 = vperm.slane %v5379, 1
    %v5383 = vperm.slane %v5379, 2
    %v5384 = vperm.slane %v5379, 3
    %v5389 = vadd.f32 %v5317, %v5381
    %v5390 = vadd.f32 %v5337, %v5382
    %v5391 = vadd.f32 %v5357, %v5383
    %v5392 = vadd.f32 %v5377, %v5384
    %v5393 = vxor.u32 %v5389, 2147483648
    %v5394 = vmul.f32 %v5393, 1.442695
    %v5395 = vpow.pop %v5394
    %v5396 = vadd.f32 %v5395, 1.0
    %v5397 = vrcp.pop %v5396
    %v5398 = vmul.f32 %v5396, %v5397
    %v5399 = vsub.f32 1.0, %v5398
    %v5400 = vmul.f32 %v5397, %v5399
    %v5401 = vadd.f32 %v5397, %v5400
    %vm5402 = vweird.f32 %v5396
    %vm5403 = vweird.f32 %v5397
    %vm5404 = vmor %vm5402, %vm5403
    %v5405 = vsel %vm5404, %v5397, %v5401
    %v5406 = vand.u32 2147483647, %v5396
    %vm5407 = vcmp.eq.f32.partialorder %v5406, 8.507059e+37
    %v5408 = vand.u32 %v5396, 2147483648
    %v5409 = vor.u32 1.1754944e-38, %v5408
    %v5410 = vsel %vm5407, %v5409, %v5405
    %v5411 = vmul.f32 1.0, %v5410
    %v5412 = vxor.u32 %v5390, 2147483648
    %v5413 = vmul.f32 %v5412, 1.442695
    %v5414 = vpow.pop %v5413
    %v5415 = vadd.f32 %v5414, 1.0
    %v5416 = vrcp.pop %v5415
    %v5417 = vmul.f32 %v5415, %v5416
    %v5418 = vsub.f32 1.0, %v5417
    %v5419 = vmul.f32 %v5416, %v5418
    %v5420 = vadd.f32 %v5416, %v5419
    %vm5421 = vweird.f32 %v5415
    %vm5422 = vweird.f32 %v5416
    %vm5423 = vmor %vm5421, %vm5422
    %v5424 = vsel %vm5423, %v5416, %v5420
    %v5425 = vand.u32 2147483647, %v5415
    %vm5426 = vcmp.eq.f32.partialorder %v5425, 8.507059e+37
    %v5427 = vand.u32 %v5415, 2147483648
    %v5428 = vor.u32 1.1754944e-38, %v5427
    %v5429 = vsel %vm5426, %v5428, %v5424
    %v5430 = vmul.f32 1.0, %v5429
    %v5431 = vtanh.pop %v5391
    %v5432 = vxor.u32 %v5392, 2147483648
    %v5433 = vmul.f32 %v5432, 1.442695
    %v5434 = vpow.pop %v5433
    %v5435 = vadd.f32 %v5434, 1.0
    %v5436 = vrcp.pop %v5435
    %v5437 = vmul.f32 %v5435, %v5436
    %v5438 = vsub.f32 1.0, %v5437
    %v5439 = vmul.f32 %v5436, %v5438
    %v5440 = vadd.f32 %v5436, %v5439
    %vm5441 = vweird.f32 %v5435
    %vm5442 = vweird.f32 %v5436
    %vm5443 = vmor %vm5441, %vm5442
    %v5444 = vsel %vm5443, %v5436, %v5440
    %v5445 = vand.u32 2147483647, %v5435
    %vm5446 = vcmp.eq.f32.partialorder %v5445, 8.507059e+37
    %v5447 = vand.u32 %v5435, 2147483648
    %v5448 = vor.u32 1.1754944e-38, %v5447
    %v5449 = vsel %vm5446, %v5448, %v5444
    %v5450 = vmul.f32 1.0, %v5449
    %v5451 = vmul.f32 %v5430, %v4459
    %v5452 = vmul.f32 %v5411, %v5431
    %v5453 = vadd.f32 %v5451, %v5452
    %v5454 = vtanh.pop %v5453
    %v5455 = vmul.f32 %v5450, %v5454
    %v5456 = vpack.c.bf16 %v5455, %v5455
    %v5457 = vld [vmem:[#allocation4] sm:$0xff]
    %v5458 = vld [vmem:[#allocation4 + $0x8] sm:$0xff]
    %v5459 = vld [vmem:[#allocation4 + $0x10] sm:$0xff]
    %v5460 = vld [vmem:[#allocation4 + $0x18] sm:$0xff]
    %v5461 = vld [vmem:[#allocation4 + $0x20] sm:$0xff]
    %v5462 = vld [vmem:[#allocation4 + $0x28] sm:$0xff]
    %v5463 = vld [vmem:[#allocation4 + $0x30] sm:$0xff]
    %v5464 = vld [vmem:[#allocation4 + $0x38] sm:$0xff]
    %v5465 = vld [vmem:[#allocation4 + $0x40] sm:$0xff]
    %v5466 = vld [vmem:[#allocation4 + $0x48] sm:$0xff]
    %v5467 = vld [vmem:[#allocation4 + $0x50] sm:$0xff]
    %v5468 = vld [vmem:[#allocation4 + $0x58] sm:$0xff]
    %v5469 = vld [vmem:[#allocation4 + $0x60] sm:$0xff]
    %v5470 = vld [vmem:[#allocation4 + $0x68] sm:$0xff]
    %v5471 = vld [vmem:[#allocation4 + $0x70] sm:$0xff]
    %v5472 = vld [vmem:[#allocation4 + $0x78] sm:$0xff]
    %v5473 = vld [vmem:[#allocation4 + $0x80] sm:$0xff]
    %v5474 = vld [vmem:[#allocation4 + $0x88] sm:$0xff]
    %v5475 = vld [vmem:[#allocation4 + $0x90] sm:$0xff]
    %v5476 = vld [vmem:[#allocation4 + $0x98] sm:$0xff]
    %v5477 = vld [vmem:[#allocation4 + $0xa0] sm:$0xff]
    %v5478 = vld [vmem:[#allocation4 + $0xa8] sm:$0xff]
    %v5479 = vld [vmem:[#allocation4 + $0xb0] sm:$0xff]
    %v5480 = vld [vmem:[#allocation4 + $0xb8] sm:$0xff]
    %v5481 = vld [vmem:[#allocation4 + $0xc0] sm:$0xff]
    %v5482 = vld [vmem:[#allocation4 + $0xc8] sm:$0xff]
    %v5483 = vld [vmem:[#allocation4 + $0xd0] sm:$0xff]
    %v5484 = vld [vmem:[#allocation4 + $0xd8] sm:$0xff]
    %v5485 = vld [vmem:[#allocation4 + $0xe0] sm:$0xff]
    %v5486 = vld [vmem:[#allocation4 + $0xe8] sm:$0xff]
    %v5487 = vld [vmem:[#allocation4 + $0xf0] sm:$0xff]
    %v5488 = vld [vmem:[#allocation4 + $0xf8] sm:$0xff]
    %v5489 = vpack.c.bf16 %v5028, %v5028
    %v5490 = vld [vmem:[%s519] sm:$0xff]
    %v5491 = vld [vmem:[%s519 + $0x8] sm:$0xff]
    %v5492 = vld [vmem:[%s519 + $0x10] sm:$0xff]
    %v5493 = vld [vmem:[%s519 + $0x18] sm:$0xff]
    %v5494 = vld [vmem:[%s519 + $0x20] sm:$0xff]
    %v5495 = vld [vmem:[%s519 + $0x28] sm:$0xff]
    %v5496 = vld [vmem:[%s519 + $0x30] sm:$0xff]
    %v5497 = vld [vmem:[%s519 + $0x38] sm:$0xff]
    %v5498 = vld [vmem:[%s519 + $0x40] sm:$0xff]
    %v5499 = vld [vmem:[%s519 + $0x48] sm:$0xff]
    %v5500 = vld [vmem:[%s519 + $0x50] sm:$0xff]
    %v5501 = vld [vmem:[%s519 + $0x58] sm:$0xff]
    %v5502 = vld [vmem:[%s519 + $0x60] sm:$0xff]
    %v5503 = vld [vmem:[%s519 + $0x68] sm:$0xff]
    %v5504 = vld [vmem:[%s519 + $0x70] sm:$0xff]
    %v5505 = vld [vmem:[%s519 + $0x78] sm:$0xff]
    %v5506 = vld [vmem:[%s519 + $0x80] sm:$0xff]
    %v5507 = vld [vmem:[%s519 + $0x88] sm:$0xff]
    %v5508 = vld [vmem:[%s519 + $0x90] sm:$0xff]
    %v5509 = vld [vmem:[%s519 + $0x98] sm:$0xff]
    %v5510 = vld [vmem:[%s519 + $0xa0] sm:$0xff]
    %v5511 = vld [vmem:[%s519 + $0xa8] sm:$0xff]
    %v5512 = vld [vmem:[%s519 + $0xb0] sm:$0xff]
    %v5513 = vld [vmem:[%s519 + $0xb8] sm:$0xff]
    %v5514 = vld [vmem:[%s519 + $0xc0] sm:$0xff]
    %v5515 = vld [vmem:[%s519 + $0xc8] sm:$0xff]
    %v5516 = vld [vmem:[%s519 + $0xd0] sm:$0xff]
    %v5517 = vld [vmem:[%s519 + $0xd8] sm:$0xff]
    %v5518 = vld [vmem:[%s519 + $0xe0] sm:$0xff]
    %v5519 = vld [vmem:[%s519 + $0xe8] sm:$0xff]
    %v5520 = vld [vmem:[%s519 + $0xf0] sm:$0xff]
    %v5521 = vld [vmem:[%s519 + $0xf8] sm:$0xff]
    %v5554 = vunpack.c.l.b16 %v5490
    %v5555 = vunpack.c.h.b16 %v5490
    %v5556 = vunpack.c.l.b16 %v5491
    %v5557 = vunpack.c.h.b16 %v5491
    %v5558 = vunpack.c.l.b16 %v5492
    %v5559 = vunpack.c.h.b16 %v5492
    %v5560 = vunpack.c.l.b16 %v5493
    %v5561 = vunpack.c.h.b16 %v5493
    %v5562 = vunpack.c.l.b16 %v5494
    %v5563 = vunpack.c.h.b16 %v5494
    %v5564 = vunpack.c.l.b16 %v5495
    %v5565 = vunpack.c.h.b16 %v5495
    %v5566 = vunpack.c.l.b16 %v5496
    %v5567 = vunpack.c.h.b16 %v5496
    %v5568 = vunpack.c.l.b16 %v5497
    %v5569 = vunpack.c.h.b16 %v5497
    %v5570 = vunpack.c.l.b16 %v5498
    %v5571 = vunpack.c.h.b16 %v5498
    %v5572 = vunpack.c.l.b16 %v5499
    %v5573 = vunpack.c.h.b16 %v5499
    %v5574 = vunpack.c.l.b16 %v5500
    %v5575 = vunpack.c.h.b16 %v5500
    %v5576 = vunpack.c.l.b16 %v5501
    %v5577 = vunpack.c.h.b16 %v5501
    %v5578 = vunpack.c.l.b16 %v5502
    %v5579 = vunpack.c.h.b16 %v5502
    %v5580 = vunpack.c.l.b16 %v5503
    %v5581 = vunpack.c.h.b16 %v5503
    %v5582 = vunpack.c.l.b16 %v5504
    %v5583 = vunpack.c.h.b16 %v5504
    %v5584 = vunpack.c.l.b16 %v5505
    %v5585 = vunpack.c.h.b16 %v5505
    %v5586 = vunpack.c.l.b16 %v5506
    %v5587 = vunpack.c.h.b16 %v5506
    %v5588 = vunpack.c.l.b16 %v5507
    %v5589 = vunpack.c.h.b16 %v5507
    %v5590 = vunpack.c.l.b16 %v5508
    %v5591 = vunpack.c.h.b16 %v5508
    %v5592 = vunpack.c.l.b16 %v5509
    %v5593 = vunpack.c.h.b16 %v5509
    %v5594 = vunpack.c.l.b16 %v5510
    %v5595 = vunpack.c.h.b16 %v5510
    %v5596 = vunpack.c.l.b16 %v5511
    %v5597 = vunpack.c.h.b16 %v5511
    %v5598 = vunpack.c.l.b16 %v5512
    %v5599 = vunpack.c.h.b16 %v5512
    %v5600 = vunpack.c.l.b16 %v5513
    %v5601 = vunpack.c.h.b16 %v5513
    %v5602 = vunpack.c.l.b16 %v5514
    %v5603 = vunpack.c.h.b16 %v5514
    %v5604 = vunpack.c.l.b16 %v5515
    %v5605 = vunpack.c.h.b16 %v5515
    %v5606 = vunpack.c.l.b16 %v5516
    %v5607 = vunpack.c.h.b16 %v5516
    %v5608 = vunpack.c.l.b16 %v5517
    %v5609 = vunpack.c.h.b16 %v5517
    %v5610 = vunpack.c.l.b16 %v5518
    %v5611 = vunpack.c.h.b16 %v5518
    %v5612 = vunpack.c.l.b16 %v5519
    %v5613 = vunpack.c.h.b16 %v5519
    %v5614 = vunpack.c.l.b16 %v5520
    %v5615 = vunpack.c.h.b16 %v5520
    %v5616 = vunpack.c.l.b16 %v5521
    %v5617 = vunpack.c.h.b16 %v5521
    %v5618 = vpack.c.b16 %v5558, %v5554
    %v5619 = vpack.c.b16 %v5559, %v5555
    %v5620 = vpack.c.b16 %v5560, %v5556
    %v5621 = vpack.c.b16 %v5561, %v5557
    %v5622 = vpack.c.b16 %v5566, %v5562
    %v5623 = vpack.c.b16 %v5567, %v5563
    %v5624 = vpack.c.b16 %v5568, %v5564
    %v5625 = vpack.c.b16 %v5569, %v5565
    %v5626 = vpack.c.b16 %v5574, %v5570
    %v5627 = vpack.c.b16 %v5575, %v5571
    %v5628 = vpack.c.b16 %v5576, %v5572
    %v5629 = vpack.c.b16 %v5577, %v5573
    %v5630 = vpack.c.b16 %v5582, %v5578
    %v5631 = vpack.c.b16 %v5583, %v5579
    %v5632 = vpack.c.b16 %v5584, %v5580
    %v5633 = vpack.c.b16 %v5585, %v5581
    %v5634 = vpack.c.b16 %v5590, %v5586
    %v5635 = vpack.c.b16 %v5591, %v5587
    %v5636 = vpack.c.b16 %v5592, %v5588
    %v5637 = vpack.c.b16 %v5593, %v5589
    %v5638 = vpack.c.b16 %v5598, %v5594
    %v5639 = vpack.c.b16 %v5599, %v5595
    %v5640 = vpack.c.b16 %v5600, %v5596
    %v5641 = vpack.c.b16 %v5601, %v5597
    %v5642 = vpack.c.b16 %v5606, %v5602
    %v5643 = vpack.c.b16 %v5607, %v5603
    %v5644 = vpack.c.b16 %v5608, %v5604
    %v5645 = vpack.c.b16 %v5609, %v5605
    %v5646 = vpack.c.b16 %v5614, %v5610
    %v5647 = vpack.c.b16 %v5615, %v5611
    %v5648 = vpack.c.b16 %v5616, %v5612
    %v5649 = vpack.c.b16 %v5617, %v5613
    %5682 = vmatpush.bf16.msra.mxu0 %v5646
    %5683 = vmatpush.bf16.msra.mxu0 %v5642
    %5684 = vmatpush.bf16.msra.mxu0 %v5638
    %5685 = vmatpush.bf16.msra.mxu0 %v5634
    %5686 = vmatpush.bf16.msra.mxu0 %v5630
    %5687 = vmatpush.bf16.msra.mxu0 %v5626
    %5688 = vmatpush.bf16.msra.mxu0 %v5622
    %5689 = vmatpush.bf16.msra.mxu0 %v5618
    %5690 = vmatmul.bf16.gmra.mxu0 %v5489
    %v5691 = vpop.f32.mrf.mxu0
    %v5692 = vadd.f32 0.0, %v5691
    %v5693 = vpop.f32.mrf.mxu0
    %5694 = vdwg.mxu0
    %5695 = vmatpush.bf16.msra.mxu0 %v5647
    %5696 = vmatpush.bf16.msra.mxu0 %v5643
    %5697 = vmatpush.bf16.msra.mxu0 %v5639
    %5698 = vmatpush.bf16.msra.mxu0 %v5635
    %5699 = vmatpush.bf16.msra.mxu0 %v5631
    %5700 = vmatpush.bf16.msra.mxu0 %v5627
    %5701 = vmatpush.bf16.msra.mxu0 %v5623
    %5702 = vmatpush.bf16.msra.mxu0 %v5619
    %5703 = vmatmul.bf16.gmra.mxu0 %v5489
    %v5704 = vpop.f32.mrf.mxu0
    %v5705 = vadd.f32 0.0, %v5704
    %v5706 = vpop.f32.mrf.mxu0
    %5707 = vdwg.mxu0
    %5708 = vmatpush.bf16.msra.mxu0 %v5648
    %5709 = vmatpush.bf16.msra.mxu0 %v5644
    %5710 = vmatpush.bf16.msra.mxu0 %v5640
    %5711 = vmatpush.bf16.msra.mxu0 %v5636
    %5712 = vmatpush.bf16.msra.mxu0 %v5632
    %5713 = vmatpush.bf16.msra.mxu0 %v5628
    %5714 = vmatpush.bf16.msra.mxu0 %v5624
    %5715 = vmatpush.bf16.msra.mxu0 %v5620
    %5716 = vmatmul.bf16.gmra.mxu0 %v5489
    %v5717 = vpop.f32.mrf.mxu0
    %v5718 = vadd.f32 0.0, %v5717
    %v5719 = vpop.f32.mrf.mxu0
    %5720 = vdwg.mxu0
    %5721 = vmatpush.bf16.msra.mxu0 %v5649
    %5722 = vmatpush.bf16.msra.mxu0 %v5645
    %5723 = vmatpush.bf16.msra.mxu0 %v5641
    %5724 = vmatpush.bf16.msra.mxu0 %v5637
    %5725 = vmatpush.bf16.msra.mxu0 %v5633
    %5726 = vmatpush.bf16.msra.mxu0 %v5629
    %5727 = vmatpush.bf16.msra.mxu0 %v5625
    %5728 = vmatpush.bf16.msra.mxu0 %v5621
    %5729 = vmatmul.bf16.gmra.mxu0 %v5489
    %v5730 = vpop.f32.mrf.mxu0
    %v5731 = vadd.f32 0.0, %v5730
    %v5732 = vpop.f32.mrf.mxu0
    %5733 = vdwg.mxu0
    %v5766 = vunpack.c.l.b16 %v5457
    %v5767 = vunpack.c.h.b16 %v5457
    %v5768 = vunpack.c.l.b16 %v5458
    %v5769 = vunpack.c.h.b16 %v5458
    %v5770 = vunpack.c.l.b16 %v5459
    %v5771 = vunpack.c.h.b16 %v5459
    %v5772 = vunpack.c.l.b16 %v5460
    %v5773 = vunpack.c.h.b16 %v5460
    %v5774 = vunpack.c.l.b16 %v5461
    %v5775 = vunpack.c.h.b16 %v5461
    %v5776 = vunpack.c.l.b16 %v5462
    %v5777 = vunpack.c.h.b16 %v5462
    %v5778 = vunpack.c.l.b16 %v5463
    %v5779 = vunpack.c.h.b16 %v5463
    %v5780 = vunpack.c.l.b16 %v5464
    %v5781 = vunpack.c.h.b16 %v5464
    %v5782 = vunpack.c.l.b16 %v5465
    %v5783 = vunpack.c.h.b16 %v5465
    %v5784 = vunpack.c.l.b16 %v5466
    %v5785 = vunpack.c.h.b16 %v5466
    %v5786 = vunpack.c.l.b16 %v5467
    %v5787 = vunpack.c.h.b16 %v5467
    %v5788 = vunpack.c.l.b16 %v5468
    %v5789 = vunpack.c.h.b16 %v5468
    %v5790 = vunpack.c.l.b16 %v5469
    %v5791 = vunpack.c.h.b16 %v5469
    %v5792 = vunpack.c.l.b16 %v5470
    %v5793 = vunpack.c.h.b16 %v5470
    %v5794 = vunpack.c.l.b16 %v5471
    %v5795 = vunpack.c.h.b16 %v5471
    %v5796 = vunpack.c.l.b16 %v5472
    %v5797 = vunpack.c.h.b16 %v5472
    %v5798 = vunpack.c.l.b16 %v5473
    %v5799 = vunpack.c.h.b16 %v5473
    %v5800 = vunpack.c.l.b16 %v5474
    %v5801 = vunpack.c.h.b16 %v5474
    %v5802 = vunpack.c.l.b16 %v5475
    %v5803 = vunpack.c.h.b16 %v5475
    %v5804 = vunpack.c.l.b16 %v5476
    %v5805 = vunpack.c.h.b16 %v5476
    %v5806 = vunpack.c.l.b16 %v5477
    %v5807 = vunpack.c.h.b16 %v5477
    %v5808 = vunpack.c.l.b16 %v5478
    %v5809 = vunpack.c.h.b16 %v5478
    %v5810 = vunpack.c.l.b16 %v5479
    %v5811 = vunpack.c.h.b16 %v5479
    %v5812 = vunpack.c.l.b16 %v5480
    %v5813 = vunpack.c.h.b16 %v5480
    %v5814 = vunpack.c.l.b16 %v5481
    %v5815 = vunpack.c.h.b16 %v5481
    %v5816 = vunpack.c.l.b16 %v5482
    %v5817 = vunpack.c.h.b16 %v5482
    %v5818 = vunpack.c.l.b16 %v5483
    %v5819 = vunpack.c.h.b16 %v5483
    %v5820 = vunpack.c.l.b16 %v5484
    %v5821 = vunpack.c.h.b16 %v5484
    %v5822 = vunpack.c.l.b16 %v5485
    %v5823 = vunpack.c.h.b16 %v5485
    %v5824 = vunpack.c.l.b16 %v5486
    %v5825 = vunpack.c.h.b16 %v5486
    %v5826 = vunpack.c.l.b16 %v5487
    %v5827 = vunpack.c.h.b16 %v5487
    %v5828 = vunpack.c.l.b16 %v5488
    %v5829 = vunpack.c.h.b16 %v5488
    %v5830 = vpack.c.b16 %v5770, %v5766
    %v5831 = vpack.c.b16 %v5771, %v5767
    %v5832 = vpack.c.b16 %v5772, %v5768
    %v5833 = vpack.c.b16 %v5773, %v5769
    %v5834 = vpack.c.b16 %v5778, %v5774
    %v5835 = vpack.c.b16 %v5779, %v5775
    %v5836 = vpack.c.b16 %v5780, %v5776
    %v5837 = vpack.c.b16 %v5781, %v5777
    %v5838 = vpack.c.b16 %v5786, %v5782
    %v5839 = vpack.c.b16 %v5787, %v5783
    %v5840 = vpack.c.b16 %v5788, %v5784
    %v5841 = vpack.c.b16 %v5789, %v5785
    %v5842 = vpack.c.b16 %v5794, %v5790
    %v5843 = vpack.c.b16 %v5795, %v5791
    %v5844 = vpack.c.b16 %v5796, %v5792
    %v5845 = vpack.c.b16 %v5797, %v5793
    %v5846 = vpack.c.b16 %v5802, %v5798
    %v5847 = vpack.c.b16 %v5803, %v5799
    %v5848 = vpack.c.b16 %v5804, %v5800
    %v5849 = vpack.c.b16 %v5805, %v5801
    %v5850 = vpack.c.b16 %v5810, %v5806
    %v5851 = vpack.c.b16 %v5811, %v5807
    %v5852 = vpack.c.b16 %v5812, %v5808
    %v5853 = vpack.c.b16 %v5813, %v5809
    %v5854 = vpack.c.b16 %v5818, %v5814
    %v5855 = vpack.c.b16 %v5819, %v5815
    %v5856 = vpack.c.b16 %v5820, %v5816
    %v5857 = vpack.c.b16 %v5821, %v5817
    %v5858 = vpack.c.b16 %v5826, %v5822
    %v5859 = vpack.c.b16 %v5827, %v5823
    %v5860 = vpack.c.b16 %v5828, %v5824
    %v5861 = vpack.c.b16 %v5829, %v5825
    %5894 = vmatpush.bf16.msra.mxu0 %v5858
    %5895 = vmatpush.bf16.msra.mxu0 %v5854
    %5896 = vmatpush.bf16.msra.mxu0 %v5850
    %5897 = vmatpush.bf16.msra.mxu0 %v5846
    %5898 = vmatpush.bf16.msra.mxu0 %v5842
    %5899 = vmatpush.bf16.msra.mxu0 %v5838
    %5900 = vmatpush.bf16.msra.mxu0 %v5834
    %5901 = vmatpush.bf16.msra.mxu0 %v5830
    %5902 = vmatmul.bf16.gmra.mxu0 %v5456
    %v5903 = vpop.f32.mrf.mxu0
    %v5904 = vadd.f32 %v5692, %v5903
    %v5905 = vpop.f32.mrf.mxu0
    %5906 = vdwg.mxu0
    %5907 = vmatpush.bf16.msra.mxu0 %v5859
    %5908 = vmatpush.bf16.msra.mxu0 %v5855
    %5909 = vmatpush.bf16.msra.mxu0 %v5851
    %5910 = vmatpush.bf16.msra.mxu0 %v5847
    %5911 = vmatpush.bf16.msra.mxu0 %v5843
    %5912 = vmatpush.bf16.msra.mxu0 %v5839
    %5913 = vmatpush.bf16.msra.mxu0 %v5835
    %5914 = vmatpush.bf16.msra.mxu0 %v5831
    %5915 = vmatmul.bf16.gmra.mxu0 %v5456
    %v5916 = vpop.f32.mrf.mxu0
    %v5917 = vadd.f32 %v5705, %v5916
    %v5918 = vpop.f32.mrf.mxu0
    %5919 = vdwg.mxu0
    %5920 = vmatpush.bf16.msra.mxu0 %v5860
    %5921 = vmatpush.bf16.msra.mxu0 %v5856
    %5922 = vmatpush.bf16.msra.mxu0 %v5852
    %5923 = vmatpush.bf16.msra.mxu0 %v5848
    %5924 = vmatpush.bf16.msra.mxu0 %v5844
    %5925 = vmatpush.bf16.msra.mxu0 %v5840
    %5926 = vmatpush.bf16.msra.mxu0 %v5836
    %5927 = vmatpush.bf16.msra.mxu0 %v5832
    %5928 = vmatmul.bf16.gmra.mxu0 %v5456
    %v5929 = vpop.f32.mrf.mxu0
    %v5930 = vadd.f32 %v5718, %v5929
    %v5931 = vpop.f32.mrf.mxu0
    %5932 = vdwg.mxu0
    %5933 = vmatpush.bf16.msra.mxu0 %v5861
    %5934 = vmatpush.bf16.msra.mxu0 %v5857
    %5935 = vmatpush.bf16.msra.mxu0 %v5853
    %5936 = vmatpush.bf16.msra.mxu0 %v5849
    %5937 = vmatpush.bf16.msra.mxu0 %v5845
    %5938 = vmatpush.bf16.msra.mxu0 %v5841
    %5939 = vmatpush.bf16.msra.mxu0 %v5837
    %5940 = vmatpush.bf16.msra.mxu0 %v5833
    %5941 = vmatmul.bf16.gmra.mxu0 %v5456
    %v5942 = vpop.f32.mrf.mxu0
    %v5943 = vadd.f32 %v5731, %v5942
    %v5944 = vpop.f32.mrf.mxu0
    %5945 = vdwg.mxu0
    %v5946 = vld [vmem:[%s976] sm:$0xf]
    %v5948 = vperm.slane %v5946, 0
    %v5949 = vperm.slane %v5946, 1
    %v5950 = vperm.slane %v5946, 2
    %v5951 = vperm.slane %v5946, 3
    %v5956 = vadd.f32 %v5904, %v5948
    %v5957 = vadd.f32 %v5917, %v5949
    %v5958 = vadd.f32 %v5930, %v5950
    %v5959 = vadd.f32 %v5943, %v5951
    %v5960 = vxor.u32 %v5956, 2147483648
    %v5961 = vmul.f32 %v5960, 1.442695
    %v5962 = vpow.pop %v5961
    %v5963 = vadd.f32 %v5962, 1.0
    %v5964 = vrcp.pop %v5963
    %v5965 = vmul.f32 %v5963, %v5964
    %v5966 = vsub.f32 1.0, %v5965
    %v5967 = vmul.f32 %v5964, %v5966
    %v5968 = vadd.f32 %v5964, %v5967
    %vm5969 = vweird.f32 %v5963
    %vm5970 = vweird.f32 %v5964
    %vm5971 = vmor %vm5969, %vm5970
    %v5972 = vsel %vm5971, %v5964, %v5968
    %v5973 = vand.u32 2147483647, %v5963
    %vm5974 = vcmp.eq.f32.partialorder %v5973, 8.507059e+37
    %v5975 = vand.u32 %v5963, 2147483648
    %v5976 = vor.u32 1.1754944e-38, %v5975
    %v5977 = vsel %vm5974, %v5976, %v5972
    %v5978 = vmul.f32 1.0, %v5977
    %v5979 = vxor.u32 %v5957, 2147483648
    %v5980 = vmul.f32 %v5979, 1.442695
    %v5981 = vpow.pop %v5980
    %v5982 = vadd.f32 %v5981, 1.0
    %v5983 = vrcp.pop %v5982
    %v5984 = vmul.f32 %v5982, %v5983
    %v5985 = vsub.f32 1.0, %v5984
    %v5986 = vmul.f32 %v5983, %v5985
    %v5987 = vadd.f32 %v5983, %v5986
    %vm5988 = vweird.f32 %v5982
    %vm5989 = vweird.f32 %v5983
    %vm5990 = vmor %vm5988, %vm5989
    %v5991 = vsel %vm5990, %v5983, %v5987
    %v5992 = vand.u32 2147483647, %v5982
    %vm5993 = vcmp.eq.f32.partialorder %v5992, 8.507059e+37
    %v5994 = vand.u32 %v5982, 2147483648
    %v5995 = vor.u32 1.1754944e-38, %v5994
    %v5996 = vsel %vm5993, %v5995, %v5991
    %v5997 = vmul.f32 1.0, %v5996
    %v5998 = vtanh.pop %v5958
    %v5999 = vxor.u32 %v5959, 2147483648
    %v6000 = vmul.f32 %v5999, 1.442695
    %v6001 = vpow.pop %v6000
    %v6002 = vadd.f32 %v6001, 1.0
    %v6003 = vrcp.pop %v6002
    %v6004 = vmul.f32 %v6002, %v6003
    %v6005 = vsub.f32 1.0, %v6004
    %v6006 = vmul.f32 %v6003, %v6005
    %v6007 = vadd.f32 %v6003, %v6006
    %vm6008 = vweird.f32 %v6002
    %vm6009 = vweird.f32 %v6003
    %vm6010 = vmor %vm6008, %vm6009
    %v6011 = vsel %vm6010, %v6003, %v6007
    %v6012 = vand.u32 2147483647, %v6002
    %vm6013 = vcmp.eq.f32.partialorder %v6012, 8.507059e+37
    %v6014 = vand.u32 %v6002, 2147483648
    %v6015 = vor.u32 1.1754944e-38, %v6014
    %v6016 = vsel %vm6013, %v6015, %v6011
    %v6017 = vmul.f32 1.0, %v6016
    %v6018 = vmul.f32 %v5997, %v5026
    %v6019 = vmul.f32 %v5978, %v5998
    %v6020 = vadd.f32 %v6018, %v6019
    %v6021 = vtanh.pop %v6020
    %v6022 = vmul.f32 %v6017, %v6021
    %s6023 = scalar_lea.vmem [#allocation2], 10
    %6024 = vst [vmem:[%s6023] sm:$0x3] %v6022
    %s6025 = scalar_lea.vmem %s0, 12
    %v6026 = vld [vmem:[%s6025] sm:$0x3]
    %v6027 = vld [vmem:[%s1] sm:$0xff]
    %v6028 = vld [vmem:[%s1 + $0x8] sm:$0xff]
    %v6029 = vld [vmem:[#allocation6] sm:$0xff]
    %v6030 = vld [vmem:[#allocation6 + $0x8] sm:$0xff]
    %v6031 = vld [vmem:[#allocation6 + $0x10] sm:$0xff]
    %v6032 = vld [vmem:[#allocation6 + $0x18] sm:$0xff]
    %v6033 = vld [vmem:[#allocation6 + $0x20] sm:$0xff]
    %v6034 = vld [vmem:[#allocation6 + $0x28] sm:$0xff]
    %v6035 = vld [vmem:[#allocation6 + $0x30] sm:$0xff]
    %v6036 = vld [vmem:[#allocation6 + $0x38] sm:$0xff]
    %v6037 = vld [vmem:[#allocation6 + $0x40] sm:$0xff]
    %v6038 = vld [vmem:[#allocation6 + $0x48] sm:$0xff]
    %v6039 = vld [vmem:[#allocation6 + $0x50] sm:$0xff]
    %v6040 = vld [vmem:[#allocation6 + $0x58] sm:$0xff]
    %v6041 = vld [vmem:[#allocation6 + $0x60] sm:$0xff]
    %v6042 = vld [vmem:[#allocation6 + $0x68] sm:$0xff]
    %v6043 = vld [vmem:[#allocation6 + $0x70] sm:$0xff]
    %v6044 = vld [vmem:[#allocation6 + $0x78] sm:$0xff]
    %v6045 = vld [vmem:[#allocation6 + $0x80] sm:$0xff]
    %v6046 = vld [vmem:[#allocation6 + $0x88] sm:$0xff]
    %v6047 = vld [vmem:[#allocation6 + $0x90] sm:$0xff]
    %v6048 = vld [vmem:[#allocation6 + $0x98] sm:$0xff]
    %v6049 = vld [vmem:[#allocation6 + $0xa0] sm:$0xff]
    %v6050 = vld [vmem:[#allocation6 + $0xa8] sm:$0xff]
    %v6051 = vld [vmem:[#allocation6 + $0xb0] sm:$0xff]
    %v6052 = vld [vmem:[#allocation6 + $0xb8] sm:$0xff]
    %v6053 = vld [vmem:[#allocation6 + $0xc0] sm:$0xff]
    %v6054 = vld [vmem:[#allocation6 + $0xc8] sm:$0xff]
    %v6055 = vld [vmem:[#allocation6 + $0xd0] sm:$0xff]
    %v6056 = vld [vmem:[#allocation6 + $0xd8] sm:$0xff]
    %v6057 = vld [vmem:[#allocation6 + $0xe0] sm:$0xff]
    %v6058 = vld [vmem:[#allocation6 + $0xe8] sm:$0xff]
    %v6059 = vld [vmem:[#allocation6 + $0xf0] sm:$0xff]
    %v6060 = vld [vmem:[#allocation6 + $0xf8] sm:$0xff]
    %v6093 = vunpack.c.l.b16 %v6029
    %v6094 = vunpack.c.h.b16 %v6029
    %v6095 = vunpack.c.l.b16 %v6030
    %v6096 = vunpack.c.h.b16 %v6030
    %v6097 = vunpack.c.l.b16 %v6031
    %v6098 = vunpack.c.h.b16 %v6031
    %v6099 = vunpack.c.l.b16 %v6032
    %v6100 = vunpack.c.h.b16 %v6032
    %v6101 = vunpack.c.l.b16 %v6033
    %v6102 = vunpack.c.h.b16 %v6033
    %v6103 = vunpack.c.l.b16 %v6034
    %v6104 = vunpack.c.h.b16 %v6034
    %v6105 = vunpack.c.l.b16 %v6035
    %v6106 = vunpack.c.h.b16 %v6035
    %v6107 = vunpack.c.l.b16 %v6036
    %v6108 = vunpack.c.h.b16 %v6036
    %v6109 = vunpack.c.l.b16 %v6037
    %v6110 = vunpack.c.h.b16 %v6037
    %v6111 = vunpack.c.l.b16 %v6038
    %v6112 = vunpack.c.h.b16 %v6038
    %v6113 = vunpack.c.l.b16 %v6039
    %v6114 = vunpack.c.h.b16 %v6039
    %v6115 = vunpack.c.l.b16 %v6040
    %v6116 = vunpack.c.h.b16 %v6040
    %v6117 = vunpack.c.l.b16 %v6041
    %v6118 = vunpack.c.h.b16 %v6041
    %v6119 = vunpack.c.l.b16 %v6042
    %v6120 = vunpack.c.h.b16 %v6042
    %v6121 = vunpack.c.l.b16 %v6043
    %v6122 = vunpack.c.h.b16 %v6043
    %v6123 = vunpack.c.l.b16 %v6044
    %v6124 = vunpack.c.h.b16 %v6044
    %v6125 = vunpack.c.l.b16 %v6045
    %v6126 = vunpack.c.h.b16 %v6045
    %v6127 = vunpack.c.l.b16 %v6046
    %v6128 = vunpack.c.h.b16 %v6046
    %v6129 = vunpack.c.l.b16 %v6047
    %v6130 = vunpack.c.h.b16 %v6047
    %v6131 = vunpack.c.l.b16 %v6048
    %v6132 = vunpack.c.h.b16 %v6048
    %v6133 = vunpack.c.l.b16 %v6049
    %v6134 = vunpack.c.h.b16 %v6049
    %v6135 = vunpack.c.l.b16 %v6050
    %v6136 = vunpack.c.h.b16 %v6050
    %v6137 = vunpack.c.l.b16 %v6051
    %v6138 = vunpack.c.h.b16 %v6051
    %v6139 = vunpack.c.l.b16 %v6052
    %v6140 = vunpack.c.h.b16 %v6052
    %v6141 = vunpack.c.l.b16 %v6053
    %v6142 = vunpack.c.h.b16 %v6053
    %v6143 = vunpack.c.l.b16 %v6054
    %v6144 = vunpack.c.h.b16 %v6054
    %v6145 = vunpack.c.l.b16 %v6055
    %v6146 = vunpack.c.h.b16 %v6055
    %v6147 = vunpack.c.l.b16 %v6056
    %v6148 = vunpack.c.h.b16 %v6056
    %v6149 = vunpack.c.l.b16 %v6057
    %v6150 = vunpack.c.h.b16 %v6057
    %v6151 = vunpack.c.l.b16 %v6058
    %v6152 = vunpack.c.h.b16 %v6058
    %v6153 = vunpack.c.l.b16 %v6059
    %v6154 = vunpack.c.h.b16 %v6059
    %v6155 = vunpack.c.l.b16 %v6060
    %v6156 = vunpack.c.h.b16 %v6060
    %v6157 = vpack.c.b16 %v6097, %v6093
    %v6158 = vpack.c.b16 %v6098, %v6094
    %v6159 = vpack.c.b16 %v6099, %v6095
    %v6160 = vpack.c.b16 %v6100, %v6096
    %v6161 = vpack.c.b16 %v6105, %v6101
    %v6162 = vpack.c.b16 %v6106, %v6102
    %v6163 = vpack.c.b16 %v6107, %v6103
    %v6164 = vpack.c.b16 %v6108, %v6104
    %v6165 = vpack.c.b16 %v6113, %v6109
    %v6166 = vpack.c.b16 %v6114, %v6110
    %v6167 = vpack.c.b16 %v6115, %v6111
    %v6168 = vpack.c.b16 %v6116, %v6112
    %v6169 = vpack.c.b16 %v6121, %v6117
    %v6170 = vpack.c.b16 %v6122, %v6118
    %v6171 = vpack.c.b16 %v6123, %v6119
    %v6172 = vpack.c.b16 %v6124, %v6120
    %v6173 = vpack.c.b16 %v6129, %v6125
    %v6174 = vpack.c.b16 %v6130, %v6126
    %v6175 = vpack.c.b16 %v6131, %v6127
    %v6176 = vpack.c.b16 %v6132, %v6128
    %v6177 = vpack.c.b16 %v6137, %v6133
    %v6178 = vpack.c.b16 %v6138, %v6134
    %v6179 = vpack.c.b16 %v6139, %v6135
    %v6180 = vpack.c.b16 %v6140, %v6136
    %v6181 = vpack.c.b16 %v6145, %v6141
    %v6182 = vpack.c.b16 %v6146, %v6142
    %v6183 = vpack.c.b16 %v6147, %v6143
    %v6184 = vpack.c.b16 %v6148, %v6144
    %v6185 = vpack.c.b16 %v6153, %v6149
    %v6186 = vpack.c.b16 %v6154, %v6150
    %v6187 = vpack.c.b16 %v6155, %v6151
    %v6188 = vpack.c.b16 %v6156, %v6152
    %6221 = vmatpush.bf16.msra.mxu0 %v6185
    %6222 = vmatpush.bf16.msra.mxu0 %v6181
    %6223 = vmatpush.bf16.msra.mxu0 %v6177
    %6224 = vmatpush.bf16.msra.mxu0 %v6173
    %6225 = vmatpush.bf16.msra.mxu0 %v6169
    %6226 = vmatpush.bf16.msra.mxu0 %v6165
    %6227 = vmatpush.bf16.msra.mxu0 %v6161
    %6228 = vmatpush.bf16.msra.mxu0 %v6157
    %6229 = vmatmul.bf16.gmra.mxu0 %v5456
    %v6230 = vpop.f32.mrf.mxu0
    %v6231 = vadd.f32 0.0, %v6230
    %v6232 = vpop.f32.mrf.mxu0
    %6233 = vdwg.mxu0
    %6234 = vmatpush.bf16.msra.mxu0 %v6186
    %6235 = vmatpush.bf16.msra.mxu0 %v6182
    %6236 = vmatpush.bf16.msra.mxu0 %v6178
    %6237 = vmatpush.bf16.msra.mxu0 %v6174
    %6238 = vmatpush.bf16.msra.mxu0 %v6170
    %6239 = vmatpush.bf16.msra.mxu0 %v6166
    %6240 = vmatpush.bf16.msra.mxu0 %v6162
    %6241 = vmatpush.bf16.msra.mxu0 %v6158
    %6242 = vmatmul.bf16.gmra.mxu0 %v5456
    %v6243 = vpop.f32.mrf.mxu0
    %v6244 = vadd.f32 0.0, %v6243
    %v6245 = vpop.f32.mrf.mxu0
    %6246 = vdwg.mxu0
    %6247 = vmatpush.bf16.msra.mxu0 %v6187
    %6248 = vmatpush.bf16.msra.mxu0 %v6183
    %6249 = vmatpush.bf16.msra.mxu0 %v6179
    %6250 = vmatpush.bf16.msra.mxu0 %v6175
    %6251 = vmatpush.bf16.msra.mxu0 %v6171
    %6252 = vmatpush.bf16.msra.mxu0 %v6167
    %6253 = vmatpush.bf16.msra.mxu0 %v6163
    %6254 = vmatpush.bf16.msra.mxu0 %v6159
    %6255 = vmatmul.bf16.gmra.mxu0 %v5456
    %v6256 = vpop.f32.mrf.mxu0
    %v6257 = vadd.f32 0.0, %v6256
    %v6258 = vpop.f32.mrf.mxu0
    %6259 = vdwg.mxu0
    %6260 = vmatpush.bf16.msra.mxu0 %v6188
    %6261 = vmatpush.bf16.msra.mxu0 %v6184
    %6262 = vmatpush.bf16.msra.mxu0 %v6180
    %6263 = vmatpush.bf16.msra.mxu0 %v6176
    %6264 = vmatpush.bf16.msra.mxu0 %v6172
    %6265 = vmatpush.bf16.msra.mxu0 %v6168
    %6266 = vmatpush.bf16.msra.mxu0 %v6164
    %6267 = vmatpush.bf16.msra.mxu0 %v6160
    %6268 = vmatmul.bf16.gmra.mxu0 %v5456
    %v6269 = vpop.f32.mrf.mxu0
    %v6270 = vadd.f32 0.0, %v6269
    %v6271 = vpop.f32.mrf.mxu0
    %6272 = vdwg.mxu0
    %6275 = vst [vmem:[#allocation1] ss:$2 sm:$0xff] %v6027
    %s6276 = scalar_lea.vmem [#allocation1], 16
    %6277 = vst [vmem:[%s6276] ss:$2 sm:$0xff] %v6028
    %v6278 = vld.sshfl [vmem:[#allocation1] sm:$0xff pattern:$0x75316420]
    %v6279 = vld.sshfl [vmem:[#allocation1 + $0x8] sm:$0xff pattern:$0x75316420]
    %v6280 = vld.sshfl [vmem:[#allocation1 + $0x10] sm:$0xff pattern:$0x75316420]
    %v6281 = vld.sshfl [vmem:[#allocation1 + $0x18] sm:$0xff pattern:$0x75316420]
    %v6283 = vsel %vm316, %v6026, 0
    %v6285 = vsel %vm320, %v6278, 0
    %v6287 = vsel %vm320, %v6279, 0
    %v6289 = vsel %vm320, %v6280, 0
    %v6291 = vsel %vm320, %v6281, 0
    %6293 = vmatpush.msra.mxu0 0.0
    %6294 = vmatpush.msra.mxu0 0.0
    %6295 = vmatpush.msra.mxu0 0.0
    %6296 = vmatpush.msra.mxu0 0.0
    %6297 = vmatpush.msra.mxu0 0.0
    %6298 = vmatpush.msra.mxu0 0.0
    %6299 = vmatpush.msra.mxu0 0.0
    %6300 = vmatpush.msra.mxu0 0.0
    %6301 = vmatpush.msra.mxu0 0.0
    %6302 = vmatpush.msra.mxu0 0.0
    %6303 = vmatpush.msra.mxu0 0.0
    %6304 = vmatpush.msra.mxu0 0.0
    %6305 = vmatpush.msra.mxu0 0.0
    %6306 = vmatpush.msra.mxu0 0.0
    %6307 = vmatpush.msra.mxu0 0.0
    %6308 = vmatpush.msra.mxu0 %v6285
    %6309 = vmatmul.f32.gmra.mxu0 %v6283
    %v6310 = vpop.f32.mrf.mxu0
    %v6311 = vadd.f32 %v6231, %v6310
    %6312 = vdwg.mxu0
    %6313 = vmatpush.msra.mxu0 0.0
    %6314 = vmatpush.msra.mxu0 0.0
    %6315 = vmatpush.msra.mxu0 0.0
    %6316 = vmatpush.msra.mxu0 0.0
    %6317 = vmatpush.msra.mxu0 0.0
    %6318 = vmatpush.msra.mxu0 0.0
    %6319 = vmatpush.msra.mxu0 0.0
    %6320 = vmatpush.msra.mxu0 0.0
    %6321 = vmatpush.msra.mxu0 0.0
    %6322 = vmatpush.msra.mxu0 0.0
    %6323 = vmatpush.msra.mxu0 0.0
    %6324 = vmatpush.msra.mxu0 0.0
    %6325 = vmatpush.msra.mxu0 0.0
    %6326 = vmatpush.msra.mxu0 0.0
    %6327 = vmatpush.msra.mxu0 0.0
    %6328 = vmatpush.msra.mxu0 %v6287
    %6329 = vmatmul.f32.gmra.mxu0 %v6283
    %v6330 = vpop.f32.mrf.mxu0
    %v6331 = vadd.f32 %v6244, %v6330
    %6332 = vdwg.mxu0
    %6333 = vmatpush.msra.mxu0 0.0
    %6334 = vmatpush.msra.mxu0 0.0
    %6335 = vmatpush.msra.mxu0 0.0
    %6336 = vmatpush.msra.mxu0 0.0
    %6337 = vmatpush.msra.mxu0 0.0
    %6338 = vmatpush.msra.mxu0 0.0
    %6339 = vmatpush.msra.mxu0 0.0
    %6340 = vmatpush.msra.mxu0 0.0
    %6341 = vmatpush.msra.mxu0 0.0
    %6342 = vmatpush.msra.mxu0 0.0
    %6343 = vmatpush.msra.mxu0 0.0
    %6344 = vmatpush.msra.mxu0 0.0
    %6345 = vmatpush.msra.mxu0 0.0
    %6346 = vmatpush.msra.mxu0 0.0
    %6347 = vmatpush.msra.mxu0 0.0
    %6348 = vmatpush.msra.mxu0 %v6289
    %6349 = vmatmul.f32.gmra.mxu0 %v6283
    %v6350 = vpop.f32.mrf.mxu0
    %v6351 = vadd.f32 %v6257, %v6350
    %6352 = vdwg.mxu0
    %6353 = vmatpush.msra.mxu0 0.0
    %6354 = vmatpush.msra.mxu0 0.0
    %6355 = vmatpush.msra.mxu0 0.0
    %6356 = vmatpush.msra.mxu0 0.0
    %6357 = vmatpush.msra.mxu0 0.0
    %6358 = vmatpush.msra.mxu0 0.0
    %6359 = vmatpush.msra.mxu0 0.0
    %6360 = vmatpush.msra.mxu0 0.0
    %6361 = vmatpush.msra.mxu0 0.0
    %6362 = vmatpush.msra.mxu0 0.0
    %6363 = vmatpush.msra.mxu0 0.0
    %6364 = vmatpush.msra.mxu0 0.0
    %6365 = vmatpush.msra.mxu0 0.0
    %6366 = vmatpush.msra.mxu0 0.0
    %6367 = vmatpush.msra.mxu0 0.0
    %6368 = vmatpush.msra.mxu0 %v6291
    %6369 = vmatmul.f32.gmra.mxu0 %v6283
    %v6370 = vpop.f32.mrf.mxu0
    %v6371 = vadd.f32 %v6270, %v6370
    %6372 = vdwg.mxu0
    %v6373 = vld [vmem:[%s4] sm:$0xf]
    %v6375 = vperm.slane %v6373, 0
    %v6376 = vperm.slane %v6373, 1
    %v6377 = vperm.slane %v6373, 2
    %v6378 = vperm.slane %v6373, 3
    %v6383 = vadd.f32 %v6311, %v6375
    %v6384 = vadd.f32 %v6331, %v6376
    %v6385 = vadd.f32 %v6351, %v6377
    %v6386 = vadd.f32 %v6371, %v6378
    %v6387 = vxor.u32 %v6383, 2147483648
    %v6388 = vmul.f32 %v6387, 1.442695
    %v6389 = vpow.pop %v6388
    %v6390 = vadd.f32 %v6389, 1.0
    %v6391 = vrcp.pop %v6390
    %v6392 = vmul.f32 %v6390, %v6391
    %v6393 = vsub.f32 1.0, %v6392
    %v6394 = vmul.f32 %v6391, %v6393
    %v6395 = vadd.f32 %v6391, %v6394
    %vm6396 = vweird.f32 %v6390
    %vm6397 = vweird.f32 %v6391
    %vm6398 = vmor %vm6396, %vm6397
    %v6399 = vsel %vm6398, %v6391, %v6395
    %v6400 = vand.u32 2147483647, %v6390
    %vm6401 = vcmp.eq.f32.partialorder %v6400, 8.507059e+37
    %v6402 = vand.u32 %v6390, 2147483648
    %v6403 = vor.u32 1.1754944e-38, %v6402
    %v6404 = vsel %vm6401, %v6403, %v6399
    %v6405 = vmul.f32 1.0, %v6404
    %v6406 = vxor.u32 %v6384, 2147483648
    %v6407 = vmul.f32 %v6406, 1.442695
    %v6408 = vpow.pop %v6407
    %v6409 = vadd.f32 %v6408, 1.0
    %v6410 = vrcp.pop %v6409
    %v6411 = vmul.f32 %v6409, %v6410
    %v6412 = vsub.f32 1.0, %v6411
    %v6413 = vmul.f32 %v6410, %v6412
    %v6414 = vadd.f32 %v6410, %v6413
    %vm6415 = vweird.f32 %v6409
    %vm6416 = vweird.f32 %v6410
    %vm6417 = vmor %vm6415, %vm6416
    %v6418 = vsel %vm6417, %v6410, %v6414
    %v6419 = vand.u32 2147483647, %v6409
    %vm6420 = vcmp.eq.f32.partialorder %v6419, 8.507059e+37
    %v6421 = vand.u32 %v6409, 2147483648
    %v6422 = vor.u32 1.1754944e-38, %v6421
    %v6423 = vsel %vm6420, %v6422, %v6418
    %v6424 = vmul.f32 1.0, %v6423
    %v6425 = vtanh.pop %v6385
    %v6426 = vxor.u32 %v6386, 2147483648
    %v6427 = vmul.f32 %v6426, 1.442695
    %v6428 = vpow.pop %v6427
    %v6429 = vadd.f32 %v6428, 1.0
    %v6430 = vrcp.pop %v6429
    %v6431 = vmul.f32 %v6429, %v6430
    %v6432 = vsub.f32 1.0, %v6431
    %v6433 = vmul.f32 %v6430, %v6432
    %v6434 = vadd.f32 %v6430, %v6433
    %vm6435 = vweird.f32 %v6429
    %vm6436 = vweird.f32 %v6430
    %vm6437 = vmor %vm6435, %vm6436
    %v6438 = vsel %vm6437, %v6430, %v6434
    %v6439 = vand.u32 2147483647, %v6429
    %vm6440 = vcmp.eq.f32.partialorder %v6439, 8.507059e+37
    %v6441 = vand.u32 %v6429, 2147483648
    %v6442 = vor.u32 1.1754944e-38, %v6441
    %v6443 = vsel %vm6440, %v6442, %v6438
    %v6444 = vmul.f32 1.0, %v6443
    %v6445 = vmul.f32 %v6424, %v5453
    %v6446 = vmul.f32 %v6405, %v6425
    %v6447 = vadd.f32 %v6445, %v6446
    %v6448 = vtanh.pop %v6447
    %v6449 = vmul.f32 %v6444, %v6448
    %v6450 = vpack.c.bf16 %v6449, %v6449
    %v6451 = vld [vmem:[#allocation4] sm:$0xff]
    %v6452 = vld [vmem:[#allocation4 + $0x8] sm:$0xff]
    %v6453 = vld [vmem:[#allocation4 + $0x10] sm:$0xff]
    %v6454 = vld [vmem:[#allocation4 + $0x18] sm:$0xff]
    %v6455 = vld [vmem:[#allocation4 + $0x20] sm:$0xff]
    %v6456 = vld [vmem:[#allocation4 + $0x28] sm:$0xff]
    %v6457 = vld [vmem:[#allocation4 + $0x30] sm:$0xff]
    %v6458 = vld [vmem:[#allocation4 + $0x38] sm:$0xff]
    %v6459 = vld [vmem:[#allocation4 + $0x40] sm:$0xff]
    %v6460 = vld [vmem:[#allocation4 + $0x48] sm:$0xff]
    %v6461 = vld [vmem:[#allocation4 + $0x50] sm:$0xff]
    %v6462 = vld [vmem:[#allocation4 + $0x58] sm:$0xff]
    %v6463 = vld [vmem:[#allocation4 + $0x60] sm:$0xff]
    %v6464 = vld [vmem:[#allocation4 + $0x68] sm:$0xff]
    %v6465 = vld [vmem:[#allocation4 + $0x70] sm:$0xff]
    %v6466 = vld [vmem:[#allocation4 + $0x78] sm:$0xff]
    %v6467 = vld [vmem:[#allocation4 + $0x80] sm:$0xff]
    %v6468 = vld [vmem:[#allocation4 + $0x88] sm:$0xff]
    %v6469 = vld [vmem:[#allocation4 + $0x90] sm:$0xff]
    %v6470 = vld [vmem:[#allocation4 + $0x98] sm:$0xff]
    %v6471 = vld [vmem:[#allocation4 + $0xa0] sm:$0xff]
    %v6472 = vld [vmem:[#allocation4 + $0xa8] sm:$0xff]
    %v6473 = vld [vmem:[#allocation4 + $0xb0] sm:$0xff]
    %v6474 = vld [vmem:[#allocation4 + $0xb8] sm:$0xff]
    %v6475 = vld [vmem:[#allocation4 + $0xc0] sm:$0xff]
    %v6476 = vld [vmem:[#allocation4 + $0xc8] sm:$0xff]
    %v6477 = vld [vmem:[#allocation4 + $0xd0] sm:$0xff]
    %v6478 = vld [vmem:[#allocation4 + $0xd8] sm:$0xff]
    %v6479 = vld [vmem:[#allocation4 + $0xe0] sm:$0xff]
    %v6480 = vld [vmem:[#allocation4 + $0xe8] sm:$0xff]
    %v6481 = vld [vmem:[#allocation4 + $0xf0] sm:$0xff]
    %v6482 = vld [vmem:[#allocation4 + $0xf8] sm:$0xff]
    %v6483 = vpack.c.bf16 %v6022, %v6022
    %v6484 = vld [vmem:[%s519] sm:$0xff]
    %v6485 = vld [vmem:[%s519 + $0x8] sm:$0xff]
    %v6486 = vld [vmem:[%s519 + $0x10] sm:$0xff]
    %v6487 = vld [vmem:[%s519 + $0x18] sm:$0xff]
    %v6488 = vld [vmem:[%s519 + $0x20] sm:$0xff]
    %v6489 = vld [vmem:[%s519 + $0x28] sm:$0xff]
    %v6490 = vld [vmem:[%s519 + $0x30] sm:$0xff]
    %v6491 = vld [vmem:[%s519 + $0x38] sm:$0xff]
    %v6492 = vld [vmem:[%s519 + $0x40] sm:$0xff]
    %v6493 = vld [vmem:[%s519 + $0x48] sm:$0xff]
    %v6494 = vld [vmem:[%s519 + $0x50] sm:$0xff]
    %v6495 = vld [vmem:[%s519 + $0x58] sm:$0xff]
    %v6496 = vld [vmem:[%s519 + $0x60] sm:$0xff]
    %v6497 = vld [vmem:[%s519 + $0x68] sm:$0xff]
    %v6498 = vld [vmem:[%s519 + $0x70] sm:$0xff]
    %v6499 = vld [vmem:[%s519 + $0x78] sm:$0xff]
    %v6500 = vld [vmem:[%s519 + $0x80] sm:$0xff]
    %v6501 = vld [vmem:[%s519 + $0x88] sm:$0xff]
    %v6502 = vld [vmem:[%s519 + $0x90] sm:$0xff]
    %v6503 = vld [vmem:[%s519 + $0x98] sm:$0xff]
    %v6504 = vld [vmem:[%s519 + $0xa0] sm:$0xff]
    %v6505 = vld [vmem:[%s519 + $0xa8] sm:$0xff]
    %v6506 = vld [vmem:[%s519 + $0xb0] sm:$0xff]
    %v6507 = vld [vmem:[%s519 + $0xb8] sm:$0xff]
    %v6508 = vld [vmem:[%s519 + $0xc0] sm:$0xff]
    %v6509 = vld [vmem:[%s519 + $0xc8] sm:$0xff]
    %v6510 = vld [vmem:[%s519 + $0xd0] sm:$0xff]
    %v6511 = vld [vmem:[%s519 + $0xd8] sm:$0xff]
    %v6512 = vld [vmem:[%s519 + $0xe0] sm:$0xff]
    %v6513 = vld [vmem:[%s519 + $0xe8] sm:$0xff]
    %v6514 = vld [vmem:[%s519 + $0xf0] sm:$0xff]
    %v6515 = vld [vmem:[%s519 + $0xf8] sm:$0xff]
    %v6548 = vunpack.c.l.b16 %v6484
    %v6549 = vunpack.c.h.b16 %v6484
    %v6550 = vunpack.c.l.b16 %v6485
    %v6551 = vunpack.c.h.b16 %v6485
    %v6552 = vunpack.c.l.b16 %v6486
    %v6553 = vunpack.c.h.b16 %v6486
    %v6554 = vunpack.c.l.b16 %v6487
    %v6555 = vunpack.c.h.b16 %v6487
    %v6556 = vunpack.c.l.b16 %v6488
    %v6557 = vunpack.c.h.b16 %v6488
    %v6558 = vunpack.c.l.b16 %v6489
    %v6559 = vunpack.c.h.b16 %v6489
    %v6560 = vunpack.c.l.b16 %v6490
    %v6561 = vunpack.c.h.b16 %v6490
    %v6562 = vunpack.c.l.b16 %v6491
    %v6563 = vunpack.c.h.b16 %v6491
    %v6564 = vunpack.c.l.b16 %v6492
    %v6565 = vunpack.c.h.b16 %v6492
    %v6566 = vunpack.c.l.b16 %v6493
    %v6567 = vunpack.c.h.b16 %v6493
    %v6568 = vunpack.c.l.b16 %v6494
    %v6569 = vunpack.c.h.b16 %v6494
    %v6570 = vunpack.c.l.b16 %v6495
    %v6571 = vunpack.c.h.b16 %v6495
    %v6572 = vunpack.c.l.b16 %v6496
    %v6573 = vunpack.c.h.b16 %v6496
    %v6574 = vunpack.c.l.b16 %v6497
    %v6575 = vunpack.c.h.b16 %v6497
    %v6576 = vunpack.c.l.b16 %v6498
    %v6577 = vunpack.c.h.b16 %v6498
    %v6578 = vunpack.c.l.b16 %v6499
    %v6579 = vunpack.c.h.b16 %v6499
    %v6580 = vunpack.c.l.b16 %v6500
    %v6581 = vunpack.c.h.b16 %v6500
    %v6582 = vunpack.c.l.b16 %v6501
    %v6583 = vunpack.c.h.b16 %v6501
    %v6584 = vunpack.c.l.b16 %v6502
    %v6585 = vunpack.c.h.b16 %v6502
    %v6586 = vunpack.c.l.b16 %v6503
    %v6587 = vunpack.c.h.b16 %v6503
    %v6588 = vunpack.c.l.b16 %v6504
    %v6589 = vunpack.c.h.b16 %v6504
    %v6590 = vunpack.c.l.b16 %v6505
    %v6591 = vunpack.c.h.b16 %v6505
    %v6592 = vunpack.c.l.b16 %v6506
    %v6593 = vunpack.c.h.b16 %v6506
    %v6594 = vunpack.c.l.b16 %v6507
    %v6595 = vunpack.c.h.b16 %v6507
    %v6596 = vunpack.c.l.b16 %v6508
    %v6597 = vunpack.c.h.b16 %v6508
    %v6598 = vunpack.c.l.b16 %v6509
    %v6599 = vunpack.c.h.b16 %v6509
    %v6600 = vunpack.c.l.b16 %v6510
    %v6601 = vunpack.c.h.b16 %v6510
    %v6602 = vunpack.c.l.b16 %v6511
    %v6603 = vunpack.c.h.b16 %v6511
    %v6604 = vunpack.c.l.b16 %v6512
    %v6605 = vunpack.c.h.b16 %v6512
    %v6606 = vunpack.c.l.b16 %v6513
    %v6607 = vunpack.c.h.b16 %v6513
    %v6608 = vunpack.c.l.b16 %v6514
    %v6609 = vunpack.c.h.b16 %v6514
    %v6610 = vunpack.c.l.b16 %v6515
    %v6611 = vunpack.c.h.b16 %v6515
    %v6612 = vpack.c.b16 %v6552, %v6548
    %v6613 = vpack.c.b16 %v6553, %v6549
    %v6614 = vpack.c.b16 %v6554, %v6550
    %v6615 = vpack.c.b16 %v6555, %v6551
    %v6616 = vpack.c.b16 %v6560, %v6556
    %v6617 = vpack.c.b16 %v6561, %v6557
    %v6618 = vpack.c.b16 %v6562, %v6558
    %v6619 = vpack.c.b16 %v6563, %v6559
    %v6620 = vpack.c.b16 %v6568, %v6564
    %v6621 = vpack.c.b16 %v6569, %v6565
    %v6622 = vpack.c.b16 %v6570, %v6566
    %v6623 = vpack.c.b16 %v6571, %v6567
    %v6624 = vpack.c.b16 %v6576, %v6572
    %v6625 = vpack.c.b16 %v6577, %v6573
    %v6626 = vpack.c.b16 %v6578, %v6574
    %v6627 = vpack.c.b16 %v6579, %v6575
    %v6628 = vpack.c.b16 %v6584, %v6580
    %v6629 = vpack.c.b16 %v6585, %v6581
    %v6630 = vpack.c.b16 %v6586, %v6582
    %v6631 = vpack.c.b16 %v6587, %v6583
    %v6632 = vpack.c.b16 %v6592, %v6588
    %v6633 = vpack.c.b16 %v6593, %v6589
    %v6634 = vpack.c.b16 %v6594, %v6590
    %v6635 = vpack.c.b16 %v6595, %v6591
    %v6636 = vpack.c.b16 %v6600, %v6596
    %v6637 = vpack.c.b16 %v6601, %v6597
    %v6638 = vpack.c.b16 %v6602, %v6598
    %v6639 = vpack.c.b16 %v6603, %v6599
    %v6640 = vpack.c.b16 %v6608, %v6604
    %v6641 = vpack.c.b16 %v6609, %v6605
    %v6642 = vpack.c.b16 %v6610, %v6606
    %v6643 = vpack.c.b16 %v6611, %v6607
    %6676 = vmatpush.bf16.msra.mxu0 %v6640
    %6677 = vmatpush.bf16.msra.mxu0 %v6636
    %6678 = vmatpush.bf16.msra.mxu0 %v6632
    %6679 = vmatpush.bf16.msra.mxu0 %v6628
    %6680 = vmatpush.bf16.msra.mxu0 %v6624
    %6681 = vmatpush.bf16.msra.mxu0 %v6620
    %6682 = vmatpush.bf16.msra.mxu0 %v6616
    %6683 = vmatpush.bf16.msra.mxu0 %v6612
    %6684 = vmatmul.bf16.gmra.mxu0 %v6483
    %v6685 = vpop.f32.mrf.mxu0
    %v6686 = vadd.f32 0.0, %v6685
    %v6687 = vpop.f32.mrf.mxu0
    %6688 = vdwg.mxu0
    %6689 = vmatpush.bf16.msra.mxu0 %v6641
    %6690 = vmatpush.bf16.msra.mxu0 %v6637
    %6691 = vmatpush.bf16.msra.mxu0 %v6633
    %6692 = vmatpush.bf16.msra.mxu0 %v6629
    %6693 = vmatpush.bf16.msra.mxu0 %v6625
    %6694 = vmatpush.bf16.msra.mxu0 %v6621
    %6695 = vmatpush.bf16.msra.mxu0 %v6617
    %6696 = vmatpush.bf16.msra.mxu0 %v6613
    %6697 = vmatmul.bf16.gmra.mxu0 %v6483
    %v6698 = vpop.f32.mrf.mxu0
    %v6699 = vadd.f32 0.0, %v6698
    %v6700 = vpop.f32.mrf.mxu0
    %6701 = vdwg.mxu0
    %6702 = vmatpush.bf16.msra.mxu0 %v6642
    %6703 = vmatpush.bf16.msra.mxu0 %v6638
    %6704 = vmatpush.bf16.msra.mxu0 %v6634
    %6705 = vmatpush.bf16.msra.mxu0 %v6630
    %6706 = vmatpush.bf16.msra.mxu0 %v6626
    %6707 = vmatpush.bf16.msra.mxu0 %v6622
    %6708 = vmatpush.bf16.msra.mxu0 %v6618
    %6709 = vmatpush.bf16.msra.mxu0 %v6614
    %6710 = vmatmul.bf16.gmra.mxu0 %v6483
    %v6711 = vpop.f32.mrf.mxu0
    %v6712 = vadd.f32 0.0, %v6711
    %v6713 = vpop.f32.mrf.mxu0
    %6714 = vdwg.mxu0
    %6715 = vmatpush.bf16.msra.mxu0 %v6643
    %6716 = vmatpush.bf16.msra.mxu0 %v6639
    %6717 = vmatpush.bf16.msra.mxu0 %v6635
    %6718 = vmatpush.bf16.msra.mxu0 %v6631
    %6719 = vmatpush.bf16.msra.mxu0 %v6627
    %6720 = vmatpush.bf16.msra.mxu0 %v6623
    %6721 = vmatpush.bf16.msra.mxu0 %v6619
    %6722 = vmatpush.bf16.msra.mxu0 %v6615
    %6723 = vmatmul.bf16.gmra.mxu0 %v6483
    %v6724 = vpop.f32.mrf.mxu0
    %v6725 = vadd.f32 0.0, %v6724
    %v6726 = vpop.f32.mrf.mxu0
    %6727 = vdwg.mxu0
    %v6760 = vunpack.c.l.b16 %v6451
    %v6761 = vunpack.c.h.b16 %v6451
    %v6762 = vunpack.c.l.b16 %v6452
    %v6763 = vunpack.c.h.b16 %v6452
    %v6764 = vunpack.c.l.b16 %v6453
    %v6765 = vunpack.c.h.b16 %v6453
    %v6766 = vunpack.c.l.b16 %v6454
    %v6767 = vunpack.c.h.b16 %v6454
    %v6768 = vunpack.c.l.b16 %v6455
    %v6769 = vunpack.c.h.b16 %v6455
    %v6770 = vunpack.c.l.b16 %v6456
    %v6771 = vunpack.c.h.b16 %v6456
    %v6772 = vunpack.c.l.b16 %v6457
    %v6773 = vunpack.c.h.b16 %v6457
    %v6774 = vunpack.c.l.b16 %v6458
    %v6775 = vunpack.c.h.b16 %v6458
    %v6776 = vunpack.c.l.b16 %v6459
    %v6777 = vunpack.c.h.b16 %v6459
    %v6778 = vunpack.c.l.b16 %v6460
    %v6779 = vunpack.c.h.b16 %v6460
    %v6780 = vunpack.c.l.b16 %v6461
    %v6781 = vunpack.c.h.b16 %v6461
    %v6782 = vunpack.c.l.b16 %v6462
    %v6783 = vunpack.c.h.b16 %v6462
    %v6784 = vunpack.c.l.b16 %v6463
    %v6785 = vunpack.c.h.b16 %v6463
    %v6786 = vunpack.c.l.b16 %v6464
    %v6787 = vunpack.c.h.b16 %v6464
    %v6788 = vunpack.c.l.b16 %v6465
    %v6789 = vunpack.c.h.b16 %v6465
    %v6790 = vunpack.c.l.b16 %v6466
    %v6791 = vunpack.c.h.b16 %v6466
    %v6792 = vunpack.c.l.b16 %v6467
    %v6793 = vunpack.c.h.b16 %v6467
    %v6794 = vunpack.c.l.b16 %v6468
    %v6795 = vunpack.c.h.b16 %v6468
    %v6796 = vunpack.c.l.b16 %v6469
    %v6797 = vunpack.c.h.b16 %v6469
    %v6798 = vunpack.c.l.b16 %v6470
    %v6799 = vunpack.c.h.b16 %v6470
    %v6800 = vunpack.c.l.b16 %v6471
    %v6801 = vunpack.c.h.b16 %v6471
    %v6802 = vunpack.c.l.b16 %v6472
    %v6803 = vunpack.c.h.b16 %v6472
    %v6804 = vunpack.c.l.b16 %v6473
    %v6805 = vunpack.c.h.b16 %v6473
    %v6806 = vunpack.c.l.b16 %v6474
    %v6807 = vunpack.c.h.b16 %v6474
    %v6808 = vunpack.c.l.b16 %v6475
    %v6809 = vunpack.c.h.b16 %v6475
    %v6810 = vunpack.c.l.b16 %v6476
    %v6811 = vunpack.c.h.b16 %v6476
    %v6812 = vunpack.c.l.b16 %v6477
    %v6813 = vunpack.c.h.b16 %v6477
    %v6814 = vunpack.c.l.b16 %v6478
    %v6815 = vunpack.c.h.b16 %v6478
    %v6816 = vunpack.c.l.b16 %v6479
    %v6817 = vunpack.c.h.b16 %v6479
    %v6818 = vunpack.c.l.b16 %v6480
    %v6819 = vunpack.c.h.b16 %v6480
    %v6820 = vunpack.c.l.b16 %v6481
    %v6821 = vunpack.c.h.b16 %v6481
    %v6822 = vunpack.c.l.b16 %v6482
    %v6823 = vunpack.c.h.b16 %v6482
    %v6824 = vpack.c.b16 %v6764, %v6760
    %v6825 = vpack.c.b16 %v6765, %v6761
    %v6826 = vpack.c.b16 %v6766, %v6762
    %v6827 = vpack.c.b16 %v6767, %v6763
    %v6828 = vpack.c.b16 %v6772, %v6768
    %v6829 = vpack.c.b16 %v6773, %v6769
    %v6830 = vpack.c.b16 %v6774, %v6770
    %v6831 = vpack.c.b16 %v6775, %v6771
    %v6832 = vpack.c.b16 %v6780, %v6776
    %v6833 = vpack.c.b16 %v6781, %v6777
    %v6834 = vpack.c.b16 %v6782, %v6778
    %v6835 = vpack.c.b16 %v6783, %v6779
    %v6836 = vpack.c.b16 %v6788, %v6784
    %v6837 = vpack.c.b16 %v6789, %v6785
    %v6838 = vpack.c.b16 %v6790, %v6786
    %v6839 = vpack.c.b16 %v6791, %v6787
    %v6840 = vpack.c.b16 %v6796, %v6792
    %v6841 = vpack.c.b16 %v6797, %v6793
    %v6842 = vpack.c.b16 %v6798, %v6794
    %v6843 = vpack.c.b16 %v6799, %v6795
    %v6844 = vpack.c.b16 %v6804, %v6800
    %v6845 = vpack.c.b16 %v6805, %v6801
    %v6846 = vpack.c.b16 %v6806, %v6802
    %v6847 = vpack.c.b16 %v6807, %v6803
    %v6848 = vpack.c.b16 %v6812, %v6808
    %v6849 = vpack.c.b16 %v6813, %v6809
    %v6850 = vpack.c.b16 %v6814, %v6810
    %v6851 = vpack.c.b16 %v6815, %v6811
    %v6852 = vpack.c.b16 %v6820, %v6816
    %v6853 = vpack.c.b16 %v6821, %v6817
    %v6854 = vpack.c.b16 %v6822, %v6818
    %v6855 = vpack.c.b16 %v6823, %v6819
    %6888 = vmatpush.bf16.msra.mxu0 %v6852
    %6889 = vmatpush.bf16.msra.mxu0 %v6848
    %6890 = vmatpush.bf16.msra.mxu0 %v6844
    %6891 = vmatpush.bf16.msra.mxu0 %v6840
    %6892 = vmatpush.bf16.msra.mxu0 %v6836
    %6893 = vmatpush.bf16.msra.mxu0 %v6832
    %6894 = vmatpush.bf16.msra.mxu0 %v6828
    %6895 = vmatpush.bf16.msra.mxu0 %v6824
    %6896 = vmatmul.bf16.gmra.mxu0 %v6450
    %v6897 = vpop.f32.mrf.mxu0
    %v6898 = vadd.f32 %v6686, %v6897
    %v6899 = vpop.f32.mrf.mxu0
    %6900 = vdwg.mxu0
    %6901 = vmatpush.bf16.msra.mxu0 %v6853
    %6902 = vmatpush.bf16.msra.mxu0 %v6849
    %6903 = vmatpush.bf16.msra.mxu0 %v6845
    %6904 = vmatpush.bf16.msra.mxu0 %v6841
    %6905 = vmatpush.bf16.msra.mxu0 %v6837
    %6906 = vmatpush.bf16.msra.mxu0 %v6833
    %6907 = vmatpush.bf16.msra.mxu0 %v6829
    %6908 = vmatpush.bf16.msra.mxu0 %v6825
    %6909 = vmatmul.bf16.gmra.mxu0 %v6450
    %v6910 = vpop.f32.mrf.mxu0
    %v6911 = vadd.f32 %v6699, %v6910
    %v6912 = vpop.f32.mrf.mxu0
    %6913 = vdwg.mxu0
    %6914 = vmatpush.bf16.msra.mxu0 %v6854
    %6915 = vmatpush.bf16.msra.mxu0 %v6850
    %6916 = vmatpush.bf16.msra.mxu0 %v6846
    %6917 = vmatpush.bf16.msra.mxu0 %v6842
    %6918 = vmatpush.bf16.msra.mxu0 %v6838
    %6919 = vmatpush.bf16.msra.mxu0 %v6834
    %6920 = vmatpush.bf16.msra.mxu0 %v6830
    %6921 = vmatpush.bf16.msra.mxu0 %v6826
    %6922 = vmatmul.bf16.gmra.mxu0 %v6450
    %v6923 = vpop.f32.mrf.mxu0
    %v6924 = vadd.f32 %v6712, %v6923
    %v6925 = vpop.f32.mrf.mxu0
    %6926 = vdwg.mxu0
    %6927 = vmatpush.bf16.msra.mxu0 %v6855
    %6928 = vmatpush.bf16.msra.mxu0 %v6851
    %6929 = vmatpush.bf16.msra.mxu0 %v6847
    %6930 = vmatpush.bf16.msra.mxu0 %v6843
    %6931 = vmatpush.bf16.msra.mxu0 %v6839
    %6932 = vmatpush.bf16.msra.mxu0 %v6835
    %6933 = vmatpush.bf16.msra.mxu0 %v6831
    %6934 = vmatpush.bf16.msra.mxu0 %v6827
    %6935 = vmatmul.bf16.gmra.mxu0 %v6450
    %v6936 = vpop.f32.mrf.mxu0
    %v6937 = vadd.f32 %v6725, %v6936
    %v6938 = vpop.f32.mrf.mxu0
    %6939 = vdwg.mxu0
    %v6940 = vld [vmem:[%s976] sm:$0xf]
    %v6942 = vperm.slane %v6940, 0
    %v6943 = vperm.slane %v6940, 1
    %v6944 = vperm.slane %v6940, 2
    %v6945 = vperm.slane %v6940, 3
    %v6950 = vadd.f32 %v6898, %v6942
    %v6951 = vadd.f32 %v6911, %v6943
    %v6952 = vadd.f32 %v6924, %v6944
    %v6953 = vadd.f32 %v6937, %v6945
    %v6954 = vxor.u32 %v6950, 2147483648
    %v6955 = vmul.f32 %v6954, 1.442695
    %v6956 = vpow.pop %v6955
    %v6957 = vadd.f32 %v6956, 1.0
    %v6958 = vrcp.pop %v6957
    %v6959 = vmul.f32 %v6957, %v6958
    %v6960 = vsub.f32 1.0, %v6959
    %v6961 = vmul.f32 %v6958, %v6960
    %v6962 = vadd.f32 %v6958, %v6961
    %vm6963 = vweird.f32 %v6957
    %vm6964 = vweird.f32 %v6958
    %vm6965 = vmor %vm6963, %vm6964
    %v6966 = vsel %vm6965, %v6958, %v6962
    %v6967 = vand.u32 2147483647, %v6957
    %vm6968 = vcmp.eq.f32.partialorder %v6967, 8.507059e+37
    %v6969 = vand.u32 %v6957, 2147483648
    %v6970 = vor.u32 1.1754944e-38, %v6969
    %v6971 = vsel %vm6968, %v6970, %v6966
    %v6972 = vmul.f32 1.0, %v6971
    %v6973 = vxor.u32 %v6951, 2147483648
    %v6974 = vmul.f32 %v6973, 1.442695
    %v6975 = vpow.pop %v6974
    %v6976 = vadd.f32 %v6975, 1.0
    %v6977 = vrcp.pop %v6976
    %v6978 = vmul.f32 %v6976, %v6977
    %v6979 = vsub.f32 1.0, %v6978
    %v6980 = vmul.f32 %v6977, %v6979
    %v6981 = vadd.f32 %v6977, %v6980
    %vm6982 = vweird.f32 %v6976
    %vm6983 = vweird.f32 %v6977
    %vm6984 = vmor %vm6982, %vm6983
    %v6985 = vsel %vm6984, %v6977, %v6981
    %v6986 = vand.u32 2147483647, %v6976
    %vm6987 = vcmp.eq.f32.partialorder %v6986, 8.507059e+37
    %v6988 = vand.u32 %v6976, 2147483648
    %v6989 = vor.u32 1.1754944e-38, %v6988
    %v6990 = vsel %vm6987, %v6989, %v6985
    %v6991 = vmul.f32 1.0, %v6990
    %v6992 = vtanh.pop %v6952
    %v6993 = vxor.u32 %v6953, 2147483648
    %v6994 = vmul.f32 %v6993, 1.442695
    %v6995 = vpow.pop %v6994
    %v6996 = vadd.f32 %v6995, 1.0
    %v6997 = vrcp.pop %v6996
    %v6998 = vmul.f32 %v6996, %v6997
    %v6999 = vsub.f32 1.0, %v6998
    %v7000 = vmul.f32 %v6997, %v6999
    %v7001 = vadd.f32 %v6997, %v7000
    %vm7002 = vweird.f32 %v6996
    %vm7003 = vweird.f32 %v6997
    %vm7004 = vmor %vm7002, %vm7003
    %v7005 = vsel %vm7004, %v6997, %v7001
    %v7006 = vand.u32 2147483647, %v6996
    %vm7007 = vcmp.eq.f32.partialorder %v7006, 8.507059e+37
    %v7008 = vand.u32 %v6996, 2147483648
    %v7009 = vor.u32 1.1754944e-38, %v7008
    %v7010 = vsel %vm7007, %v7009, %v7005
    %v7011 = vmul.f32 1.0, %v7010
    %v7012 = vmul.f32 %v6991, %v6020
    %v7013 = vmul.f32 %v6972, %v6992
    %v7014 = vadd.f32 %v7012, %v7013
    %v7015 = vtanh.pop %v7014
    %v7016 = vmul.f32 %v7011, %v7015
    %s7017 = scalar_lea.vmem [#allocation2], 12
    %7018 = vst [vmem:[%s7017] sm:$0x3] %v7016
    %s7019 = scalar_lea.vmem %s0, 14
    %v7020 = vld [vmem:[%s7019] sm:$0x3]
    %v7021 = vld [vmem:[%s1] sm:$0xff]
    %v7022 = vld [vmem:[%s1 + $0x8] sm:$0xff]
    %v7023 = vld [vmem:[#allocation6] sm:$0xff]
    %v7024 = vld [vmem:[#allocation6 + $0x8] sm:$0xff]
    %v7025 = vld [vmem:[#allocation6 + $0x10] sm:$0xff]
    %v7026 = vld [vmem:[#allocation6 + $0x18] sm:$0xff]
    %v7027 = vld [vmem:[#allocation6 + $0x20] sm:$0xff]
    %v7028 = vld [vmem:[#allocation6 + $0x28] sm:$0xff]
    %v7029 = vld [vmem:[#allocation6 + $0x30] sm:$0xff]
    %v7030 = vld [vmem:[#allocation6 + $0x38] sm:$0xff]
    %v7031 = vld [vmem:[#allocation6 + $0x40] sm:$0xff]
    %v7032 = vld [vmem:[#allocation6 + $0x48] sm:$0xff]
    %v7033 = vld [vmem:[#allocation6 + $0x50] sm:$0xff]
    %v7034 = vld [vmem:[#allocation6 + $0x58] sm:$0xff]
    %v7035 = vld [vmem:[#allocation6 + $0x60] sm:$0xff]
    %v7036 = vld [vmem:[#allocation6 + $0x68] sm:$0xff]
    %v7037 = vld [vmem:[#allocation6 + $0x70] sm:$0xff]
    %v7038 = vld [vmem:[#allocation6 + $0x78] sm:$0xff]
    %v7039 = vld [vmem:[#allocation6 + $0x80] sm:$0xff]
    %v7040 = vld [vmem:[#allocation6 + $0x88] sm:$0xff]
    %v7041 = vld [vmem:[#allocation6 + $0x90] sm:$0xff]
    %v7042 = vld [vmem:[#allocation6 + $0x98] sm:$0xff]
    %v7043 = vld [vmem:[#allocation6 + $0xa0] sm:$0xff]
    %v7044 = vld [vmem:[#allocation6 + $0xa8] sm:$0xff]
    %v7045 = vld [vmem:[#allocation6 + $0xb0] sm:$0xff]
    %v7046 = vld [vmem:[#allocation6 + $0xb8] sm:$0xff]
    %v7047 = vld [vmem:[#allocation6 + $0xc0] sm:$0xff]
    %v7048 = vld [vmem:[#allocation6 + $0xc8] sm:$0xff]
    %v7049 = vld [vmem:[#allocation6 + $0xd0] sm:$0xff]
    %v7050 = vld [vmem:[#allocation6 + $0xd8] sm:$0xff]
    %v7051 = vld [vmem:[#allocation6 + $0xe0] sm:$0xff]
    %v7052 = vld [vmem:[#allocation6 + $0xe8] sm:$0xff]
    %v7053 = vld [vmem:[#allocation6 + $0xf0] sm:$0xff]
    %v7054 = vld [vmem:[#allocation6 + $0xf8] sm:$0xff]
    %v7087 = vunpack.c.l.b16 %v7023
    %v7088 = vunpack.c.h.b16 %v7023
    %v7089 = vunpack.c.l.b16 %v7024
    %v7090 = vunpack.c.h.b16 %v7024
    %v7091 = vunpack.c.l.b16 %v7025
    %v7092 = vunpack.c.h.b16 %v7025
    %v7093 = vunpack.c.l.b16 %v7026
    %v7094 = vunpack.c.h.b16 %v7026
    %v7095 = vunpack.c.l.b16 %v7027
    %v7096 = vunpack.c.h.b16 %v7027
    %v7097 = vunpack.c.l.b16 %v7028
    %v7098 = vunpack.c.h.b16 %v7028
    %v7099 = vunpack.c.l.b16 %v7029
    %v7100 = vunpack.c.h.b16 %v7029
    %v7101 = vunpack.c.l.b16 %v7030
    %v7102 = vunpack.c.h.b16 %v7030
    %v7103 = vunpack.c.l.b16 %v7031
    %v7104 = vunpack.c.h.b16 %v7031
    %v7105 = vunpack.c.l.b16 %v7032
    %v7106 = vunpack.c.h.b16 %v7032
    %v7107 = vunpack.c.l.b16 %v7033
    %v7108 = vunpack.c.h.b16 %v7033
    %v7109 = vunpack.c.l.b16 %v7034
    %v7110 = vunpack.c.h.b16 %v7034
    %v7111 = vunpack.c.l.b16 %v7035
    %v7112 = vunpack.c.h.b16 %v7035
    %v7113 = vunpack.c.l.b16 %v7036
    %v7114 = vunpack.c.h.b16 %v7036
    %v7115 = vunpack.c.l.b16 %v7037
    %v7116 = vunpack.c.h.b16 %v7037
    %v7117 = vunpack.c.l.b16 %v7038
    %v7118 = vunpack.c.h.b16 %v7038
    %v7119 = vunpack.c.l.b16 %v7039
    %v7120 = vunpack.c.h.b16 %v7039
    %v7121 = vunpack.c.l.b16 %v7040
    %v7122 = vunpack.c.h.b16 %v7040
    %v7123 = vunpack.c.l.b16 %v7041
    %v7124 = vunpack.c.h.b16 %v7041
    %v7125 = vunpack.c.l.b16 %v7042
    %v7126 = vunpack.c.h.b16 %v7042
    %v7127 = vunpack.c.l.b16 %v7043
    %v7128 = vunpack.c.h.b16 %v7043
    %v7129 = vunpack.c.l.b16 %v7044
    %v7130 = vunpack.c.h.b16 %v7044
    %v7131 = vunpack.c.l.b16 %v7045
    %v7132 = vunpack.c.h.b16 %v7045
    %v7133 = vunpack.c.l.b16 %v7046
    %v7134 = vunpack.c.h.b16 %v7046
    %v7135 = vunpack.c.l.b16 %v7047
    %v7136 = vunpack.c.h.b16 %v7047
    %v7137 = vunpack.c.l.b16 %v7048
    %v7138 = vunpack.c.h.b16 %v7048
    %v7139 = vunpack.c.l.b16 %v7049
    %v7140 = vunpack.c.h.b16 %v7049
    %v7141 = vunpack.c.l.b16 %v7050
    %v7142 = vunpack.c.h.b16 %v7050
    %v7143 = vunpack.c.l.b16 %v7051
    %v7144 = vunpack.c.h.b16 %v7051
    %v7145 = vunpack.c.l.b16 %v7052
    %v7146 = vunpack.c.h.b16 %v7052
    %v7147 = vunpack.c.l.b16 %v7053
    %v7148 = vunpack.c.h.b16 %v7053
    %v7149 = vunpack.c.l.b16 %v7054
    %v7150 = vunpack.c.h.b16 %v7054
    %v7151 = vpack.c.b16 %v7091, %v7087
    %v7152 = vpack.c.b16 %v7092, %v7088
    %v7153 = vpack.c.b16 %v7093, %v7089
    %v7154 = vpack.c.b16 %v7094, %v7090
    %v7155 = vpack.c.b16 %v7099, %v7095
    %v7156 = vpack.c.b16 %v7100, %v7096
    %v7157 = vpack.c.b16 %v7101, %v7097
    %v7158 = vpack.c.b16 %v7102, %v7098
    %v7159 = vpack.c.b16 %v7107, %v7103
    %v7160 = vpack.c.b16 %v7108, %v7104
    %v7161 = vpack.c.b16 %v7109, %v7105
    %v7162 = vpack.c.b16 %v7110, %v7106
    %v7163 = vpack.c.b16 %v7115, %v7111
    %v7164 = vpack.c.b16 %v7116, %v7112
    %v7165 = vpack.c.b16 %v7117, %v7113
    %v7166 = vpack.c.b16 %v7118, %v7114
    %v7167 = vpack.c.b16 %v7123, %v7119
    %v7168 = vpack.c.b16 %v7124, %v7120
    %v7169 = vpack.c.b16 %v7125, %v7121
    %v7170 = vpack.c.b16 %v7126, %v7122
    %v7171 = vpack.c.b16 %v7131, %v7127
    %v7172 = vpack.c.b16 %v7132, %v7128
    %v7173 = vpack.c.b16 %v7133, %v7129
    %v7174 = vpack.c.b16 %v7134, %v7130
    %v7175 = vpack.c.b16 %v7139, %v7135
    %v7176 = vpack.c.b16 %v7140, %v7136
    %v7177 = vpack.c.b16 %v7141, %v7137
    %v7178 = vpack.c.b16 %v7142, %v7138
    %v7179 = vpack.c.b16 %v7147, %v7143
    %v7180 = vpack.c.b16 %v7148, %v7144
    %v7181 = vpack.c.b16 %v7149, %v7145
    %v7182 = vpack.c.b16 %v7150, %v7146
    %7215 = vmatpush.bf16.msra.mxu0 %v7179
    %7216 = vmatpush.bf16.msra.mxu0 %v7175
    %7217 = vmatpush.bf16.msra.mxu0 %v7171
    %7218 = vmatpush.bf16.msra.mxu0 %v7167
    %7219 = vmatpush.bf16.msra.mxu0 %v7163
    %7220 = vmatpush.bf16.msra.mxu0 %v7159
    %7221 = vmatpush.bf16.msra.mxu0 %v7155
    %7222 = vmatpush.bf16.msra.mxu0 %v7151
    %7223 = vmatmul.bf16.gmra.mxu0 %v6450
    %v7224 = vpop.f32.mrf.mxu0
    %v7225 = vadd.f32 0.0, %v7224
    %v7226 = vpop.f32.mrf.mxu0
    %7227 = vdwg.mxu0
    %7228 = vmatpush.bf16.msra.mxu0 %v7180
    %7229 = vmatpush.bf16.msra.mxu0 %v7176
    %7230 = vmatpush.bf16.msra.mxu0 %v7172
    %7231 = vmatpush.bf16.msra.mxu0 %v7168
    %7232 = vmatpush.bf16.msra.mxu0 %v7164
    %7233 = vmatpush.bf16.msra.mxu0 %v7160
    %7234 = vmatpush.bf16.msra.mxu0 %v7156
    %7235 = vmatpush.bf16.msra.mxu0 %v7152
    %7236 = vmatmul.bf16.gmra.mxu0 %v6450
    %v7237 = vpop.f32.mrf.mxu0
    %v7238 = vadd.f32 0.0, %v7237
    %v7239 = vpop.f32.mrf.mxu0
    %7240 = vdwg.mxu0
    %7241 = vmatpush.bf16.msra.mxu0 %v7181
    %7242 = vmatpush.bf16.msra.mxu0 %v7177
    %7243 = vmatpush.bf16.msra.mxu0 %v7173
    %7244 = vmatpush.bf16.msra.mxu0 %v7169
    %7245 = vmatpush.bf16.msra.mxu0 %v7165
    %7246 = vmatpush.bf16.msra.mxu0 %v7161
    %7247 = vmatpush.bf16.msra.mxu0 %v7157
    %7248 = vmatpush.bf16.msra.mxu0 %v7153
    %7249 = vmatmul.bf16.gmra.mxu0 %v6450
    %v7250 = vpop.f32.mrf.mxu0
    %v7251 = vadd.f32 0.0, %v7250
    %v7252 = vpop.f32.mrf.mxu0
    %7253 = vdwg.mxu0
    %7254 = vmatpush.bf16.msra.mxu0 %v7182
    %7255 = vmatpush.bf16.msra.mxu0 %v7178
    %7256 = vmatpush.bf16.msra.mxu0 %v7174
    %7257 = vmatpush.bf16.msra.mxu0 %v7170
    %7258 = vmatpush.bf16.msra.mxu0 %v7166
    %7259 = vmatpush.bf16.msra.mxu0 %v7162
    %7260 = vmatpush.bf16.msra.mxu0 %v7158
    %7261 = vmatpush.bf16.msra.mxu0 %v7154
    %7262 = vmatmul.bf16.gmra.mxu0 %v6450
    %v7263 = vpop.f32.mrf.mxu0
    %v7264 = vadd.f32 0.0, %v7263
    %v7265 = vpop.f32.mrf.mxu0
    %7266 = vdwg.mxu0
    %7269 = vst [vmem:[#allocation1] ss:$2 sm:$0xff] %v7021
    %s7270 = scalar_lea.vmem [#allocation1], 16
    %7271 = vst [vmem:[%s7270] ss:$2 sm:$0xff] %v7022
    %v7272 = vld.sshfl [vmem:[#allocation1] sm:$0xff pattern:$0x75316420]
    %v7273 = vld.sshfl [vmem:[#allocation1 + $0x8] sm:$0xff pattern:$0x75316420]
    %v7274 = vld.sshfl [vmem:[#allocation1 + $0x10] sm:$0xff pattern:$0x75316420]
    %v7275 = vld.sshfl [vmem:[#allocation1 + $0x18] sm:$0xff pattern:$0x75316420]
    %v7277 = vsel %vm316, %v7020, 0
    %v7279 = vsel %vm320, %v7272, 0
    %v7281 = vsel %vm320, %v7273, 0
    %v7283 = vsel %vm320, %v7274, 0
    %v7285 = vsel %vm320, %v7275, 0
    %7287 = vmatpush.msra.mxu0 0.0
    %7288 = vmatpush.msra.mxu0 0.0
    %7289 = vmatpush.msra.mxu0 0.0
    %7290 = vmatpush.msra.mxu0 0.0
    %7291 = vmatpush.msra.mxu0 0.0
    %7292 = vmatpush.msra.mxu0 0.0
    %7293 = vmatpush.msra.mxu0 0.0
    %7294 = vmatpush.msra.mxu0 0.0
    %7295 = vmatpush.msra.mxu0 0.0
    %7296 = vmatpush.msra.mxu0 0.0
    %7297 = vmatpush.msra.mxu0 0.0
    %7298 = vmatpush.msra.mxu0 0.0
    %7299 = vmatpush.msra.mxu0 0.0
    %7300 = vmatpush.msra.mxu0 0.0
    %7301 = vmatpush.msra.mxu0 0.0
    %7302 = vmatpush.msra.mxu0 %v7279
    %7303 = vmatmul.f32.gmra.mxu0 %v7277
    %v7304 = vpop.f32.mrf.mxu0
    %v7305 = vadd.f32 %v7225, %v7304
    %7306 = vdwg.mxu0
    %7307 = vmatpush.msra.mxu0 0.0
    %7308 = vmatpush.msra.mxu0 0.0
    %7309 = vmatpush.msra.mxu0 0.0
    %7310 = vmatpush.msra.mxu0 0.0
    %7311 = vmatpush.msra.mxu0 0.0
    %7312 = vmatpush.msra.mxu0 0.0
    %7313 = vmatpush.msra.mxu0 0.0
    %7314 = vmatpush.msra.mxu0 0.0
    %7315 = vmatpush.msra.mxu0 0.0
    %7316 = vmatpush.msra.mxu0 0.0
    %7317 = vmatpush.msra.mxu0 0.0
    %7318 = vmatpush.msra.mxu0 0.0
    %7319 = vmatpush.msra.mxu0 0.0
    %7320 = vmatpush.msra.mxu0 0.0
    %7321 = vmatpush.msra.mxu0 0.0
    %7322 = vmatpush.msra.mxu0 %v7281
    %7323 = vmatmul.f32.gmra.mxu0 %v7277
    %v7324 = vpop.f32.mrf.mxu0
    %v7325 = vadd.f32 %v7238, %v7324
    %7326 = vdwg.mxu0
    %7327 = vmatpush.msra.mxu0 0.0
    %7328 = vmatpush.msra.mxu0 0.0
    %7329 = vmatpush.msra.mxu0 0.0
    %7330 = vmatpush.msra.mxu0 0.0
    %7331 = vmatpush.msra.mxu0 0.0
    %7332 = vmatpush.msra.mxu0 0.0
    %7333 = vmatpush.msra.mxu0 0.0
    %7334 = vmatpush.msra.mxu0 0.0
    %7335 = vmatpush.msra.mxu0 0.0
    %7336 = vmatpush.msra.mxu0 0.0
    %7337 = vmatpush.msra.mxu0 0.0
    %7338 = vmatpush.msra.mxu0 0.0
    %7339 = vmatpush.msra.mxu0 0.0
    %7340 = vmatpush.msra.mxu0 0.0
    %7341 = vmatpush.msra.mxu0 0.0
    %7342 = vmatpush.msra.mxu0 %v7283
    %7343 = vmatmul.f32.gmra.mxu0 %v7277
    %v7344 = vpop.f32.mrf.mxu0
    %v7345 = vadd.f32 %v7251, %v7344
    %7346 = vdwg.mxu0
    %7347 = vmatpush.msra.mxu0 0.0
    %7348 = vmatpush.msra.mxu0 0.0
    %7349 = vmatpush.msra.mxu0 0.0
    %7350 = vmatpush.msra.mxu0 0.0
    %7351 = vmatpush.msra.mxu0 0.0
    %7352 = vmatpush.msra.mxu0 0.0
    %7353 = vmatpush.msra.mxu0 0.0
    %7354 = vmatpush.msra.mxu0 0.0
    %7355 = vmatpush.msra.mxu0 0.0
    %7356 = vmatpush.msra.mxu0 0.0
    %7357 = vmatpush.msra.mxu0 0.0
    %7358 = vmatpush.msra.mxu0 0.0
    %7359 = vmatpush.msra.mxu0 0.0
    %7360 = vmatpush.msra.mxu0 0.0
    %7361 = vmatpush.msra.mxu0 0.0
    %7362 = vmatpush.msra.mxu0 %v7285
    %7363 = vmatmul.f32.gmra.mxu0 %v7277
    %v7364 = vpop.f32.mrf.mxu0
    %v7365 = vadd.f32 %v7264, %v7364
    %7366 = vdwg.mxu0
    %v7367 = vld [vmem:[%s4] sm:$0xf]
    %v7369 = vperm.slane %v7367, 0
    %v7370 = vperm.slane %v7367, 1
    %v7371 = vperm.slane %v7367, 2
    %v7372 = vperm.slane %v7367, 3
    %v7377 = vadd.f32 %v7305, %v7369
    %v7378 = vadd.f32 %v7325, %v7370
    %v7379 = vadd.f32 %v7345, %v7371
    %v7380 = vadd.f32 %v7365, %v7372
    %v7381 = vxor.u32 %v7377, 2147483648
    %v7382 = vmul.f32 %v7381, 1.442695
    %v7383 = vpow.pop %v7382
    %v7384 = vadd.f32 %v7383, 1.0
    %v7385 = vrcp.pop %v7384
    %v7386 = vmul.f32 %v7384, %v7385
    %v7387 = vsub.f32 1.0, %v7386
    %v7388 = vmul.f32 %v7385, %v7387
    %v7389 = vadd.f32 %v7385, %v7388
    %vm7390 = vweird.f32 %v7384
    %vm7391 = vweird.f32 %v7385
    %vm7392 = vmor %vm7390, %vm7391
    %v7393 = vsel %vm7392, %v7385, %v7389
    %v7394 = vand.u32 2147483647, %v7384
    %vm7395 = vcmp.eq.f32.partialorder %v7394, 8.507059e+37
    %v7396 = vand.u32 %v7384, 2147483648
    %v7397 = vor.u32 1.1754944e-38, %v7396
    %v7398 = vsel %vm7395, %v7397, %v7393
    %v7399 = vmul.f32 1.0, %v7398
    %v7400 = vxor.u32 %v7378, 2147483648
    %v7401 = vmul.f32 %v7400, 1.442695
    %v7402 = vpow.pop %v7401
    %v7403 = vadd.f32 %v7402, 1.0
    %v7404 = vrcp.pop %v7403
    %v7405 = vmul.f32 %v7403, %v7404
    %v7406 = vsub.f32 1.0, %v7405
    %v7407 = vmul.f32 %v7404, %v7406
    %v7408 = vadd.f32 %v7404, %v7407
    %vm7409 = vweird.f32 %v7403
    %vm7410 = vweird.f32 %v7404
    %vm7411 = vmor %vm7409, %vm7410
    %v7412 = vsel %vm7411, %v7404, %v7408
    %v7413 = vand.u32 2147483647, %v7403
    %vm7414 = vcmp.eq.f32.partialorder %v7413, 8.507059e+37
    %v7415 = vand.u32 %v7403, 2147483648
    %v7416 = vor.u32 1.1754944e-38, %v7415
    %v7417 = vsel %vm7414, %v7416, %v7412
    %v7418 = vmul.f32 1.0, %v7417
    %v7419 = vtanh.pop %v7379
    %v7420 = vxor.u32 %v7380, 2147483648
    %v7421 = vmul.f32 %v7420, 1.442695
    %v7422 = vpow.pop %v7421
    %v7423 = vadd.f32 %v7422, 1.0
    %v7424 = vrcp.pop %v7423
    %v7425 = vmul.f32 %v7423, %v7424
    %v7426 = vsub.f32 1.0, %v7425
    %v7427 = vmul.f32 %v7424, %v7426
    %v7428 = vadd.f32 %v7424, %v7427
    %vm7429 = vweird.f32 %v7423
    %vm7430 = vweird.f32 %v7424
    %vm7431 = vmor %vm7429, %vm7430
    %v7432 = vsel %vm7431, %v7424, %v7428
    %v7433 = vand.u32 2147483647, %v7423
    %vm7434 = vcmp.eq.f32.partialorder %v7433, 8.507059e+37
    %v7435 = vand.u32 %v7423, 2147483648
    %v7436 = vor.u32 1.1754944e-38, %v7435
    %v7437 = vsel %vm7434, %v7436, %v7432
    %v7438 = vmul.f32 1.0, %v7437
    %v7439 = vmul.f32 %v7418, %v6447
    %v7440 = vmul.f32 %v7399, %v7419
    %v7441 = vadd.f32 %v7439, %v7440
    %v7442 = vtanh.pop %v7441
    %v7443 = vmul.f32 %v7438, %v7442
    %v7444 = vpack.c.bf16 %v7443, %v7443
    %v7445 = vld [vmem:[#allocation4] sm:$0xff]
    %v7446 = vld [vmem:[#allocation4 + $0x8] sm:$0xff]
    %v7447 = vld [vmem:[#allocation4 + $0x10] sm:$0xff]
    %v7448 = vld [vmem:[#allocation4 + $0x18] sm:$0xff]
    %v7449 = vld [vmem:[#allocation4 + $0x20] sm:$0xff]
    %v7450 = vld [vmem:[#allocation4 + $0x28] sm:$0xff]
    %v7451 = vld [vmem:[#allocation4 + $0x30] sm:$0xff]
    %v7452 = vld [vmem:[#allocation4 + $0x38] sm:$0xff]
    %v7453 = vld [vmem:[#allocation4 + $0x40] sm:$0xff]
    %v7454 = vld [vmem:[#allocation4 + $0x48] sm:$0xff]
    %v7455 = vld [vmem:[#allocation4 + $0x50] sm:$0xff]
    %v7456 = vld [vmem:[#allocation4 + $0x58] sm:$0xff]
    %v7457 = vld [vmem:[#allocation4 + $0x60] sm:$0xff]
    %v7458 = vld [vmem:[#allocation4 + $0x68] sm:$0xff]
    %v7459 = vld [vmem:[#allocation4 + $0x70] sm:$0xff]
    %v7460 = vld [vmem:[#allocation4 + $0x78] sm:$0xff]
    %v7461 = vld [vmem:[#allocation4 + $0x80] sm:$0xff]
    %v7462 = vld [vmem:[#allocation4 + $0x88] sm:$0xff]
    %v7463 = vld [vmem:[#allocation4 + $0x90] sm:$0xff]
    %v7464 = vld [vmem:[#allocation4 + $0x98] sm:$0xff]
    %v7465 = vld [vmem:[#allocation4 + $0xa0] sm:$0xff]
    %v7466 = vld [vmem:[#allocation4 + $0xa8] sm:$0xff]
    %v7467 = vld [vmem:[#allocation4 + $0xb0] sm:$0xff]
    %v7468 = vld [vmem:[#allocation4 + $0xb8] sm:$0xff]
    %v7469 = vld [vmem:[#allocation4 + $0xc0] sm:$0xff]
    %v7470 = vld [vmem:[#allocation4 + $0xc8] sm:$0xff]
    %v7471 = vld [vmem:[#allocation4 + $0xd0] sm:$0xff]
    %v7472 = vld [vmem:[#allocation4 + $0xd8] sm:$0xff]
    %v7473 = vld [vmem:[#allocation4 + $0xe0] sm:$0xff]
    %v7474 = vld [vmem:[#allocation4 + $0xe8] sm:$0xff]
    %v7475 = vld [vmem:[#allocation4 + $0xf0] sm:$0xff]
    %v7476 = vld [vmem:[#allocation4 + $0xf8] sm:$0xff]
    %v7477 = vpack.c.bf16 %v7016, %v7016
    %v7478 = vld [vmem:[%s519] sm:$0xff]
    %v7479 = vld [vmem:[%s519 + $0x8] sm:$0xff]
    %v7480 = vld [vmem:[%s519 + $0x10] sm:$0xff]
    %v7481 = vld [vmem:[%s519 + $0x18] sm:$0xff]
    %v7482 = vld [vmem:[%s519 + $0x20] sm:$0xff]
    %v7483 = vld [vmem:[%s519 + $0x28] sm:$0xff]
    %v7484 = vld [vmem:[%s519 + $0x30] sm:$0xff]
    %v7485 = vld [vmem:[%s519 + $0x38] sm:$0xff]
    %v7486 = vld [vmem:[%s519 + $0x40] sm:$0xff]
    %v7487 = vld [vmem:[%s519 + $0x48] sm:$0xff]
    %v7488 = vld [vmem:[%s519 + $0x50] sm:$0xff]
    %v7489 = vld [vmem:[%s519 + $0x58] sm:$0xff]
    %v7490 = vld [vmem:[%s519 + $0x60] sm:$0xff]
    %v7491 = vld [vmem:[%s519 + $0x68] sm:$0xff]
    %v7492 = vld [vmem:[%s519 + $0x70] sm:$0xff]
    %v7493 = vld [vmem:[%s519 + $0x78] sm:$0xff]
    %v7494 = vld [vmem:[%s519 + $0x80] sm:$0xff]
    %v7495 = vld [vmem:[%s519 + $0x88] sm:$0xff]
    %v7496 = vld [vmem:[%s519 + $0x90] sm:$0xff]
    %v7497 = vld [vmem:[%s519 + $0x98] sm:$0xff]
    %v7498 = vld [vmem:[%s519 + $0xa0] sm:$0xff]
    %v7499 = vld [vmem:[%s519 + $0xa8] sm:$0xff]
    %v7500 = vld [vmem:[%s519 + $0xb0] sm:$0xff]
    %v7501 = vld [vmem:[%s519 + $0xb8] sm:$0xff]
    %v7502 = vld [vmem:[%s519 + $0xc0] sm:$0xff]
    %v7503 = vld [vmem:[%s519 + $0xc8] sm:$0xff]
    %v7504 = vld [vmem:[%s519 + $0xd0] sm:$0xff]
    %v7505 = vld [vmem:[%s519 + $0xd8] sm:$0xff]
    %v7506 = vld [vmem:[%s519 + $0xe0] sm:$0xff]
    %v7507 = vld [vmem:[%s519 + $0xe8] sm:$0xff]
    %v7508 = vld [vmem:[%s519 + $0xf0] sm:$0xff]
    %v7509 = vld [vmem:[%s519 + $0xf8] sm:$0xff]
    %v7542 = vunpack.c.l.b16 %v7478
    %v7543 = vunpack.c.h.b16 %v7478
    %v7544 = vunpack.c.l.b16 %v7479
    %v7545 = vunpack.c.h.b16 %v7479
    %v7546 = vunpack.c.l.b16 %v7480
    %v7547 = vunpack.c.h.b16 %v7480
    %v7548 = vunpack.c.l.b16 %v7481
    %v7549 = vunpack.c.h.b16 %v7481
    %v7550 = vunpack.c.l.b16 %v7482
    %v7551 = vunpack.c.h.b16 %v7482
    %v7552 = vunpack.c.l.b16 %v7483
    %v7553 = vunpack.c.h.b16 %v7483
    %v7554 = vunpack.c.l.b16 %v7484
    %v7555 = vunpack.c.h.b16 %v7484
    %v7556 = vunpack.c.l.b16 %v7485
    %v7557 = vunpack.c.h.b16 %v7485
    %v7558 = vunpack.c.l.b16 %v7486
    %v7559 = vunpack.c.h.b16 %v7486
    %v7560 = vunpack.c.l.b16 %v7487
    %v7561 = vunpack.c.h.b16 %v7487
    %v7562 = vunpack.c.l.b16 %v7488
    %v7563 = vunpack.c.h.b16 %v7488
    %v7564 = vunpack.c.l.b16 %v7489
    %v7565 = vunpack.c.h.b16 %v7489
    %v7566 = vunpack.c.l.b16 %v7490
    %v7567 = vunpack.c.h.b16 %v7490
    %v7568 = vunpack.c.l.b16 %v7491
    %v7569 = vunpack.c.h.b16 %v7491
    %v7570 = vunpack.c.l.b16 %v7492
    %v7571 = vunpack.c.h.b16 %v7492
    %v7572 = vunpack.c.l.b16 %v7493
    %v7573 = vunpack.c.h.b16 %v7493
    %v7574 = vunpack.c.l.b16 %v7494
    %v7575 = vunpack.c.h.b16 %v7494
    %v7576 = vunpack.c.l.b16 %v7495
    %v7577 = vunpack.c.h.b16 %v7495
    %v7578 = vunpack.c.l.b16 %v7496
    %v7579 = vunpack.c.h.b16 %v7496
    %v7580 = vunpack.c.l.b16 %v7497
    %v7581 = vunpack.c.h.b16 %v7497
    %v7582 = vunpack.c.l.b16 %v7498
    %v7583 = vunpack.c.h.b16 %v7498
    %v7584 = vunpack.c.l.b16 %v7499
    %v7585 = vunpack.c.h.b16 %v7499
    %v7586 = vunpack.c.l.b16 %v7500
    %v7587 = vunpack.c.h.b16 %v7500
    %v7588 = vunpack.c.l.b16 %v7501
    %v7589 = vunpack.c.h.b16 %v7501
    %v7590 = vunpack.c.l.b16 %v7502
    %v7591 = vunpack.c.h.b16 %v7502
    %v7592 = vunpack.c.l.b16 %v7503
    %v7593 = vunpack.c.h.b16 %v7503
    %v7594 = vunpack.c.l.b16 %v7504
    %v7595 = vunpack.c.h.b16 %v7504
    %v7596 = vunpack.c.l.b16 %v7505
    %v7597 = vunpack.c.h.b16 %v7505
    %v7598 = vunpack.c.l.b16 %v7506
    %v7599 = vunpack.c.h.b16 %v7506
    %v7600 = vunpack.c.l.b16 %v7507
    %v7601 = vunpack.c.h.b16 %v7507
    %v7602 = vunpack.c.l.b16 %v7508
    %v7603 = vunpack.c.h.b16 %v7508
    %v7604 = vunpack.c.l.b16 %v7509
    %v7605 = vunpack.c.h.b16 %v7509
    %v7606 = vpack.c.b16 %v7546, %v7542
    %v7607 = vpack.c.b16 %v7547, %v7543
    %v7608 = vpack.c.b16 %v7548, %v7544
    %v7609 = vpack.c.b16 %v7549, %v7545
    %v7610 = vpack.c.b16 %v7554, %v7550
    %v7611 = vpack.c.b16 %v7555, %v7551
    %v7612 = vpack.c.b16 %v7556, %v7552
    %v7613 = vpack.c.b16 %v7557, %v7553
    %v7614 = vpack.c.b16 %v7562, %v7558
    %v7615 = vpack.c.b16 %v7563, %v7559
    %v7616 = vpack.c.b16 %v7564, %v7560
    %v7617 = vpack.c.b16 %v7565, %v7561
    %v7618 = vpack.c.b16 %v7570, %v7566
    %v7619 = vpack.c.b16 %v7571, %v7567
    %v7620 = vpack.c.b16 %v7572, %v7568
    %v7621 = vpack.c.b16 %v7573, %v7569
    %v7622 = vpack.c.b16 %v7578, %v7574
    %v7623 = vpack.c.b16 %v7579, %v7575
    %v7624 = vpack.c.b16 %v7580, %v7576
    %v7625 = vpack.c.b16 %v7581, %v7577
    %v7626 = vpack.c.b16 %v7586, %v7582
    %v7627 = vpack.c.b16 %v7587, %v7583
    %v7628 = vpack.c.b16 %v7588, %v7584
    %v7629 = vpack.c.b16 %v7589, %v7585
    %v7630 = vpack.c.b16 %v7594, %v7590
    %v7631 = vpack.c.b16 %v7595, %v7591
    %v7632 = vpack.c.b16 %v7596, %v7592
    %v7633 = vpack.c.b16 %v7597, %v7593
    %v7634 = vpack.c.b16 %v7602, %v7598
    %v7635 = vpack.c.b16 %v7603, %v7599
    %v7636 = vpack.c.b16 %v7604, %v7600
    %v7637 = vpack.c.b16 %v7605, %v7601
    %7670 = vmatpush.bf16.msra.mxu0 %v7634
    %7671 = vmatpush.bf16.msra.mxu0 %v7630
    %7672 = vmatpush.bf16.msra.mxu0 %v7626
    %7673 = vmatpush.bf16.msra.mxu0 %v7622
    %7674 = vmatpush.bf16.msra.mxu0 %v7618
    %7675 = vmatpush.bf16.msra.mxu0 %v7614
    %7676 = vmatpush.bf16.msra.mxu0 %v7610
    %7677 = vmatpush.bf16.msra.mxu0 %v7606
    %7678 = vmatmul.bf16.gmra.mxu0 %v7477
    %v7679 = vpop.f32.mrf.mxu0
    %v7680 = vadd.f32 0.0, %v7679
    %v7681 = vpop.f32.mrf.mxu0
    %7682 = vdwg.mxu0
    %7683 = vmatpush.bf16.msra.mxu0 %v7635
    %7684 = vmatpush.bf16.msra.mxu0 %v7631
    %7685 = vmatpush.bf16.msra.mxu0 %v7627
    %7686 = vmatpush.bf16.msra.mxu0 %v7623
    %7687 = vmatpush.bf16.msra.mxu0 %v7619
    %7688 = vmatpush.bf16.msra.mxu0 %v7615
    %7689 = vmatpush.bf16.msra.mxu0 %v7611
    %7690 = vmatpush.bf16.msra.mxu0 %v7607
    %7691 = vmatmul.bf16.gmra.mxu0 %v7477
    %v7692 = vpop.f32.mrf.mxu0
    %v7693 = vadd.f32 0.0, %v7692
    %v7694 = vpop.f32.mrf.mxu0
    %7695 = vdwg.mxu0
    %7696 = vmatpush.bf16.msra.mxu0 %v7636
    %7697 = vmatpush.bf16.msra.mxu0 %v7632
    %7698 = vmatpush.bf16.msra.mxu0 %v7628
    %7699 = vmatpush.bf16.msra.mxu0 %v7624
    %7700 = vmatpush.bf16.msra.mxu0 %v7620
    %7701 = vmatpush.bf16.msra.mxu0 %v7616
    %7702 = vmatpush.bf16.msra.mxu0 %v7612
    %7703 = vmatpush.bf16.msra.mxu0 %v7608
    %7704 = vmatmul.bf16.gmra.mxu0 %v7477
    %v7705 = vpop.f32.mrf.mxu0
    %v7706 = vadd.f32 0.0, %v7705
    %v7707 = vpop.f32.mrf.mxu0
    %7708 = vdwg.mxu0
    %7709 = vmatpush.bf16.msra.mxu0 %v7637
    %7710 = vmatpush.bf16.msra.mxu0 %v7633
    %7711 = vmatpush.bf16.msra.mxu0 %v7629
    %7712 = vmatpush.bf16.msra.mxu0 %v7625
    %7713 = vmatpush.bf16.msra.mxu0 %v7621
    %7714 = vmatpush.bf16.msra.mxu0 %v7617
    %7715 = vmatpush.bf16.msra.mxu0 %v7613
    %7716 = vmatpush.bf16.msra.mxu0 %v7609
    %7717 = vmatmul.bf16.gmra.mxu0 %v7477
    %v7718 = vpop.f32.mrf.mxu0
    %v7719 = vadd.f32 0.0, %v7718
    %v7720 = vpop.f32.mrf.mxu0
    %7721 = vdwg.mxu0
    %v7754 = vunpack.c.l.b16 %v7445
    %v7755 = vunpack.c.h.b16 %v7445
    %v7756 = vunpack.c.l.b16 %v7446
    %v7757 = vunpack.c.h.b16 %v7446
    %v7758 = vunpack.c.l.b16 %v7447
    %v7759 = vunpack.c.h.b16 %v7447
    %v7760 = vunpack.c.l.b16 %v7448
    %v7761 = vunpack.c.h.b16 %v7448
    %v7762 = vunpack.c.l.b16 %v7449
    %v7763 = vunpack.c.h.b16 %v7449
    %v7764 = vunpack.c.l.b16 %v7450
    %v7765 = vunpack.c.h.b16 %v7450
    %v7766 = vunpack.c.l.b16 %v7451
    %v7767 = vunpack.c.h.b16 %v7451
    %v7768 = vunpack.c.l.b16 %v7452
    %v7769 = vunpack.c.h.b16 %v7452
    %v7770 = vunpack.c.l.b16 %v7453
    %v7771 = vunpack.c.h.b16 %v7453
    %v7772 = vunpack.c.l.b16 %v7454
    %v7773 = vunpack.c.h.b16 %v7454
    %v7774 = vunpack.c.l.b16 %v7455
    %v7775 = vunpack.c.h.b16 %v7455
    %v7776 = vunpack.c.l.b16 %v7456
    %v7777 = vunpack.c.h.b16 %v7456
    %v7778 = vunpack.c.l.b16 %v7457
    %v7779 = vunpack.c.h.b16 %v7457
    %v7780 = vunpack.c.l.b16 %v7458
    %v7781 = vunpack.c.h.b16 %v7458
    %v7782 = vunpack.c.l.b16 %v7459
    %v7783 = vunpack.c.h.b16 %v7459
    %v7784 = vunpack.c.l.b16 %v7460
    %v7785 = vunpack.c.h.b16 %v7460
    %v7786 = vunpack.c.l.b16 %v7461
    %v7787 = vunpack.c.h.b16 %v7461
    %v7788 = vunpack.c.l.b16 %v7462
    %v7789 = vunpack.c.h.b16 %v7462
    %v7790 = vunpack.c.l.b16 %v7463
    %v7791 = vunpack.c.h.b16 %v7463
    %v7792 = vunpack.c.l.b16 %v7464
    %v7793 = vunpack.c.h.b16 %v7464
    %v7794 = vunpack.c.l.b16 %v7465
    %v7795 = vunpack.c.h.b16 %v7465
    %v7796 = vunpack.c.l.b16 %v7466
    %v7797 = vunpack.c.h.b16 %v7466
    %v7798 = vunpack.c.l.b16 %v7467
    %v7799 = vunpack.c.h.b16 %v7467
    %v7800 = vunpack.c.l.b16 %v7468
    %v7801 = vunpack.c.h.b16 %v7468
    %v7802 = vunpack.c.l.b16 %v7469
    %v7803 = vunpack.c.h.b16 %v7469
    %v7804 = vunpack.c.l.b16 %v7470
    %v7805 = vunpack.c.h.b16 %v7470
    %v7806 = vunpack.c.l.b16 %v7471
    %v7807 = vunpack.c.h.b16 %v7471
    %v7808 = vunpack.c.l.b16 %v7472
    %v7809 = vunpack.c.h.b16 %v7472
    %v7810 = vunpack.c.l.b16 %v7473
    %v7811 = vunpack.c.h.b16 %v7473
    %v7812 = vunpack.c.l.b16 %v7474
    %v7813 = vunpack.c.h.b16 %v7474
    %v7814 = vunpack.c.l.b16 %v7475
    %v7815 = vunpack.c.h.b16 %v7475
    %v7816 = vunpack.c.l.b16 %v7476
    %v7817 = vunpack.c.h.b16 %v7476
    %v7818 = vpack.c.b16 %v7758, %v7754
    %v7819 = vpack.c.b16 %v7759, %v7755
    %v7820 = vpack.c.b16 %v7760, %v7756
    %v7821 = vpack.c.b16 %v7761, %v7757
    %v7822 = vpack.c.b16 %v7766, %v7762
    %v7823 = vpack.c.b16 %v7767, %v7763
    %v7824 = vpack.c.b16 %v7768, %v7764
    %v7825 = vpack.c.b16 %v7769, %v7765
    %v7826 = vpack.c.b16 %v7774, %v7770
    %v7827 = vpack.c.b16 %v7775, %v7771
    %v7828 = vpack.c.b16 %v7776, %v7772
    %v7829 = vpack.c.b16 %v7777, %v7773
    %v7830 = vpack.c.b16 %v7782, %v7778
    %v7831 = vpack.c.b16 %v7783, %v7779
    %v7832 = vpack.c.b16 %v7784, %v7780
    %v7833 = vpack.c.b16 %v7785, %v7781
    %v7834 = vpack.c.b16 %v7790, %v7786
    %v7835 = vpack.c.b16 %v7791, %v7787
    %v7836 = vpack.c.b16 %v7792, %v7788
    %v7837 = vpack.c.b16 %v7793, %v7789
    %v7838 = vpack.c.b16 %v7798, %v7794
    %v7839 = vpack.c.b16 %v7799, %v7795
    %v7840 = vpack.c.b16 %v7800, %v7796
    %v7841 = vpack.c.b16 %v7801, %v7797
    %v7842 = vpack.c.b16 %v7806, %v7802
    %v7843 = vpack.c.b16 %v7807, %v7803
    %v7844 = vpack.c.b16 %v7808, %v7804
    %v7845 = vpack.c.b16 %v7809, %v7805
    %v7846 = vpack.c.b16 %v7814, %v7810
    %v7847 = vpack.c.b16 %v7815, %v7811
    %v7848 = vpack.c.b16 %v7816, %v7812
    %v7849 = vpack.c.b16 %v7817, %v7813
    %7882 = vmatpush.bf16.msra.mxu0 %v7846
    %7883 = vmatpush.bf16.msra.mxu0 %v7842
    %7884 = vmatpush.bf16.msra.mxu0 %v7838
    %7885 = vmatpush.bf16.msra.mxu0 %v7834
    %7886 = vmatpush.bf16.msra.mxu0 %v7830
    %7887 = vmatpush.bf16.msra.mxu0 %v7826
    %7888 = vmatpush.bf16.msra.mxu0 %v7822
    %7889 = vmatpush.bf16.msra.mxu0 %v7818
    %7890 = vmatmul.bf16.gmra.mxu0 %v7444
    %v7891 = vpop.f32.mrf.mxu0
    %v7892 = vadd.f32 %v7680, %v7891
    %v7893 = vpop.f32.mrf.mxu0
    %7894 = vdwg.mxu0
    %7895 = vmatpush.bf16.msra.mxu0 %v7847
    %7896 = vmatpush.bf16.msra.mxu0 %v7843
    %7897 = vmatpush.bf16.msra.mxu0 %v7839
    %7898 = vmatpush.bf16.msra.mxu0 %v7835
    %7899 = vmatpush.bf16.msra.mxu0 %v7831
    %7900 = vmatpush.bf16.msra.mxu0 %v7827
    %7901 = vmatpush.bf16.msra.mxu0 %v7823
    %7902 = vmatpush.bf16.msra.mxu0 %v7819
    %7903 = vmatmul.bf16.gmra.mxu0 %v7444
    %v7904 = vpop.f32.mrf.mxu0
    %v7905 = vadd.f32 %v7693, %v7904
    %v7906 = vpop.f32.mrf.mxu0
    %7907 = vdwg.mxu0
    %7908 = vmatpush.bf16.msra.mxu0 %v7848
    %7909 = vmatpush.bf16.msra.mxu0 %v7844
    %7910 = vmatpush.bf16.msra.mxu0 %v7840
    %7911 = vmatpush.bf16.msra.mxu0 %v7836
    %7912 = vmatpush.bf16.msra.mxu0 %v7832
    %7913 = vmatpush.bf16.msra.mxu0 %v7828
    %7914 = vmatpush.bf16.msra.mxu0 %v7824
    %7915 = vmatpush.bf16.msra.mxu0 %v7820
    %7916 = vmatmul.bf16.gmra.mxu0 %v7444
    %v7917 = vpop.f32.mrf.mxu0
    %v7918 = vadd.f32 %v7706, %v7917
    %v7919 = vpop.f32.mrf.mxu0
    %7920 = vdwg.mxu0
    %7921 = vmatpush.bf16.msra.mxu0 %v7849
    %7922 = vmatpush.bf16.msra.mxu0 %v7845
    %7923 = vmatpush.bf16.msra.mxu0 %v7841
    %7924 = vmatpush.bf16.msra.mxu0 %v7837
    %7925 = vmatpush.bf16.msra.mxu0 %v7833
    %7926 = vmatpush.bf16.msra.mxu0 %v7829
    %7927 = vmatpush.bf16.msra.mxu0 %v7825
    %7928 = vmatpush.bf16.msra.mxu0 %v7821
    %7929 = vmatmul.bf16.gmra.mxu0 %v7444
    %v7930 = vpop.f32.mrf.mxu0
    %v7931 = vadd.f32 %v7719, %v7930
    %v7932 = vpop.f32.mrf.mxu0
    %7933 = vdwg.mxu0
    %v7934 = vld [vmem:[%s976] sm:$0xf]
    %v7936 = vperm.slane %v7934, 0
    %v7937 = vperm.slane %v7934, 1
    %v7938 = vperm.slane %v7934, 2
    %v7939 = vperm.slane %v7934, 3
    %v7944 = vadd.f32 %v7892, %v7936
    %v7945 = vadd.f32 %v7905, %v7937
    %v7946 = vadd.f32 %v7918, %v7938
    %v7947 = vadd.f32 %v7931, %v7939
    %v7948 = vxor.u32 %v7944, 2147483648
    %v7949 = vmul.f32 %v7948, 1.442695
    %v7950 = vpow.pop %v7949
    %v7951 = vadd.f32 %v7950, 1.0
    %v7952 = vrcp.pop %v7951
    %v7953 = vmul.f32 %v7951, %v7952
    %v7954 = vsub.f32 1.0, %v7953
    %v7955 = vmul.f32 %v7952, %v7954
    %v7956 = vadd.f32 %v7952, %v7955
    %vm7957 = vweird.f32 %v7951
    %vm7958 = vweird.f32 %v7952
    %vm7959 = vmor %vm7957, %vm7958
    %v7960 = vsel %vm7959, %v7952, %v7956
    %v7961 = vand.u32 2147483647, %v7951
    %vm7962 = vcmp.eq.f32.partialorder %v7961, 8.507059e+37
    %v7963 = vand.u32 %v7951, 2147483648
    %v7964 = vor.u32 1.1754944e-38, %v7963
    %v7965 = vsel %vm7962, %v7964, %v7960
    %v7966 = vmul.f32 1.0, %v7965
    %v7967 = vxor.u32 %v7945, 2147483648
    %v7968 = vmul.f32 %v7967, 1.442695
    %v7969 = vpow.pop %v7968
    %v7970 = vadd.f32 %v7969, 1.0
    %v7971 = vrcp.pop %v7970
    %v7972 = vmul.f32 %v7970, %v7971
    %v7973 = vsub.f32 1.0, %v7972
    %v7974 = vmul.f32 %v7971, %v7973
    %v7975 = vadd.f32 %v7971, %v7974
    %vm7976 = vweird.f32 %v7970
    %vm7977 = vweird.f32 %v7971
    %vm7978 = vmor %vm7976, %vm7977
    %v7979 = vsel %vm7978, %v7971, %v7975
    %v7980 = vand.u32 2147483647, %v7970
    %vm7981 = vcmp.eq.f32.partialorder %v7980, 8.507059e+37
    %v7982 = vand.u32 %v7970, 2147483648
    %v7983 = vor.u32 1.1754944e-38, %v7982
    %v7984 = vsel %vm7981, %v7983, %v7979
    %v7985 = vmul.f32 1.0, %v7984
    %v7986 = vtanh.pop %v7946
    %v7987 = vxor.u32 %v7947, 2147483648
    %v7988 = vmul.f32 %v7987, 1.442695
    %v7989 = vpow.pop %v7988
    %v7990 = vadd.f32 %v7989, 1.0
    %v7991 = vrcp.pop %v7990
    %v7992 = vmul.f32 %v7990, %v7991
    %v7993 = vsub.f32 1.0, %v7992
    %v7994 = vmul.f32 %v7991, %v7993
    %v7995 = vadd.f32 %v7991, %v7994
    %vm7996 = vweird.f32 %v7990
    %vm7997 = vweird.f32 %v7991
    %vm7998 = vmor %vm7996, %vm7997
    %v7999 = vsel %vm7998, %v7991, %v7995
    %v8000 = vand.u32 2147483647, %v7990
    %vm8001 = vcmp.eq.f32.partialorder %v8000, 8.507059e+37
    %v8002 = vand.u32 %v7990, 2147483648
    %v8003 = vor.u32 1.1754944e-38, %v8002
    %v8004 = vsel %vm8001, %v8003, %v7999
    %v8005 = vmul.f32 1.0, %v8004
    %v8006 = vmul.f32 %v7985, %v7014
    %v8007 = vmul.f32 %v7966, %v7986
    %v8008 = vadd.f32 %v8006, %v8007
    %v8009 = vtanh.pop %v8008
    %v8010 = vmul.f32 %v8005, %v8009
    %s8011 = scalar_lea.vmem [#allocation2], 14
    %8012 = vst [vmem:[%s8011] sm:$0x3] %v8010
    %v8013 = vld [vmem:[#allocation2] sm:$0x3]
    %v8014 = vld [vmem:[#allocation2 + $0x2] sm:$0x3]
    %v8015 = vld [vmem:[#allocation2 + $0x4] sm:$0x3]
    %v8016 = vld [vmem:[#allocation2 + $0x6] sm:$0x3]
    %v8017 = vld [vmem:[#allocation2 + $0x8] sm:$0x3]
    %v8018 = vld [vmem:[#allocation2 + $0xa] sm:$0x3]
    %v8019 = vld [vmem:[#allocation2 + $0xc] sm:$0x3]
    %v8020 = vld [vmem:[#allocation2 + $0xe] sm:$0x3]
    %v8021 = vld [vmem:[%s5] sm:$0x1]
    %v8023 = vperm.slane %v8021, 0
    %v8025 = vmul.f32 %v8013, %v8023
    %v8026 = vmul.f32 %v8014, %v8023
    %v8027 = vmul.f32 %v8015, %v8023
    %v8028 = vmul.f32 %v8016, %v8023
    %v8029 = vmul.f32 %v8017, %v8023
    %v8030 = vmul.f32 %v8018, %v8023
    %v8031 = vmul.f32 %v8019, %v8023
    %v8032 = vmul.f32 %v8020, %v8023
    %vm8033 = vcmask 1041408
    %v8034 = vsel %vm8033, %v8025, 0.0
    %8035 = vadd.xlane.f32.xlu0 %v8034
    %v8036 = vpop.xlane.xlu0 %8035
    %v8037 = vsel %vm8033, %v8026, 0.0
    %8038 = vadd.xlane.f32.xlu0 %v8037
    %v8039 = vpop.xlane.xlu0 %8038
    %v8040 = vsel %vm8033, %v8027, 0.0
    %8041 = vadd.xlane.f32.xlu0 %v8040
    %v8042 = vpop.xlane.xlu0 %8041
    %v8043 = vsel %vm8033, %v8028, 0.0
    %8044 = vadd.xlane.f32.xlu0 %v8043
    %v8045 = vpop.xlane.xlu0 %8044
    %v8046 = vsel %vm8033, %v8029, 0.0
    %8047 = vadd.xlane.f32.xlu0 %v8046
    %v8048 = vpop.xlane.xlu0 %8047
    %v8049 = vsel %vm8033, %v8030, 0.0
    %8050 = vadd.xlane.f32.xlu0 %v8049
    %v8051 = vpop.xlane.xlu0 %8050
    %v8052 = vsel %vm8033, %v8031, 0.0
    %8053 = vadd.xlane.f32.xlu0 %v8052
    %v8054 = vpop.xlane.xlu0 %8053
    %v8055 = vsel %vm8033, %v8032, 0.0
    %8056 = vadd.xlane.f32.xlu0 %v8055
    %v8057 = vpop.xlane.xlu0 %8056
    %s8058 = sld [smem:[#allocation3]]
    %v8059 = vstv %s8058
    %v8060 = vadd.f32 %v8036, %v8059
    %v8061 = vadd.f32 %v8039, %v8059
    %v8062 = vadd.f32 %v8042, %v8059
    %v8063 = vadd.f32 %v8045, %v8059
    %v8064 = vadd.f32 %v8048, %v8059
    %v8065 = vadd.f32 %v8051, %v8059
    %v8066 = vadd.f32 %v8054, %v8059
    %v8067 = vadd.f32 %v8057, %v8059
    %v8068 = vxor.u32 %v8060, 2147483648
    %v8069 = vxor.u32 %v8061, 2147483648
    %v8070 = vxor.u32 %v8062, 2147483648
    %v8071 = vxor.u32 %v8063, 2147483648
    %v8072 = vxor.u32 %v8064, 2147483648
    %v8073 = vxor.u32 %v8065, 2147483648
    %v8074 = vxor.u32 %v8066, 2147483648
    %v8075 = vxor.u32 %v8067, 2147483648
    %v8076 = vmul.f32 %v8068, 1.442695
    %v8077 = vpow.pop %v8076
    %v8078 = vmul.f32 %v8069, 1.442695
    %v8079 = vpow.pop %v8078
    %v8080 = vmul.f32 %v8070, 1.442695
    %v8081 = vpow.pop %v8080
    %v8082 = vmul.f32 %v8071, 1.442695
    %v8083 = vpow.pop %v8082
    %v8084 = vmul.f32 %v8072, 1.442695
    %v8085 = vpow.pop %v8084
    %v8086 = vmul.f32 %v8073, 1.442695
    %v8087 = vpow.pop %v8086
    %v8088 = vmul.f32 %v8074, 1.442695
    %v8089 = vpow.pop %v8088
    %v8090 = vmul.f32 %v8075, 1.442695
    %v8091 = vpow.pop %v8090
    %v8092 = vadd.f32 %v8077, 1.0
    %v8093 = vadd.f32 %v8079, 1.0
    %v8094 = vadd.f32 %v8081, 1.0
    %v8095 = vadd.f32 %v8083, 1.0
    %v8096 = vadd.f32 %v8085, 1.0
    %v8097 = vadd.f32 %v8087, 1.0
    %v8098 = vadd.f32 %v8089, 1.0
    %v8099 = vadd.f32 %v8091, 1.0
    %v8100 = vrcp.pop %v8092
    %v8101 = vmul.f32 %v8092, %v8100
    %v8102 = vsub.f32 1.0, %v8101
    %v8103 = vmul.f32 %v8100, %v8102
    %v8104 = vadd.f32 %v8100, %v8103
    %vm8105 = vweird.f32 %v8092
    %vm8106 = vweird.f32 %v8100
    %vm8107 = vmor %vm8105, %vm8106
    %v8108 = vsel %vm8107, %v8100, %v8104
    %v8109 = vand.u32 2147483647, %v8092
    %vm8110 = vcmp.eq.f32.partialorder %v8109, 8.507059e+37
    %v8111 = vand.u32 %v8092, 2147483648
    %v8112 = vor.u32 1.1754944e-38, %v8111
    %v8113 = vsel %vm8110, %v8112, %v8108
    %v8114 = vmul.f32 1.0, %v8113
    %v8115 = vrcp.pop %v8093
    %v8116 = vmul.f32 %v8093, %v8115
    %v8117 = vsub.f32 1.0, %v8116
    %v8118 = vmul.f32 %v8115, %v8117
    %v8119 = vadd.f32 %v8115, %v8118
    %vm8120 = vweird.f32 %v8093
    %vm8121 = vweird.f32 %v8115
    %vm8122 = vmor %vm8120, %vm8121
    %v8123 = vsel %vm8122, %v8115, %v8119
    %v8124 = vand.u32 2147483647, %v8093
    %vm8125 = vcmp.eq.f32.partialorder %v8124, 8.507059e+37
    %v8126 = vand.u32 %v8093, 2147483648
    %v8127 = vor.u32 1.1754944e-38, %v8126
    %v8128 = vsel %vm8125, %v8127, %v8123
    %v8129 = vmul.f32 1.0, %v8128
    %v8130 = vrcp.pop %v8094
    %v8131 = vmul.f32 %v8094, %v8130
    %v8132 = vsub.f32 1.0, %v8131
    %v8133 = vmul.f32 %v8130, %v8132
    %v8134 = vadd.f32 %v8130, %v8133
    %vm8135 = vweird.f32 %v8094
    %vm8136 = vweird.f32 %v8130
    %vm8137 = vmor %vm8135, %vm8136
    %v8138 = vsel %vm8137, %v8130, %v8134
    %v8139 = vand.u32 2147483647, %v8094
    %vm8140 = vcmp.eq.f32.partialorder %v8139, 8.507059e+37
    %v8141 = vand.u32 %v8094, 2147483648
    %v8142 = vor.u32 1.1754944e-38, %v8141
    %v8143 = vsel %vm8140, %v8142, %v8138
    %v8144 = vmul.f32 1.0, %v8143
    %v8145 = vrcp.pop %v8095
    %v8146 = vmul.f32 %v8095, %v8145
    %v8147 = vsub.f32 1.0, %v8146
    %v8148 = vmul.f32 %v8145, %v8147
    %v8149 = vadd.f32 %v8145, %v8148
    %vm8150 = vweird.f32 %v8095
    %vm8151 = vweird.f32 %v8145
    %vm8152 = vmor %vm8150, %vm8151
    %v8153 = vsel %vm8152, %v8145, %v8149
    %v8154 = vand.u32 2147483647, %v8095
    %vm8155 = vcmp.eq.f32.partialorder %v8154, 8.507059e+37
    %v8156 = vand.u32 %v8095, 2147483648
    %v8157 = vor.u32 1.1754944e-38, %v8156
    %v8158 = vsel %vm8155, %v8157, %v8153
    %v8159 = vmul.f32 1.0, %v8158
    %v8160 = vrcp.pop %v8096
    %v8161 = vmul.f32 %v8096, %v8160
    %v8162 = vsub.f32 1.0, %v8161
    %v8163 = vmul.f32 %v8160, %v8162
    %v8164 = vadd.f32 %v8160, %v8163
    %vm8165 = vweird.f32 %v8096
    %vm8166 = vweird.f32 %v8160
    %vm8167 = vmor %vm8165, %vm8166
    %v8168 = vsel %vm8167, %v8160, %v8164
    %v8169 = vand.u32 2147483647, %v8096
    %vm8170 = vcmp.eq.f32.partialorder %v8169, 8.507059e+37
    %v8171 = vand.u32 %v8096, 2147483648
    %v8172 = vor.u32 1.1754944e-38, %v8171
    %v8173 = vsel %vm8170, %v8172, %v8168
    %v8174 = vmul.f32 1.0, %v8173
    %v8175 = vrcp.pop %v8097
    %v8176 = vmul.f32 %v8097, %v8175
    %v8177 = vsub.f32 1.0, %v8176
    %v8178 = vmul.f32 %v8175, %v8177
    %v8179 = vadd.f32 %v8175, %v8178
    %vm8180 = vweird.f32 %v8097
    %vm8181 = vweird.f32 %v8175
    %vm8182 = vmor %vm8180, %vm8181
    %v8183 = vsel %vm8182, %v8175, %v8179
    %v8184 = vand.u32 2147483647, %v8097
    %vm8185 = vcmp.eq.f32.partialorder %v8184, 8.507059e+37
    %v8186 = vand.u32 %v8097, 2147483648
    %v8187 = vor.u32 1.1754944e-38, %v8186
    %v8188 = vsel %vm8185, %v8187, %v8183
    %v8189 = vmul.f32 1.0, %v8188
    %v8190 = vrcp.pop %v8098
    %v8191 = vmul.f32 %v8098, %v8190
    %v8192 = vsub.f32 1.0, %v8191
    %v8193 = vmul.f32 %v8190, %v8192
    %v8194 = vadd.f32 %v8190, %v8193
    %vm8195 = vweird.f32 %v8098
    %vm8196 = vweird.f32 %v8190
    %vm8197 = vmor %vm8195, %vm8196
    %v8198 = vsel %vm8197, %v8190, %v8194
    %v8199 = vand.u32 2147483647, %v8098
    %vm8200 = vcmp.eq.f32.partialorder %v8199, 8.507059e+37
    %v8201 = vand.u32 %v8098, 2147483648
    %v8202 = vor.u32 1.1754944e-38, %v8201
    %v8203 = vsel %vm8200, %v8202, %v8198
    %v8204 = vmul.f32 1.0, %v8203
    %v8205 = vrcp.pop %v8099
    %v8206 = vmul.f32 %v8099, %v8205
    %v8207 = vsub.f32 1.0, %v8206
    %v8208 = vmul.f32 %v8205, %v8207
    %v8209 = vadd.f32 %v8205, %v8208
    %vm8210 = vweird.f32 %v8099
    %vm8211 = vweird.f32 %v8205
    %vm8212 = vmor %vm8210, %vm8211
    %v8213 = vsel %vm8212, %v8205, %v8209
    %v8214 = vand.u32 2147483647, %v8099
    %vm8215 = vcmp.eq.f32.partialorder %v8214, 8.507059e+37
    %v8216 = vand.u32 %v8099, 2147483648
    %v8217 = vor.u32 1.1754944e-38, %v8216
    %v8218 = vsel %vm8215, %v8217, %v8213
    %v8219 = vmul.f32 1.0, %v8218
    %v8228 = vlaneseq
    %v8229 = vand.u32 %v8228, 127
    %v8230 = vperm.slane %v8114, %v8229
    %v8231 = vperm.slane %v8129, %v8229
    %v8232 = vperm.slane %v8144, %v8229
    %v8233 = vperm.slane %v8159, %v8229
    %v8234 = vperm.slane %v8174, %v8229
    %v8235 = vperm.slane %v8189, %v8229
    %v8236 = vperm.slane %v8204, %v8229
    %v8237 = vperm.slane %v8219, %v8229
    %vm8238 = vcmask 1041409
    %v8239 = vsel %vm8238, %v8231, %v8230
    %vm8240 = vcmask 1042434
    %v8241 = vsel %vm8240, %v8232, %v8239
    %vm8242 = vcmask 1043459
    %v8243 = vsel %vm8242, %v8233, %v8241
    %vm8244 = vcmask 1044484
    %v8245 = vsel %vm8244, %v8234, %v8243
    %vm8246 = vcmask 1045509
    %v8247 = vsel %vm8246, %v8235, %v8245
    %vm8248 = vcmask 1046534
    %v8249 = vsel %vm8248, %v8236, %v8247
    %vm8250 = vcmask 1047559
    %v8251 = vsel %vm8250, %v8237, %v8249
    %vm8253 = vcmask 15360
    %8254 = vst.msk [vmem:[%s7] sm:$0xff] %vm8253, %v8251
    // Predicated region
    $region38: #{stumble_net_forward.1} parent=1 // pred_check
      _
    $region39: #{stumble_net_forward.1} parent=1 // pred_check_branch
      %8256 = sbr.rel (0) target = $region41
    $region40: #{stumble_net_forward.1} parent=1 // pred_region
      _
    $region41: #{stumble_net_forward.1} parent=1 // pred_fallthru
      _
    // Predicated region
    $region42: #{stumble_net_forward.1} parent=1 // pred_check
      _
    $region43: #{stumble_net_forward.1} parent=1 // pred_check_branch
      %8258 = sbr.rel (0) target = $region45
    $region44: #{stumble_net_forward.1} parent=1 // pred_region
      _
    $region45: #{stumble_net_forward.1} parent=1 // pred_fallthru
      _
    %8259 = vsyncpa [#allocation5], 1
    %8260 = vsyncpa [#allocation7], 1

</llo_original>
